<compile_context>
chip_gen: v5e
topology: v5e:2x2
jax: 0.10.0
libtpu: 0.0.40
codegen_flags: <defaults>
</compile_context>

<pallas_src>
import functools

import jax
import jax.numpy as jnp
from jax.experimental import pallas as pl
from jax.experimental.pallas import tpu as pltpu

MXU_DTYPE = jnp.bfloat16   # MXU operand dtype; accumulation is always f32
CPAD = 128                 # working channel width (multiple of 128 -> lane dense)


def _round_up(x, m):
    return (x + m - 1) // m * m


# ---------------------------------------------------------------------------
# Kernel 1: (M,K)@(K,N) + bias + optional ReLU with a single full-K block.
# Used only for the illumination layer (K=675 padded to 768, N=128), so the
# whole K fits in VMEM and no accumulator / K grid axis is needed.
# ---------------------------------------------------------------------------
def _matmul_kernel(x_ref, w_ref, b_ref, o_ref, *, relu):
    r = jnp.dot(x_ref[...], w_ref[...],
                preferred_element_type=jnp.float32) + b_ref[...]
    if relu:
        r = jnp.maximum(r, 0.0)
    o_ref[...] = r.astype(o_ref.dtype)


def matmul_bias_act(x, w, b, relu=False, out_dtype=None):
    """x: (M,K), w: (K,N), b: (N,) -> (M,N). Single K block (K must fit VMEM)."""
    M, K = x.shape
    K2, N = w.shape
    assert K == K2
    out_dtype = MXU_DTYPE if out_dtype is None else out_dtype

    Kp = _round_up(K, 128)
    Np = _round_up(N, 128)
    assert Kp <= 4096, "single-K-block matmul only; K too large for VMEM"
    tn = Np if Np <= 512 else 128
    tm = min(_round_up(M, 8), 512)
    Mp = _round_up(M, tm)

    xp = jnp.pad(x, ((0, Mp - M), (0, Kp - K))).astype(MXU_DTYPE)
    wp = jnp.pad(w, ((0, Kp - K), (0, Np - N))).astype(MXU_DTYPE)
    bp = jnp.pad(b.reshape(1, -1), ((0, 0), (0, Np - N))).astype(jnp.float32)

    grid = (Mp // tm, Np // tn)
    out = pl.pallas_call(
        functools.partial(_matmul_kernel, relu=relu),
        out_shape=jax.ShapeDtypeStruct((Mp, Np), out_dtype),
        grid=grid,
        in_specs=[
            pl.BlockSpec((tm, Kp), lambda i, j: (i, 0)),
            pl.BlockSpec((Kp, tn), lambda i, j: (0, j)),
            pl.BlockSpec((1, tn), lambda i, j: (0, j)),
        ],
        out_specs=pl.BlockSpec((tm, tn), lambda i, j: (i, j)),
        compiler_params=pltpu.CompilerParams(
            dimension_semantics=("parallel", "parallel"),
            vmem_limit_bytes=32 * 1024 * 1024),
        cost_estimate=pl.CostEstimate(
            flops=2 * Mp * Np * Kp,
            transcendentals=0,
            bytes_accessed=2 * (Mp * Kp + Kp * Np + Mp * Np)),
    )(xp, wp, bp)
    return out[:M, :N]


# ---------------------------------------------------------------------------
# Kernel 2: 3x3 conv (pad=1, stride=1) + bias + optional ReLU.
#   - grid=(B,): whole image per step; the zero halo lives in an f32 VMEM
#     scratch built in-kernel (no wrapper-side jnp.pad, no duplicate inputs).
#   - each tap is one (rows*W, C) x (C, D) MXU dot; rows = H when the
#     flattened reshape is f32-tile aligned (W % 8 == 0), else one row at a
#     time (used only at the tiny pooled level).
#   - optional fused epilogue: relu(conv(x)) @ proj_w + proj_b emitted instead
#     of the conv activation (used for d1b + per-head 1x1 output conv).
# ---------------------------------------------------------------------------
def _conv3x3_kernel(*refs, relu, proj):
    if proj:
        x_ref, w_ref, b_ref, pw_ref, pb_ref, p_ref, xpad_ref = refs
        o_ref = None
    else:
        x_ref, w_ref, b_ref, o_ref, xpad_ref = refs
        pw_ref = pb_ref = p_ref = None

    _, H, W, C = x_ref.shape
    D = w_ref.shape[3]

    # Build the zero-halo'd image in VMEM (border re-zeroed every step so the
    # kernel stays correct when the grid is sharded across TensorCores).
    xpad_ref[...] = jnp.zeros_like(xpad_ref)
    xpad_ref[1:H + 1, 1:W + 1, :] = x_ref[0].astype(xpad_ref.dtype)

    rows = H if (W % 8 == 0) else 1       # row blocking for the tap dots
    n_blocks = H // rows

    for blk in range(n_blocks):
        hs = blk * rows
        acc = jnp.zeros((rows * W, D), jnp.float32)
        for ki in range(3):
            for kj in range(3):
                win = xpad_ref[hs + ki:hs + ki + rows, kj:kj + W, :]
                win = win.reshape(rows * W, C).astype(MXU_DTYPE)
                acc = acc + jnp.dot(win, w_ref[ki, kj],
                                    preferred_element_type=jnp.float32)
        acc = acc + b_ref[...]
        if relu:
            acc = jnp.maximum(acc, 0.0)
        if proj:
            P = pw_ref.shape[1]
            hv = jnp.dot(acc.astype(MXU_DTYPE), pw_ref[...],
                         preferred_element_type=jnp.float32) + pb_ref[...]
            p_ref[0, hs:hs + rows] = hv.reshape(rows, W, P).astype(p_ref.dtype)
        else:
            o_ref[0, hs:hs + rows] = acc.reshape(rows, W, D).astype(o_ref.dtype)


def conv3x3(x, w, b, relu=True, proj_w=None, proj_b=None):
    """x: [B,H,W,C] (unpadded), w: [3,3,C,D], b: [D].

    Returns [B,H,W,D] bf16, or, when proj_w/proj_b are given, the fused
    relu(conv3x3(x)+b) @ proj_w + proj_b as [B,H,W,P] f32 (the conv activation
    is never written to HBM).
    """
    B, H, W, C = x.shape
    D = w.shape[-1]
    proj = proj_w is not None

    xq = x.astype(MXU_DTYPE)
    wq = w.astype(MXU_DTYPE)
    b2 = b.reshape(1, D).astype(jnp.float32)

    in_specs = [
        pl.BlockSpec((1, H, W, C), lambda bi: (bi, 0, 0, 0)),
        pl.BlockSpec((3, 3, C, D), lambda bi: (0, 0, 0, 0)),
        pl.BlockSpec((1, D), lambda bi: (0, 0)),
    ]
    inputs = [xq, wq, b2]

    if proj:
        P = proj_w.shape[-1]
        in_specs += [
            pl.BlockSpec((D, P), lambda bi: (0, 0)),
            pl.BlockSpec((1, P), lambda bi: (0, 0)),
        ]
        inputs += [proj_w.astype(MXU_DTYPE),
                   proj_b.reshape(1, P).astype(jnp.float32)]
        out_shape = jax.ShapeDtypeStruct((B, H, W, P), jnp.float32)
        out_specs = pl.BlockSpec((1, H, W, P), lambda bi: (bi, 0, 0, 0))
        flops_extra = 2 * B * H * W * D * P
        out_bytes = B * H * W * P * 4
    else:
        out_shape = jax.ShapeDtypeStruct((B, H, W, D), MXU_DTYPE)
        out_specs = pl.BlockSpec((1, H, W, D), lambda bi: (bi, 0, 0, 0))
        flops_extra = 0
        out_bytes = B * H * W * D * 2

    return pl.pallas_call(
        functools.partial(_conv3x3_kernel, relu=relu, proj=proj),
        out_shape=out_shape,
        grid=(B,),
        in_specs=in_specs,
        out_specs=out_specs,
        scratch_shapes=[pltpu.VMEM((H + 2, W + 2, C), jnp.float32)],
        compiler_params=pltpu.CompilerParams(
            dimension_semantics=("parallel",),
            vmem_limit_bytes=32 * 1024 * 1024),
        cost_estimate=pl.CostEstimate(
            flops=2 * B * H * W * 9 * C * D + flops_extra,
            transcendentals=0,
            bytes_accessed=B * H * W * C * 2 + 9 * C * D * 2 + out_bytes),
    )(*inputs)


# ---------------------------------------------------------------------------
# JAX glue.
# TODO(synk): fuse maxpool into the e1b conv epilogue and upsample+concat into
# the d1a conv kernel (remaining HBM-pass eliminations from the review).
# ---------------------------------------------------------------------------
def maxpool2(x):
    B, H, W, C = x.shape
    return x.reshape(B, H // 2, 2, W // 2, 2, C).max(axis=(2, 4))


def upsample2(x):
    return jnp.repeat(jnp.repeat(x, 2, axis=1), 2, axis=2)


# ---------------------------------------------------------------------------
# Parameters: per-head UNets built then fused block-diagonally so one set of
# kernels serves all heads (lane-dense, one pallas_call per layer).
# ---------------------------------------------------------------------------
def _conv_param(key, kh, kw, cin, cout):
    kw_key, kb_key = jax.random.split(key)
    fan_in = kh * kw * cin
    w = jax.random.normal(kw_key, (kh, kw, cin, cout), jnp.float32) * (2.0 / fan_in) ** 0.5
    b = jax.random.normal(kb_key, (cout,), jnp.float32) * 0.01
    return w, b


def init_params(key, num_heads, num_channels=1, num_filters=16):
    nf = num_filters
    cpad = max(CPAD, _round_up(2 * nf * num_heads, 128))
    hpad = _round_up(num_heads, 128)
    k_ill, k_heads = jax.random.split(key)

    # IlluminationLayer: 675 -> num_channels per-pixel channel mix (no bias).
    illum_w = jax.random.uniform(k_ill, (675, num_channels), jnp.float32)
    illum_w = jnp.pad(illum_w, ((0, 0), (0, cpad - num_channels)))
    illum_b = jnp.zeros((cpad,), jnp.float32)

    per_head = []
    for hk in jax.random.split(k_heads, num_heads):
        ks = jax.random.split(hk, 7)
        per_head.append({
            "e1a": _conv_param(ks[0], 3, 3, num_channels, nf),
            "e1b": _conv_param(ks[1], 3, 3, nf, nf),
            "ba":  _conv_param(ks[2], 3, 3, nf, 2 * nf),
            "bb":  _conv_param(ks[3], 3, 3, 2 * nf, 2 * nf),
            "d1a": _conv_param(ks[4], 3, 3, 3 * nf, nf),
            "d1b": _conv_param(ks[5], 3, 3, nf, nf),
            "out": _conv_param(ks[6], 1, 1, nf, 1),
        })

    def pad_conv(w, b, cin_p, cout_p):
        w = jnp.pad(w, ((0, 0), (0, 0),
                        (0, cin_p - w.shape[2]), (0, cout_p - w.shape[3])))
        b = jnp.pad(b, (0, cout_p - b.shape[0]))
        return w, b

    def fuse_shared(name):                      # shared input across heads
        w = jnp.concatenate([p[name][0] for p in per_head], axis=-1)
        b = jnp.concatenate([p[name][1] for p in per_head], axis=-1)
        return pad_conv(w, b, cpad, cpad)

    def fuse_blockdiag(name, cin_h, cout_h):    # independent per-head channels
        w = jnp.zeros((3, 3, num_heads * cin_h, num_heads * cout_h), jnp.float32)
        bs = []
        for i, p in enumerate(per_head):
            wi, bi = p[name]
            w = w.at[:, :, i * cin_h:(i + 1) * cin_h,
                     i * cout_h:(i + 1) * cout_h].set(wi)
            bs.append(bi)
        return pad_conv(w, jnp.concatenate(bs, axis=-1), cpad, cpad)

    def fuse_d1a():
        # fused skip-concat layout is [up padded to cpad | e1 padded to cpad]
        w = jnp.zeros((3, 3, 2 * cpad, num_heads * nf), jnp.float32)
        bs = []
        for i, p in enumerate(per_head):
            wi, bi = p["d1a"]                   # rows: [0:2nf]=up, [2nf:3nf]=skip
            w = w.at[:, :, i * 2 * nf:(i + 1) * 2 * nf,
                     i * nf:(i + 1) * nf].set(wi[:, :, :2 * nf, :])
            w = w.at[:, :, cpad + i * nf:cpad + (i + 1) * nf,
                     i * nf:(i + 1) * nf].set(wi[:, :, 2 * nf:, :])
            bs.append(bi)
        return pad_conv(w, jnp.concatenate(bs, axis=-1), 2 * cpad, cpad)

    def fuse_out():                             # all heads' 1x1, lane-padded
        w = jnp.zeros((cpad, hpad), jnp.float32)
        b = jnp.zeros((hpad,), jnp.float32)
        for i, p in enumerate(per_head):
            wi, bi = p["out"]
            w = w.at[i * nf:(i + 1) * nf, i].set(wi[0, 0, :, 0])
            b = b.at[i].set(bi[0])
        return w, b

    params = {"illum_w": illum_w, "illum_b": illum_b}
    params["e1a_w"], params["e1a_b"] = fuse_shared("e1a")
    params["e1b_w"], params["e1b_b"] = fuse_blockdiag("e1b", nf, nf)
    params["ba_w"], params["ba_b"] = fuse_blockdiag("ba", nf, 2 * nf)
    params["bb_w"], params["bb_b"] = fuse_blockdiag("bb", 2 * nf, 2 * nf)
    params["d1a_w"], params["d1a_b"] = fuse_d1a()
    params["d1b_w"], params["d1b_b"] = fuse_blockdiag("d1b", nf, nf)
    params["out_w"], params["out_b"] = fuse_out()
    return params


# ---------------------------------------------------------------------------
# Full forward (skip=False path): one fused multi-head UNet
# ---------------------------------------------------------------------------
def model_forward(x_nchw, params, num_heads):
    # TODO(synk): fold this transpose + K-pad + cast into the illumination kernel.
    x = jnp.transpose(x_nchw, (0, 2, 3, 1)).astype(jnp.float32)   # [B,H,W,675]
    B, H, W, Cin = x.shape

    # Illumination: per-pixel 675 -> num_channels mix (single full-K block).
    ill = matmul_bias_act(x.reshape(B * H * W, Cin),
                          params["illum_w"], params["illum_b"], relu=False)
    ill = ill.reshape(B, H, W, -1)                                 # channel-padded

    e1 = conv3x3(ill, params["e1a_w"], params["e1a_b"])
    e1 = conv3x3(e1, params["e1b_w"], params["e1b_b"])
    pool = maxpool2(e1)                    # TODO(synk): fuse into e1b epilogue
    bn = conv3x3(pool, params["ba_w"], params["ba_b"])
    bn = conv3x3(bn, params["bb_w"], params["bb_b"])
    up = upsample2(bn)                     # TODO(synk): fuse up+concat into d1a
    cat = jnp.concatenate([up, e1], axis=-1)
    d1 = conv3x3(cat, params["d1a_w"], params["d1a_b"])

    # d1b conv + ReLU + fused per-head 1x1 projection (d1b never hits HBM).
    heads = conv3x3(d1, params["d1b_w"], params["d1b_b"],
                    proj_w=params["out_w"], proj_b=params["out_b"])
    heads = heads[..., :num_heads]                                 # [B,H,W,heads]
    return jnp.transpose(heads, (3, 0, 1, 2))[:, :, None, :, :]    # [heads,B,1,H,W]


if __name__ == "__main__":
    num_heads = 2
    num_channels = 1
    num_filters = 16
    B, H, W = 2, 8, 8

    key = jax.random.PRNGKey(0)
    k_params, k_x = jax.random.split(key)
    params = init_params(k_params, num_heads, num_channels, num_filters)
    x = jax.random.normal(k_x, (B, 675, H, W), jnp.float32)

    fwd = jax.jit(functools.partial(model_forward, num_heads=num_heads))
    out = fwd(x, params)
    jax.block_until_ready(out)
    assert out.shape == (num_heads, B, 1, H, W), out.shape
    assert out.dtype == jnp.float32
    print("KERNEL_OK")
</pallas_src>

<mosaic_0001>
module attributes {stable_mosaic.version = 11 : i64} {
  func.func @_matmul_kernel(%arg0: i32, %arg1: i32, %arg2: memref<128x768xbf16, #tpu.memory_space<vmem>>, %arg3: memref<768x128xbf16, #tpu.memory_space<vmem>>, %arg4: memref<1x128xf32, #tpu.memory_space<vmem>>, %arg5: memref<128x128xbf16, #tpu.memory_space<vmem>>) attributes {dimension_semantics = [#tpu.dimension_semantics<parallel>, #tpu.dimension_semantics<parallel>], iteration_bounds = array<i64: 1, 1>, scalar_prefetch = 0 : i64, scratch_operands = 0 : i64, tpu.core_type = #tpu.core_type<tc>, window_params = [{transform_indices = @transform_0, window_bounds = array<i64: 128, 768>}, {transform_indices = @transform_1, window_bounds = array<i64: 768, 128>}, {transform_indices = @transform_2, window_bounds = array<i64: 1, 128>}, {transform_indices = @transform_3, window_bounds = array<i64: 128, 128>}]} {
    %c0 = arith.constant 0 : index
    %c0_0 = arith.constant 0 : index
    %0 = vector.load %arg2[%c0, %c0_0] : memref<128x768xbf16, #tpu.memory_space<vmem>>, vector<128x768xbf16>
    %c0_1 = arith.constant 0 : index
    %c0_2 = arith.constant 0 : index
    %1 = vector.load %arg3[%c0_1, %c0_2] : memref<768x128xbf16, #tpu.memory_space<vmem>>, vector<768x128xbf16>
    %cst = arith.constant dense<0.000000e+00> : vector<128x128xf32>
    %2 = tpu.matmul %0, %1, %cst {dimension_numbers = #tpu.dot_dimension_numbers<[1], [0], [0], [1], [0, 0, 1, 1], [], []>} : vector<128x768xbf16>, vector<768x128xbf16>, vector<128x128xf32> -> vector<128x128xf32>
    %c0_3 = arith.constant 0 : index
    %c0_4 = arith.constant 0 : index
    %3 = vector.load %arg4[%c0_3, %c0_4] : memref<1x128xf32, #tpu.memory_space<vmem>>, vector<1x128xf32>
    %4 = vector.broadcast %3 : vector<1x128xf32> to vector<128x128xf32>
    %5 = arith.addf %2, %4 : vector<128x128xf32>
    %6 = arith.truncf %5 : vector<128x128xf32> to vector<128x128xbf16>
    %c0_5 = arith.constant 0 : index
    %c0_6 = arith.constant 0 : index
    %7 = vector.load %arg5[%c0_5, %c0_6] : memref<128x128xbf16, #tpu.memory_space<vmem>>, vector<128x128xbf16>
    tpu.vector_store %arg5[%c0_5, %c0_6], %6 {strides = array<i32>} : memref<128x128xbf16, #tpu.memory_space<vmem>>, vector<128x128xbf16>,
    return
  }
  func.func @transform_0(%arg0: i32, %arg1: i32) -> (i32, i32) {
    %c0_i32 = arith.constant 0 : i32
    %c0_i32_0 = arith.constant 0 : i32
    return %arg0, %c0_i32 : i32, i32
  }
  func.func @transform_1(%arg0: i32, %arg1: i32) -> (i32, i32) {
    %c0_i32 = arith.constant 0 : i32
    %c0_i32_0 = arith.constant 0 : i32
    return %c0_i32, %arg1 : i32, i32
  }
  func.func @transform_2(%arg0: i32, %arg1: i32) -> (i32, i32) {
    %c0_i32 = arith.constant 0 : i32
    %c0_i32_0 = arith.constant 0 : i32
    return %c0_i32, %arg1 : i32, i32
  }
  func.func @transform_3(%arg0: i32, %arg1: i32) -> (i32, i32) {
    %c0_i32 = arith.constant 0 : i32
    return %arg0, %arg1 : i32, i32
  }
}

module attributes {stable_mosaic.version = 11 : i64} {
  func.func @_conv3x3_kernel(%arg0: i32, %arg1: memref<1x8x8x128xbf16, #tpu.memory_space<vmem>>, %arg2: memref<3x3x128x128xbf16, #tpu.memory_space<vmem>>, %arg3: memref<1x128xf32, #tpu.memory_space<vmem>>, %arg4: memref<1x8x8x128xbf16, #tpu.memory_space<vmem>>, %arg5: memref<10x10x128xf32, #tpu.memory_space<vmem>>) attributes {dimension_semantics = [#tpu.dimension_semantics<parallel>], iteration_bounds = array<i64: 2>, scalar_prefetch = 0 : i64, scratch_operands = 1 : i64, tpu.core_type = #tpu.core_type<tc>, window_params = [{transform_indices = @transform_0, window_bounds = array<i64: 1, 8, 8, 128>}, {pipeline_mode = #tpu.pipeline_mode<synchronous>, transform_indices = @transform_1, window_bounds = array<i64: 3, 3, 128, 128>}, {pipeline_mode = #tpu.pipeline_mode<synchronous>, transform_indices = @transform_2, window_bounds = array<i64: 1, 128>}, {transform_indices = @transform_3, window_bounds = array<i64: 1, 8, 8, 128>}]} {
    %cst = arith.constant 0.000000e+00 : f32
    %0 = vector.broadcast %cst : f32 to vector<10x10x128xf32>
    %c0 = arith.constant 0 : index
    %c0_0 = arith.constant 0 : index
    %c0_1 = arith.constant 0 : index
    %1 = vector.load %arg5[%c0, %c0_0, %c0_1] : memref<10x10x128xf32, #tpu.memory_space<vmem>>, vector<10x10x128xf32>
    tpu.vector_store %arg5[%c0, %c0_0, %c0_1], %0 {strides = array<i32>} : memref<10x10x128xf32, #tpu.memory_space<vmem>>, vector<10x10x128xf32>,
    %c0_2 = arith.constant 0 : index
    %c0_3 = arith.constant 0 : index
    %c0_4 = arith.constant 0 : index
    %c0_5 = arith.constant 0 : index
    %2 = vector.load %arg1[%c0_2, %c0_3, %c0_4, %c0_5] : memref<1x8x8x128xbf16, #tpu.memory_space<vmem>>, vector<1x8x8x128xbf16>
    %3 = vector.shape_cast %2 : vector<1x8x8x128xbf16> to vector<8x8x128xbf16>
    %4 = arith.extf %3 : vector<8x8x128xbf16> to vector<8x8x128xf32>
    %c1 = arith.constant 1 : index
    %c1_6 = arith.constant 1 : index
    %c0_7 = arith.constant 0 : index
    %5 = vector.load %arg5[%c1, %c1_6, %c0_7] : memref<10x10x128xf32, #tpu.memory_space<vmem>>, vector<8x8x128xf32>
    tpu.vector_store %arg5[%c1, %c1_6, %c0_7], %4 {strides = array<i32>} : memref<10x10x128xf32, #tpu.memory_space<vmem>>, vector<8x8x128xf32>,
    %cst_8 = arith.constant 0.000000e+00 : f32
    %6 = vector.broadcast %cst_8 : f32 to vector<64x128xf32>
    %c0_9 = arith.constant 0 : index
    %c0_10 = arith.constant 0 : index
    %c0_11 = arith.constant 0 : index
    %7 = vector.load %arg5[%c0_9, %c0_10, %c0_11] : memref<10x10x128xf32, #tpu.memory_space<vmem>>, vector<8x8x128xf32>
    %8 = vector.shape_cast %7 : vector<8x8x128xf32> to vector<64x128xf32>
    %9 = arith.truncf %8 : vector<64x128xf32> to vector<64x128xbf16>
    %c0_12 = arith.constant 0 : index
    %c0_13 = arith.constant 0 : index
    %c0_14 = arith.constant 0 : index
    %c0_15 = arith.constant 0 : index
    %10 = vector.load %arg2[%c0_12, %c0_13, %c0_14, %c0_15] : memref<3x3x128x128xbf16, #tpu.memory_space<vmem>>, vector<1x1x128x128xbf16>
    %11 = vector.shape_cast %10 : vector<1x1x128x128xbf16> to vector<128x128xbf16>
    %cst_16 = arith.constant dense<0.000000e+00> : vector<64x128xf32>
    %12 = tpu.matmul %9, %11, %cst_16 {dimension_numbers = #tpu.dot_dimension_numbers<[1], [0], [0], [1], [0, 0, 1, 1], [], []>} : vector<64x128xbf16>, vector<128x128xbf16>, vector<64x128xf32> -> vector<64x128xf32>
    %13 = arith.addf %6, %12 : vector<64x128xf32>
    %c0_17 = arith.constant 0 : index
    %c1_18 = arith.constant 1 : index
    %c0_19 = arith.constant 0 : index
    %14 = vector.load %arg5[%c0_17, %c1_18, %c0_19] : memref<10x10x128xf32, #tpu.memory_space<vmem>>, vector<8x8x128xf32>
    %15 = vector.shape_cast %14 : vector<8x8x128xf32> to vector<64x128xf32>
    %16 = arith.truncf %15 : vector<64x128xf32> to vector<64x128xbf16>
    %c0_20 = arith.constant 0 : index
    %c1_21 = arith.constant 1 : index
    %c0_22 = arith.constant 0 : index
    %c0_23 = arith.constant 0 : index
    %17 = vector.load %arg2[%c0_20, %c1_21, %c0_22, %c0_23] : memref<3x3x128x128xbf16, #tpu.memory_space<vmem>>, vector<1x1x128x128xbf16>
    %18 = vector.shape_cast %17 : vector<1x1x128x128xbf16> to vector<128x128xbf16>
    %cst_24 = arith.constant dense<0.000000e+00> : vector<64x128xf32>
    %19 = tpu.matmul %16, %18, %cst_24 {dimension_numbers = #tpu.dot_dimension_numbers<[1], [0], [0], [1], [0, 0, 1, 1], [], []>} : vector<64x128xbf16>, vector<128x128xbf16>, vector<64x128xf32> -> vector<64x128xf32>
    %20 = arith.addf %13, %19 : vector<64x128xf32>
    %c0_25 = arith.constant 0 : index
    %c2 = arith.constant 2 : index
    %c0_26 = arith.constant 0 : index
    %21 = vector.load %arg5[%c0_25, %c2, %c0_26] : memref<10x10x128xf32, #tpu.memory_space<vmem>>, vector<8x8x128xf32>
    %22 = vector.shape_cast %21 : vector<8x8x128xf32> to vector<64x128xf32>
    %23 = arith.truncf %22 : vector<64x128xf32> to vector<64x128xbf16>
    %c0_27 = arith.constant 0 : index
    %c2_28 = arith.constant 2 : index
    %c0_29 = arith.constant 0 : index
    %c0_30 = arith.constant 0 : index
    %24 = vector.load %arg2[%c0_27, %c2_28, %c0_29, %c0_30] : memref<3x3x128x128xbf16, #tpu.memory_space<vmem>>, vector<1x1x128x128xbf16>
    %25 = vector.shape_cast %24 : vector<1x1x128x128xbf16> to vector<128x128xbf16>
    %cst_31 = arith.constant dense<0.000000e+00> : vector<64x128xf32>
    %26 = tpu.matmul %23, %25, %cst_31 {dimension_numbers = #tpu.dot_dimension_numbers<[1], [0], [0], [1], [0, 0, 1, 1], [], []>} : vector<64x128xbf16>, vector<128x128xbf16>, vector<64x128xf32> -> vector<64x128xf32>
    %27 = arith.addf %20, %26 : vector<64x128xf32>
    %c1_32 = arith.constant 1 : index
    %c0_33 = arith.constant 0 : index
    %c0_34 = arith.constant 0 : index
    %28 = vector.load %arg5[%c1_32, %c0_33, %c0_34] : memref<10x10x128xf32, #tpu.memory_space<vmem>>, vector<8x8x128xf32>
    %29 = vector.shape_cast %28 : vector<8x8x128xf32> to vector<64x128xf32>
    %30 = arith.truncf %29 : vector<64x128xf32> to vector<64x128xbf16>
    %c1_35 = arith.constant 1 : index
    %c0_36 = arith.constant 0 : index
    %c0_37 = arith.constant 0 : index
    %c0_38 = arith.constant 0 : index
    %31 = vector.load %arg2[%c1_35, %c0_36, %c0_37, %c0_38] : memref<3x3x128x128xbf16, #tpu.memory_space<vmem>>, vector<1x1x128x128xbf16>
    %32 = vector.shape_cast %31 : vector<1x1x128x128xbf16> to vector<128x128xbf16>
    %cst_39 = arith.constant dense<0.000000e+00> : vector<64x128xf32>
    %33 = tpu.matmul %30, %32, %cst_39 {dimension_numbers = #tpu.dot_dimension_numbers<[1], [0], [0], [1], [0, 0, 1, 1], [], []>} : vector<64x128xbf16>, vector<128x128xbf16>, vector<64x128xf32> -> vector<64x128xf32>
    %34 = arith.addf %27, %33 : vector<64x128xf32>
    %c1_40 = arith.constant 1 : index
    %c1_41 = arith.constant 1 : index
    %c0_42 = arith.constant 0 : index
    %35 = vector.load %arg5[%c1_40, %c1_41, %c0_42] : memref<10x10x128xf32, #tpu.memory_space<vmem>>, vector<8x8x128xf32>
    %36 = vector.shape_cast %35 : vector<8x8x128xf32> to vector<64x128xf32>
    %37 = arith.truncf %36 : vector<64x128xf32> to vector<64x128xbf16>
    %c1_43 = arith.constant 1 : index
    %c1_44 = arith.constant 1 : index
    %c0_45 = arith.constant 0 : index
    %c0_46 = arith.constant 0 : index
    %38 = vector.load %arg2[%c1_43, %c1_44, %c0_45, %c0_46] : memref<3x3x128x128xbf16, #tpu.memory_space<vmem>>, vector<1x1x128x128xbf16>
    %39 = vector.shape_cast %38 : vector<1x1x128x128xbf16> to vector<128x128xbf16>
    %cst_47 = arith.constant dense<0.000000e+00> : vector<64x128xf32>
    %40 = tpu.matmul %37, %39, %cst_47 {dimension_numbers = #tpu.dot_dimension_numbers<[1], [0], [0], [1], [0, 0, 1, 1], [], []>} : vector<64x128xbf16>, vector<128x128xbf16>, vector<64x128xf32> -> vector<64x128xf32>
    %41 = arith.addf %34, %40 : vector<64x128xf32>
    %c1_48 = arith.constant 1 : index
    %c2_49 = arith.constant 2 : index
    %c0_50 = arith.constant 0 : index
    %42 = vector.load %arg5[%c1_48, %c2_49, %c0_50] : memref<10x10x128xf32, #tpu.memory_space<vmem>>, vector<8x8x128xf32>
    %43 = vector.shape_cast %42 : vector<8x8x128xf32> to vector<64x128xf32>
    %44 = arith.truncf %43 : vector<64x128xf32> to vector<64x128xbf16>
    %c1_51 = arith.constant 1 : index
    %c2_52 = arith.constant 2 : index
    %c0_53 = arith.constant 0 : index
    %c0_54 = arith.constant 0 : index
    %45 = vector.load %arg2[%c1_51, %c2_52, %c0_53, %c0_54] : memref<3x3x128x128xbf16, #tpu.memory_space<vmem>>, vector<1x1x128x128xbf16>
    %46 = vector.shape_cast %45 : vector<1x1x128x128xbf16> to vector<128x128xbf16>
    %cst_55 = arith.constant dense<0.000000e+00> : vector<64x128xf32>
    %47 = tpu.matmul %44, %46, %cst_55 {dimension_numbers = #tpu.dot_dimension_numbers<[1], [0], [0], [1], [0, 0, 1, 1], [], []>} : vector<64x128xbf16>, vector<128x128xbf16>, vector<64x128xf32> -> vector<64x128xf32>
    %48 = arith.addf %41, %47 : vector<64x128xf32>
    %c2_56 = arith.constant 2 : index
    %c0_57 = arith.constant 0 : index
    %c0_58 = arith.constant 0 : index
    %49 = vector.load %arg5[%c2_56, %c0_57, %c0_58] : memref<10x10x128xf32, #tpu.memory_space<vmem>>, vector<8x8x128xf32>
    %50 = vector.shape_cast %49 : vector<8x8x128xf32> to vector<64x128xf32>
    %51 = arith.truncf %50 : vector<64x128xf32> to vector<64x128xbf16>
    %c2_59 = arith.constant 2 : index
    %c0_60 = arith.constant 0 : index
    %c0_61 = arith.constant 0 : index
    %c0_62 = arith.constant 0 : index
    %52 = vector.load %arg2[%c2_59, %c0_60, %c0_61, %c0_62] : memref<3x3x128x128xbf16, #tpu.memory_space<vmem>>, vector<1x1x128x128xbf16>
    %53 = vector.shape_cast %52 : vector<1x1x128x128xbf16> to vector<128x128xbf16>
    %cst_63 = arith.constant dense<0.000000e+00> : vector<64x128xf32>
    %54 = tpu.matmul %51, %53, %cst_63 {dimension_numbers = #tpu.dot_dimension_numbers<[1], [0], [0], [1], [0, 0, 1, 1], [], []>} : vector<64x128xbf16>, vector<128x128xbf16>, vector<64x128xf32> -> vector<64x128xf32>
    %55 = arith.addf %48, %54 : vector<64x128xf32>
    %c2_64 = arith.constant 2 : index
    %c1_65 = arith.constant 1 : index
    %c0_66 = arith.constant 0 : index
    %56 = vector.load %arg5[%c2_64, %c1_65, %c0_66] : memref<10x10x128xf32, #tpu.memory_space<vmem>>, vector<8x8x128xf32>
    %57 = vector.shape_cast %56 : vector<8x8x128xf32> to vector<64x128xf32>
    %58 = arith.truncf %57 : vector<64x128xf32> to vector<64x128xbf16>
    %c2_67 = arith.constant 2 : index
    %c1_68 = arith.constant 1 : index
    %c0_69 = arith.constant 0 : index
    %c0_70 = arith.constant 0 : index
    %59 = vector.load %arg2[%c2_67, %c1_68, %c0_69, %c0_70] : memref<3x3x128x128xbf16, #tpu.memory_space<vmem>>, vector<1x1x128x128xbf16>
    %60 = vector.shape_cast %59 : vector<1x1x128x128xbf16> to vector<128x128xbf16>
    %cst_71 = arith.constant dense<0.000000e+00> : vector<64x128xf32>
    %61 = tpu.matmul %58, %60, %cst_71 {dimension_numbers = #tpu.dot_dimension_numbers<[1], [0], [0], [1], [0, 0, 1, 1], [], []>} : vector<64x128xbf16>, vector<128x128xbf16>, vector<64x128xf32> -> vector<64x128xf32>
    %62 = arith.addf %55, %61 : vector<64x128xf32>
    %c2_72 = arith.constant 2 : index
    %c2_73 = arith.constant 2 : index
    %c0_74 = arith.constant 0 : index
    %63 = vector.load %arg5[%c2_72, %c2_73, %c0_74] : memref<10x10x128xf32, #tpu.memory_space<vmem>>, vector<8x8x128xf32>
    %64 = vector.shape_cast %63 : vector<8x8x128xf32> to vector<64x128xf32>
    %65 = arith.truncf %64 : vector<64x128xf32> to vector<64x128xbf16>
    %c2_75 = arith.constant 2 : index
    %c2_76 = arith.constant 2 : index
    %c0_77 = arith.constant 0 : index
    %c0_78 = arith.constant 0 : index
    %66 = vector.load %arg2[%c2_75, %c2_76, %c0_77, %c0_78] : memref<3x3x128x128xbf16, #tpu.memory_space<vmem>>, vector<1x1x128x128xbf16>
    %67 = vector.shape_cast %66 : vector<1x1x128x128xbf16> to vector<128x128xbf16>
    %cst_79 = arith.constant dense<0.000000e+00> : vector<64x128xf32>
    %68 = tpu.matmul %65, %67, %cst_79 {dimension_numbers = #tpu.dot_dimension_numbers<[1], [0], [0], [1], [0, 0, 1, 1], [], []>} : vector<64x128xbf16>, vector<128x128xbf16>, vector<64x128xf32> -> vector<64x128xf32>
    %69 = arith.addf %62, %68 : vector<64x128xf32>
    %c0_80 = arith.constant 0 : index
    %c0_81 = arith.constant 0 : index
    %70 = vector.load %arg3[%c0_80, %c0_81] : memref<1x128xf32, #tpu.memory_space<vmem>>, vector<1x128xf32>
    %71 = vector.broadcast %70 : vector<1x128xf32> to vector<64x128xf32>
    %72 = arith.addf %69, %71 : vector<64x128xf32>
    %cst_82 = arith.constant 0.000000e+00 : f32
    %73 = vector.broadcast %cst_82 : f32 to vector<64x128xf32>
    %74 = arith.maximumf %72, %73 : vector<64x128xf32>
    %75 = vector.shape_cast %74 : vector<64x128xf32> to vector<8x8x128xf32>
    %76 = arith.truncf %75 : vector<8x8x128xf32> to vector<8x8x128xbf16>
    %c0_83 = arith.constant 0 : index
    %c0_84 = arith.constant 0 : index
    %c0_85 = arith.constant 0 : index
    %c0_86 = arith.constant 0 : index
    %77 = vector.load %arg4[%c0_83, %c0_84, %c0_85, %c0_86] : memref<1x8x8x128xbf16, #tpu.memory_space<vmem>>, vector<1x8x8x128xbf16>
    %78 = vector.shape_cast %77 : vector<1x8x8x128xbf16> to vector<8x8x128xbf16>
    %79 = vector.shape_cast %76 : vector<8x8x128xbf16> to vector<1x8x8x128xbf16>
    tpu.vector_store %arg4[%c0_83, %c0_84, %c0_85, %c0_86], %79 {strides = array<i32>} : memref<1x8x8x128xbf16, #tpu.memory_space<vmem>>, vector<1x8x8x128xbf16>,
    return
  }
  func.func @transform_0(%arg0: i32) -> (i32, i32, i32, i32) {
    %c0_i32 = arith.constant 0 : i32
    %c0_i32_0 = arith.constant 0 : i32
    %c0_i32_1 = arith.constant 0 : i32
    %c0_i32_2 = arith.constant 0 : i32
    return %arg0, %c0_i32, %c0_i32_0, %c0_i32_1 : i32, i32, i32, i32
  }
  func.func @transform_1(%arg0: i32) -> (i32, i32, i32, i32) {
    %c0_i32 = arith.constant 0 : i32
    %c0_i32_0 = arith.constant 0 : i32
    %c0_i32_1 = arith.constant 0 : i32
    %c0_i32_2 = arith.constant 0 : i32
    %c0_i32_3 = arith.constant 0 : i32
    return %c0_i32, %c0_i32_0, %c0_i32_1, %c0_i32_2 : i32, i32, i32, i32
  }
  func.func @transform_2(%arg0: i32) -> (i32, i32) {
    %c0_i32 = arith.constant 0 : i32
    %c0_i32_0 = arith.constant 0 : i32
    %c0_i32_1 = arith.constant 0 : i32
    return %c0_i32, %c0_i32_0 : i32, i32
  }
  func.func @transform_3(%arg0: i32) -> (i32, i32, i32, i32) {
    %c0_i32 = arith.constant 0 : i32
    %c0_i32_0 = arith.constant 0 : i32
    %c0_i32_1 = arith.constant 0 : i32
    %c0_i32_2 = arith.constant 0 : i32
    return %arg0, %c0_i32, %c0_i32_0, %c0_i32_1 : i32, i32, i32, i32
  }
}

module attributes {stable_mosaic.version = 11 : i64} {
  func.func @_conv3x3_kernel(%arg0: i32, %arg1: memref<1x4x4x128xbf16, #tpu.memory_space<vmem>>, %arg2: memref<3x3x128x128xbf16, #tpu.memory_space<vmem>>, %arg3: memref<1x128xf32, #tpu.memory_space<vmem>>, %arg4: memref<1x4x4x128xbf16, #tpu.memory_space<vmem>>, %arg5: memref<6x6x128xf32, #tpu.memory_space<vmem>>) attributes {dimension_semantics = [#tpu.dimension_semantics<parallel>], iteration_bounds = array<i64: 2>, scalar_prefetch = 0 : i64, scratch_operands = 1 : i64, tpu.core_type = #tpu.core_type<tc>, window_params = [{transform_indices = @transform_0, window_bounds = array<i64: 1, 4, 4, 128>}, {pipeline_mode = #tpu.pipeline_mode<synchronous>, transform_indices = @transform_1, window_bounds = array<i64: 3, 3, 128, 128>}, {pipeline_mode = #tpu.pipeline_mode<synchronous>, transform_indices = @transform_2, window_bounds = array<i64: 1, 128>}, {transform_indices = @transform_3, window_bounds = array<i64: 1, 4, 4, 128>}]} {
    %cst = arith.constant 0.000000e+00 : f32
    %0 = vector.broadcast %cst : f32 to vector<6x6x128xf32>
    %c0 = arith.constant 0 : index
    %c0_0 = arith.constant 0 : index
    %c0_1 = arith.constant 0 : index
    %1 = vector.load %arg5[%c0, %c0_0, %c0_1] : memref<6x6x128xf32, #tpu.memory_space<vmem>>, vector<6x6x128xf32>
    tpu.vector_store %arg5[%c0, %c0_0, %c0_1], %0 {strides = array<i32>} : memref<6x6x128xf32, #tpu.memory_space<vmem>>, vector<6x6x128xf32>,
    %c0_2 = arith.constant 0 : index
    %c0_3 = arith.constant 0 : index
    %c0_4 = arith.constant 0 : index
    %c0_5 = arith.constant 0 : index
    %2 = vector.load %arg1[%c0_2, %c0_3, %c0_4, %c0_5] : memref<1x4x4x128xbf16, #tpu.memory_space<vmem>>, vector<1x4x4x128xbf16>
    %3 = vector.shape_cast %2 : vector<1x4x4x128xbf16> to vector<4x4x128xbf16>
    %4 = arith.extf %3 : vector<4x4x128xbf16> to vector<4x4x128xf32>
    %c1 = arith.constant 1 : index
    %c1_6 = arith.constant 1 : index
    %c0_7 = arith.constant 0 : index
    %5 = vector.load %arg5[%c1, %c1_6, %c0_7] : memref<6x6x128xf32, #tpu.memory_space<vmem>>, vector<4x4x128xf32>
    tpu.vector_store %arg5[%c1, %c1_6, %c0_7], %4 {strides = array<i32>} : memref<6x6x128xf32, #tpu.memory_space<vmem>>, vector<4x4x128xf32>,
    %cst_8 = arith.constant 0.000000e+00 : f32
    %6 = vector.broadcast %cst_8 : f32 to vector<4x128xf32>
    %c0_9 = arith.constant 0 : index
    %c0_10 = arith.constant 0 : index
    %c0_11 = arith.constant 0 : index
    %7 = vector.load %arg5[%c0_9, %c0_10, %c0_11] : memref<6x6x128xf32, #tpu.memory_space<vmem>>, vector<1x4x128xf32>
    %8 = vector.shape_cast %7 : vector<1x4x128xf32> to vector<4x128xf32>
    %9 = arith.truncf %8 : vector<4x128xf32> to vector<4x128xbf16>
    %c0_12 = arith.constant 0 : index
    %c0_13 = arith.constant 0 : index
    %c0_14 = arith.constant 0 : index
    %c0_15 = arith.constant 0 : index
    %10 = vector.load %arg2[%c0_12, %c0_13, %c0_14, %c0_15] : memref<3x3x128x128xbf16, #tpu.memory_space<vmem>>, vector<1x1x128x128xbf16>
    %11 = vector.shape_cast %10 : vector<1x1x128x128xbf16> to vector<128x128xbf16>
    %cst_16 = arith.constant dense<0.000000e+00> : vector<4x128xf32>
    %12 = tpu.matmul %9, %11, %cst_16 {dimension_numbers = #tpu.dot_dimension_numbers<[1], [0], [0], [1], [0, 0, 1, 1], [], []>} : vector<4x128xbf16>, vector<128x128xbf16>, vector<4x128xf32> -> vector<4x128xf32>
    %13 = arith.addf %6, %12 : vector<4x128xf32>
    %c0_17 = arith.constant 0 : index
    %c1_18 = arith.constant 1 : index
    %c0_19 = arith.constant 0 : index
    %14 = vector.load %arg5[%c0_17, %c1_18, %c0_19] : memref<6x6x128xf32, #tpu.memory_space<vmem>>, vector<1x4x128xf32>
    %15 = vector.shape_cast %14 : vector<1x4x128xf32> to vector<4x128xf32>
    %16 = arith.truncf %15 : vector<4x128xf32> to vector<4x128xbf16>
    %c0_20 = arith.constant 0 : index
    %c1_21 = arith.constant 1 : index
    %c0_22 = arith.constant 0 : index
    %c0_23 = arith.constant 0 : index
    %17 = vector.load %arg2[%c0_20, %c1_21, %c0_22, %c0_23] : memref<3x3x128x128xbf16, #tpu.memory_space<vmem>>, vector<1x1x128x128xbf16>
    %18 = vector.shape_cast %17 : vector<1x1x128x128xbf16> to vector<128x128xbf16>
    %cst_24 = arith.constant dense<0.000000e+00> : vector<4x128xf32>
    %19 = tpu.matmul %16, %18, %cst_24 {dimension_numbers = #tpu.dot_dimension_numbers<[1], [0], [0], [1], [0, 0, 1, 1], [], []>} : vector<4x128xbf16>, vector<128x128xbf16>, vector<4x128xf32> -> vector<4x128xf32>
    %20 = arith.addf %13, %19 : vector<4x128xf32>
    %c0_25 = arith.constant 0 : index
    %c2 = arith.constant 2 : index
    %c0_26 = arith.constant 0 : index
    %21 = vector.load %arg5[%c0_25, %c2, %c0_26] : memref<6x6x128xf32, #tpu.memory_space<vmem>>, vector<1x4x128xf32>
    %22 = vector.shape_cast %21 : vector<1x4x128xf32> to vector<4x128xf32>
    %23 = arith.truncf %22 : vector<4x128xf32> to vector<4x128xbf16>
    %c0_27 = arith.constant 0 : index
    %c2_28 = arith.constant 2 : index
    %c0_29 = arith.constant 0 : index
    %c0_30 = arith.constant 0 : index
    %24 = vector.load %arg2[%c0_27, %c2_28, %c0_29, %c0_30] : memref<3x3x128x128xbf16, #tpu.memory_space<vmem>>, vector<1x1x128x128xbf16>
    %25 = vector.shape_cast %24 : vector<1x1x128x128xbf16> to vector<128x128xbf16>
    %cst_31 = arith.constant dense<0.000000e+00> : vector<4x128xf32>
    %26 = tpu.matmul %23, %25, %cst_31 {dimension_numbers = #tpu.dot_dimension_numbers<[1], [0], [0], [1], [0, 0, 1, 1], [], []>} : vector<4x128xbf16>, vector<128x128xbf16>, vector<4x128xf32> -> vector<4x128xf32>
    %27 = arith.addf %20, %26 : vector<4x128xf32>
    %c1_32 = arith.constant 1 : index
    %c0_33 = arith.constant 0 : index
    %c0_34 = arith.constant 0 : index
    %28 = vector.load %arg5[%c1_32, %c0_33, %c0_34] : memref<6x6x128xf32, #tpu.memory_space<vmem>>, vector<1x4x128xf32>
    %29 = vector.shape_cast %28 : vector<1x4x128xf32> to vector<4x128xf32>
    %30 = arith.truncf %29 : vector<4x128xf32> to vector<4x128xbf16>
    %c1_35 = arith.constant 1 : index
    %c0_36 = arith.constant 0 : index
    %c0_37 = arith.constant 0 : index
    %c0_38 = arith.constant 0 : index
    %31 = vector.load %arg2[%c1_35, %c0_36, %c0_37, %c0_38] : memref<3x3x128x128xbf16, #tpu.memory_space<vmem>>, vector<1x1x128x128xbf16>
    %32 = vector.shape_cast %31 : vector<1x1x128x128xbf16> to vector<128x128xbf16>
    %cst_39 = arith.constant dense<0.000000e+00> : vector<4x128xf32>
    %33 = tpu.matmul %30, %32, %cst_39 {dimension_numbers = #tpu.dot_dimension_numbers<[1], [0], [0], [1], [0, 0, 1, 1], [], []>} : vector<4x128xbf16>, vector<128x128xbf16>, vector<4x128xf32> -> vector<4x128xf32>
    %34 = arith.addf %27, %33 : vector<4x128xf32>
    %c1_40 = arith.constant 1 : index
    %c1_41 = arith.constant 1 : index
    %c0_42 = arith.constant 0 : index
    %35 = vector.load %arg5[%c1_40, %c1_41, %c0_42] : memref<6x6x128xf32, #tpu.memory_space<vmem>>, vector<1x4x128xf32>
    %36 = vector.shape_cast %35 : vector<1x4x128xf32> to vector<4x128xf32>
    %37 = arith.truncf %36 : vector<4x128xf32> to vector<4x128xbf16>
    %c1_43 = arith.constant 1 : index
    %c1_44 = arith.constant 1 : index
    %c0_45 = arith.constant 0 : index
    %c0_46 = arith.constant 0 : index
    %38 = vector.load %arg2[%c1_43, %c1_44, %c0_45, %c0_46] : memref<3x3x128x128xbf16, #tpu.memory_space<vmem>>, vector<1x1x128x128xbf16>
    %39 = vector.shape_cast %38 : vector<1x1x128x128xbf16> to vector<128x128xbf16>
    %cst_47 = arith.constant dense<0.000000e+00> : vector<4x128xf32>
    %40 = tpu.matmul %37, %39, %cst_47 {dimension_numbers = #tpu.dot_dimension_numbers<[1], [0], [0], [1], [0, 0, 1, 1], [], []>} : vector<4x128xbf16>, vector<128x128xbf16>, vector<4x128xf32> -> vector<4x128xf32>
    %41 = arith.addf %34, %40 : vector<4x128xf32>
    %c1_48 = arith.constant 1 : index
    %c2_49 = arith.constant 2 : index
    %c0_50 = arith.constant 0 : index
    %42 = vector.load %arg5[%c1_48, %c2_49, %c0_50] : memref<6x6x128xf32, #tpu.memory_space<vmem>>, vector<1x4x128xf32>
    %43 = vector.shape_cast %42 : vector<1x4x128xf32> to vector<4x128xf32>
    %44 = arith.truncf %43 : vector<4x128xf32> to vector<4x128xbf16>
    %c1_51 = arith.constant 1 : index
    %c2_52 = arith.constant 2 : index
    %c0_53 = arith.constant 0 : index
    %c0_54 = arith.constant 0 : index
    %45 = vector.load %arg2[%c1_51, %c2_52, %c0_53, %c0_54] : memref<3x3x128x128xbf16, #tpu.memory_space<vmem>>, vector<1x1x128x128xbf16>
    %46 = vector.shape_cast %45 : vector<1x1x128x128xbf16> to vector<128x128xbf16>
    %cst_55 = arith.constant dense<0.000000e+00> : vector<4x128xf32>
    %47 = tpu.matmul %44, %46, %cst_55 {dimension_numbers = #tpu.dot_dimension_numbers<[1], [0], [0], [1], [0, 0, 1, 1], [], []>} : vector<4x128xbf16>, vector<128x128xbf16>, vector<4x128xf32> -> vector<4x128xf32>
    %48 = arith.addf %41, %47 : vector<4x128xf32>
    %c2_56 = arith.constant 2 : index
    %c0_57 = arith.constant 0 : index
    %c0_58 = arith.constant 0 : index
    %49 = vector.load %arg5[%c2_56, %c0_57, %c0_58] : memref<6x6x128xf32, #tpu.memory_space<vmem>>, vector<1x4x128xf32>
    %50 = vector.shape_cast %49 : vector<1x4x128xf32> to vector<4x128xf32>
    %51 = arith.truncf %50 : vector<4x128xf32> to vector<4x128xbf16>
    %c2_59 = arith.constant 2 : index
    %c0_60 = arith.constant 0 : index
    %c0_61 = arith.constant 0 : index
    %c0_62 = arith.constant 0 : index
    %52 = vector.load %arg2[%c2_59, %c0_60, %c0_61, %c0_62] : memref<3x3x128x128xbf16, #tpu.memory_space<vmem>>, vector<1x1x128x128xbf16>
    %53 = vector.shape_cast %52 : vector<1x1x128x128xbf16> to vector<128x128xbf16>
    %cst_63 = arith.constant dense<0.000000e+00> : vector<4x128xf32>
    %54 = tpu.matmul %51, %53, %cst_63 {dimension_numbers = #tpu.dot_dimension_numbers<[1], [0], [0], [1], [0, 0, 1, 1], [], []>} : vector<4x128xbf16>, vector<128x128xbf16>, vector<4x128xf32> -> vector<4x128xf32>
    %55 = arith.addf %48, %54 : vector<4x128xf32>
    %c2_64 = arith.constant 2 : index
    %c1_65 = arith.constant 1 : index
    %c0_66 = arith.constant 0 : index
    %56 = vector.load %arg5[%c2_64, %c1_65, %c0_66] : memref<6x6x128xf32, #tpu.memory_space<vmem>>, vector<1x4x128xf32>
    %57 = vector.shape_cast %56 : vector<1x4x128xf32> to vector<4x128xf32>
    %58 = arith.truncf %57 : vector<4x128xf32> to vector<4x128xbf16>
    %c2_67 = arith.constant 2 : index
    %c1_68 = arith.constant 1 : index
    %c0_69 = arith.constant 0 : index
    %c0_70 = arith.constant 0 : index
    %59 = vector.load %arg2[%c2_67, %c1_68, %c0_69, %c0_70] : memref<3x3x128x128xbf16, #tpu.memory_space<vmem>>, vector<1x1x128x128xbf16>
    %60 = vector.shape_cast %59 : vector<1x1x128x128xbf16> to vector<128x128xbf16>
    %cst_71 = arith.constant dense<0.000000e+00> : vector<4x128xf32>
    %61 = tpu.matmul %58, %60, %cst_71 {dimension_numbers = #tpu.dot_dimension_numbers<[1], [0], [0], [1], [0, 0, 1, 1], [], []>} : vector<4x128xbf16>, vector<128x128xbf16>, vector<4x128xf32> -> vector<4x128xf32>
    %62 = arith.addf %55, %61 : vector<4x128xf32>
    %c2_72 = arith.constant 2 : index
    %c2_73 = arith.constant 2 : index
    %c0_74 = arith.constant 0 : index
    %63 = vector.load %arg5[%c2_72, %c2_73, %c0_74] : memref<6x6x128xf32, #tpu.memory_space<vmem>>, vector<1x4x128xf32>
    %64 = vector.shape_cast %63 : vector<1x4x128xf32> to vector<4x128xf32>
    %65 = arith.truncf %64 : vector<4x128xf32> to vector<4x128xbf16>
    %c2_75 = arith.constant 2 : index
    %c2_76 = arith.constant 2 : index
    %c0_77 = arith.constant 0 : index
    %c0_78 = arith.constant 0 : index
    %66 = vector.load %arg2[%c2_75, %c2_76, %c0_77, %c0_78] : memref<3x3x128x128xbf16, #tpu.memory_space<vmem>>, vector<1x1x128x128xbf16>
    %67 = vector.shape_cast %66 : vector<1x1x128x128xbf16> to vector<128x128xbf16>
    %cst_79 = arith.constant dense<0.000000e+00> : vector<4x128xf32>
    %68 = tpu.matmul %65, %67, %cst_79 {dimension_numbers = #tpu.dot_dimension_numbers<[1], [0], [0], [1], [0, 0, 1, 1], [], []>} : vector<4x128xbf16>, vector<128x128xbf16>, vector<4x128xf32> -> vector<4x128xf32>
    %69 = arith.addf %62, %68 : vector<4x128xf32>
    %c0_80 = arith.constant 0 : index
    %c0_81 = arith.constant 0 : index
    %70 = vector.load %arg3[%c0_80, %c0_81] : memref<1x128xf32, #tpu.memory_space<vmem>>, vector<1x128xf32>
    %71 = vector.broadcast %70 : vector<1x128xf32> to vector<4x128xf32>
    %72 = arith.addf %69, %71 : vector<4x128xf32>
    %cst_82 = arith.constant 0.000000e+00 : f32
    %73 = vector.broadcast %cst_82 : f32 to vector<4x128xf32>
    %74 = arith.maximumf %72, %73 : vector<4x128xf32>
    %75 = vector.shape_cast %74 : vector<4x128xf32> to vector<1x4x128xf32>
    %76 = arith.truncf %75 : vector<1x4x128xf32> to vector<1x4x128xbf16>
    %c0_83 = arith.constant 0 : index
    %c0_84 = arith.constant 0 : index
    %c0_85 = arith.constant 0 : index
    %c0_86 = arith.constant 0 : index
    %77 = vector.load %arg4[%c0_83, %c0_84, %c0_85, %c0_86] : memref<1x4x4x128xbf16, #tpu.memory_space<vmem>>, vector<1x1x4x128xbf16>
    %78 = vector.shape_cast %77 : vector<1x1x4x128xbf16> to vector<1x4x128xbf16>
    %79 = vector.shape_cast %76 : vector<1x4x128xbf16> to vector<1x1x4x128xbf16>
    tpu.vector_store %arg4[%c0_83, %c0_84, %c0_85, %c0_86], %79 {strides = array<i32>} : memref<1x4x4x128xbf16, #tpu.memory_space<vmem>>, vector<1x1x4x128xbf16>,
    %cst_87 = arith.constant 0.000000e+00 : f32
    %80 = vector.broadcast %cst_87 : f32 to vector<4x128xf32>
    %c1_88 = arith.constant 1 : index
    %c0_89 = arith.constant 0 : index
    %c0_90 = arith.constant 0 : index
    %81 = vector.load %arg5[%c1_88, %c0_89, %c0_90] : memref<6x6x128xf32, #tpu.memory_space<vmem>>, vector<1x4x128xf32>
    %82 = vector.shape_cast %81 : vector<1x4x128xf32> to vector<4x128xf32>
    %83 = arith.truncf %82 : vector<4x128xf32> to vector<4x128xbf16>
    %c0_91 = arith.constant 0 : index
    %c0_92 = arith.constant 0 : index
    %c0_93 = arith.constant 0 : index
    %c0_94 = arith.constant 0 : index
    %84 = vector.load %arg2[%c0_91, %c0_92, %c0_93, %c0_94] : memref<3x3x128x128xbf16, #tpu.memory_space<vmem>>, vector<1x1x128x128xbf16>
    %85 = vector.shape_cast %84 : vector<1x1x128x128xbf16> to vector<128x128xbf16>
    %cst_95 = arith.constant dense<0.000000e+00> : vector<4x128xf32>
    %86 = tpu.matmul %83, %85, %cst_95 {dimension_numbers = #tpu.dot_dimension_numbers<[1], [0], [0], [1], [0, 0, 1, 1], [], []>} : vector<4x128xbf16>, vector<128x128xbf16>, vector<4x128xf32> -> vector<4x128xf32>
    %87 = arith.addf %80, %86 : vector<4x128xf32>
    %c1_96 = arith.constant 1 : index
    %c1_97 = arith.constant 1 : index
    %c0_98 = arith.constant 0 : index
    %88 = vector.load %arg5[%c1_96, %c1_97, %c0_98] : memref<6x6x128xf32, #tpu.memory_space<vmem>>, vector<1x4x128xf32>
    %89 = vector.shape_cast %88 : vector<1x4x128xf32> to vector<4x128xf32>
    %90 = arith.truncf %89 : vector<4x128xf32> to vector<4x128xbf16>
    %c0_99 = arith.constant 0 : index
    %c1_100 = arith.constant 1 : index
    %c0_101 = arith.constant 0 : index
    %c0_102 = arith.constant 0 : index
    %91 = vector.load %arg2[%c0_99, %c1_100, %c0_101, %c0_102] : memref<3x3x128x128xbf16, #tpu.memory_space<vmem>>, vector<1x1x128x128xbf16>
    %92 = vector.shape_cast %91 : vector<1x1x128x128xbf16> to vector<128x128xbf16>
    %cst_103 = arith.constant dense<0.000000e+00> : vector<4x128xf32>
    %93 = tpu.matmul %90, %92, %cst_103 {dimension_numbers = #tpu.dot_dimension_numbers<[1], [0], [0], [1], [0, 0, 1, 1], [], []>} : vector<4x128xbf16>, vector<128x128xbf16>, vector<4x128xf32> -> vector<4x128xf32>
    %94 = arith.addf %87, %93 : vector<4x128xf32>
    %c1_104 = arith.constant 1 : index
    %c2_105 = arith.constant 2 : index
    %c0_106 = arith.constant 0 : index
    %95 = vector.load %arg5[%c1_104, %c2_105, %c0_106] : memref<6x6x128xf32, #tpu.memory_space<vmem>>, vector<1x4x128xf32>
    %96 = vector.shape_cast %95 : vector<1x4x128xf32> to vector<4x128xf32>
    %97 = arith.truncf %96 : vector<4x128xf32> to vector<4x128xbf16>
    %c0_107 = arith.constant 0 : index
    %c2_108 = arith.constant 2 : index
    %c0_109 = arith.constant 0 : index
    %c0_110 = arith.constant 0 : index
    %98 = vector.load %arg2[%c0_107, %c2_108, %c0_109, %c0_110] : memref<3x3x128x128xbf16, #tpu.memory_space<vmem>>, vector<1x1x128x128xbf16>
    %99 = vector.shape_cast %98 : vector<1x1x128x128xbf16> to vector<128x128xbf16>
    %cst_111 = arith.constant dense<0.000000e+00> : vector<4x128xf32>
    %100 = tpu.matmul %97, %99, %cst_111 {dimension_numbers = #tpu.dot_dimension_numbers<[1], [0], [0], [1], [0, 0, 1, 1], [], []>} : vector<4x128xbf16>, vector<128x128xbf16>, vector<4x128xf32> -> vector<4x128xf32>
    %101 = arith.addf %94, %100 : vector<4x128xf32>
    %c2_112 = arith.constant 2 : index
    %c0_113 = arith.constant 0 : index
    %c0_114 = arith.constant 0 : index
    %102 = vector.load %arg5[%c2_112, %c0_113, %c0_114] : memref<6x6x128xf32, #tpu.memory_space<vmem>>, vector<1x4x128xf32>
    %103 = vector.shape_cast %102 : vector<1x4x128xf32> to vector<4x128xf32>
    %104 = arith.truncf %103 : vector<4x128xf32> to vector<4x128xbf16>
    %c1_115 = arith.constant 1 : index
    %c0_116 = arith.constant 0 : index
    %c0_117 = arith.constant 0 : index
    %c0_118 = arith.constant 0 : index
    %105 = vector.load %arg2[%c1_115, %c0_116, %c0_117, %c0_118] : memref<3x3x128x128xbf16, #tpu.memory_space<vmem>>, vector<1x1x128x128xbf16>
    %106 = vector.shape_cast %105 : vector<1x1x128x128xbf16> to vector<128x128xbf16>
    %cst_119 = arith.constant dense<0.000000e+00> : vector<4x128xf32>
    %107 = tpu.matmul %104, %106, %cst_119 {dimension_numbers = #tpu.dot_dimension_numbers<[1], [0], [0], [1], [0, 0, 1, 1], [], []>} : vector<4x128xbf16>, vector<128x128xbf16>, vector<4x128xf32> -> vector<4x128xf32>
    %108 = arith.addf %101, %107 : vector<4x128xf32>
    %c2_120 = arith.constant 2 : index
    %c1_121 = arith.constant 1 : index
    %c0_122 = arith.constant 0 : index
    %109 = vector.load %arg5[%c2_120, %c1_121, %c0_122] : memref<6x6x128xf32, #tpu.memory_space<vmem>>, vector<1x4x128xf32>
    %110 = vector.shape_cast %109 : vector<1x4x128xf32> to vector<4x128xf32>
    %111 = arith.truncf %110 : vector<4x128xf32> to vector<4x128xbf16>
    %c1_123 = arith.constant 1 : index
    %c1_124 = arith.constant 1 : index
    %c0_125 = arith.constant 0 : index
    %c0_126 = arith.constant 0 : index
    %112 = vector.load %arg2[%c1_123, %c1_124, %c0_125, %c0_126] : memref<3x3x128x128xbf16, #tpu.memory_space<vmem>>, vector<1x1x128x128xbf16>
    %113 = vector.shape_cast %112 : vector<1x1x128x128xbf16> to vector<128x128xbf16>
    %cst_127 = arith.constant dense<0.000000e+00> : vector<4x128xf32>
    %114 = tpu.matmul %111, %113, %cst_127 {dimension_numbers = #tpu.dot_dimension_numbers<[1], [0], [0], [1], [0, 0, 1, 1], [], []>} : vector<4x128xbf16>, vector<128x128xbf16>, vector<4x128xf32> -> vector<4x128xf32>
    %115 = arith.addf %108, %114 : vector<4x128xf32>
    %c2_128 = arith.constant 2 : index
    %c2_129 = arith.constant 2 : index
    %c0_130 = arith.constant 0 : index
    %116 = vector.load %arg5[%c2_128, %c2_129, %c0_130] : memref<6x6x128xf32, #tpu.memory_space<vmem>>, vector<1x4x128xf32>
    %117 = vector.shape_cast %116 : vector<1x4x128xf32> to vector<4x128xf32>
    %118 = arith.truncf %117 : vector<4x128xf32> to vector<4x128xbf16>
    %c1_131 = arith.constant 1 : index
    %c2_132 = arith.constant 2 : index
    %c0_133 = arith.constant 0 : index
    %c0_134 = arith.constant 0 : index
    %119 = vector.load %arg2[%c1_131, %c2_132, %c0_133, %c0_134] : memref<3x3x128x128xbf16, #tpu.memory_space<vmem>>, vector<1x1x128x128xbf16>
    %120 = vector.shape_cast %119 : vector<1x1x128x128xbf16> to vector<128x128xbf16>
    %cst_135 = arith.constant dense<0.000000e+00> : vector<4x128xf32>
    %121 = tpu.matmul %118, %120, %cst_135 {dimension_numbers = #tpu.dot_dimension_numbers<[1], [0], [0], [1], [0, 0, 1, 1], [], []>} : vector<4x128xbf16>, vector<128x128xbf16>, vector<4x128xf32> -> vector<4x128xf32>
    %122 = arith.addf %115, %121 : vector<4x128xf32>
    %c3 = arith.constant 3 : index
    %c0_136 = arith.constant 0 : index
    %c0_137 = arith.constant 0 : index
    %123 = vector.load %arg5[%c3, %c0_136, %c0_137] : memref<6x6x128xf32, #tpu.memory_space<vmem>>, vector<1x4x128xf32>
    %124 = vector.shape_cast %123 : vector<1x4x128xf32> to vector<4x128xf32>
    %125 = arith.truncf %124 : vector<4x128xf32> to vector<4x128xbf16>
    %c2_138 = arith.constant 2 : index
    %c0_139 = arith.constant 0 : index
    %c0_140 = arith.constant 0 : index
    %c0_141 = arith.constant 0 : index
    %126 = vector.load %arg2[%c2_138, %c0_139, %c0_140, %c0_141] : memref<3x3x128x128xbf16, #tpu.memory_space<vmem>>, vector<1x1x128x128xbf16>
    %127 = vector.shape_cast %126 : vector<1x1x128x128xbf16> to vector<128x128xbf16>
    %cst_142 = arith.constant dense<0.000000e+00> : vector<4x128xf32>
    %128 = tpu.matmul %125, %127, %cst_142 {dimension_numbers = #tpu.dot_dimension_numbers<[1], [0], [0], [1], [0, 0, 1, 1], [], []>} : vector<4x128xbf16>, vector<128x128xbf16>, vector<4x128xf32> -> vector<4x128xf32>
    %129 = arith.addf %122, %128 : vector<4x128xf32>
    %c3_143 = arith.constant 3 : index
    %c1_144 = arith.constant 1 : index
    %c0_145 = arith.constant 0 : index
    %130 = vector.load %arg5[%c3_143, %c1_144, %c0_145] : memref<6x6x128xf32, #tpu.memory_space<vmem>>, vector<1x4x128xf32>
    %131 = vector.shape_cast %130 : vector<1x4x128xf32> to vector<4x128xf32>
    %132 = arith.truncf %131 : vector<4x128xf32> to vector<4x128xbf16>
    %c2_146 = arith.constant 2 : index
    %c1_147 = arith.constant 1 : index
    %c0_148 = arith.constant 0 : index
    %c0_149 = arith.constant 0 : index
    %133 = vector.load %arg2[%c2_146, %c1_147, %c0_148, %c0_149] : memref<3x3x128x128xbf16, #tpu.memory_space<vmem>>, vector<1x1x128x128xbf16>
    %134 = vector.shape_cast %133 : vector<1x1x128x128xbf16> to vector<128x128xbf16>
    %cst_150 = arith.constant dense<0.000000e+00> : vector<4x128xf32>
    %135 = tpu.matmul %132, %134, %cst_150 {dimension_numbers = #tpu.dot_dimension_numbers<[1], [0], [0], [1], [0, 0, 1, 1], [], []>} : vector<4x128xbf16>, vector<128x128xbf16>, vector<4x128xf32> -> vector<4x128xf32>
    %136 = arith.addf %129, %135 : vector<4x128xf32>
    %c3_151 = arith.constant 3 : index
    %c2_152 = arith.constant 2 : index
    %c0_153 = arith.constant 0 : index
    %137 = vector.load %arg5[%c3_151, %c2_152, %c0_153] : memref<6x6x128xf32, #tpu.memory_space<vmem>>, vector<1x4x128xf32>
    %138 = vector.shape_cast %137 : vector<1x4x128xf32> to vector<4x128xf32>
    %139 = arith.truncf %138 : vector<4x128xf32> to vector<4x128xbf16>
    %c2_154 = arith.constant 2 : index
    %c2_155 = arith.constant 2 : index
    %c0_156 = arith.constant 0 : index
    %c0_157 = arith.constant 0 : index
    %140 = vector.load %arg2[%c2_154, %c2_155, %c0_156, %c0_157] : memref<3x3x128x128xbf16, #tpu.memory_space<vmem>>, vector<1x1x128x128xbf16>
    %141 = vector.shape_cast %140 : vector<1x1x128x128xbf16> to vector<128x128xbf16>
    %cst_158 = arith.constant dense<0.000000e+00> : vector<4x128xf32>
    %142 = tpu.matmul %139, %141, %cst_158 {dimension_numbers = #tpu.dot_dimension_numbers<[1], [0], [0], [1], [0, 0, 1, 1], [], []>} : vector<4x128xbf16>, vector<128x128xbf16>, vector<4x128xf32> -> vector<4x128xf32>
    %143 = arith.addf %136, %142 : vector<4x128xf32>
    %c0_159 = arith.constant 0 : index
    %c0_160 = arith.constant 0 : index
    %144 = vector.load %arg3[%c0_159, %c0_160] : memref<1x128xf32, #tpu.memory_space<vmem>>, vector<1x128xf32>
    %145 = vector.broadcast %144 : vector<1x128xf32> to vector<4x128xf32>
    %146 = arith.addf %143, %145 : vector<4x128xf32>
    %cst_161 = arith.constant 0.000000e+00 : f32
    %147 = vector.broadcast %cst_161 : f32 to vector<4x128xf32>
    %148 = arith.maximumf %146, %147 : vector<4x128xf32>
    %149 = vector.shape_cast %148 : vector<4x128xf32> to vector<1x4x128xf32>
    %150 = arith.truncf %149 : vector<1x4x128xf32> to vector<1x4x128xbf16>
    %c0_162 = arith.constant 0 : index
    %c1_163 = arith.constant 1 : index
    %c0_164 = arith.constant 0 : index
    %c0_165 = arith.constant 0 : index
    %151 = vector.load %arg4[%c0_162, %c1_163, %c0_164, %c0_165] : memref<1x4x4x128xbf16, #tpu.memory_space<vmem>>, vector<1x1x4x128xbf16>
    %152 = vector.shape_cast %151 : vector<1x1x4x128xbf16> to vector<1x4x128xbf16>
    %153 = vector.shape_cast %150 : vector<1x4x128xbf16> to vector<1x1x4x128xbf16>
    tpu.vector_store %arg4[%c0_162, %c1_163, %c0_164, %c0_165], %153 {strides = array<i32>} : memref<1x4x4x128xbf16, #tpu.memory_space<vmem>>, vector<1x1x4x128xbf16>,
    %cst_166 = arith.constant 0.000000e+00 : f32
    %154 = vector.broadcast %cst_166 : f32 to vector<4x128xf32>
    %c2_167 = arith.constant 2 : index
    %c0_168 = arith.constant 0 : index
    %c0_169 = arith.constant 0 : index
    %155 = vector.load %arg5[%c2_167, %c0_168, %c0_169] : memref<6x6x128xf32, #tpu.memory_space<vmem>>, vector<1x4x128xf32>
    %156 = vector.shape_cast %155 : vector<1x4x128xf32> to vector<4x128xf32>
    %157 = arith.truncf %156 : vector<4x128xf32> to vector<4x128xbf16>
    %c0_170 = arith.constant 0 : index
    %c0_171 = arith.constant 0 : index
    %c0_172 = arith.constant 0 : index
    %c0_173 = arith.constant 0 : index
    %158 = vector.load %arg2[%c0_170, %c0_171, %c0_172, %c0_173] : memref<3x3x128x128xbf16, #tpu.memory_space<vmem>>, vector<1x1x128x128xbf16>
    %159 = vector.shape_cast %158 : vector<1x1x128x128xbf16> to vector<128x128xbf16>
    %cst_174 = arith.constant dense<0.000000e+00> : vector<4x128xf32>
    %160 = tpu.matmul %157, %159, %cst_174 {dimension_numbers = #tpu.dot_dimension_numbers<[1], [0], [0], [1], [0, 0, 1, 1], [], []>} : vector<4x128xbf16>, vector<128x128xbf16>, vector<4x128xf32> -> vector<4x128xf32>
    %161 = arith.addf %154, %160 : vector<4x128xf32>
    %c2_175 = arith.constant 2 : index
    %c1_176 = arith.constant 1 : index
    %c0_177 = arith.constant 0 : index
    %162 = vector.load %arg5[%c2_175, %c1_176, %c0_177] : memref<6x6x128xf32, #tpu.memory_space<vmem>>, vector<1x4x128xf32>
    %163 = vector.shape_cast %162 : vector<1x4x128xf32> to vector<4x128xf32>
    %164 = arith.truncf %163 : vector<4x128xf32> to vector<4x128xbf16>
    %c0_178 = arith.constant 0 : index
    %c1_179 = arith.constant 1 : index
    %c0_180 = arith.constant 0 : index
    %c0_181 = arith.constant 0 : index
    %165 = vector.load %arg2[%c0_178, %c1_179, %c0_180, %c0_181] : memref<3x3x128x128xbf16, #tpu.memory_space<vmem>>, vector<1x1x128x128xbf16>
    %166 = vector.shape_cast %165 : vector<1x1x128x128xbf16> to vector<128x128xbf16>
    %cst_182 = arith.constant dense<0.000000e+00> : vector<4x128xf32>
    %167 = tpu.matmul %164, %166, %cst_182 {dimension_numbers = #tpu.dot_dimension_numbers<[1], [0], [0], [1], [0, 0, 1, 1], [], []>} : vector<4x128xbf16>, vector<128x128xbf16>, vector<4x128xf32> -> vector<4x128xf32>
    %168 = arith.addf %161, %167 : vector<4x128xf32>
    %c2_183 = arith.constant 2 : index
    %c2_184 = arith.constant 2 : index
    %c0_185 = arith.constant 0 : index
    %169 = vector.load %arg5[%c2_183, %c2_184, %c0_185] : memref<6x6x128xf32, #tpu.memory_space<vmem>>, vector<1x4x128xf32>
    %170 = vector.shape_cast %169 : vector<1x4x128xf32> to vector<4x128xf32>
    %171 = arith.truncf %170 : vector<4x128xf32> to vector<4x128xbf16>
    %c0_186 = arith.constant 0 : index
    %c2_187 = arith.constant 2 : index
    %c0_188 = arith.constant 0 : index
    %c0_189 = arith.constant 0 : index
    %172 = vector.load %arg2[%c0_186, %c2_187, %c0_188, %c0_189] : memref<3x3x128x128xbf16, #tpu.memory_space<vmem>>, vector<1x1x128x128xbf16>
    %173 = vector.shape_cast %172 : vector<1x1x128x128xbf16> to vector<128x128xbf16>
    %cst_190 = arith.constant dense<0.000000e+00> : vector<4x128xf32>
    %174 = tpu.matmul %171, %173, %cst_190 {dimension_numbers = #tpu.dot_dimension_numbers<[1], [0], [0], [1], [0, 0, 1, 1], [], []>} : vector<4x128xbf16>, vector<128x128xbf16>, vector<4x128xf32> -> vector<4x128xf32>
    %175 = arith.addf %168, %174 : vector<4x128xf32>
    %c3_191 = arith.constant 3 : index
    %c0_192 = arith.constant 0 : index
    %c0_193 = arith.constant 0 : index
    %176 = vector.load %arg5[%c3_191, %c0_192, %c0_193] : memref<6x6x128xf32, #tpu.memory_space<vmem>>, vector<1x4x128xf32>
    %177 = vector.shape_cast %176 : vector<1x4x128xf32> to vector<4x128xf32>
    %178 = arith.truncf %177 : vector<4x128xf32> to vector<4x128xbf16>
    %c1_194 = arith.constant 1 : index
    %c0_195 = arith.constant 0 : index
    %c0_196 = arith.constant 0 : index
    %c0_197 = arith.constant 0 : index
    %179 = vector.load %arg2[%c1_194, %c0_195, %c0_196, %c0_197] : memref<3x3x128x128xbf16, #tpu.memory_space<vmem>>, vector<1x1x128x128xbf16>
    %180 = vector.shape_cast %179 : vector<1x1x128x128xbf16> to vector<128x128xbf16>
    %cst_198 = arith.constant dense<0.000000e+00> : vector<4x128xf32>
    %181 = tpu.matmul %178, %180, %cst_198 {dimension_numbers = #tpu.dot_dimension_numbers<[1], [0], [0], [1], [0, 0, 1, 1], [], []>} : vector<4x128xbf16>, vector<128x128xbf16>, vector<4x128xf32> -> vector<4x128xf32>
    %182 = arith.addf %175, %181 : vector<4x128xf32>
    %c3_199 = arith.constant 3 : index
    %c1_200 = arith.constant 1 : index
    %c0_201 = arith.constant 0 : index
    %183 = vector.load %arg5[%c3_199, %c1_200, %c0_201] : memref<6x6x128xf32, #tpu.memory_space<vmem>>, vector<1x4x128xf32>
    %184 = vector.shape_cast %183 : vector<1x4x128xf32> to vector<4x128xf32>
    %185 = arith.truncf %184 : vector<4x128xf32> to vector<4x128xbf16>
    %c1_202 = arith.constant 1 : index
    %c1_203 = arith.constant 1 : index
    %c0_204 = arith.constant 0 : index
    %c0_205 = arith.constant 0 : index
    %186 = vector.load %arg2[%c1_202, %c1_203, %c0_204, %c0_205] : memref<3x3x128x128xbf16, #tpu.memory_space<vmem>>, vector<1x1x128x128xbf16>
    %187 = vector.shape_cast %186 : vector<1x1x128x128xbf16> to vector<128x128xbf16>
    %cst_206 = arith.constant dense<0.000000e+00> : vector<4x128xf32>
    %188 = tpu.matmul %185, %187, %cst_206 {dimension_numbers = #tpu.dot_dimension_numbers<[1], [0], [0], [1], [0, 0, 1, 1], [], []>} : vector<4x128xbf16>, vector<128x128xbf16>, vector<4x128xf32> -> vector<4x128xf32>
    %189 = arith.addf %182, %188 : vector<4x128xf32>
    %c3_207 = arith.constant 3 : index
    %c2_208 = arith.constant 2 : index
    %c0_209 = arith.constant 0 : index
    %190 = vector.load %arg5[%c3_207, %c2_208, %c0_209] : memref<6x6x128xf32, #tpu.memory_space<vmem>>, vector<1x4x128xf32>
    %191 = vector.shape_cast %190 : vector<1x4x128xf32> to vector<4x128xf32>
    %192 = arith.truncf %191 : vector<4x128xf32> to vector<4x128xbf16>
    %c1_210 = arith.constant 1 : index
    %c2_211 = arith.constant 2 : index
    %c0_212 = arith.constant 0 : index
    %c0_213 = arith.constant 0 : index
    %193 = vector.load %arg2[%c1_210, %c2_211, %c0_212, %c0_213] : memref<3x3x128x128xbf16, #tpu.memory_space<vmem>>, vector<1x1x128x128xbf16>
    %194 = vector.shape_cast %193 : vector<1x1x128x128xbf16> to vector<128x128xbf16>
    %cst_214 = arith.constant dense<0.000000e+00> : vector<4x128xf32>
    %195 = tpu.matmul %192, %194, %cst_214 {dimension_numbers = #tpu.dot_dimension_numbers<[1], [0], [0], [1], [0, 0, 1, 1], [], []>} : vector<4x128xbf16>, vector<128x128xbf16>, vector<4x128xf32> -> vector<4x128xf32>
    %196 = arith.addf %189, %195 : vector<4x128xf32>
    %c4 = arith.constant 4 : index
    %c0_215 = arith.constant 0 : index
    %c0_216 = arith.constant 0 : index
    %197 = vector.load %arg5[%c4, %c0_215, %c0_216] : memref<6x6x128xf32, #tpu.memory_space<vmem>>, vector<1x4x128xf32>
    %198 = vector.shape_cast %197 : vector<1x4x128xf32> to vector<4x128xf32>
    %199 = arith.truncf %198 : vector<4x128xf32> to vector<4x128xbf16>
    %c2_217 = arith.constant 2 : index
    %c0_218 = arith.constant 0 : index
    %c0_219 = arith.constant 0 : index
    %c0_220 = arith.constant 0 : index
    %200 = vector.load %arg2[%c2_217, %c0_218, %c0_219, %c0_220] : memref<3x3x128x128xbf16, #tpu.memory_space<vmem>>, vector<1x1x128x128xbf16>
    %201 = vector.shape_cast %200 : vector<1x1x128x128xbf16> to vector<128x128xbf16>
    %cst_221 = arith.constant dense<0.000000e+00> : vector<4x128xf32>
    %202 = tpu.matmul %199, %201, %cst_221 {dimension_numbers = #tpu.dot_dimension_numbers<[1], [0], [0], [1], [0, 0, 1, 1], [], []>} : vector<4x128xbf16>, vector<128x128xbf16>, vector<4x128xf32> -> vector<4x128xf32>
    %203 = arith.addf %196, %202 : vector<4x128xf32>
    %c4_222 = arith.constant 4 : index
    %c1_223 = arith.constant 1 : index
    %c0_224 = arith.constant 0 : index
    %204 = vector.load %arg5[%c4_222, %c1_223, %c0_224] : memref<6x6x128xf32, #tpu.memory_space<vmem>>, vector<1x4x128xf32>
    %205 = vector.shape_cast %204 : vector<1x4x128xf32> to vector<4x128xf32>
    %206 = arith.truncf %205 : vector<4x128xf32> to vector<4x128xbf16>
    %c2_225 = arith.constant 2 : index
    %c1_226 = arith.constant 1 : index
    %c0_227 = arith.constant 0 : index
    %c0_228 = arith.constant 0 : index
    %207 = vector.load %arg2[%c2_225, %c1_226, %c0_227, %c0_228] : memref<3x3x128x128xbf16, #tpu.memory_space<vmem>>, vector<1x1x128x128xbf16>
    %208 = vector.shape_cast %207 : vector<1x1x128x128xbf16> to vector<128x128xbf16>
    %cst_229 = arith.constant dense<0.000000e+00> : vector<4x128xf32>
    %209 = tpu.matmul %206, %208, %cst_229 {dimension_numbers = #tpu.dot_dimension_numbers<[1], [0], [0], [1], [0, 0, 1, 1], [], []>} : vector<4x128xbf16>, vector<128x128xbf16>, vector<4x128xf32> -> vector<4x128xf32>
    %210 = arith.addf %203, %209 : vector<4x128xf32>
    %c4_230 = arith.constant 4 : index
    %c2_231 = arith.constant 2 : index
    %c0_232 = arith.constant 0 : index
    %211 = vector.load %arg5[%c4_230, %c2_231, %c0_232] : memref<6x6x128xf32, #tpu.memory_space<vmem>>, vector<1x4x128xf32>
    %212 = vector.shape_cast %211 : vector<1x4x128xf32> to vector<4x128xf32>
    %213 = arith.truncf %212 : vector<4x128xf32> to vector<4x128xbf16>
    %c2_233 = arith.constant 2 : index
    %c2_234 = arith.constant 2 : index
    %c0_235 = arith.constant 0 : index
    %c0_236 = arith.constant 0 : index
    %214 = vector.load %arg2[%c2_233, %c2_234, %c0_235, %c0_236] : memref<3x3x128x128xbf16, #tpu.memory_space<vmem>>, vector<1x1x128x128xbf16>
    %215 = vector.shape_cast %214 : vector<1x1x128x128xbf16> to vector<128x128xbf16>
    %cst_237 = arith.constant dense<0.000000e+00> : vector<4x128xf32>
    %216 = tpu.matmul %213, %215, %cst_237 {dimension_numbers = #tpu.dot_dimension_numbers<[1], [0], [0], [1], [0, 0, 1, 1], [], []>} : vector<4x128xbf16>, vector<128x128xbf16>, vector<4x128xf32> -> vector<4x128xf32>
    %217 = arith.addf %210, %216 : vector<4x128xf32>
    %c0_238 = arith.constant 0 : index
    %c0_239 = arith.constant 0 : index
    %218 = vector.load %arg3[%c0_238, %c0_239] : memref<1x128xf32, #tpu.memory_space<vmem>>, vector<1x128xf32>
    %219 = vector.broadcast %218 : vector<1x128xf32> to vector<4x128xf32>
    %220 = arith.addf %217, %219 : vector<4x128xf32>
    %cst_240 = arith.constant 0.000000e+00 : f32
    %221 = vector.broadcast %cst_240 : f32 to vector<4x128xf32>
    %222 = arith.maximumf %220, %221 : vector<4x128xf32>
    %223 = vector.shape_cast %222 : vector<4x128xf32> to vector<1x4x128xf32>
    %224 = arith.truncf %223 : vector<1x4x128xf32> to vector<1x4x128xbf16>
    %c0_241 = arith.constant 0 : index
    %c2_242 = arith.constant 2 : index
    %c0_243 = arith.constant 0 : index
    %c0_244 = arith.constant 0 : index
    %225 = vector.load %arg4[%c0_241, %c2_242, %c0_243, %c0_244] : memref<1x4x4x128xbf16, #tpu.memory_space<vmem>>, vector<1x1x4x128xbf16>
    %226 = vector.shape_cast %225 : vector<1x1x4x128xbf16> to vector<1x4x128xbf16>
    %227 = vector.shape_cast %224 : vector<1x4x128xbf16> to vector<1x1x4x128xbf16>
    tpu.vector_store %arg4[%c0_241, %c2_242, %c0_243, %c0_244], %227 {strides = array<i32>} : memref<1x4x4x128xbf16, #tpu.memory_space<vmem>>, vector<1x1x4x128xbf16>,
    %cst_245 = arith.constant 0.000000e+00 : f32
    %228 = vector.broadcast %cst_245 : f32 to vector<4x128xf32>
    %c3_246 = arith.constant 3 : index
    %c0_247 = arith.constant 0 : index
    %c0_248 = arith.constant 0 : index
    %229 = vector.load %arg5[%c3_246, %c0_247, %c0_248] : memref<6x6x128xf32, #tpu.memory_space<vmem>>, vector<1x4x128xf32>
    %230 = vector.shape_cast %229 : vector<1x4x128xf32> to vector<4x128xf32>
    %231 = arith.truncf %230 : vector<4x128xf32> to vector<4x128xbf16>
    %c0_249 = arith.constant 0 : index
    %c0_250 = arith.constant 0 : index
    %c0_251 = arith.constant 0 : index
    %c0_252 = arith.constant 0 : index
    %232 = vector.load %arg2[%c0_249, %c0_250, %c0_251, %c0_252] : memref<3x3x128x128xbf16, #tpu.memory_space<vmem>>, vector<1x1x128x128xbf16>
    %233 = vector.shape_cast %232 : vector<1x1x128x128xbf16> to vector<128x128xbf16>
    %cst_253 = arith.constant dense<0.000000e+00> : vector<4x128xf32>
    %234 = tpu.matmul %231, %233, %cst_253 {dimension_numbers = #tpu.dot_dimension_numbers<[1], [0], [0], [1], [0, 0, 1, 1], [], []>} : vector<4x128xbf16>, vector<128x128xbf16>, vector<4x128xf32> -> vector<4x128xf32>
    %235 = arith.addf %228, %234 : vector<4x128xf32>
    %c3_254 = arith.constant 3 : index
    %c1_255 = arith.constant 1 : index
    %c0_256 = arith.constant 0 : index
    %236 = vector.load %arg5[%c3_254, %c1_255, %c0_256] : memref<6x6x128xf32, #tpu.memory_space<vmem>>, vector<1x4x128xf32>
    %237 = vector.shape_cast %236 : vector<1x4x128xf32> to vector<4x128xf32>
    %238 = arith.truncf %237 : vector<4x128xf32> to vector<4x128xbf16>
    %c0_257 = arith.constant 0 : index
    %c1_258 = arith.constant 1 : index
    %c0_259 = arith.constant 0 : index
    %c0_260 = arith.constant 0 : index
    %239 = vector.load %arg2[%c0_257, %c1_258, %c0_259, %c0_260] : memref<3x3x128x128xbf16, #tpu.memory_space<vmem>>, vector<1x1x128x128xbf16>
    %240 = vector.shape_cast %239 : vector<1x1x128x128xbf16> to vector<128x128xbf16>
    %cst_261 = arith.constant dense<0.000000e+00> : vector<4x128xf32>
    %241 = tpu.matmul %238, %240, %cst_261 {dimension_numbers = #tpu.dot_dimension_numbers<[1], [0], [0], [1], [0, 0, 1, 1], [], []>} : vector<4x128xbf16>, vector<128x128xbf16>, vector<4x128xf32> -> vector<4x128xf32>
    %242 = arith.addf %235, %241 : vector<4x128xf32>
    %c3_262 = arith.constant 3 : index
    %c2_263 = arith.constant 2 : index
    %c0_264 = arith.constant 0 : index
    %243 = vector.load %arg5[%c3_262, %c2_263, %c0_264] : memref<6x6x128xf32, #tpu.memory_space<vmem>>, vector<1x4x128xf32>
    %244 = vector.shape_cast %243 : vector<1x4x128xf32> to vector<4x128xf32>
    %245 = arith.truncf %244 : vector<4x128xf32> to vector<4x128xbf16>
    %c0_265 = arith.constant 0 : index
    %c2_266 = arith.constant 2 : index
    %c0_267 = arith.constant 0 : index
    %c0_268 = arith.constant 0 : index
    %246 = vector.load %arg2[%c0_265, %c2_266, %c0_267, %c0_268] : memref<3x3x128x128xbf16, #tpu.memory_space<vmem>>, vector<1x1x128x128xbf16>
    %247 = vector.shape_cast %246 : vector<1x1x128x128xbf16> to vector<128x128xbf16>
    %cst_269 = arith.constant dense<0.000000e+00> : vector<4x128xf32>
    %248 = tpu.matmul %245, %247, %cst_269 {dimension_numbers = #tpu.dot_dimension_numbers<[1], [0], [0], [1], [0, 0, 1, 1], [], []>} : vector<4x128xbf16>, vector<128x128xbf16>, vector<4x128xf32> -> vector<4x128xf32>
    %249 = arith.addf %242, %248 : vector<4x128xf32>
    %c4_270 = arith.constant 4 : index
    %c0_271 = arith.constant 0 : index
    %c0_272 = arith.constant 0 : index
    %250 = vector.load %arg5[%c4_270, %c0_271, %c0_272] : memref<6x6x128xf32, #tpu.memory_space<vmem>>, vector<1x4x128xf32>
    %251 = vector.shape_cast %250 : vector<1x4x128xf32> to vector<4x128xf32>
    %252 = arith.truncf %251 : vector<4x128xf32> to vector<4x128xbf16>
    %c1_273 = arith.constant 1 : index
    %c0_274 = arith.constant 0 : index
    %c0_275 = arith.constant 0 : index
    %c0_276 = arith.constant 0 : index
    %253 = vector.load %arg2[%c1_273, %c0_274, %c0_275, %c0_276] : memref<3x3x128x128xbf16, #tpu.memory_space<vmem>>, vector<1x1x128x128xbf16>
    %254 = vector.shape_cast %253 : vector<1x1x128x128xbf16> to vector<128x128xbf16>
    %cst_277 = arith.constant dense<0.000000e+00> : vector<4x128xf32>
    %255 = tpu.matmul %252, %254, %cst_277 {dimension_numbers = #tpu.dot_dimension_numbers<[1], [0], [0], [1], [0, 0, 1, 1], [], []>} : vector<4x128xbf16>, vector<128x128xbf16>, vector<4x128xf32> -> vector<4x128xf32>
    %256 = arith.addf %249, %255 : vector<4x128xf32>
    %c4_278 = arith.constant 4 : index
    %c1_279 = arith.constant 1 : index
    %c0_280 = arith.constant 0 : index
    %257 = vector.load %arg5[%c4_278, %c1_279, %c0_280] : memref<6x6x128xf32, #tpu.memory_space<vmem>>, vector<1x4x128xf32>
    %258 = vector.shape_cast %257 : vector<1x4x128xf32> to vector<4x128xf32>
    %259 = arith.truncf %258 : vector<4x128xf32> to vector<4x128xbf16>
    %c1_281 = arith.constant 1 : index
    %c1_282 = arith.constant 1 : index
    %c0_283 = arith.constant 0 : index
    %c0_284 = arith.constant 0 : index
    %260 = vector.load %arg2[%c1_281, %c1_282, %c0_283, %c0_284] : memref<3x3x128x128xbf16, #tpu.memory_space<vmem>>, vector<1x1x128x128xbf16>
    %261 = vector.shape_cast %260 : vector<1x1x128x128xbf16> to vector<128x128xbf16>
    %cst_285 = arith.constant dense<0.000000e+00> : vector<4x128xf32>
    %262 = tpu.matmul %259, %261, %cst_285 {dimension_numbers = #tpu.dot_dimension_numbers<[1], [0], [0], [1], [0, 0, 1, 1], [], []>} : vector<4x128xbf16>, vector<128x128xbf16>, vector<4x128xf32> -> vector<4x128xf32>
    %263 = arith.addf %256, %262 : vector<4x128xf32>
    %c4_286 = arith.constant 4 : index
    %c2_287 = arith.constant 2 : index
    %c0_288 = arith.constant 0 : index
    %264 = vector.load %arg5[%c4_286, %c2_287, %c0_288] : memref<6x6x128xf32, #tpu.memory_space<vmem>>, vector<1x4x128xf32>
    %265 = vector.shape_cast %264 : vector<1x4x128xf32> to vector<4x128xf32>
    %266 = arith.truncf %265 : vector<4x128xf32> to vector<4x128xbf16>
    %c1_289 = arith.constant 1 : index
    %c2_290 = arith.constant 2 : index
    %c0_291 = arith.constant 0 : index
    %c0_292 = arith.constant 0 : index
    %267 = vector.load %arg2[%c1_289, %c2_290, %c0_291, %c0_292] : memref<3x3x128x128xbf16, #tpu.memory_space<vmem>>, vector<1x1x128x128xbf16>
    %268 = vector.shape_cast %267 : vector<1x1x128x128xbf16> to vector<128x128xbf16>
    %cst_293 = arith.constant dense<0.000000e+00> : vector<4x128xf32>
    %269 = tpu.matmul %266, %268, %cst_293 {dimension_numbers = #tpu.dot_dimension_numbers<[1], [0], [0], [1], [0, 0, 1, 1], [], []>} : vector<4x128xbf16>, vector<128x128xbf16>, vector<4x128xf32> -> vector<4x128xf32>
    %270 = arith.addf %263, %269 : vector<4x128xf32>
    %c5 = arith.constant 5 : index
    %c0_294 = arith.constant 0 : index
    %c0_295 = arith.constant 0 : index
    %271 = vector.load %arg5[%c5, %c0_294, %c0_295] : memref<6x6x128xf32, #tpu.memory_space<vmem>>, vector<1x4x128xf32>
    %272 = vector.shape_cast %271 : vector<1x4x128xf32> to vector<4x128xf32>
    %273 = arith.truncf %272 : vector<4x128xf32> to vector<4x128xbf16>
    %c2_296 = arith.constant 2 : index
    %c0_297 = arith.constant 0 : index
    %c0_298 = arith.constant 0 : index
    %c0_299 = arith.constant 0 : index
    %274 = vector.load %arg2[%c2_296, %c0_297, %c0_298, %c0_299] : memref<3x3x128x128xbf16, #tpu.memory_space<vmem>>, vector<1x1x128x128xbf16>
    %275 = vector.shape_cast %274 : vector<1x1x128x128xbf16> to vector<128x128xbf16>
    %cst_300 = arith.constant dense<0.000000e+00> : vector<4x128xf32>
    %276 = tpu.matmul %273, %275, %cst_300 {dimension_numbers = #tpu.dot_dimension_numbers<[1], [0], [0], [1], [0, 0, 1, 1], [], []>} : vector<4x128xbf16>, vector<128x128xbf16>, vector<4x128xf32> -> vector<4x128xf32>
    %277 = arith.addf %270, %276 : vector<4x128xf32>
    %c5_301 = arith.constant 5 : index
    %c1_302 = arith.constant 1 : index
    %c0_303 = arith.constant 0 : index
    %278 = vector.load %arg5[%c5_301, %c1_302, %c0_303] : memref<6x6x128xf32, #tpu.memory_space<vmem>>, vector<1x4x128xf32>
    %279 = vector.shape_cast %278 : vector<1x4x128xf32> to vector<4x128xf32>
    %280 = arith.truncf %279 : vector<4x128xf32> to vector<4x128xbf16>
    %c2_304 = arith.constant 2 : index
    %c1_305 = arith.constant 1 : index
    %c0_306 = arith.constant 0 : index
    %c0_307 = arith.constant 0 : index
    %281 = vector.load %arg2[%c2_304, %c1_305, %c0_306, %c0_307] : memref<3x3x128x128xbf16, #tpu.memory_space<vmem>>, vector<1x1x128x128xbf16>
    %282 = vector.shape_cast %281 : vector<1x1x128x128xbf16> to vector<128x128xbf16>
    %cst_308 = arith.constant dense<0.000000e+00> : vector<4x128xf32>
    %283 = tpu.matmul %280, %282, %cst_308 {dimension_numbers = #tpu.dot_dimension_numbers<[1], [0], [0], [1], [0, 0, 1, 1], [], []>} : vector<4x128xbf16>, vector<128x128xbf16>, vector<4x128xf32> -> vector<4x128xf32>
    %284 = arith.addf %277, %283 : vector<4x128xf32>
    %c5_309 = arith.constant 5 : index
    %c2_310 = arith.constant 2 : index
    %c0_311 = arith.constant 0 : index
    %285 = vector.load %arg5[%c5_309, %c2_310, %c0_311] : memref<6x6x128xf32, #tpu.memory_space<vmem>>, vector<1x4x128xf32>
    %286 = vector.shape_cast %285 : vector<1x4x128xf32> to vector<4x128xf32>
    %287 = arith.truncf %286 : vector<4x128xf32> to vector<4x128xbf16>
    %c2_312 = arith.constant 2 : index
    %c2_313 = arith.constant 2 : index
    %c0_314 = arith.constant 0 : index
    %c0_315 = arith.constant 0 : index
    %288 = vector.load %arg2[%c2_312, %c2_313, %c0_314, %c0_315] : memref<3x3x128x128xbf16, #tpu.memory_space<vmem>>, vector<1x1x128x128xbf16>
    %289 = vector.shape_cast %288 : vector<1x1x128x128xbf16> to vector<128x128xbf16>
    %cst_316 = arith.constant dense<0.000000e+00> : vector<4x128xf32>
    %290 = tpu.matmul %287, %289, %cst_316 {dimension_numbers = #tpu.dot_dimension_numbers<[1], [0], [0], [1], [0, 0, 1, 1], [], []>} : vector<4x128xbf16>, vector<128x128xbf16>, vector<4x128xf32> -> vector<4x128xf32>
    %291 = arith.addf %284, %290 : vector<4x128xf32>
    %c0_317 = arith.constant 0 : index
    %c0_318 = arith.constant 0 : index
    %292 = vector.load %arg3[%c0_317, %c0_318] : memref<1x128xf32, #tpu.memory_space<vmem>>, vector<1x128xf32>
    %293 = vector.broadcast %292 : vector<1x128xf32> to vector<4x128xf32>
    %294 = arith.addf %291, %293 : vector<4x128xf32>
    %cst_319 = arith.constant 0.000000e+00 : f32
    %295 = vector.broadcast %cst_319 : f32 to vector<4x128xf32>
    %296 = arith.maximumf %294, %295 : vector<4x128xf32>
    %297 = vector.shape_cast %296 : vector<4x128xf32> to vector<1x4x128xf32>
    %298 = arith.truncf %297 : vector<1x4x128xf32> to vector<1x4x128xbf16>
    %c0_320 = arith.constant 0 : index
    %c3_321 = arith.constant 3 : index
    %c0_322 = arith.constant 0 : index
    %c0_323 = arith.constant 0 : index
    %299 = vector.load %arg4[%c0_320, %c3_321, %c0_322, %c0_323] : memref<1x4x4x128xbf16, #tpu.memory_space<vmem>>, vector<1x1x4x128xbf16>
    %300 = vector.shape_cast %299 : vector<1x1x4x128xbf16> to vector<1x4x128xbf16>
    %301 = vector.shape_cast %298 : vector<1x4x128xbf16> to vector<1x1x4x128xbf16>
    tpu.vector_store %arg4[%c0_320, %c3_321, %c0_322, %c0_323], %301 {strides = array<i32>} : memref<1x4x4x128xbf16, #tpu.memory_space<vmem>>, vector<1x1x4x128xbf16>,
    return
  }
  func.func @transform_0(%arg0: i32) -> (i32, i32, i32, i32) {
    %c0_i32 = arith.constant 0 : i32
    %c0_i32_0 = arith.constant 0 : i32
    %c0_i32_1 = arith.constant 0 : i32
    %c0_i32_2 = arith.constant 0 : i32
    return %arg0, %c0_i32, %c0_i32_0, %c0_i32_1 : i32, i32, i32, i32
  }
  func.func @transform_1(%arg0: i32) -> (i32, i32, i32, i32) {
    %c0_i32 = arith.constant 0 : i32
    %c0_i32_0 = arith.constant 0 : i32
    %c0_i32_1 = arith.constant 0 : i32
    %c0_i32_2 = arith.constant 0 : i32
    %c0_i32_3 = arith.constant 0 : i32
    return %c0_i32, %c0_i32_0, %c0_i32_1, %c0_i32_2 : i32, i32, i32, i32
  }
  func.func @transform_2(%arg0: i32) -> (i32, i32) {
    %c0_i32 = arith.constant 0 : i32
    %c0_i32_0 = arith.constant 0 : i32
    %c0_i32_1 = arith.constant 0 : i32
    return %c0_i32, %c0_i32_0 : i32, i32
  }
  func.func @transform_3(%arg0: i32) -> (i32, i32, i32, i32) {
    %c0_i32 = arith.constant 0 : i32
    %c0_i32_0 = arith.constant 0 : i32
    %c0_i32_1 = arith.constant 0 : i32
    %c0_i32_2 = arith.constant 0 : i32
    return %arg0, %c0_i32, %c0_i32_0, %c0_i32_1 : i32, i32, i32, i32
  }
}

module attributes {stable_mosaic.version = 11 : i64} {
  func.func @_conv3x3_kernel(%arg0: i32, %arg1: memref<1x8x8x256xbf16, #tpu.memory_space<vmem>>, %arg2: memref<3x3x256x128xbf16, #tpu.memory_space<vmem>>, %arg3: memref<1x128xf32, #tpu.memory_space<vmem>>, %arg4: memref<1x8x8x128xbf16, #tpu.memory_space<vmem>>, %arg5: memref<10x10x256xf32, #tpu.memory_space<vmem>>) attributes {dimension_semantics = [#tpu.dimension_semantics<parallel>], iteration_bounds = array<i64: 2>, scalar_prefetch = 0 : i64, scratch_operands = 1 : i64, tpu.core_type = #tpu.core_type<tc>, window_params = [{transform_indices = @transform_0, window_bounds = array<i64: 1, 8, 8, 256>}, {pipeline_mode = #tpu.pipeline_mode<synchronous>, transform_indices = @transform_1, window_bounds = array<i64: 3, 3, 256, 128>}, {pipeline_mode = #tpu.pipeline_mode<synchronous>, transform_indices = @transform_2, window_bounds = array<i64: 1, 128>}, {transform_indices = @transform_3, window_bounds = array<i64: 1, 8, 8, 128>}]} {
    %cst = arith.constant 0.000000e+00 : f32
    %0 = vector.broadcast %cst : f32 to vector<10x10x256xf32>
    %c0 = arith.constant 0 : index
    %c0_0 = arith.constant 0 : index
    %c0_1 = arith.constant 0 : index
    %1 = vector.load %arg5[%c0, %c0_0, %c0_1] : memref<10x10x256xf32, #tpu.memory_space<vmem>>, vector<10x10x256xf32>
    tpu.vector_store %arg5[%c0, %c0_0, %c0_1], %0 {strides = array<i32>} : memref<10x10x256xf32, #tpu.memory_space<vmem>>, vector<10x10x256xf32>,
    %c0_2 = arith.constant 0 : index
    %c0_3 = arith.constant 0 : index
    %c0_4 = arith.constant 0 : index
    %c0_5 = arith.constant 0 : index
    %2 = vector.load %arg1[%c0_2, %c0_3, %c0_4, %c0_5] : memref<1x8x8x256xbf16, #tpu.memory_space<vmem>>, vector<1x8x8x256xbf16>
    %3 = vector.shape_cast %2 : vector<1x8x8x256xbf16> to vector<8x8x256xbf16>
    %4 = arith.extf %3 : vector<8x8x256xbf16> to vector<8x8x256xf32>
    %c1 = arith.constant 1 : index
    %c1_6 = arith.constant 1 : index
    %c0_7 = arith.constant 0 : index
    %5 = vector.load %arg5[%c1, %c1_6, %c0_7] : memref<10x10x256xf32, #tpu.memory_space<vmem>>, vector<8x8x256xf32>
    tpu.vector_store %arg5[%c1, %c1_6, %c0_7], %4 {strides = array<i32>} : memref<10x10x256xf32, #tpu.memory_space<vmem>>, vector<8x8x256xf32>,
    %cst_8 = arith.constant 0.000000e+00 : f32
    %6 = vector.broadcast %cst_8 : f32 to vector<64x128xf32>
    %c0_9 = arith.constant 0 : index
    %c0_10 = arith.constant 0 : index
    %c0_11 = arith.constant 0 : index
    %7 = vector.load %arg5[%c0_9, %c0_10, %c0_11] : memref<10x10x256xf32, #tpu.memory_space<vmem>>, vector<8x8x256xf32>
    %8 = vector.shape_cast %7 : vector<8x8x256xf32> to vector<64x256xf32>
    %9 = arith.truncf %8 : vector<64x256xf32> to vector<64x256xbf16>
    %c0_12 = arith.constant 0 : index
    %c0_13 = arith.constant 0 : index
    %c0_14 = arith.constant 0 : index
    %c0_15 = arith.constant 0 : index
    %10 = vector.load %arg2[%c0_12, %c0_13, %c0_14, %c0_15] : memref<3x3x256x128xbf16, #tpu.memory_space<vmem>>, vector<1x1x256x128xbf16>
    %11 = vector.shape_cast %10 : vector<1x1x256x128xbf16> to vector<256x128xbf16>
    %cst_16 = arith.constant dense<0.000000e+00> : vector<64x128xf32>
    %12 = tpu.matmul %9, %11, %cst_16 {dimension_numbers = #tpu.dot_dimension_numbers<[1], [0], [0], [1], [0, 0, 1, 1], [], []>} : vector<64x256xbf16>, vector<256x128xbf16>, vector<64x128xf32> -> vector<64x128xf32>
    %13 = arith.addf %6, %12 : vector<64x128xf32>
    %c0_17 = arith.constant 0 : index
    %c1_18 = arith.constant 1 : index
    %c0_19 = arith.constant 0 : index
    %14 = vector.load %arg5[%c0_17, %c1_18, %c0_19] : memref<10x10x256xf32, #tpu.memory_space<vmem>>, vector<8x8x256xf32>
    %15 = vector.shape_cast %14 : vector<8x8x256xf32> to vector<64x256xf32>
    %16 = arith.truncf %15 : vector<64x256xf32> to vector<64x256xbf16>
    %c0_20 = arith.constant 0 : index
    %c1_21 = arith.constant 1 : index
    %c0_22 = arith.constant 0 : index
    %c0_23 = arith.constant 0 : index
    %17 = vector.load %arg2[%c0_20, %c1_21, %c0_22, %c0_23] : memref<3x3x256x128xbf16, #tpu.memory_space<vmem>>, vector<1x1x256x128xbf16>
    %18 = vector.shape_cast %17 : vector<1x1x256x128xbf16> to vector<256x128xbf16>
    %cst_24 = arith.constant dense<0.000000e+00> : vector<64x128xf32>
    %19 = tpu.matmul %16, %18, %cst_24 {dimension_numbers = #tpu.dot_dimension_numbers<[1], [0], [0], [1], [0, 0, 1, 1], [], []>} : vector<64x256xbf16>, vector<256x128xbf16>, vector<64x128xf32> -> vector<64x128xf32>
    %20 = arith.addf %13, %19 : vector<64x128xf32>
    %c0_25 = arith.constant 0 : index
    %c2 = arith.constant 2 : index
    %c0_26 = arith.constant 0 : index
    %21 = vector.load %arg5[%c0_25, %c2, %c0_26] : memref<10x10x256xf32, #tpu.memory_space<vmem>>, vector<8x8x256xf32>
    %22 = vector.shape_cast %21 : vector<8x8x256xf32> to vector<64x256xf32>
    %23 = arith.truncf %22 : vector<64x256xf32> to vector<64x256xbf16>
    %c0_27 = arith.constant 0 : index
    %c2_28 = arith.constant 2 : index
    %c0_29 = arith.constant 0 : index
    %c0_30 = arith.constant 0 : index
    %24 = vector.load %arg2[%c0_27, %c2_28, %c0_29, %c0_30] : memref<3x3x256x128xbf16, #tpu.memory_space<vmem>>, vector<1x1x256x128xbf16>
    %25 = vector.shape_cast %24 : vector<1x1x256x128xbf16> to vector<256x128xbf16>
    %cst_31 = arith.constant dense<0.000000e+00> : vector<64x128xf32>
    %26 = tpu.matmul %23, %25, %cst_31 {dimension_numbers = #tpu.dot_dimension_numbers<[1], [0], [0], [1], [0, 0, 1, 1], [], []>} : vector<64x256xbf16>, vector<256x128xbf16>, vector<64x128xf32> -> vector<64x128xf32>
    %27 = arith.addf %20, %26 : vector<64x128xf32>
    %c1_32 = arith.constant 1 : index
    %c0_33 = arith.constant 0 : index
    %c0_34 = arith.constant 0 : index
    %28 = vector.load %arg5[%c1_32, %c0_33, %c0_34] : memref<10x10x256xf32, #tpu.memory_space<vmem>>, vector<8x8x256xf32>
    %29 = vector.shape_cast %28 : vector<8x8x256xf32> to vector<64x256xf32>
    %30 = arith.truncf %29 : vector<64x256xf32> to vector<64x256xbf16>
    %c1_35 = arith.constant 1 : index
    %c0_36 = arith.constant 0 : index
    %c0_37 = arith.constant 0 : index
    %c0_38 = arith.constant 0 : index
    %31 = vector.load %arg2[%c1_35, %c0_36, %c0_37, %c0_38] : memref<3x3x256x128xbf16, #tpu.memory_space<vmem>>, vector<1x1x256x128xbf16>
    %32 = vector.shape_cast %31 : vector<1x1x256x128xbf16> to vector<256x128xbf16>
    %cst_39 = arith.constant dense<0.000000e+00> : vector<64x128xf32>
    %33 = tpu.matmul %30, %32, %cst_39 {dimension_numbers = #tpu.dot_dimension_numbers<[1], [0], [0], [1], [0, 0, 1, 1], [], []>} : vector<64x256xbf16>, vector<256x128xbf16>, vector<64x128xf32> -> vector<64x128xf32>
    %34 = arith.addf %27, %33 : vector<64x128xf32>
    %c1_40 = arith.constant 1 : index
    %c1_41 = arith.constant 1 : index
    %c0_42 = arith.constant 0 : index
    %35 = vector.load %arg5[%c1_40, %c1_41, %c0_42] : memref<10x10x256xf32, #tpu.memory_space<vmem>>, vector<8x8x256xf32>
    %36 = vector.shape_cast %35 : vector<8x8x256xf32> to vector<64x256xf32>
    %37 = arith.truncf %36 : vector<64x256xf32> to vector<64x256xbf16>
    %c1_43 = arith.constant 1 : index
    %c1_44 = arith.constant 1 : index
    %c0_45 = arith.constant 0 : index
    %c0_46 = arith.constant 0 : index
    %38 = vector.load %arg2[%c1_43, %c1_44, %c0_45, %c0_46] : memref<3x3x256x128xbf16, #tpu.memory_space<vmem>>, vector<1x1x256x128xbf16>
    %39 = vector.shape_cast %38 : vector<1x1x256x128xbf16> to vector<256x128xbf16>
    %cst_47 = arith.constant dense<0.000000e+00> : vector<64x128xf32>
    %40 = tpu.matmul %37, %39, %cst_47 {dimension_numbers = #tpu.dot_dimension_numbers<[1], [0], [0], [1], [0, 0, 1, 1], [], []>} : vector<64x256xbf16>, vector<256x128xbf16>, vector<64x128xf32> -> vector<64x128xf32>
    %41 = arith.addf %34, %40 : vector<64x128xf32>
    %c1_48 = arith.constant 1 : index
    %c2_49 = arith.constant 2 : index
    %c0_50 = arith.constant 0 : index
    %42 = vector.load %arg5[%c1_48, %c2_49, %c0_50] : memref<10x10x256xf32, #tpu.memory_space<vmem>>, vector<8x8x256xf32>
    %43 = vector.shape_cast %42 : vector<8x8x256xf32> to vector<64x256xf32>
    %44 = arith.truncf %43 : vector<64x256xf32> to vector<64x256xbf16>
    %c1_51 = arith.constant 1 : index
    %c2_52 = arith.constant 2 : index
    %c0_53 = arith.constant 0 : index
    %c0_54 = arith.constant 0 : index
    %45 = vector.load %arg2[%c1_51, %c2_52, %c0_53, %c0_54] : memref<3x3x256x128xbf16, #tpu.memory_space<vmem>>, vector<1x1x256x128xbf16>
    %46 = vector.shape_cast %45 : vector<1x1x256x128xbf16> to vector<256x128xbf16>
    %cst_55 = arith.constant dense<0.000000e+00> : vector<64x128xf32>
    %47 = tpu.matmul %44, %46, %cst_55 {dimension_numbers = #tpu.dot_dimension_numbers<[1], [0], [0], [1], [0, 0, 1, 1], [], []>} : vector<64x256xbf16>, vector<256x128xbf16>, vector<64x128xf32> -> vector<64x128xf32>
    %48 = arith.addf %41, %47 : vector<64x128xf32>
    %c2_56 = arith.constant 2 : index
    %c0_57 = arith.constant 0 : index
    %c0_58 = arith.constant 0 : index
    %49 = vector.load %arg5[%c2_56, %c0_57, %c0_58] : memref<10x10x256xf32, #tpu.memory_space<vmem>>, vector<8x8x256xf32>
    %50 = vector.shape_cast %49 : vector<8x8x256xf32> to vector<64x256xf32>
    %51 = arith.truncf %50 : vector<64x256xf32> to vector<64x256xbf16>
    %c2_59 = arith.constant 2 : index
    %c0_60 = arith.constant 0 : index
    %c0_61 = arith.constant 0 : index
    %c0_62 = arith.constant 0 : index
    %52 = vector.load %arg2[%c2_59, %c0_60, %c0_61, %c0_62] : memref<3x3x256x128xbf16, #tpu.memory_space<vmem>>, vector<1x1x256x128xbf16>
    %53 = vector.shape_cast %52 : vector<1x1x256x128xbf16> to vector<256x128xbf16>
    %cst_63 = arith.constant dense<0.000000e+00> : vector<64x128xf32>
    %54 = tpu.matmul %51, %53, %cst_63 {dimension_numbers = #tpu.dot_dimension_numbers<[1], [0], [0], [1], [0, 0, 1, 1], [], []>} : vector<64x256xbf16>, vector<256x128xbf16>, vector<64x128xf32> -> vector<64x128xf32>
    %55 = arith.addf %48, %54 : vector<64x128xf32>
    %c2_64 = arith.constant 2 : index
    %c1_65 = arith.constant 1 : index
    %c0_66 = arith.constant 0 : index
    %56 = vector.load %arg5[%c2_64, %c1_65, %c0_66] : memref<10x10x256xf32, #tpu.memory_space<vmem>>, vector<8x8x256xf32>
    %57 = vector.shape_cast %56 : vector<8x8x256xf32> to vector<64x256xf32>
    %58 = arith.truncf %57 : vector<64x256xf32> to vector<64x256xbf16>
    %c2_67 = arith.constant 2 : index
    %c1_68 = arith.constant 1 : index
    %c0_69 = arith.constant 0 : index
    %c0_70 = arith.constant 0 : index
    %59 = vector.load %arg2[%c2_67, %c1_68, %c0_69, %c0_70] : memref<3x3x256x128xbf16, #tpu.memory_space<vmem>>, vector<1x1x256x128xbf16>
    %60 = vector.shape_cast %59 : vector<1x1x256x128xbf16> to vector<256x128xbf16>
    %cst_71 = arith.constant dense<0.000000e+00> : vector<64x128xf32>
    %61 = tpu.matmul %58, %60, %cst_71 {dimension_numbers = #tpu.dot_dimension_numbers<[1], [0], [0], [1], [0, 0, 1, 1], [], []>} : vector<64x256xbf16>, vector<256x128xbf16>, vector<64x128xf32> -> vector<64x128xf32>
    %62 = arith.addf %55, %61 : vector<64x128xf32>
    %c2_72 = arith.constant 2 : index
    %c2_73 = arith.constant 2 : index
    %c0_74 = arith.constant 0 : index
    %63 = vector.load %arg5[%c2_72, %c2_73, %c0_74] : memref<10x10x256xf32, #tpu.memory_space<vmem>>, vector<8x8x256xf32>
    %64 = vector.shape_cast %63 : vector<8x8x256xf32> to vector<64x256xf32>
    %65 = arith.truncf %64 : vector<64x256xf32> to vector<64x256xbf16>
    %c2_75 = arith.constant 2 : index
    %c2_76 = arith.constant 2 : index
    %c0_77 = arith.constant 0 : index
    %c0_78 = arith.constant 0 : index
    %66 = vector.load %arg2[%c2_75, %c2_76, %c0_77, %c0_78] : memref<3x3x256x128xbf16, #tpu.memory_space<vmem>>, vector<1x1x256x128xbf16>
    %67 = vector.shape_cast %66 : vector<1x1x256x128xbf16> to vector<256x128xbf16>
    %cst_79 = arith.constant dense<0.000000e+00> : vector<64x128xf32>
    %68 = tpu.matmul %65, %67, %cst_79 {dimension_numbers = #tpu.dot_dimension_numbers<[1], [0], [0], [1], [0, 0, 1, 1], [], []>} : vector<64x256xbf16>, vector<256x128xbf16>, vector<64x128xf32> -> vector<64x128xf32>
    %69 = arith.addf %62, %68 : vector<64x128xf32>
    %c0_80 = arith.constant 0 : index
    %c0_81 = arith.constant 0 : index
    %70 = vector.load %arg3[%c0_80, %c0_81] : memref<1x128xf32, #tpu.memory_space<vmem>>, vector<1x128xf32>
    %71 = vector.broadcast %70 : vector<1x128xf32> to vector<64x128xf32>
    %72 = arith.addf %69, %71 : vector<64x128xf32>
    %cst_82 = arith.constant 0.000000e+00 : f32
    %73 = vector.broadcast %cst_82 : f32 to vector<64x128xf32>
    %74 = arith.maximumf %72, %73 : vector<64x128xf32>
    %75 = vector.shape_cast %74 : vector<64x128xf32> to vector<8x8x128xf32>
    %76 = arith.truncf %75 : vector<8x8x128xf32> to vector<8x8x128xbf16>
    %c0_83 = arith.constant 0 : index
    %c0_84 = arith.constant 0 : index
    %c0_85 = arith.constant 0 : index
    %c0_86 = arith.constant 0 : index
    %77 = vector.load %arg4[%c0_83, %c0_84, %c0_85, %c0_86] : memref<1x8x8x128xbf16, #tpu.memory_space<vmem>>, vector<1x8x8x128xbf16>
    %78 = vector.shape_cast %77 : vector<1x8x8x128xbf16> to vector<8x8x128xbf16>
    %79 = vector.shape_cast %76 : vector<8x8x128xbf16> to vector<1x8x8x128xbf16>
    tpu.vector_store %arg4[%c0_83, %c0_84, %c0_85, %c0_86], %79 {strides = array<i32>} : memref<1x8x8x128xbf16, #tpu.memory_space<vmem>>, vector<1x8x8x128xbf16>,
    return
  }
  func.func @transform_0(%arg0: i32) -> (i32, i32, i32, i32) {
    %c0_i32 = arith.constant 0 : i32
    %c0_i32_0 = arith.constant 0 : i32
    %c0_i32_1 = arith.constant 0 : i32
    %c0_i32_2 = arith.constant 0 : i32
    return %arg0, %c0_i32, %c0_i32_0, %c0_i32_1 : i32, i32, i32, i32
  }
  func.func @transform_1(%arg0: i32) -> (i32, i32, i32, i32) {
    %c0_i32 = arith.constant 0 : i32
    %c0_i32_0 = arith.constant 0 : i32
    %c0_i32_1 = arith.constant 0 : i32
    %c0_i32_2 = arith.constant 0 : i32
    %c0_i32_3 = arith.constant 0 : i32
    return %c0_i32, %c0_i32_0, %c0_i32_1, %c0_i32_2 : i32, i32, i32, i32
  }
  func.func @transform_2(%arg0: i32) -> (i32, i32) {
    %c0_i32 = arith.constant 0 : i32
    %c0_i32_0 = arith.constant 0 : i32
    %c0_i32_1 = arith.constant 0 : i32
    return %c0_i32, %c0_i32_0 : i32, i32
  }
  func.func @transform_3(%arg0: i32) -> (i32, i32, i32, i32) {
    %c0_i32 = arith.constant 0 : i32
    %c0_i32_0 = arith.constant 0 : i32
    %c0_i32_1 = arith.constant 0 : i32
    %c0_i32_2 = arith.constant 0 : i32
    return %arg0, %c0_i32, %c0_i32_0, %c0_i32_1 : i32, i32, i32, i32
  }
}

module attributes {stable_mosaic.version = 11 : i64} {
  func.func @_conv3x3_kernel(%arg0: i32, %arg1: memref<1x8x8x128xbf16, #tpu.memory_space<vmem>>, %arg2: memref<3x3x128x128xbf16, #tpu.memory_space<vmem>>, %arg3: memref<1x128xf32, #tpu.memory_space<vmem>>, %arg4: memref<128x128xbf16, #tpu.memory_space<vmem>>, %arg5: memref<1x128xf32, #tpu.memory_space<vmem>>, %arg6: memref<1x8x8x128xf32, #tpu.memory_space<vmem>>, %arg7: memref<10x10x128xf32, #tpu.memory_space<vmem>>) attributes {dimension_semantics = [#tpu.dimension_semantics<parallel>], iteration_bounds = array<i64: 2>, scalar_prefetch = 0 : i64, scratch_operands = 1 : i64, tpu.core_type = #tpu.core_type<tc>, window_params = [{transform_indices = @transform_0, window_bounds = array<i64: 1, 8, 8, 128>}, {pipeline_mode = #tpu.pipeline_mode<synchronous>, transform_indices = @transform_1, window_bounds = array<i64: 3, 3, 128, 128>}, {pipeline_mode = #tpu.pipeline_mode<synchronous>, transform_indices = @transform_2, window_bounds = array<i64: 1, 128>}, {pipeline_mode = #tpu.pipeline_mode<synchronous>, transform_indices = @transform_3, window_bounds = array<i64: 128, 128>}, {pipeline_mode = #tpu.pipeline_mode<synchronous>, transform_indices = @transform_4, window_bounds = array<i64: 1, 128>}, {transform_indices = @transform_5, window_bounds = array<i64: 1, 8, 8, 128>}]} {
    %cst = arith.constant 0.000000e+00 : f32
    %0 = vector.broadcast %cst : f32 to vector<10x10x128xf32>
    %c0 = arith.constant 0 : index
    %c0_0 = arith.constant 0 : index
    %c0_1 = arith.constant 0 : index
    %1 = vector.load %arg7[%c0, %c0_0, %c0_1] : memref<10x10x128xf32, #tpu.memory_space<vmem>>, vector<10x10x128xf32>
    tpu.vector_store %arg7[%c0, %c0_0, %c0_1], %0 {strides = array<i32>} : memref<10x10x128xf32, #tpu.memory_space<vmem>>, vector<10x10x128xf32>,
    %c0_2 = arith.constant 0 : index
    %c0_3 = arith.constant 0 : index
    %c0_4 = arith.constant 0 : index
    %c0_5 = arith.constant 0 : index
    %2 = vector.load %arg1[%c0_2, %c0_3, %c0_4, %c0_5] : memref<1x8x8x128xbf16, #tpu.memory_space<vmem>>, vector<1x8x8x128xbf16>
    %3 = vector.shape_cast %2 : vector<1x8x8x128xbf16> to vector<8x8x128xbf16>
    %4 = arith.extf %3 : vector<8x8x128xbf16> to vector<8x8x128xf32>
    %c1 = arith.constant 1 : index
    %c1_6 = arith.constant 1 : index
    %c0_7 = arith.constant 0 : index
    %5 = vector.load %arg7[%c1, %c1_6, %c0_7] : memref<10x10x128xf32, #tpu.memory_space<vmem>>, vector<8x8x128xf32>
    tpu.vector_store %arg7[%c1, %c1_6, %c0_7], %4 {strides = array<i32>} : memref<10x10x128xf32, #tpu.memory_space<vmem>>, vector<8x8x128xf32>,
    %cst_8 = arith.constant 0.000000e+00 : f32
    %6 = vector.broadcast %cst_8 : f32 to vector<64x128xf32>
    %c0_9 = arith.constant 0 : index
    %c0_10 = arith.constant 0 : index
    %c0_11 = arith.constant 0 : index
    %7 = vector.load %arg7[%c0_9, %c0_10, %c0_11] : memref<10x10x128xf32, #tpu.memory_space<vmem>>, vector<8x8x128xf32>
    %8 = vector.shape_cast %7 : vector<8x8x128xf32> to vector<64x128xf32>
    %9 = arith.truncf %8 : vector<64x128xf32> to vector<64x128xbf16>
    %c0_12 = arith.constant 0 : index
    %c0_13 = arith.constant 0 : index
    %c0_14 = arith.constant 0 : index
    %c0_15 = arith.constant 0 : index
    %10 = vector.load %arg2[%c0_12, %c0_13, %c0_14, %c0_15] : memref<3x3x128x128xbf16, #tpu.memory_space<vmem>>, vector<1x1x128x128xbf16>
    %11 = vector.shape_cast %10 : vector<1x1x128x128xbf16> to vector<128x128xbf16>
    %cst_16 = arith.constant dense<0.000000e+00> : vector<64x128xf32>
    %12 = tpu.matmul %9, %11, %cst_16 {dimension_numbers = #tpu.dot_dimension_numbers<[1], [0], [0], [1], [0, 0, 1, 1], [], []>} : vector<64x128xbf16>, vector<128x128xbf16>, vector<64x128xf32> -> vector<64x128xf32>
    %13 = arith.addf %6, %12 : vector<64x128xf32>
    %c0_17 = arith.constant 0 : index
    %c1_18 = arith.constant 1 : index
    %c0_19 = arith.constant 0 : index
    %14 = vector.load %arg7[%c0_17, %c1_18, %c0_19] : memref<10x10x128xf32, #tpu.memory_space<vmem>>, vector<8x8x128xf32>
    %15 = vector.shape_cast %14 : vector<8x8x128xf32> to vector<64x128xf32>
    %16 = arith.truncf %15 : vector<64x128xf32> to vector<64x128xbf16>
    %c0_20 = arith.constant 0 : index
    %c1_21 = arith.constant 1 : index
    %c0_22 = arith.constant 0 : index
    %c0_23 = arith.constant 0 : index
    %17 = vector.load %arg2[%c0_20, %c1_21, %c0_22, %c0_23] : memref<3x3x128x128xbf16, #tpu.memory_space<vmem>>, vector<1x1x128x128xbf16>
    %18 = vector.shape_cast %17 : vector<1x1x128x128xbf16> to vector<128x128xbf16>
    %cst_24 = arith.constant dense<0.000000e+00> : vector<64x128xf32>
    %19 = tpu.matmul %16, %18, %cst_24 {dimension_numbers = #tpu.dot_dimension_numbers<[1], [0], [0], [1], [0, 0, 1, 1], [], []>} : vector<64x128xbf16>, vector<128x128xbf16>, vector<64x128xf32> -> vector<64x128xf32>
    %20 = arith.addf %13, %19 : vector<64x128xf32>
    %c0_25 = arith.constant 0 : index
    %c2 = arith.constant 2 : index
    %c0_26 = arith.constant 0 : index
    %21 = vector.load %arg7[%c0_25, %c2, %c0_26] : memref<10x10x128xf32, #tpu.memory_space<vmem>>, vector<8x8x128xf32>
    %22 = vector.shape_cast %21 : vector<8x8x128xf32> to vector<64x128xf32>
    %23 = arith.truncf %22 : vector<64x128xf32> to vector<64x128xbf16>
    %c0_27 = arith.constant 0 : index
    %c2_28 = arith.constant 2 : index
    %c0_29 = arith.constant 0 : index
    %c0_30 = arith.constant 0 : index
    %24 = vector.load %arg2[%c0_27, %c2_28, %c0_29, %c0_30] : memref<3x3x128x128xbf16, #tpu.memory_space<vmem>>, vector<1x1x128x128xbf16>
    %25 = vector.shape_cast %24 : vector<1x1x128x128xbf16> to vector<128x128xbf16>
    %cst_31 = arith.constant dense<0.000000e+00> : vector<64x128xf32>
    %26 = tpu.matmul %23, %25, %cst_31 {dimension_numbers = #tpu.dot_dimension_numbers<[1], [0], [0], [1], [0, 0, 1, 1], [], []>} : vector<64x128xbf16>, vector<128x128xbf16>, vector<64x128xf32> -> vector<64x128xf32>
    %27 = arith.addf %20, %26 : vector<64x128xf32>
    %c1_32 = arith.constant 1 : index
    %c0_33 = arith.constant 0 : index
    %c0_34 = arith.constant 0 : index
    %28 = vector.load %arg7[%c1_32, %c0_33, %c0_34] : memref<10x10x128xf32, #tpu.memory_space<vmem>>, vector<8x8x128xf32>
    %29 = vector.shape_cast %28 : vector<8x8x128xf32> to vector<64x128xf32>
    %30 = arith.truncf %29 : vector<64x128xf32> to vector<64x128xbf16>
    %c1_35 = arith.constant 1 : index
    %c0_36 = arith.constant 0 : index
    %c0_37 = arith.constant 0 : index
    %c0_38 = arith.constant 0 : index
    %31 = vector.load %arg2[%c1_35, %c0_36, %c0_37, %c0_38] : memref<3x3x128x128xbf16, #tpu.memory_space<vmem>>, vector<1x1x128x128xbf16>
    %32 = vector.shape_cast %31 : vector<1x1x128x128xbf16> to vector<128x128xbf16>
    %cst_39 = arith.constant dense<0.000000e+00> : vector<64x128xf32>
    %33 = tpu.matmul %30, %32, %cst_39 {dimension_numbers = #tpu.dot_dimension_numbers<[1], [0], [0], [1], [0, 0, 1, 1], [], []>} : vector<64x128xbf16>, vector<128x128xbf16>, vector<64x128xf32> -> vector<64x128xf32>
    %34 = arith.addf %27, %33 : vector<64x128xf32>
    %c1_40 = arith.constant 1 : index
    %c1_41 = arith.constant 1 : index
    %c0_42 = arith.constant 0 : index
    %35 = vector.load %arg7[%c1_40, %c1_41, %c0_42] : memref<10x10x128xf32, #tpu.memory_space<vmem>>, vector<8x8x128xf32>
    %36 = vector.shape_cast %35 : vector<8x8x128xf32> to vector<64x128xf32>
    %37 = arith.truncf %36 : vector<64x128xf32> to vector<64x128xbf16>
    %c1_43 = arith.constant 1 : index
    %c1_44 = arith.constant 1 : index
    %c0_45 = arith.constant 0 : index
    %c0_46 = arith.constant 0 : index
    %38 = vector.load %arg2[%c1_43, %c1_44, %c0_45, %c0_46] : memref<3x3x128x128xbf16, #tpu.memory_space<vmem>>, vector<1x1x128x128xbf16>
    %39 = vector.shape_cast %38 : vector<1x1x128x128xbf16> to vector<128x128xbf16>
    %cst_47 = arith.constant dense<0.000000e+00> : vector<64x128xf32>
    %40 = tpu.matmul %37, %39, %cst_47 {dimension_numbers = #tpu.dot_dimension_numbers<[1], [0], [0], [1], [0, 0, 1, 1], [], []>} : vector<64x128xbf16>, vector<128x128xbf16>, vector<64x128xf32> -> vector<64x128xf32>
    %41 = arith.addf %34, %40 : vector<64x128xf32>
    %c1_48 = arith.constant 1 : index
    %c2_49 = arith.constant 2 : index
    %c0_50 = arith.constant 0 : index
    %42 = vector.load %arg7[%c1_48, %c2_49, %c0_50] : memref<10x10x128xf32, #tpu.memory_space<vmem>>, vector<8x8x128xf32>
    %43 = vector.shape_cast %42 : vector<8x8x128xf32> to vector<64x128xf32>
    %44 = arith.truncf %43 : vector<64x128xf32> to vector<64x128xbf16>
    %c1_51 = arith.constant 1 : index
    %c2_52 = arith.constant 2 : index
    %c0_53 = arith.constant 0 : index
    %c0_54 = arith.constant 0 : index
    %45 = vector.load %arg2[%c1_51, %c2_52, %c0_53, %c0_54] : memref<3x3x128x128xbf16, #tpu.memory_space<vmem>>, vector<1x1x128x128xbf16>
    %46 = vector.shape_cast %45 : vector<1x1x128x128xbf16> to vector<128x128xbf16>
    %cst_55 = arith.constant dense<0.000000e+00> : vector<64x128xf32>
    %47 = tpu.matmul %44, %46, %cst_55 {dimension_numbers = #tpu.dot_dimension_numbers<[1], [0], [0], [1], [0, 0, 1, 1], [], []>} : vector<64x128xbf16>, vector<128x128xbf16>, vector<64x128xf32> -> vector<64x128xf32>
    %48 = arith.addf %41, %47 : vector<64x128xf32>
    %c2_56 = arith.constant 2 : index
    %c0_57 = arith.constant 0 : index
    %c0_58 = arith.constant 0 : index
    %49 = vector.load %arg7[%c2_56, %c0_57, %c0_58] : memref<10x10x128xf32, #tpu.memory_space<vmem>>, vector<8x8x128xf32>
    %50 = vector.shape_cast %49 : vector<8x8x128xf32> to vector<64x128xf32>
    %51 = arith.truncf %50 : vector<64x128xf32> to vector<64x128xbf16>
    %c2_59 = arith.constant 2 : index
    %c0_60 = arith.constant 0 : index
    %c0_61 = arith.constant 0 : index
    %c0_62 = arith.constant 0 : index
    %52 = vector.load %arg2[%c2_59, %c0_60, %c0_61, %c0_62] : memref<3x3x128x128xbf16, #tpu.memory_space<vmem>>, vector<1x1x128x128xbf16>
    %53 = vector.shape_cast %52 : vector<1x1x128x128xbf16> to vector<128x128xbf16>
    %cst_63 = arith.constant dense<0.000000e+00> : vector<64x128xf32>
    %54 = tpu.matmul %51, %53, %cst_63 {dimension_numbers = #tpu.dot_dimension_numbers<[1], [0], [0], [1], [0, 0, 1, 1], [], []>} : vector<64x128xbf16>, vector<128x128xbf16>, vector<64x128xf32> -> vector<64x128xf32>
    %55 = arith.addf %48, %54 : vector<64x128xf32>
    %c2_64 = arith.constant 2 : index
    %c1_65 = arith.constant 1 : index
    %c0_66 = arith.constant 0 : index
    %56 = vector.load %arg7[%c2_64, %c1_65, %c0_66] : memref<10x10x128xf32, #tpu.memory_space<vmem>>, vector<8x8x128xf32>
    %57 = vector.shape_cast %56 : vector<8x8x128xf32> to vector<64x128xf32>
    %58 = arith.truncf %57 : vector<64x128xf32> to vector<64x128xbf16>
    %c2_67 = arith.constant 2 : index
    %c1_68 = arith.constant 1 : index
    %c0_69 = arith.constant 0 : index
    %c0_70 = arith.constant 0 : index
    %59 = vector.load %arg2[%c2_67, %c1_68, %c0_69, %c0_70] : memref<3x3x128x128xbf16, #tpu.memory_space<vmem>>, vector<1x1x128x128xbf16>
    %60 = vector.shape_cast %59 : vector<1x1x128x128xbf16> to vector<128x128xbf16>
    %cst_71 = arith.constant dense<0.000000e+00> : vector<64x128xf32>
    %61 = tpu.matmul %58, %60, %cst_71 {dimension_numbers = #tpu.dot_dimension_numbers<[1], [0], [0], [1], [0, 0, 1, 1], [], []>} : vector<64x128xbf16>, vector<128x128xbf16>, vector<64x128xf32> -> vector<64x128xf32>
    %62 = arith.addf %55, %61 : vector<64x128xf32>
    %c2_72 = arith.constant 2 : index
    %c2_73 = arith.constant 2 : index
    %c0_74 = arith.constant 0 : index
    %63 = vector.load %arg7[%c2_72, %c2_73, %c0_74] : memref<10x10x128xf32, #tpu.memory_space<vmem>>, vector<8x8x128xf32>
    %64 = vector.shape_cast %63 : vector<8x8x128xf32> to vector<64x128xf32>
    %65 = arith.truncf %64 : vector<64x128xf32> to vector<64x128xbf16>
    %c2_75 = arith.constant 2 : index
    %c2_76 = arith.constant 2 : index
    %c0_77 = arith.constant 0 : index
    %c0_78 = arith.constant 0 : index
    %66 = vector.load %arg2[%c2_75, %c2_76, %c0_77, %c0_78] : memref<3x3x128x128xbf16, #tpu.memory_space<vmem>>, vector<1x1x128x128xbf16>
    %67 = vector.shape_cast %66 : vector<1x1x128x128xbf16> to vector<128x128xbf16>
    %cst_79 = arith.constant dense<0.000000e+00> : vector<64x128xf32>
    %68 = tpu.matmul %65, %67, %cst_79 {dimension_numbers = #tpu.dot_dimension_numbers<[1], [0], [0], [1], [0, 0, 1, 1], [], []>} : vector<64x128xbf16>, vector<128x128xbf16>, vector<64x128xf32> -> vector<64x128xf32>
    %69 = arith.addf %62, %68 : vector<64x128xf32>
    %c0_80 = arith.constant 0 : index
    %c0_81 = arith.constant 0 : index
    %70 = vector.load %arg3[%c0_80, %c0_81] : memref<1x128xf32, #tpu.memory_space<vmem>>, vector<1x128xf32>
    %71 = vector.broadcast %70 : vector<1x128xf32> to vector<64x128xf32>
    %72 = arith.addf %69, %71 : vector<64x128xf32>
    %cst_82 = arith.constant 0.000000e+00 : f32
    %73 = vector.broadcast %cst_82 : f32 to vector<64x128xf32>
    %74 = arith.maximumf %72, %73 : vector<64x128xf32>
    %75 = arith.truncf %74 : vector<64x128xf32> to vector<64x128xbf16>
    %c0_83 = arith.constant 0 : index
    %c0_84 = arith.constant 0 : index
    %76 = vector.load %arg4[%c0_83, %c0_84] : memref<128x128xbf16, #tpu.memory_space<vmem>>, vector<128x128xbf16>
    %cst_85 = arith.constant dense<0.000000e+00> : vector<64x128xf32>
    %77 = tpu.matmul %75, %76, %cst_85 {dimension_numbers = #tpu.dot_dimension_numbers<[1], [0], [0], [1], [0, 0, 1, 1], [], []>} : vector<64x128xbf16>, vector<128x128xbf16>, vector<64x128xf32> -> vector<64x128xf32>
    %c0_86 = arith.constant 0 : index
    %c0_87 = arith.constant 0 : index
    %78 = vector.load %arg5[%c0_86, %c0_87] : memref<1x128xf32, #tpu.memory_space<vmem>>, vector<1x128xf32>
    %79 = vector.broadcast %78 : vector<1x128xf32> to vector<64x128xf32>
    %80 = arith.addf %77, %79 : vector<64x128xf32>
    %81 = vector.shape_cast %80 : vector<64x128xf32> to vector<8x8x128xf32>
    %c0_88 = arith.constant 0 : index
    %c0_89 = arith.constant 0 : index
    %c0_90 = arith.constant 0 : index
    %c0_91 = arith.constant 0 : index
    %82 = vector.load %arg6[%c0_88, %c0_89, %c0_90, %c0_91] : memref<1x8x8x128xf32, #tpu.memory_space<vmem>>, vector<1x8x8x128xf32>
    %83 = vector.shape_cast %82 : vector<1x8x8x128xf32> to vector<8x8x128xf32>
    %84 = vector.shape_cast %81 : vector<8x8x128xf32> to vector<1x8x8x128xf32>
    tpu.vector_store %arg6[%c0_88, %c0_89, %c0_90, %c0_91], %84 {strides = array<i32>} : memref<1x8x8x128xf32, #tpu.memory_space<vmem>>, vector<1x8x8x128xf32>,
    return
  }
  func.func @transform_0(%arg0: i32) -> (i32, i32, i32, i32) {
    %c0_i32 = arith.constant 0 : i32
    %c0_i32_0 = arith.constant 0 : i32
    %c0_i32_1 = arith.constant 0 : i32
    %c0_i32_2 = arith.constant 0 : i32
    return %arg0, %c0_i32, %c0_i32_0, %c0_i32_1 : i32, i32, i32, i32
  }
  func.func @transform_1(%arg0: i32) -> (i32, i32, i32, i32) {
    %c0_i32 = arith.constant 0 : i32
    %c0_i32_0 = arith.constant 0 : i32
    %c0_i32_1 = arith.constant 0 : i32
    %c0_i32_2 = arith.constant 0 : i32
    %c0_i32_3 = arith.constant 0 : i32
    return %c0_i32, %c0_i32_0, %c0_i32_1, %c0_i32_2 : i32, i32, i32, i32
  }
  func.func @transform_2(%arg0: i32) -> (i32, i32) {
    %c0_i32 = arith.constant 0 : i32
    %c0_i32_0 = arith.constant 0 : i32
    %c0_i32_1 = arith.constant 0 : i32
    return %c0_i32, %c0_i32_0 : i32, i32
  }
  func.func @transform_3(%arg0: i32) -> (i32, i32) {
    %c0_i32 = arith.constant 0 : i32
    %c0_i32_0 = arith.constant 0 : i32
    %c0_i32_1 = arith.constant 0 : i32
    return %c0_i32, %c0_i32_0 : i32, i32
  }
  func.func @transform_4(%arg0: i32) -> (i32, i32) {
    %c0_i32 = arith.constant 0 : i32
    %c0_i32_0 = arith.constant 0 : i32
    %c0_i32_1 = arith.constant 0 : i32
    return %c0_i32, %c0_i32_0 : i32, i32
  }
  func.func @transform_5(%arg0: i32) -> (i32, i32, i32, i32) {
    %c0_i32 = arith.constant 0 : i32
    %c0_i32_0 = arith.constant 0 : i32
    %c0_i32_1 = arith.constant 0 : i32
    %c0_i32_2 = arith.constant 0 : i32
    return %arg0, %c0_i32, %c0_i32_0, %c0_i32_1 : i32, i32, i32, i32
  }
}

</mosaic_0001>

<llo_original>
// kernel: model_forward.8
$region0: #{model_forward.8}
  #allocation0 [shape = 'u32[]', space=smem, size = 0x4, offset = 0x4, fixed_abs, tag = 'smem constant byte address 0x4 - core index']
  #allocation1 [shape = 'u32[72,128]{1,0:T(1,128)}', space=vmem, size = 0x9000, scoped, tag = 'internal scratch']
  #allocation2 [shape = 'f32[10,10,128]{2,1,0:T(8,128)}', space=vmem, size = 0x14000, scoped, tag = 'scratch operand']
  %s0 = inlined_call_operand.vmem [shape: bf16[2,8,8,128], index: 0, kind: input, shape index: {}]
  %s1 = inlined_call_operand.vmem [shape: bf16[3,3,128,128], index: 1, kind: input, shape index: {}]
  %s2 = inlined_call_operand.vmem [shape: f32[1,128], index: 2, kind: input, shape index: {}]
  %s3 = inlined_call_operand.vmem [shape: bf16[2,8,8,128], index: 3, kind: output, shape index: {}]
  %s4 = sld [smem:[#allocation0]]
  $region45: #{model_forward.8} parent=0
    _
  %s6 = ssub.s32 1, %s4
  %s7 = scalar_select 0, %s6, %s4
  loop: start=0, step=1, limit=4
  $region2: #{model_forward.8} parent=0 // loop_pre_header
    _
  $region3: #{model_forward.8} parent=0 // loop_header
    %s9 = sphi 0, %s13
    %p10 = scmp.ge.s32.totalorder %s9, 4
    %s19 = sphi 0, %s21
    %s22 = sphi 0, %s19
    %s23 = sphi 0, %s22
    %s39 = sphi 0, %s23
    %s43 = sphi 0, %s43
    %s45 = sphi 0, %s43
    %s46 = sphi 0, %s45
    %s60 = sphi 0, %s46
    %s64 = sphi 0, %s64
    %s66 = sphi 0, %s64
    %s67 = sphi 0, %s66
    %s81 = sphi 0, %s67
    %s87 = sphi 0, %s89
    %s90 = sphi 0, %s87
    %s91 = sphi 0, %s90
    %s107 = sphi 0, %s91
  $region4: #{model_forward.8} parent=0 // loop_header_branch
    %12 = sbr.rel (%p10) target = $region8
  $region5: #{model_forward.8} parent=0 // loop_body
    %s14 = ssub.s32 %s9, 1
    %s15 = ssub.s32 %s9, 2
    %s16 = sadd.s32 %s9, 1
    %s17 = ssub.s32 %s9, %s16
    %p18 = scmp.eq.s32.totalorder %s17, 0
    %s20 = sadd.s32 %s19, 1
    %s21 = scalar_select %p18, %s19, %s20
    %p24 = pneg %p18
    %p25 = scmp.eq.s32.totalorder %s9, 1
    %p26 = por %p24, %p25
    %p27 = scmp.ne.s32.totalorder %s19, %s22
    %p28 = scmp.eq.s32.totalorder %s9, 0
    %p29 = por %p27, %p28
    %p30 = scmp.ne.s32.totalorder %s19, %s22
    %p31 = scmp.eq.s32.totalorder %s14, 1
    %p32 = por %p30, %p31
    %p33 = scmp.ne.s32.totalorder %s22, %s23
    %p34 = scmp.eq.s32.totalorder %s14, 0
    %p35 = por %p33, %p34
    %p36 = scmp.ne.s32.totalorder %s22, %s23
    %p37 = scmp.eq.s32.totalorder %s15, 1
    %p38 = por %p36, %p37
    %p40 = scmp.ne.s32.totalorder %s23, %s39
    %p41 = scmp.eq.s32.totalorder %s15, 0
    %p42 = por %p40, %p41
    %s44 = sadd.s32 %s43, 1
    %p47 = scmp.eq.s32.totalorder %s9, 1
    %p48 = scmp.ne.s32.totalorder %s43, %s45
    %p49 = scmp.eq.s32.totalorder %s9, 0
    %p50 = por %p48, %p49
    %p51 = scmp.ne.s32.totalorder %s43, %s45
    %p52 = scmp.eq.s32.totalorder %s14, 1
    %p53 = por %p51, %p52
    %p54 = scmp.ne.s32.totalorder %s45, %s46
    %p55 = scmp.eq.s32.totalorder %s14, 0
    %p56 = por %p54, %p55
    %p57 = scmp.ne.s32.totalorder %s45, %s46
    %p58 = scmp.eq.s32.totalorder %s15, 1
    %p59 = por %p57, %p58
    %p61 = scmp.ne.s32.totalorder %s46, %s60
    %p62 = scmp.eq.s32.totalorder %s15, 0
    %p63 = por %p61, %p62
    %s65 = sadd.s32 %s64, 1
    %p68 = scmp.eq.s32.totalorder %s9, 1
    %p69 = scmp.ne.s32.totalorder %s64, %s66
    %p70 = scmp.eq.s32.totalorder %s9, 0
    %p71 = por %p69, %p70
    %p72 = scmp.ne.s32.totalorder %s64, %s66
    %p73 = scmp.eq.s32.totalorder %s14, 1
    %p74 = por %p72, %p73
    %p75 = scmp.ne.s32.totalorder %s66, %s67
    %p76 = scmp.eq.s32.totalorder %s14, 0
    %p77 = por %p75, %p76
    %p78 = scmp.ne.s32.totalorder %s66, %s67
    %p79 = scmp.eq.s32.totalorder %s15, 1
    %p80 = por %p78, %p79
    %p82 = scmp.ne.s32.totalorder %s67, %s81
    %p83 = scmp.eq.s32.totalorder %s15, 0
    %p84 = por %p82, %p83
    %s85 = ssub.s32 %s9, %s16
    %p86 = scmp.eq.s32.totalorder %s85, 0
    %s88 = sadd.s32 %s87, 1
    %s89 = scalar_select %p86, %s87, %s88
    %p92 = pneg %p86
    %p93 = scmp.eq.s32.totalorder %s9, 1
    %p94 = por %p92, %p93
    %p95 = scmp.ne.s32.totalorder %s87, %s90
    %p96 = scmp.eq.s32.totalorder %s9, 0
    %p97 = por %p95, %p96
    %p98 = scmp.ne.s32.totalorder %s87, %s90
    %p99 = scmp.eq.s32.totalorder %s14, 1
    %p100 = por %p98, %p99
    %p101 = scmp.ne.s32.totalorder %s90, %s91
    %p102 = scmp.eq.s32.totalorder %s14, 0
    %p103 = por %p101, %p102
    %p104 = scmp.ne.s32.totalorder %s90, %s91
    %p105 = scmp.eq.s32.totalorder %s15, 1
    %p106 = por %p104, %p105
    %p108 = scmp.ne.s32.totalorder %s91, %s107
    %p109 = scmp.eq.s32.totalorder %s15, 0
    %p110 = por %p108, %p109
    %p111 = scmp.le.s32.totalorder 1, %s9
    %p112 = scmp.lt.s32.totalorder %s9, 3
    %p113 = pnand %p111, %p112
    %p114 = pneg %p113
    // Predicated region
    $region9: #{model_forward.8} parent=5 // pred_check
      _
    $region10: #{model_forward.8} parent=5 // pred_check_branch
      %116 = sbr.rel (%p113) target = $region12
    $region11: #{model_forward.8} parent=5 // pred_region
      %s117 = ssub.s32 %s9, 1
      // Predicated region
      $region13: #{model_forward.8} parent=11 // pred_check
        %p118 = pneg %p56
      $region14: #{model_forward.8} parent=11 // pred_check_branch
        %120 = sbr.rel (%p118) target = $region16
      $region15: #{model_forward.8} parent=11 // pred_region
        _
      $region16: #{model_forward.8} parent=11 // pred_fallthru
        _
      // Predicated region
      $region17: #{model_forward.8} parent=11 // pred_check
        %p121 = pneg %p77
      $region18: #{model_forward.8} parent=11 // pred_check_branch
        %123 = sbr.rel (%p121) target = $region20
      $region19: #{model_forward.8} parent=11 // pred_region
        _
      $region20: #{model_forward.8} parent=11 // pred_fallthru
        _
    $region12: #{model_forward.8} parent=5 // pred_fallthru
      _
    %p124 = scmp.lt.s32.totalorder %s9, 2
    // Predicated region
    $region21: #{model_forward.8} parent=5 // pred_check
      %p125 = pneg %p124
    $region22: #{model_forward.8} parent=5 // pred_check_branch
      %127 = sbr.rel (%p125) target = $region24
    $region23: #{model_forward.8} parent=5 // pred_region
      // Predicated region
      $region25: #{model_forward.8} parent=23 // pred_check
        %p128 = pneg %p29
      $region26: #{model_forward.8} parent=23 // pred_check_branch
        %130 = sbr.rel (%p128) target = $region28
      $region27: #{model_forward.8} parent=23 // pred_region
        %p131 = scmp.lt.s32.totalorder %s9, 1
        %s132 = scalar_select %p131, %s9, 1
        %s133 = smul.addr %s132, 8
        %s134 = smul.addr %s133, 4
        %s135 = scalar_lea.vmem %s0, %s134
      $region28: #{model_forward.8} parent=23 // pred_fallthru
        _
    $region24: #{model_forward.8} parent=5 // pred_fallthru
      _
    %p136 = scmp.le.s32.totalorder 1, %s9
    %p137 = scmp.lt.s32.totalorder %s9, 3
    %p138 = pnand %p136, %p137
    %p139 = pneg %p138
    // Predicated region
    $region29: #{model_forward.8} parent=5 // pred_check
      _
    $region30: #{model_forward.8} parent=5 // pred_check_branch
      %141 = sbr.rel (%p138) target = $region32
    $region31: #{model_forward.8} parent=5 // pred_region
      %s142 = ssub.s32 %s9, 1
      %p143 = scmp.lt.s32.totalorder %s14, 1
      %s144 = scalar_select %p143, %s14, 1
      %s145 = smul.addr %s144, 8
      %s146 = smul.addr %s145, 4
      %s147 = scalar_lea.vmem %s0, %s146
      %p148 = pneg %p35
      %p149 = pneg %p32
      %p150 = pneg %p56
      %p151 = pneg %p53
      %p152 = pneg %p77
      %p153 = pneg %p74
      %p154 = pneg %p103
      %p155 = pneg %p100
      %p156 = scmp.lt.s32.totalorder %s14, 1
      %s157 = scalar_select %p156, %s14, 1
      %s158 = smul.addr %s157, 8
      %s159 = smul.addr %s158, 4
      %s160 = scalar_lea.vmem %s3, %s159
      %p161 = scmp.lt.s32.totalorder %s14, 1
      %s162 = scalar_select %p161, %s14, 1
      %s163 = smul.addr %s162, 8
      %s164 = smul.addr %s163, 4
      %s165 = scalar_lea.vmem %s0, %s164
      %p166 = scmp.lt.s32.totalorder %s14, 1
      %s167 = scalar_select %p166, %s14, 1
      %s168 = smul.addr %s167, 8
      %s169 = smul.addr %s168, 4
      %s170 = scalar_lea.vmem %s3, %s169
      %171 = vst [vmem:[#allocation2] sm:$0xff] 0.0
      %172 = vst [vmem:[#allocation2 + $0x8] sm:$0x3] 0.0
      %173 = vst [vmem:[#allocation2 + $0x10] sm:$0xff] 0.0
      %174 = vst [vmem:[#allocation2 + $0x18] sm:$0x3] 0.0
      %175 = vst [vmem:[#allocation2 + $0x20] sm:$0xff] 0.0
      %176 = vst [vmem:[#allocation2 + $0x28] sm:$0x3] 0.0
      %177 = vst [vmem:[#allocation2 + $0x30] sm:$0xff] 0.0
      %178 = vst [vmem:[#allocation2 + $0x38] sm:$0x3] 0.0
      %179 = vst [vmem:[#allocation2 + $0x40] sm:$0xff] 0.0
      %180 = vst [vmem:[#allocation2 + $0x48] sm:$0x3] 0.0
      %181 = vst [vmem:[#allocation2 + $0x50] sm:$0xff] 0.0
      %182 = vst [vmem:[#allocation2 + $0x58] sm:$0x3] 0.0
      %183 = vst [vmem:[#allocation2 + $0x60] sm:$0xff] 0.0
      %184 = vst [vmem:[#allocation2 + $0x68] sm:$0x3] 0.0
      %185 = vst [vmem:[#allocation2 + $0x70] sm:$0xff] 0.0
      %186 = vst [vmem:[#allocation2 + $0x78] sm:$0x3] 0.0
      %187 = vst [vmem:[#allocation2 + $0x80] sm:$0xff] 0.0
      %188 = vst [vmem:[#allocation2 + $0x88] sm:$0x3] 0.0
      %189 = vst [vmem:[#allocation2 + $0x90] sm:$0xff] 0.0
      %190 = vst [vmem:[#allocation2 + $0x98] sm:$0x3] 0.0
      %v191 = vld [vmem:[%s165] sm:$0xf]
      %v192 = vld [vmem:[%s165 + $0x4] sm:$0xf]
      %v193 = vld [vmem:[%s165 + $0x8] sm:$0xf]
      %v194 = vld [vmem:[%s165 + $0xc] sm:$0xf]
      %v195 = vld [vmem:[%s165 + $0x10] sm:$0xf]
      %v196 = vld [vmem:[%s165 + $0x14] sm:$0xf]
      %v197 = vld [vmem:[%s165 + $0x18] sm:$0xf]
      %v198 = vld [vmem:[%s165 + $0x1c] sm:$0xf]
      %v199 = vunpack.c.l.bf16 %v191
      %v200 = vunpack.c.l.bf16 %v192
      %v201 = vunpack.c.l.bf16 %v193
      %v202 = vunpack.c.l.bf16 %v194
      %v203 = vunpack.c.l.bf16 %v195
      %v204 = vunpack.c.l.bf16 %v196
      %v205 = vunpack.c.l.bf16 %v197
      %v206 = vunpack.c.l.bf16 %v198
      %s207 = scalar_lea.vmem [#allocation2], 16
      %208 = vst [vmem:[%s207 + $0x1] sm:$0xff] %v199
      %209 = vst [vmem:[%s207 + $0x11] sm:$0xff] %v200
      %210 = vst [vmem:[%s207 + $0x21] sm:$0xff] %v201
      %211 = vst [vmem:[%s207 + $0x31] sm:$0xff] %v202
      %212 = vst [vmem:[%s207 + $0x41] sm:$0xff] %v203
      %213 = vst [vmem:[%s207 + $0x51] sm:$0xff] %v204
      %214 = vst [vmem:[%s207 + $0x61] sm:$0xff] %v205
      %215 = vst [vmem:[%s207 + $0x71] sm:$0xff] %v206
      %v216 = vld [vmem:[#allocation2] sm:$0xff]
      %v217 = vld [vmem:[#allocation2 + $0x10] sm:$0xff]
      %v218 = vld [vmem:[#allocation2 + $0x20] sm:$0xff]
      %v219 = vld [vmem:[#allocation2 + $0x30] sm:$0xff]
      %v220 = vld [vmem:[#allocation2 + $0x40] sm:$0xff]
      %v221 = vld [vmem:[#allocation2 + $0x50] sm:$0xff]
      %v222 = vld [vmem:[#allocation2 + $0x60] sm:$0xff]
      %v223 = vld [vmem:[#allocation2 + $0x70] sm:$0xff]
      %v224 = vpack.c.bf16 %v217, %v216
      %v225 = vpack.c.bf16 %v219, %v218
      %v226 = vpack.c.bf16 %v221, %v220
      %v227 = vpack.c.bf16 %v223, %v222
      %v228 = vld [vmem:[%s1] sm:$0xf]
      %v229 = vld [vmem:[%s1 + $0x4] sm:$0xf]
      %v230 = vld [vmem:[%s1 + $0x8] sm:$0xf]
      %v231 = vld [vmem:[%s1 + $0xc] sm:$0xf]
      %v232 = vld [vmem:[%s1 + $0x10] sm:$0xf]
      %v233 = vld [vmem:[%s1 + $0x14] sm:$0xf]
      %v234 = vld [vmem:[%s1 + $0x18] sm:$0xf]
      %v235 = vld [vmem:[%s1 + $0x1c] sm:$0xf]
      %v236 = vld [vmem:[%s1 + $0x20] sm:$0xf]
      %v237 = vld [vmem:[%s1 + $0x24] sm:$0xf]
      %v238 = vld [vmem:[%s1 + $0x28] sm:$0xf]
      %v239 = vld [vmem:[%s1 + $0x2c] sm:$0xf]
      %v240 = vld [vmem:[%s1 + $0x30] sm:$0xf]
      %v241 = vld [vmem:[%s1 + $0x34] sm:$0xf]
      %v242 = vld [vmem:[%s1 + $0x38] sm:$0xf]
      %v243 = vld [vmem:[%s1 + $0x3c] sm:$0xf]
      %v244 = vld [vmem:[#allocation2 + $0x1] sm:$0xff]
      %v245 = vld [vmem:[#allocation2 + $0x11] sm:$0xff]
      %v246 = vld [vmem:[#allocation2 + $0x21] sm:$0xff]
      %v247 = vld [vmem:[#allocation2 + $0x31] sm:$0xff]
      %v248 = vld [vmem:[#allocation2 + $0x41] sm:$0xff]
      %v249 = vld [vmem:[#allocation2 + $0x51] sm:$0xff]
      %v250 = vld [vmem:[#allocation2 + $0x61] sm:$0xff]
      %v251 = vld [vmem:[#allocation2 + $0x71] sm:$0xff]
      %v252 = vpack.c.bf16 %v245, %v244
      %v253 = vpack.c.bf16 %v247, %v246
      %v254 = vpack.c.bf16 %v249, %v248
      %v255 = vpack.c.bf16 %v251, %v250
      %s256 = scalar_lea.vmem %s1, 64
      %v257 = vld [vmem:[%s256] sm:$0xf]
      %v258 = vld [vmem:[%s256 + $0x4] sm:$0xf]
      %v259 = vld [vmem:[%s256 + $0x8] sm:$0xf]
      %v260 = vld [vmem:[%s256 + $0xc] sm:$0xf]
      %v261 = vld [vmem:[%s256 + $0x10] sm:$0xf]
      %v262 = vld [vmem:[%s256 + $0x14] sm:$0xf]
      %v263 = vld [vmem:[%s256 + $0x18] sm:$0xf]
      %v264 = vld [vmem:[%s256 + $0x1c] sm:$0xf]
      %v265 = vld [vmem:[%s256 + $0x20] sm:$0xf]
      %v266 = vld [vmem:[%s256 + $0x24] sm:$0xf]
      %v267 = vld [vmem:[%s256 + $0x28] sm:$0xf]
      %v268 = vld [vmem:[%s256 + $0x2c] sm:$0xf]
      %v269 = vld [vmem:[%s256 + $0x30] sm:$0xf]
      %v270 = vld [vmem:[%s256 + $0x34] sm:$0xf]
      %v271 = vld [vmem:[%s256 + $0x38] sm:$0xf]
      %v272 = vld [vmem:[%s256 + $0x3c] sm:$0xf]
      %v289 = vunpack.c.l.b16 %v257
      %v290 = vunpack.c.l.b16 %v258
      %v291 = vunpack.c.l.b16 %v259
      %v292 = vunpack.c.l.b16 %v260
      %v293 = vunpack.c.l.b16 %v261
      %v294 = vunpack.c.l.b16 %v262
      %v295 = vunpack.c.l.b16 %v263
      %v296 = vunpack.c.l.b16 %v264
      %v297 = vunpack.c.l.b16 %v265
      %v298 = vunpack.c.l.b16 %v266
      %v299 = vunpack.c.l.b16 %v267
      %v300 = vunpack.c.l.b16 %v268
      %v301 = vunpack.c.l.b16 %v269
      %v302 = vunpack.c.l.b16 %v270
      %v303 = vunpack.c.l.b16 %v271
      %v304 = vunpack.c.l.b16 %v272
      %v305 = vpack.c.b16 %v290, %v289
      %v306 = vpack.c.b16 %v292, %v291
      %v307 = vpack.c.b16 %v294, %v293
      %v308 = vpack.c.b16 %v296, %v295
      %v309 = vpack.c.b16 %v298, %v297
      %v310 = vpack.c.b16 %v300, %v299
      %v311 = vpack.c.b16 %v302, %v301
      %v312 = vpack.c.b16 %v304, %v303
      %321 = vmatpush.bf16.msra.mxu0 %v312
      %322 = vmatpush.bf16.msra.mxu0 %v311
      %323 = vmatpush.bf16.msra.mxu0 %v310
      %324 = vmatpush.bf16.msra.mxu0 %v309
      %325 = vmatpush.bf16.msra.mxu0 %v308
      %326 = vmatpush.bf16.msra.mxu0 %v307
      %327 = vmatpush.bf16.msra.mxu0 %v306
      %328 = vmatpush.bf16.msra.mxu0 %v305
      %329 = vmatmul.bf16.gmra.mxu0 %v252
      %v330 = vpop.f32.mrf.mxu0
      %v331 = vadd.f32 0.0, %v330
      %v332 = vpop.f32.mrf.mxu0
      %v333 = vadd.f32 0.0, %v332
      %334 = vmatmul.bf16.gmra.mxu0 %v253
      %v335 = vpop.f32.mrf.mxu0
      %v336 = vadd.f32 0.0, %v335
      %v337 = vpop.f32.mrf.mxu0
      %v338 = vadd.f32 0.0, %v337
      %339 = vmatmul.bf16.gmra.mxu0 %v254
      %v340 = vpop.f32.mrf.mxu0
      %v341 = vadd.f32 0.0, %v340
      %v342 = vpop.f32.mrf.mxu0
      %v343 = vadd.f32 0.0, %v342
      %344 = vmatmul.bf16.gmra.mxu0 %v255
      %v345 = vpop.f32.mrf.mxu0
      %v346 = vadd.f32 0.0, %v345
      %v347 = vpop.f32.mrf.mxu0
      %v348 = vadd.f32 0.0, %v347
      %349 = vdwg.mxu0
      %v366 = vunpack.c.l.b16 %v228
      %v367 = vunpack.c.l.b16 %v229
      %v368 = vunpack.c.l.b16 %v230
      %v369 = vunpack.c.l.b16 %v231
      %v370 = vunpack.c.l.b16 %v232
      %v371 = vunpack.c.l.b16 %v233
      %v372 = vunpack.c.l.b16 %v234
      %v373 = vunpack.c.l.b16 %v235
      %v374 = vunpack.c.l.b16 %v236
      %v375 = vunpack.c.l.b16 %v237
      %v376 = vunpack.c.l.b16 %v238
      %v377 = vunpack.c.l.b16 %v239
      %v378 = vunpack.c.l.b16 %v240
      %v379 = vunpack.c.l.b16 %v241
      %v380 = vunpack.c.l.b16 %v242
      %v381 = vunpack.c.l.b16 %v243
      %v382 = vpack.c.b16 %v367, %v366
      %v383 = vpack.c.b16 %v369, %v368
      %v384 = vpack.c.b16 %v371, %v370
      %v385 = vpack.c.b16 %v373, %v372
      %v386 = vpack.c.b16 %v375, %v374
      %v387 = vpack.c.b16 %v377, %v376
      %v388 = vpack.c.b16 %v379, %v378
      %v389 = vpack.c.b16 %v381, %v380
      %398 = vmatpush.bf16.msra.mxu0 %v389
      %399 = vmatpush.bf16.msra.mxu0 %v388
      %400 = vmatpush.bf16.msra.mxu0 %v387
      %401 = vmatpush.bf16.msra.mxu0 %v386
      %402 = vmatpush.bf16.msra.mxu0 %v385
      %403 = vmatpush.bf16.msra.mxu0 %v384
      %404 = vmatpush.bf16.msra.mxu0 %v383
      %405 = vmatpush.bf16.msra.mxu0 %v382
      %406 = vmatmul.bf16.gmra.mxu0 %v224
      %v407 = vpop.f32.mrf.mxu0
      %v408 = vadd.f32 %v331, %v407
      %v409 = vpop.f32.mrf.mxu0
      %v410 = vadd.f32 %v333, %v409
      %411 = vmatmul.bf16.gmra.mxu0 %v225
      %v412 = vpop.f32.mrf.mxu0
      %v413 = vadd.f32 %v336, %v412
      %v414 = vpop.f32.mrf.mxu0
      %v415 = vadd.f32 %v338, %v414
      %416 = vmatmul.bf16.gmra.mxu0 %v226
      %v417 = vpop.f32.mrf.mxu0
      %v418 = vadd.f32 %v341, %v417
      %v419 = vpop.f32.mrf.mxu0
      %v420 = vadd.f32 %v343, %v419
      %421 = vmatmul.bf16.gmra.mxu0 %v227
      %v422 = vpop.f32.mrf.mxu0
      %v423 = vadd.f32 %v346, %v422
      %v424 = vpop.f32.mrf.mxu0
      %v425 = vadd.f32 %v348, %v424
      %426 = vdwg.mxu0
      %v427 = vld [vmem:[#allocation2 + $0x2] sm:$0xff]
      %v428 = vld [vmem:[#allocation2 + $0x12] sm:$0xff]
      %v429 = vld [vmem:[#allocation2 + $0x22] sm:$0xff]
      %v430 = vld [vmem:[#allocation2 + $0x32] sm:$0xff]
      %v431 = vld [vmem:[#allocation2 + $0x42] sm:$0xff]
      %v432 = vld [vmem:[#allocation2 + $0x52] sm:$0xff]
      %v433 = vld [vmem:[#allocation2 + $0x62] sm:$0xff]
      %v434 = vld [vmem:[#allocation2 + $0x72] sm:$0xff]
      %v435 = vpack.c.bf16 %v428, %v427
      %v436 = vpack.c.bf16 %v430, %v429
      %v437 = vpack.c.bf16 %v432, %v431
      %v438 = vpack.c.bf16 %v434, %v433
      %s439 = scalar_lea.vmem %s1, 128
      %v440 = vld [vmem:[%s439] sm:$0xf]
      %v441 = vld [vmem:[%s439 + $0x4] sm:$0xf]
      %v442 = vld [vmem:[%s439 + $0x8] sm:$0xf]
      %v443 = vld [vmem:[%s439 + $0xc] sm:$0xf]
      %v444 = vld [vmem:[%s439 + $0x10] sm:$0xf]
      %v445 = vld [vmem:[%s439 + $0x14] sm:$0xf]
      %v446 = vld [vmem:[%s439 + $0x18] sm:$0xf]
      %v447 = vld [vmem:[%s439 + $0x1c] sm:$0xf]
      %v448 = vld [vmem:[%s439 + $0x20] sm:$0xf]
      %v449 = vld [vmem:[%s439 + $0x24] sm:$0xf]
      %v450 = vld [vmem:[%s439 + $0x28] sm:$0xf]
      %v451 = vld [vmem:[%s439 + $0x2c] sm:$0xf]
      %v452 = vld [vmem:[%s439 + $0x30] sm:$0xf]
      %v453 = vld [vmem:[%s439 + $0x34] sm:$0xf]
      %v454 = vld [vmem:[%s439 + $0x38] sm:$0xf]
      %v455 = vld [vmem:[%s439 + $0x3c] sm:$0xf]
      %v472 = vunpack.c.l.b16 %v440
      %v473 = vunpack.c.l.b16 %v441
      %v474 = vunpack.c.l.b16 %v442
      %v475 = vunpack.c.l.b16 %v443
      %v476 = vunpack.c.l.b16 %v444
      %v477 = vunpack.c.l.b16 %v445
      %v478 = vunpack.c.l.b16 %v446
      %v479 = vunpack.c.l.b16 %v447
      %v480 = vunpack.c.l.b16 %v448
      %v481 = vunpack.c.l.b16 %v449
      %v482 = vunpack.c.l.b16 %v450
      %v483 = vunpack.c.l.b16 %v451
      %v484 = vunpack.c.l.b16 %v452
      %v485 = vunpack.c.l.b16 %v453
      %v486 = vunpack.c.l.b16 %v454
      %v487 = vunpack.c.l.b16 %v455
      %v488 = vpack.c.b16 %v473, %v472
      %v489 = vpack.c.b16 %v475, %v474
      %v490 = vpack.c.b16 %v477, %v476
      %v491 = vpack.c.b16 %v479, %v478
      %v492 = vpack.c.b16 %v481, %v480
      %v493 = vpack.c.b16 %v483, %v482
      %v494 = vpack.c.b16 %v485, %v484
      %v495 = vpack.c.b16 %v487, %v486
      %504 = vmatpush.bf16.msra.mxu0 %v495
      %505 = vmatpush.bf16.msra.mxu0 %v494
      %506 = vmatpush.bf16.msra.mxu0 %v493
      %507 = vmatpush.bf16.msra.mxu0 %v492
      %508 = vmatpush.bf16.msra.mxu0 %v491
      %509 = vmatpush.bf16.msra.mxu0 %v490
      %510 = vmatpush.bf16.msra.mxu0 %v489
      %511 = vmatpush.bf16.msra.mxu0 %v488
      %512 = vmatmul.bf16.gmra.mxu0 %v435
      %v513 = vpop.f32.mrf.mxu0
      %v514 = vadd.f32 0.0, %v513
      %v515 = vpop.f32.mrf.mxu0
      %v516 = vadd.f32 0.0, %v515
      %517 = vmatmul.bf16.gmra.mxu0 %v436
      %v518 = vpop.f32.mrf.mxu0
      %v519 = vadd.f32 0.0, %v518
      %v520 = vpop.f32.mrf.mxu0
      %v521 = vadd.f32 0.0, %v520
      %522 = vmatmul.bf16.gmra.mxu0 %v437
      %v523 = vpop.f32.mrf.mxu0
      %v524 = vadd.f32 0.0, %v523
      %v525 = vpop.f32.mrf.mxu0
      %v526 = vadd.f32 0.0, %v525
      %527 = vmatmul.bf16.gmra.mxu0 %v438
      %v528 = vpop.f32.mrf.mxu0
      %v529 = vadd.f32 0.0, %v528
      %v530 = vpop.f32.mrf.mxu0
      %v531 = vadd.f32 0.0, %v530
      %532 = vdwg.mxu0
      %v533 = vadd.f32 %v408, %v514
      %v534 = vadd.f32 %v410, %v516
      %v535 = vadd.f32 %v413, %v519
      %v536 = vadd.f32 %v415, %v521
      %v537 = vadd.f32 %v418, %v524
      %v538 = vadd.f32 %v420, %v526
      %v539 = vadd.f32 %v423, %v529
      %v540 = vadd.f32 %v425, %v531
      %v541 = vld [vmem:[%s207] sm:$0xff]
      %v542 = vld [vmem:[%s207 + $0x10] sm:$0xff]
      %v543 = vld [vmem:[%s207 + $0x20] sm:$0xff]
      %v544 = vld [vmem:[%s207 + $0x30] sm:$0xff]
      %v545 = vld [vmem:[%s207 + $0x40] sm:$0xff]
      %v546 = vld [vmem:[%s207 + $0x50] sm:$0xff]
      %v547 = vld [vmem:[%s207 + $0x60] sm:$0xff]
      %v548 = vld [vmem:[%s207 + $0x70] sm:$0xff]
      %v549 = vpack.c.bf16 %v542, %v541
      %v550 = vpack.c.bf16 %v544, %v543
      %v551 = vpack.c.bf16 %v546, %v545
      %v552 = vpack.c.bf16 %v548, %v547
      %s553 = scalar_lea.vmem %s1, 192
      %v554 = vld [vmem:[%s553] sm:$0xf]
      %v555 = vld [vmem:[%s553 + $0x4] sm:$0xf]
      %v556 = vld [vmem:[%s553 + $0x8] sm:$0xf]
      %v557 = vld [vmem:[%s553 + $0xc] sm:$0xf]
      %v558 = vld [vmem:[%s553 + $0x10] sm:$0xf]
      %v559 = vld [vmem:[%s553 + $0x14] sm:$0xf]
      %v560 = vld [vmem:[%s553 + $0x18] sm:$0xf]
      %v561 = vld [vmem:[%s553 + $0x1c] sm:$0xf]
      %v562 = vld [vmem:[%s553 + $0x20] sm:$0xf]
      %v563 = vld [vmem:[%s553 + $0x24] sm:$0xf]
      %v564 = vld [vmem:[%s553 + $0x28] sm:$0xf]
      %v565 = vld [vmem:[%s553 + $0x2c] sm:$0xf]
      %v566 = vld [vmem:[%s553 + $0x30] sm:$0xf]
      %v567 = vld [vmem:[%s553 + $0x34] sm:$0xf]
      %v568 = vld [vmem:[%s553 + $0x38] sm:$0xf]
      %v569 = vld [vmem:[%s553 + $0x3c] sm:$0xf]
      %v586 = vunpack.c.l.b16 %v554
      %v587 = vunpack.c.l.b16 %v555
      %v588 = vunpack.c.l.b16 %v556
      %v589 = vunpack.c.l.b16 %v557
      %v590 = vunpack.c.l.b16 %v558
      %v591 = vunpack.c.l.b16 %v559
      %v592 = vunpack.c.l.b16 %v560
      %v593 = vunpack.c.l.b16 %v561
      %v594 = vunpack.c.l.b16 %v562
      %v595 = vunpack.c.l.b16 %v563
      %v596 = vunpack.c.l.b16 %v564
      %v597 = vunpack.c.l.b16 %v565
      %v598 = vunpack.c.l.b16 %v566
      %v599 = vunpack.c.l.b16 %v567
      %v600 = vunpack.c.l.b16 %v568
      %v601 = vunpack.c.l.b16 %v569
      %v602 = vpack.c.b16 %v587, %v586
      %v603 = vpack.c.b16 %v589, %v588
      %v604 = vpack.c.b16 %v591, %v590
      %v605 = vpack.c.b16 %v593, %v592
      %v606 = vpack.c.b16 %v595, %v594
      %v607 = vpack.c.b16 %v597, %v596
      %v608 = vpack.c.b16 %v599, %v598
      %v609 = vpack.c.b16 %v601, %v600
      %618 = vmatpush.bf16.msra.mxu0 %v609
      %619 = vmatpush.bf16.msra.mxu0 %v608
      %620 = vmatpush.bf16.msra.mxu0 %v607
      %621 = vmatpush.bf16.msra.mxu0 %v606
      %622 = vmatpush.bf16.msra.mxu0 %v605
      %623 = vmatpush.bf16.msra.mxu0 %v604
      %624 = vmatpush.bf16.msra.mxu0 %v603
      %625 = vmatpush.bf16.msra.mxu0 %v602
      %626 = vmatmul.bf16.gmra.mxu0 %v549
      %v627 = vpop.f32.mrf.mxu0
      %v628 = vadd.f32 0.0, %v627
      %v629 = vpop.f32.mrf.mxu0
      %v630 = vadd.f32 0.0, %v629
      %631 = vmatmul.bf16.gmra.mxu0 %v550
      %v632 = vpop.f32.mrf.mxu0
      %v633 = vadd.f32 0.0, %v632
      %v634 = vpop.f32.mrf.mxu0
      %v635 = vadd.f32 0.0, %v634
      %636 = vmatmul.bf16.gmra.mxu0 %v551
      %v637 = vpop.f32.mrf.mxu0
      %v638 = vadd.f32 0.0, %v637
      %v639 = vpop.f32.mrf.mxu0
      %v640 = vadd.f32 0.0, %v639
      %641 = vmatmul.bf16.gmra.mxu0 %v552
      %v642 = vpop.f32.mrf.mxu0
      %v643 = vadd.f32 0.0, %v642
      %v644 = vpop.f32.mrf.mxu0
      %v645 = vadd.f32 0.0, %v644
      %646 = vdwg.mxu0
      %v647 = vadd.f32 %v533, %v628
      %v648 = vadd.f32 %v534, %v630
      %v649 = vadd.f32 %v535, %v633
      %v650 = vadd.f32 %v536, %v635
      %v651 = vadd.f32 %v537, %v638
      %v652 = vadd.f32 %v538, %v640
      %v653 = vadd.f32 %v539, %v643
      %v654 = vadd.f32 %v540, %v645
      %v655 = vld [vmem:[%s207 + $0x1] sm:$0xff]
      %v656 = vld [vmem:[%s207 + $0x11] sm:$0xff]
      %v657 = vld [vmem:[%s207 + $0x21] sm:$0xff]
      %v658 = vld [vmem:[%s207 + $0x31] sm:$0xff]
      %v659 = vld [vmem:[%s207 + $0x41] sm:$0xff]
      %v660 = vld [vmem:[%s207 + $0x51] sm:$0xff]
      %v661 = vld [vmem:[%s207 + $0x61] sm:$0xff]
      %v662 = vld [vmem:[%s207 + $0x71] sm:$0xff]
      %v663 = vpack.c.bf16 %v656, %v655
      %v664 = vpack.c.bf16 %v658, %v657
      %v665 = vpack.c.bf16 %v660, %v659
      %v666 = vpack.c.bf16 %v662, %v661
      %s667 = scalar_lea.vmem %s1, 256
      %v668 = vld [vmem:[%s667] sm:$0xf]
      %v669 = vld [vmem:[%s667 + $0x4] sm:$0xf]
      %v670 = vld [vmem:[%s667 + $0x8] sm:$0xf]
      %v671 = vld [vmem:[%s667 + $0xc] sm:$0xf]
      %v672 = vld [vmem:[%s667 + $0x10] sm:$0xf]
      %v673 = vld [vmem:[%s667 + $0x14] sm:$0xf]
      %v674 = vld [vmem:[%s667 + $0x18] sm:$0xf]
      %v675 = vld [vmem:[%s667 + $0x1c] sm:$0xf]
      %v676 = vld [vmem:[%s667 + $0x20] sm:$0xf]
      %v677 = vld [vmem:[%s667 + $0x24] sm:$0xf]
      %v678 = vld [vmem:[%s667 + $0x28] sm:$0xf]
      %v679 = vld [vmem:[%s667 + $0x2c] sm:$0xf]
      %v680 = vld [vmem:[%s667 + $0x30] sm:$0xf]
      %v681 = vld [vmem:[%s667 + $0x34] sm:$0xf]
      %v682 = vld [vmem:[%s667 + $0x38] sm:$0xf]
      %v683 = vld [vmem:[%s667 + $0x3c] sm:$0xf]
      %v700 = vunpack.c.l.b16 %v668
      %v701 = vunpack.c.l.b16 %v669
      %v702 = vunpack.c.l.b16 %v670
      %v703 = vunpack.c.l.b16 %v671
      %v704 = vunpack.c.l.b16 %v672
      %v705 = vunpack.c.l.b16 %v673
      %v706 = vunpack.c.l.b16 %v674
      %v707 = vunpack.c.l.b16 %v675
      %v708 = vunpack.c.l.b16 %v676
      %v709 = vunpack.c.l.b16 %v677
      %v710 = vunpack.c.l.b16 %v678
      %v711 = vunpack.c.l.b16 %v679
      %v712 = vunpack.c.l.b16 %v680
      %v713 = vunpack.c.l.b16 %v681
      %v714 = vunpack.c.l.b16 %v682
      %v715 = vunpack.c.l.b16 %v683
      %v716 = vpack.c.b16 %v701, %v700
      %v717 = vpack.c.b16 %v703, %v702
      %v718 = vpack.c.b16 %v705, %v704
      %v719 = vpack.c.b16 %v707, %v706
      %v720 = vpack.c.b16 %v709, %v708
      %v721 = vpack.c.b16 %v711, %v710
      %v722 = vpack.c.b16 %v713, %v712
      %v723 = vpack.c.b16 %v715, %v714
      %732 = vmatpush.bf16.msra.mxu0 %v723
      %733 = vmatpush.bf16.msra.mxu0 %v722
      %734 = vmatpush.bf16.msra.mxu0 %v721
      %735 = vmatpush.bf16.msra.mxu0 %v720
      %736 = vmatpush.bf16.msra.mxu0 %v719
      %737 = vmatpush.bf16.msra.mxu0 %v718
      %738 = vmatpush.bf16.msra.mxu0 %v717
      %739 = vmatpush.bf16.msra.mxu0 %v716
      %740 = vmatmul.bf16.gmra.mxu0 %v663
      %v741 = vpop.f32.mrf.mxu0
      %v742 = vadd.f32 0.0, %v741
      %v743 = vpop.f32.mrf.mxu0
      %v744 = vadd.f32 0.0, %v743
      %745 = vmatmul.bf16.gmra.mxu0 %v664
      %v746 = vpop.f32.mrf.mxu0
      %v747 = vadd.f32 0.0, %v746
      %v748 = vpop.f32.mrf.mxu0
      %v749 = vadd.f32 0.0, %v748
      %750 = vmatmul.bf16.gmra.mxu0 %v665
      %v751 = vpop.f32.mrf.mxu0
      %v752 = vadd.f32 0.0, %v751
      %v753 = vpop.f32.mrf.mxu0
      %v754 = vadd.f32 0.0, %v753
      %755 = vmatmul.bf16.gmra.mxu0 %v666
      %v756 = vpop.f32.mrf.mxu0
      %v757 = vadd.f32 0.0, %v756
      %v758 = vpop.f32.mrf.mxu0
      %v759 = vadd.f32 0.0, %v758
      %760 = vdwg.mxu0
      %v761 = vadd.f32 %v647, %v742
      %v762 = vadd.f32 %v648, %v744
      %v763 = vadd.f32 %v649, %v747
      %v764 = vadd.f32 %v650, %v749
      %v765 = vadd.f32 %v651, %v752
      %v766 = vadd.f32 %v652, %v754
      %v767 = vadd.f32 %v653, %v757
      %v768 = vadd.f32 %v654, %v759
      %v769 = vld [vmem:[%s207 + $0x2] sm:$0xff]
      %v770 = vld [vmem:[%s207 + $0x12] sm:$0xff]
      %v771 = vld [vmem:[%s207 + $0x22] sm:$0xff]
      %v772 = vld [vmem:[%s207 + $0x32] sm:$0xff]
      %v773 = vld [vmem:[%s207 + $0x42] sm:$0xff]
      %v774 = vld [vmem:[%s207 + $0x52] sm:$0xff]
      %v775 = vld [vmem:[%s207 + $0x62] sm:$0xff]
      %v776 = vld [vmem:[%s207 + $0x72] sm:$0xff]
      %v777 = vpack.c.bf16 %v770, %v769
      %v778 = vpack.c.bf16 %v772, %v771
      %v779 = vpack.c.bf16 %v774, %v773
      %v780 = vpack.c.bf16 %v776, %v775
      %s781 = scalar_lea.vmem %s1, 320
      %v782 = vld [vmem:[%s781] sm:$0xf]
      %v783 = vld [vmem:[%s781 + $0x4] sm:$0xf]
      %v784 = vld [vmem:[%s781 + $0x8] sm:$0xf]
      %v785 = vld [vmem:[%s781 + $0xc] sm:$0xf]
      %v786 = vld [vmem:[%s781 + $0x10] sm:$0xf]
      %v787 = vld [vmem:[%s781 + $0x14] sm:$0xf]
      %v788 = vld [vmem:[%s781 + $0x18] sm:$0xf]
      %v789 = vld [vmem:[%s781 + $0x1c] sm:$0xf]
      %v790 = vld [vmem:[%s781 + $0x20] sm:$0xf]
      %v791 = vld [vmem:[%s781 + $0x24] sm:$0xf]
      %v792 = vld [vmem:[%s781 + $0x28] sm:$0xf]
      %v793 = vld [vmem:[%s781 + $0x2c] sm:$0xf]
      %v794 = vld [vmem:[%s781 + $0x30] sm:$0xf]
      %v795 = vld [vmem:[%s781 + $0x34] sm:$0xf]
      %v796 = vld [vmem:[%s781 + $0x38] sm:$0xf]
      %v797 = vld [vmem:[%s781 + $0x3c] sm:$0xf]
      %v814 = vunpack.c.l.b16 %v782
      %v815 = vunpack.c.l.b16 %v783
      %v816 = vunpack.c.l.b16 %v784
      %v817 = vunpack.c.l.b16 %v785
      %v818 = vunpack.c.l.b16 %v786
      %v819 = vunpack.c.l.b16 %v787
      %v820 = vunpack.c.l.b16 %v788
      %v821 = vunpack.c.l.b16 %v789
      %v822 = vunpack.c.l.b16 %v790
      %v823 = vunpack.c.l.b16 %v791
      %v824 = vunpack.c.l.b16 %v792
      %v825 = vunpack.c.l.b16 %v793
      %v826 = vunpack.c.l.b16 %v794
      %v827 = vunpack.c.l.b16 %v795
      %v828 = vunpack.c.l.b16 %v796
      %v829 = vunpack.c.l.b16 %v797
      %v830 = vpack.c.b16 %v815, %v814
      %v831 = vpack.c.b16 %v817, %v816
      %v832 = vpack.c.b16 %v819, %v818
      %v833 = vpack.c.b16 %v821, %v820
      %v834 = vpack.c.b16 %v823, %v822
      %v835 = vpack.c.b16 %v825, %v824
      %v836 = vpack.c.b16 %v827, %v826
      %v837 = vpack.c.b16 %v829, %v828
      %846 = vmatpush.bf16.msra.mxu0 %v837
      %847 = vmatpush.bf16.msra.mxu0 %v836
      %848 = vmatpush.bf16.msra.mxu0 %v835
      %849 = vmatpush.bf16.msra.mxu0 %v834
      %850 = vmatpush.bf16.msra.mxu0 %v833
      %851 = vmatpush.bf16.msra.mxu0 %v832
      %852 = vmatpush.bf16.msra.mxu0 %v831
      %853 = vmatpush.bf16.msra.mxu0 %v830
      %854 = vmatmul.bf16.gmra.mxu0 %v777
      %v855 = vpop.f32.mrf.mxu0
      %v856 = vadd.f32 0.0, %v855
      %v857 = vpop.f32.mrf.mxu0
      %v858 = vadd.f32 0.0, %v857
      %859 = vmatmul.bf16.gmra.mxu0 %v778
      %v860 = vpop.f32.mrf.mxu0
      %v861 = vadd.f32 0.0, %v860
      %v862 = vpop.f32.mrf.mxu0
      %v863 = vadd.f32 0.0, %v862
      %864 = vmatmul.bf16.gmra.mxu0 %v779
      %v865 = vpop.f32.mrf.mxu0
      %v866 = vadd.f32 0.0, %v865
      %v867 = vpop.f32.mrf.mxu0
      %v868 = vadd.f32 0.0, %v867
      %869 = vmatmul.bf16.gmra.mxu0 %v780
      %v870 = vpop.f32.mrf.mxu0
      %v871 = vadd.f32 0.0, %v870
      %v872 = vpop.f32.mrf.mxu0
      %v873 = vadd.f32 0.0, %v872
      %874 = vdwg.mxu0
      %v875 = vadd.f32 %v761, %v856
      %v876 = vadd.f32 %v762, %v858
      %v877 = vadd.f32 %v763, %v861
      %v878 = vadd.f32 %v764, %v863
      %v879 = vadd.f32 %v765, %v866
      %v880 = vadd.f32 %v766, %v868
      %v881 = vadd.f32 %v767, %v871
      %v882 = vadd.f32 %v768, %v873
      %s883 = scalar_lea.vmem [#allocation2], 32
      %v884 = vld [vmem:[%s883] sm:$0xff]
      %v885 = vld [vmem:[%s883 + $0x10] sm:$0xff]
      %v886 = vld [vmem:[%s883 + $0x20] sm:$0xff]
      %v887 = vld [vmem:[%s883 + $0x30] sm:$0xff]
      %v888 = vld [vmem:[%s883 + $0x40] sm:$0xff]
      %v889 = vld [vmem:[%s883 + $0x50] sm:$0xff]
      %v890 = vld [vmem:[%s883 + $0x60] sm:$0xff]
      %v891 = vld [vmem:[%s883 + $0x70] sm:$0xff]
      %v892 = vpack.c.bf16 %v885, %v884
      %v893 = vpack.c.bf16 %v887, %v886
      %v894 = vpack.c.bf16 %v889, %v888
      %v895 = vpack.c.bf16 %v891, %v890
      %s896 = scalar_lea.vmem %s1, 384
      %v897 = vld [vmem:[%s896] sm:$0xf]
      %v898 = vld [vmem:[%s896 + $0x4] sm:$0xf]
      %v899 = vld [vmem:[%s896 + $0x8] sm:$0xf]
      %v900 = vld [vmem:[%s896 + $0xc] sm:$0xf]
      %v901 = vld [vmem:[%s896 + $0x10] sm:$0xf]
      %v902 = vld [vmem:[%s896 + $0x14] sm:$0xf]
      %v903 = vld [vmem:[%s896 + $0x18] sm:$0xf]
      %v904 = vld [vmem:[%s896 + $0x1c] sm:$0xf]
      %v905 = vld [vmem:[%s896 + $0x20] sm:$0xf]
      %v906 = vld [vmem:[%s896 + $0x24] sm:$0xf]
      %v907 = vld [vmem:[%s896 + $0x28] sm:$0xf]
      %v908 = vld [vmem:[%s896 + $0x2c] sm:$0xf]
      %v909 = vld [vmem:[%s896 + $0x30] sm:$0xf]
      %v910 = vld [vmem:[%s896 + $0x34] sm:$0xf]
      %v911 = vld [vmem:[%s896 + $0x38] sm:$0xf]
      %v912 = vld [vmem:[%s896 + $0x3c] sm:$0xf]
      %v929 = vunpack.c.l.b16 %v897
      %v930 = vunpack.c.l.b16 %v898
      %v931 = vunpack.c.l.b16 %v899
      %v932 = vunpack.c.l.b16 %v900
      %v933 = vunpack.c.l.b16 %v901
      %v934 = vunpack.c.l.b16 %v902
      %v935 = vunpack.c.l.b16 %v903
      %v936 = vunpack.c.l.b16 %v904
      %v937 = vunpack.c.l.b16 %v905
      %v938 = vunpack.c.l.b16 %v906
      %v939 = vunpack.c.l.b16 %v907
      %v940 = vunpack.c.l.b16 %v908
      %v941 = vunpack.c.l.b16 %v909
      %v942 = vunpack.c.l.b16 %v910
      %v943 = vunpack.c.l.b16 %v911
      %v944 = vunpack.c.l.b16 %v912
      %v945 = vpack.c.b16 %v930, %v929
      %v946 = vpack.c.b16 %v932, %v931
      %v947 = vpack.c.b16 %v934, %v933
      %v948 = vpack.c.b16 %v936, %v935
      %v949 = vpack.c.b16 %v938, %v937
      %v950 = vpack.c.b16 %v940, %v939
      %v951 = vpack.c.b16 %v942, %v941
      %v952 = vpack.c.b16 %v944, %v943
      %961 = vmatpush.bf16.msra.mxu0 %v952
      %962 = vmatpush.bf16.msra.mxu0 %v951
      %963 = vmatpush.bf16.msra.mxu0 %v950
      %964 = vmatpush.bf16.msra.mxu0 %v949
      %965 = vmatpush.bf16.msra.mxu0 %v948
      %966 = vmatpush.bf16.msra.mxu0 %v947
      %967 = vmatpush.bf16.msra.mxu0 %v946
      %968 = vmatpush.bf16.msra.mxu0 %v945
      %969 = vmatmul.bf16.gmra.mxu0 %v892
      %v970 = vpop.f32.mrf.mxu0
      %v971 = vadd.f32 0.0, %v970
      %v972 = vpop.f32.mrf.mxu0
      %v973 = vadd.f32 0.0, %v972
      %974 = vmatmul.bf16.gmra.mxu0 %v893
      %v975 = vpop.f32.mrf.mxu0
      %v976 = vadd.f32 0.0, %v975
      %v977 = vpop.f32.mrf.mxu0
      %v978 = vadd.f32 0.0, %v977
      %979 = vmatmul.bf16.gmra.mxu0 %v894
      %v980 = vpop.f32.mrf.mxu0
      %v981 = vadd.f32 0.0, %v980
      %v982 = vpop.f32.mrf.mxu0
      %v983 = vadd.f32 0.0, %v982
      %984 = vmatmul.bf16.gmra.mxu0 %v895
      %v985 = vpop.f32.mrf.mxu0
      %v986 = vadd.f32 0.0, %v985
      %v987 = vpop.f32.mrf.mxu0
      %v988 = vadd.f32 0.0, %v987
      %989 = vdwg.mxu0
      %v990 = vadd.f32 %v875, %v971
      %v991 = vadd.f32 %v876, %v973
      %v992 = vadd.f32 %v877, %v976
      %v993 = vadd.f32 %v878, %v978
      %v994 = vadd.f32 %v879, %v981
      %v995 = vadd.f32 %v880, %v983
      %v996 = vadd.f32 %v881, %v986
      %v997 = vadd.f32 %v882, %v988
      %v998 = vld [vmem:[%s883 + $0x1] sm:$0xff]
      %v999 = vld [vmem:[%s883 + $0x11] sm:$0xff]
      %v1000 = vld [vmem:[%s883 + $0x21] sm:$0xff]
      %v1001 = vld [vmem:[%s883 + $0x31] sm:$0xff]
      %v1002 = vld [vmem:[%s883 + $0x41] sm:$0xff]
      %v1003 = vld [vmem:[%s883 + $0x51] sm:$0xff]
      %v1004 = vld [vmem:[%s883 + $0x61] sm:$0xff]
      %v1005 = vld [vmem:[%s883 + $0x71] sm:$0xff]
      %v1006 = vpack.c.bf16 %v999, %v998
      %v1007 = vpack.c.bf16 %v1001, %v1000
      %v1008 = vpack.c.bf16 %v1003, %v1002
      %v1009 = vpack.c.bf16 %v1005, %v1004
      %s1010 = scalar_lea.vmem %s1, 448
      %v1011 = vld [vmem:[%s1010] sm:$0xf]
      %v1012 = vld [vmem:[%s1010 + $0x4] sm:$0xf]
      %v1013 = vld [vmem:[%s1010 + $0x8] sm:$0xf]
      %v1014 = vld [vmem:[%s1010 + $0xc] sm:$0xf]
      %v1015 = vld [vmem:[%s1010 + $0x10] sm:$0xf]
      %v1016 = vld [vmem:[%s1010 + $0x14] sm:$0xf]
      %v1017 = vld [vmem:[%s1010 + $0x18] sm:$0xf]
      %v1018 = vld [vmem:[%s1010 + $0x1c] sm:$0xf]
      %v1019 = vld [vmem:[%s1010 + $0x20] sm:$0xf]
      %v1020 = vld [vmem:[%s1010 + $0x24] sm:$0xf]
      %v1021 = vld [vmem:[%s1010 + $0x28] sm:$0xf]
      %v1022 = vld [vmem:[%s1010 + $0x2c] sm:$0xf]
      %v1023 = vld [vmem:[%s1010 + $0x30] sm:$0xf]
      %v1024 = vld [vmem:[%s1010 + $0x34] sm:$0xf]
      %v1025 = vld [vmem:[%s1010 + $0x38] sm:$0xf]
      %v1026 = vld [vmem:[%s1010 + $0x3c] sm:$0xf]
      %v1043 = vunpack.c.l.b16 %v1011
      %v1044 = vunpack.c.l.b16 %v1012
      %v1045 = vunpack.c.l.b16 %v1013
      %v1046 = vunpack.c.l.b16 %v1014
      %v1047 = vunpack.c.l.b16 %v1015
      %v1048 = vunpack.c.l.b16 %v1016
      %v1049 = vunpack.c.l.b16 %v1017
      %v1050 = vunpack.c.l.b16 %v1018
      %v1051 = vunpack.c.l.b16 %v1019
      %v1052 = vunpack.c.l.b16 %v1020
      %v1053 = vunpack.c.l.b16 %v1021
      %v1054 = vunpack.c.l.b16 %v1022
      %v1055 = vunpack.c.l.b16 %v1023
      %v1056 = vunpack.c.l.b16 %v1024
      %v1057 = vunpack.c.l.b16 %v1025
      %v1058 = vunpack.c.l.b16 %v1026
      %v1059 = vpack.c.b16 %v1044, %v1043
      %v1060 = vpack.c.b16 %v1046, %v1045
      %v1061 = vpack.c.b16 %v1048, %v1047
      %v1062 = vpack.c.b16 %v1050, %v1049
      %v1063 = vpack.c.b16 %v1052, %v1051
      %v1064 = vpack.c.b16 %v1054, %v1053
      %v1065 = vpack.c.b16 %v1056, %v1055
      %v1066 = vpack.c.b16 %v1058, %v1057
      %1075 = vmatpush.bf16.msra.mxu0 %v1066
      %1076 = vmatpush.bf16.msra.mxu0 %v1065
      %1077 = vmatpush.bf16.msra.mxu0 %v1064
      %1078 = vmatpush.bf16.msra.mxu0 %v1063
      %1079 = vmatpush.bf16.msra.mxu0 %v1062
      %1080 = vmatpush.bf16.msra.mxu0 %v1061
      %1081 = vmatpush.bf16.msra.mxu0 %v1060
      %1082 = vmatpush.bf16.msra.mxu0 %v1059
      %1083 = vmatmul.bf16.gmra.mxu0 %v1006
      %v1084 = vpop.f32.mrf.mxu0
      %v1085 = vadd.f32 0.0, %v1084
      %v1086 = vpop.f32.mrf.mxu0
      %v1087 = vadd.f32 0.0, %v1086
      %1088 = vmatmul.bf16.gmra.mxu0 %v1007
      %v1089 = vpop.f32.mrf.mxu0
      %v1090 = vadd.f32 0.0, %v1089
      %v1091 = vpop.f32.mrf.mxu0
      %v1092 = vadd.f32 0.0, %v1091
      %1093 = vmatmul.bf16.gmra.mxu0 %v1008
      %v1094 = vpop.f32.mrf.mxu0
      %v1095 = vadd.f32 0.0, %v1094
      %v1096 = vpop.f32.mrf.mxu0
      %v1097 = vadd.f32 0.0, %v1096
      %1098 = vmatmul.bf16.gmra.mxu0 %v1009
      %v1099 = vpop.f32.mrf.mxu0
      %v1100 = vadd.f32 0.0, %v1099
      %v1101 = vpop.f32.mrf.mxu0
      %v1102 = vadd.f32 0.0, %v1101
      %1103 = vdwg.mxu0
      %v1104 = vadd.f32 %v990, %v1085
      %v1105 = vadd.f32 %v991, %v1087
      %v1106 = vadd.f32 %v992, %v1090
      %v1107 = vadd.f32 %v993, %v1092
      %v1108 = vadd.f32 %v994, %v1095
      %v1109 = vadd.f32 %v995, %v1097
      %v1110 = vadd.f32 %v996, %v1100
      %v1111 = vadd.f32 %v997, %v1102
      %v1112 = vld [vmem:[%s883 + $0x2] sm:$0xff]
      %v1113 = vld [vmem:[%s883 + $0x12] sm:$0xff]
      %v1114 = vld [vmem:[%s883 + $0x22] sm:$0xff]
      %v1115 = vld [vmem:[%s883 + $0x32] sm:$0xff]
      %v1116 = vld [vmem:[%s883 + $0x42] sm:$0xff]
      %v1117 = vld [vmem:[%s883 + $0x52] sm:$0xff]
      %v1118 = vld [vmem:[%s883 + $0x62] sm:$0xff]
      %v1119 = vld [vmem:[%s883 + $0x72] sm:$0xff]
      %v1120 = vpack.c.bf16 %v1113, %v1112
      %v1121 = vpack.c.bf16 %v1115, %v1114
      %v1122 = vpack.c.bf16 %v1117, %v1116
      %v1123 = vpack.c.bf16 %v1119, %v1118
      %s1124 = scalar_lea.vmem %s1, 512
      %v1125 = vld [vmem:[%s1124] sm:$0xf]
      %v1126 = vld [vmem:[%s1124 + $0x4] sm:$0xf]
      %v1127 = vld [vmem:[%s1124 + $0x8] sm:$0xf]
      %v1128 = vld [vmem:[%s1124 + $0xc] sm:$0xf]
      %v1129 = vld [vmem:[%s1124 + $0x10] sm:$0xf]
      %v1130 = vld [vmem:[%s1124 + $0x14] sm:$0xf]
      %v1131 = vld [vmem:[%s1124 + $0x18] sm:$0xf]
      %v1132 = vld [vmem:[%s1124 + $0x1c] sm:$0xf]
      %v1133 = vld [vmem:[%s1124 + $0x20] sm:$0xf]
      %v1134 = vld [vmem:[%s1124 + $0x24] sm:$0xf]
      %v1135 = vld [vmem:[%s1124 + $0x28] sm:$0xf]
      %v1136 = vld [vmem:[%s1124 + $0x2c] sm:$0xf]
      %v1137 = vld [vmem:[%s1124 + $0x30] sm:$0xf]
      %v1138 = vld [vmem:[%s1124 + $0x34] sm:$0xf]
      %v1139 = vld [vmem:[%s1124 + $0x38] sm:$0xf]
      %v1140 = vld [vmem:[%s1124 + $0x3c] sm:$0xf]
      %v1157 = vunpack.c.l.b16 %v1125
      %v1158 = vunpack.c.l.b16 %v1126
      %v1159 = vunpack.c.l.b16 %v1127
      %v1160 = vunpack.c.l.b16 %v1128
      %v1161 = vunpack.c.l.b16 %v1129
      %v1162 = vunpack.c.l.b16 %v1130
      %v1163 = vunpack.c.l.b16 %v1131
      %v1164 = vunpack.c.l.b16 %v1132
      %v1165 = vunpack.c.l.b16 %v1133
      %v1166 = vunpack.c.l.b16 %v1134
      %v1167 = vunpack.c.l.b16 %v1135
      %v1168 = vunpack.c.l.b16 %v1136
      %v1169 = vunpack.c.l.b16 %v1137
      %v1170 = vunpack.c.l.b16 %v1138
      %v1171 = vunpack.c.l.b16 %v1139
      %v1172 = vunpack.c.l.b16 %v1140
      %v1173 = vpack.c.b16 %v1158, %v1157
      %v1174 = vpack.c.b16 %v1160, %v1159
      %v1175 = vpack.c.b16 %v1162, %v1161
      %v1176 = vpack.c.b16 %v1164, %v1163
      %v1177 = vpack.c.b16 %v1166, %v1165
      %v1178 = vpack.c.b16 %v1168, %v1167
      %v1179 = vpack.c.b16 %v1170, %v1169
      %v1180 = vpack.c.b16 %v1172, %v1171
      %1189 = vmatpush.bf16.msra.mxu0 %v1180
      %1190 = vmatpush.bf16.msra.mxu0 %v1179
      %1191 = vmatpush.bf16.msra.mxu0 %v1178
      %1192 = vmatpush.bf16.msra.mxu0 %v1177
      %1193 = vmatpush.bf16.msra.mxu0 %v1176
      %1194 = vmatpush.bf16.msra.mxu0 %v1175
      %1195 = vmatpush.bf16.msra.mxu0 %v1174
      %1196 = vmatpush.bf16.msra.mxu0 %v1173
      %1197 = vmatmul.bf16.gmra.mxu0 %v1120
      %v1198 = vpop.f32.mrf.mxu0
      %v1199 = vadd.f32 0.0, %v1198
      %v1200 = vpop.f32.mrf.mxu0
      %v1201 = vadd.f32 0.0, %v1200
      %1202 = vmatmul.bf16.gmra.mxu0 %v1121
      %v1203 = vpop.f32.mrf.mxu0
      %v1204 = vadd.f32 0.0, %v1203
      %v1205 = vpop.f32.mrf.mxu0
      %v1206 = vadd.f32 0.0, %v1205
      %1207 = vmatmul.bf16.gmra.mxu0 %v1122
      %v1208 = vpop.f32.mrf.mxu0
      %v1209 = vadd.f32 0.0, %v1208
      %v1210 = vpop.f32.mrf.mxu0
      %v1211 = vadd.f32 0.0, %v1210
      %1212 = vmatmul.bf16.gmra.mxu0 %v1123
      %v1213 = vpop.f32.mrf.mxu0
      %v1214 = vadd.f32 0.0, %v1213
      %v1215 = vpop.f32.mrf.mxu0
      %v1216 = vadd.f32 0.0, %v1215
      %1217 = vdwg.mxu0
      %v1218 = vadd.f32 %v1104, %v1199
      %v1219 = vadd.f32 %v1105, %v1201
      %v1220 = vadd.f32 %v1106, %v1204
      %v1221 = vadd.f32 %v1107, %v1206
      %v1222 = vadd.f32 %v1108, %v1209
      %v1223 = vadd.f32 %v1109, %v1211
      %v1224 = vadd.f32 %v1110, %v1214
      %v1225 = vadd.f32 %v1111, %v1216
      %v1226 = vld [vmem:[%s2] sm:$0x1]
      %v1228 = vperm.slane %v1226, 0
      %v1230 = vadd.f32 %v1218, %v1228
      %v1231 = vadd.f32 %v1219, %v1228
      %v1232 = vadd.f32 %v1220, %v1228
      %v1233 = vadd.f32 %v1221, %v1228
      %v1234 = vadd.f32 %v1222, %v1228
      %v1235 = vadd.f32 %v1223, %v1228
      %v1236 = vadd.f32 %v1224, %v1228
      %v1237 = vadd.f32 %v1225, %v1228
      %v1238 = vmax.f32 %v1230, 0.0
      %v1239 = vmax.f32 %v1231, 0.0
      %v1240 = vmax.f32 %v1232, 0.0
      %v1241 = vmax.f32 %v1233, 0.0
      %v1242 = vmax.f32 %v1234, 0.0
      %v1243 = vmax.f32 %v1235, 0.0
      %v1244 = vmax.f32 %v1236, 0.0
      %v1245 = vmax.f32 %v1237, 0.0
      %v1246 = vpack.c.bf16 %v1238, %v1238
      %v1247 = vpack.c.bf16 %v1239, %v1239
      %v1248 = vpack.c.bf16 %v1240, %v1240
      %v1249 = vpack.c.bf16 %v1241, %v1241
      %v1250 = vpack.c.bf16 %v1242, %v1242
      %v1251 = vpack.c.bf16 %v1243, %v1243
      %v1252 = vpack.c.bf16 %v1244, %v1244
      %v1253 = vpack.c.bf16 %v1245, %v1245
      %1254 = vst [vmem:[%s170] sm:$0xf] %v1246
      %1255 = vst [vmem:[%s170 + $0x4] sm:$0xf] %v1247
      %1256 = vst [vmem:[%s170 + $0x8] sm:$0xf] %v1248
      %1257 = vst [vmem:[%s170 + $0xc] sm:$0xf] %v1249
      %1258 = vst [vmem:[%s170 + $0x10] sm:$0xf] %v1250
      %1259 = vst [vmem:[%s170 + $0x14] sm:$0xf] %v1251
      %1260 = vst [vmem:[%s170 + $0x18] sm:$0xf] %v1252
      %1261 = vst [vmem:[%s170 + $0x1c] sm:$0xf] %v1253
      %p1262 = scmp.lt.s32.totalorder %s14, 1
      %s1263 = scalar_select %p1262, %s14, 1
      %s1264 = smul.addr %s1263, 8
      %s1265 = smul.addr %s1264, 4
      %s1266 = scalar_lea.vmem %s3, %s1265
      // Predicated region
      $region33: #{model_forward.8} parent=31 // pred_check
        %p1267 = pneg %p100
      $region34: #{model_forward.8} parent=31 // pred_check_branch
        %1269 = sbr.rel (%p1267) target = $region36
      $region35: #{model_forward.8} parent=31 // pred_region
        _
      $region36: #{model_forward.8} parent=31 // pred_fallthru
        _
    $region32: #{model_forward.8} parent=5 // pred_fallthru
      _
    %p1270 = scmp.le.s32.totalorder 2, %s9
    // Predicated region
    $region37: #{model_forward.8} parent=5 // pred_check
      %p1271 = pneg %p1270
    $region38: #{model_forward.8} parent=5 // pred_check_branch
      %1273 = sbr.rel (%p1271) target = $region40
    $region39: #{model_forward.8} parent=5 // pred_region
      %s1274 = ssub.s32 %s9, 2
      // Predicated region
      $region41: #{model_forward.8} parent=39 // pred_check
        %p1275 = pneg %p106
      $region42: #{model_forward.8} parent=39 // pred_check_branch
        %1277 = sbr.rel (%p1275) target = $region44
      $region43: #{model_forward.8} parent=39 // pred_region
        %p1278 = scmp.lt.s32.totalorder %s15, 1
        %s1279 = scalar_select %p1278, %s15, 1
        %s1280 = smul.addr %s1279, 8
        %s1281 = smul.addr %s1280, 4
        %s1282 = scalar_lea.vmem %s3, %s1281
      $region44: #{model_forward.8} parent=39 // pred_fallthru
        _
    $region40: #{model_forward.8} parent=5 // pred_fallthru
      _
  $region6: #{model_forward.8} parent=0 // loop_footer
    %s13 = sadd.s32 1, %s9
  $region7: #{model_forward.8} parent=0 // loop_footer_branch
    %8 = sbr.rel target = $region3
  $region8: #{model_forward.8} parent=0 // loop_exit
    _

// kernel: model_forward.7
$region0: #{model_forward.7}
  #allocation0 [shape = 'u32[]', space=smem, size = 0x4, offset = 0x4, fixed_abs, tag = 'smem constant byte address 0x4 - core index']
  #allocation1 [shape = 'u32[72,128]{1,0:T(1,128)}', space=vmem, size = 0x9000, scoped, tag = 'internal scratch']
  %s0 = inlined_call_operand.vmem [shape: bf16[128,768], index: 0, kind: input, shape index: {}]
  %s1 = inlined_call_operand.vmem [shape: bf16[768,128], index: 1, kind: input, shape index: {}]
  %s2 = inlined_call_operand.vmem [shape: f32[1,128], index: 2, kind: input, shape index: {}]
  %s3 = inlined_call_operand.vmem [shape: bf16[128,128], index: 3, kind: output, shape index: {}]
  %s4 = sld [smem:[#allocation0]]
  $region22: #{model_forward.7} parent=0
    _
  %s6 = ssub.s32 1, %s4
  %s7 = scalar_select 0, %s6, %s4
  // Predicated region
  $region2: #{model_forward.7} parent=0 // pred_check
    _
  $region3: #{model_forward.7} parent=0 // pred_check_branch
    %9 = sbr.rel (0) target = $region5
  $region4: #{model_forward.7} parent=0 // pred_region
    _
  $region5: #{model_forward.7} parent=0 // pred_fallthru
    _
  // Predicated region
  $region6: #{model_forward.7} parent=0 // pred_check
    _
  $region7: #{model_forward.7} parent=0 // pred_check_branch
    %11 = sbr.rel (0) target = $region9
  $region8: #{model_forward.7} parent=0 // pred_region
    _
  $region9: #{model_forward.7} parent=0 // pred_fallthru
    _
  // Predicated region
  $region10: #{model_forward.7} parent=0 // pred_check
    _
  $region11: #{model_forward.7} parent=0 // pred_check_branch
    %13 = sbr.rel (0) target = $region13
  $region12: #{model_forward.7} parent=0 // pred_region
    _
  $region13: #{model_forward.7} parent=0 // pred_fallthru
    _
  %v14 = vld [vmem:[%s0] sm:$0xff]
  %v15 = vld [vmem:[%s0 + $0x8] sm:$0xff]
  %v16 = vld [vmem:[%s0 + $0x10] sm:$0xff]
  %v17 = vld [vmem:[%s0 + $0x18] sm:$0xff]
  %v18 = vld [vmem:[%s0 + $0x20] sm:$0xff]
  %v19 = vld [vmem:[%s0 + $0x28] sm:$0xff]
  %v20 = vld [vmem:[%s0 + $0x30] sm:$0xff]
  %v21 = vld [vmem:[%s0 + $0x38] sm:$0xff]
  %v22 = vld [vmem:[%s0 + $0x40] sm:$0xff]
  %v23 = vld [vmem:[%s0 + $0x48] sm:$0xff]
  %v24 = vld [vmem:[%s0 + $0x50] sm:$0xff]
  %v25 = vld [vmem:[%s0 + $0x58] sm:$0xff]
  %v26 = vld [vmem:[%s0 + $0x60] sm:$0xff]
  %v27 = vld [vmem:[%s0 + $0x68] sm:$0xff]
  %v28 = vld [vmem:[%s0 + $0x70] sm:$0xff]
  %v29 = vld [vmem:[%s0 + $0x78] sm:$0xff]
  %v30 = vld [vmem:[%s0 + $0x80] sm:$0xff]
  %v31 = vld [vmem:[%s0 + $0x88] sm:$0xff]
  %v32 = vld [vmem:[%s0 + $0x90] sm:$0xff]
  %v33 = vld [vmem:[%s0 + $0x98] sm:$0xff]
  %v34 = vld [vmem:[%s0 + $0xa0] sm:$0xff]
  %v35 = vld [vmem:[%s0 + $0xa8] sm:$0xff]
  %v36 = vld [vmem:[%s0 + $0xb0] sm:$0xff]
  %v37 = vld [vmem:[%s0 + $0xb8] sm:$0xff]
  %v38 = vld [vmem:[%s0 + $0xc0] sm:$0xff]
  %v39 = vld [vmem:[%s0 + $0xc8] sm:$0xff]
  %v40 = vld [vmem:[%s0 + $0xd0] sm:$0xff]
  %v41 = vld [vmem:[%s0 + $0xd8] sm:$0xff]
  %v42 = vld [vmem:[%s0 + $0xe0] sm:$0xff]
  %v43 = vld [vmem:[%s0 + $0xe8] sm:$0xff]
  %v44 = vld [vmem:[%s0 + $0xf0] sm:$0xff]
  %v45 = vld [vmem:[%s0 + $0xf8] sm:$0xff]
  %v46 = vld [vmem:[%s0 + $0x100] sm:$0xff]
  %v47 = vld [vmem:[%s0 + $0x108] sm:$0xff]
  %v48 = vld [vmem:[%s0 + $0x110] sm:$0xff]
  %v49 = vld [vmem:[%s0 + $0x118] sm:$0xff]
  %v50 = vld [vmem:[%s0 + $0x120] sm:$0xff]
  %v51 = vld [vmem:[%s0 + $0x128] sm:$0xff]
  %v52 = vld [vmem:[%s0 + $0x130] sm:$0xff]
  %v53 = vld [vmem:[%s0 + $0x138] sm:$0xff]
  %v54 = vld [vmem:[%s0 + $0x140] sm:$0xff]
  %v55 = vld [vmem:[%s0 + $0x148] sm:$0xff]
  %v56 = vld [vmem:[%s0 + $0x150] sm:$0xff]
  %v57 = vld [vmem:[%s0 + $0x158] sm:$0xff]
  %v58 = vld [vmem:[%s0 + $0x160] sm:$0xff]
  %v59 = vld [vmem:[%s0 + $0x168] sm:$0xff]
  %v60 = vld [vmem:[%s0 + $0x170] sm:$0xff]
  %v61 = vld [vmem:[%s0 + $0x178] sm:$0xff]
  %v62 = vld [vmem:[%s1] sm:$0xf]
  %v63 = vld [vmem:[%s1 + $0x4] sm:$0xf]
  %v64 = vld [vmem:[%s1 + $0x8] sm:$0xf]
  %v65 = vld [vmem:[%s1 + $0xc] sm:$0xf]
  %v66 = vld [vmem:[%s1 + $0x10] sm:$0xf]
  %v67 = vld [vmem:[%s1 + $0x14] sm:$0xf]
  %v68 = vld [vmem:[%s1 + $0x18] sm:$0xf]
  %v69 = vld [vmem:[%s1 + $0x1c] sm:$0xf]
  %v70 = vld [vmem:[%s1 + $0x20] sm:$0xf]
  %v71 = vld [vmem:[%s1 + $0x24] sm:$0xf]
  %v72 = vld [vmem:[%s1 + $0x28] sm:$0xf]
  %v73 = vld [vmem:[%s1 + $0x2c] sm:$0xf]
  %v74 = vld [vmem:[%s1 + $0x30] sm:$0xf]
  %v75 = vld [vmem:[%s1 + $0x34] sm:$0xf]
  %v76 = vld [vmem:[%s1 + $0x38] sm:$0xf]
  %v77 = vld [vmem:[%s1 + $0x3c] sm:$0xf]
  %v78 = vld [vmem:[%s1 + $0x40] sm:$0xf]
  %v79 = vld [vmem:[%s1 + $0x44] sm:$0xf]
  %v80 = vld [vmem:[%s1 + $0x48] sm:$0xf]
  %v81 = vld [vmem:[%s1 + $0x4c] sm:$0xf]
  %v82 = vld [vmem:[%s1 + $0x50] sm:$0xf]
  %v83 = vld [vmem:[%s1 + $0x54] sm:$0xf]
  %v84 = vld [vmem:[%s1 + $0x58] sm:$0xf]
  %v85 = vld [vmem:[%s1 + $0x5c] sm:$0xf]
  %v86 = vld [vmem:[%s1 + $0x60] sm:$0xf]
  %v87 = vld [vmem:[%s1 + $0x64] sm:$0xf]
  %v88 = vld [vmem:[%s1 + $0x68] sm:$0xf]
  %v89 = vld [vmem:[%s1 + $0x6c] sm:$0xf]
  %v90 = vld [vmem:[%s1 + $0x70] sm:$0xf]
  %v91 = vld [vmem:[%s1 + $0x74] sm:$0xf]
  %v92 = vld [vmem:[%s1 + $0x78] sm:$0xf]
  %v93 = vld [vmem:[%s1 + $0x7c] sm:$0xf]
  %v94 = vld [vmem:[%s1 + $0x80] sm:$0xf]
  %v95 = vld [vmem:[%s1 + $0x84] sm:$0xf]
  %v96 = vld [vmem:[%s1 + $0x88] sm:$0xf]
  %v97 = vld [vmem:[%s1 + $0x8c] sm:$0xf]
  %v98 = vld [vmem:[%s1 + $0x90] sm:$0xf]
  %v99 = vld [vmem:[%s1 + $0x94] sm:$0xf]
  %v100 = vld [vmem:[%s1 + $0x98] sm:$0xf]
  %v101 = vld [vmem:[%s1 + $0x9c] sm:$0xf]
  %v102 = vld [vmem:[%s1 + $0xa0] sm:$0xf]
  %v103 = vld [vmem:[%s1 + $0xa4] sm:$0xf]
  %v104 = vld [vmem:[%s1 + $0xa8] sm:$0xf]
  %v105 = vld [vmem:[%s1 + $0xac] sm:$0xf]
  %v106 = vld [vmem:[%s1 + $0xb0] sm:$0xf]
  %v107 = vld [vmem:[%s1 + $0xb4] sm:$0xf]
  %v108 = vld [vmem:[%s1 + $0xb8] sm:$0xf]
  %v109 = vld [vmem:[%s1 + $0xbc] sm:$0xf]
  %v110 = vld [vmem:[%s1 + $0xc0] sm:$0xf]
  %v111 = vld [vmem:[%s1 + $0xc4] sm:$0xf]
  %v112 = vld [vmem:[%s1 + $0xc8] sm:$0xf]
  %v113 = vld [vmem:[%s1 + $0xcc] sm:$0xf]
  %v114 = vld [vmem:[%s1 + $0xd0] sm:$0xf]
  %v115 = vld [vmem:[%s1 + $0xd4] sm:$0xf]
  %v116 = vld [vmem:[%s1 + $0xd8] sm:$0xf]
  %v117 = vld [vmem:[%s1 + $0xdc] sm:$0xf]
  %v118 = vld [vmem:[%s1 + $0xe0] sm:$0xf]
  %v119 = vld [vmem:[%s1 + $0xe4] sm:$0xf]
  %v120 = vld [vmem:[%s1 + $0xe8] sm:$0xf]
  %v121 = vld [vmem:[%s1 + $0xec] sm:$0xf]
  %v122 = vld [vmem:[%s1 + $0xf0] sm:$0xf]
  %v123 = vld [vmem:[%s1 + $0xf4] sm:$0xf]
  %v124 = vld [vmem:[%s1 + $0xf8] sm:$0xf]
  %v125 = vld [vmem:[%s1 + $0xfc] sm:$0xf]
  %v126 = vld [vmem:[%s1 + $0x100] sm:$0xf]
  %v127 = vld [vmem:[%s1 + $0x104] sm:$0xf]
  %v128 = vld [vmem:[%s1 + $0x108] sm:$0xf]
  %v129 = vld [vmem:[%s1 + $0x10c] sm:$0xf]
  %v130 = vld [vmem:[%s1 + $0x110] sm:$0xf]
  %v131 = vld [vmem:[%s1 + $0x114] sm:$0xf]
  %v132 = vld [vmem:[%s1 + $0x118] sm:$0xf]
  %v133 = vld [vmem:[%s1 + $0x11c] sm:$0xf]
  %v134 = vld [vmem:[%s1 + $0x120] sm:$0xf]
  %v135 = vld [vmem:[%s1 + $0x124] sm:$0xf]
  %v136 = vld [vmem:[%s1 + $0x128] sm:$0xf]
  %v137 = vld [vmem:[%s1 + $0x12c] sm:$0xf]
  %v138 = vld [vmem:[%s1 + $0x130] sm:$0xf]
  %v139 = vld [vmem:[%s1 + $0x134] sm:$0xf]
  %v140 = vld [vmem:[%s1 + $0x138] sm:$0xf]
  %v141 = vld [vmem:[%s1 + $0x13c] sm:$0xf]
  %v142 = vld [vmem:[%s1 + $0x140] sm:$0xf]
  %v143 = vld [vmem:[%s1 + $0x144] sm:$0xf]
  %v144 = vld [vmem:[%s1 + $0x148] sm:$0xf]
  %v145 = vld [vmem:[%s1 + $0x14c] sm:$0xf]
  %v146 = vld [vmem:[%s1 + $0x150] sm:$0xf]
  %v147 = vld [vmem:[%s1 + $0x154] sm:$0xf]
  %v148 = vld [vmem:[%s1 + $0x158] sm:$0xf]
  %v149 = vld [vmem:[%s1 + $0x15c] sm:$0xf]
  %v150 = vld [vmem:[%s1 + $0x160] sm:$0xf]
  %v151 = vld [vmem:[%s1 + $0x164] sm:$0xf]
  %v152 = vld [vmem:[%s1 + $0x168] sm:$0xf]
  %v153 = vld [vmem:[%s1 + $0x16c] sm:$0xf]
  %v154 = vld [vmem:[%s1 + $0x170] sm:$0xf]
  %v155 = vld [vmem:[%s1 + $0x174] sm:$0xf]
  %v156 = vld [vmem:[%s1 + $0x178] sm:$0xf]
  %v157 = vld [vmem:[%s1 + $0x17c] sm:$0xf]
  %v158 = vld [vmem:[%s2] sm:$0x1]
  %v160 = vperm.slane %v158, 0
  %v210 = vunpack.c.l.b16 %v14
  %v211 = vunpack.c.h.b16 %v14
  %v212 = vunpack.c.l.b16 %v15
  %v213 = vunpack.c.h.b16 %v15
  %v214 = vunpack.c.l.b16 %v16
  %v215 = vunpack.c.h.b16 %v16
  %v216 = vunpack.c.l.b16 %v17
  %v217 = vunpack.c.h.b16 %v17
  %v218 = vunpack.c.l.b16 %v18
  %v219 = vunpack.c.h.b16 %v18
  %v220 = vunpack.c.l.b16 %v19
  %v221 = vunpack.c.h.b16 %v19
  %v222 = vunpack.c.l.b16 %v20
  %v223 = vunpack.c.h.b16 %v20
  %v224 = vunpack.c.l.b16 %v21
  %v225 = vunpack.c.h.b16 %v21
  %v226 = vunpack.c.l.b16 %v22
  %v227 = vunpack.c.h.b16 %v22
  %v228 = vunpack.c.l.b16 %v23
  %v229 = vunpack.c.h.b16 %v23
  %v230 = vunpack.c.l.b16 %v24
  %v231 = vunpack.c.h.b16 %v24
  %v232 = vunpack.c.l.b16 %v25
  %v233 = vunpack.c.h.b16 %v25
  %v234 = vunpack.c.l.b16 %v26
  %v235 = vunpack.c.h.b16 %v26
  %v236 = vunpack.c.l.b16 %v27
  %v237 = vunpack.c.h.b16 %v27
  %v238 = vunpack.c.l.b16 %v28
  %v239 = vunpack.c.h.b16 %v28
  %v240 = vunpack.c.l.b16 %v29
  %v241 = vunpack.c.h.b16 %v29
  %v242 = vunpack.c.l.b16 %v30
  %v243 = vunpack.c.h.b16 %v30
  %v244 = vunpack.c.l.b16 %v31
  %v245 = vunpack.c.h.b16 %v31
  %v246 = vunpack.c.l.b16 %v32
  %v247 = vunpack.c.h.b16 %v32
  %v248 = vunpack.c.l.b16 %v33
  %v249 = vunpack.c.h.b16 %v33
  %v250 = vunpack.c.l.b16 %v34
  %v251 = vunpack.c.h.b16 %v34
  %v252 = vunpack.c.l.b16 %v35
  %v253 = vunpack.c.h.b16 %v35
  %v254 = vunpack.c.l.b16 %v36
  %v255 = vunpack.c.h.b16 %v36
  %v256 = vunpack.c.l.b16 %v37
  %v257 = vunpack.c.h.b16 %v37
  %v258 = vunpack.c.l.b16 %v38
  %v259 = vunpack.c.h.b16 %v38
  %v260 = vunpack.c.l.b16 %v39
  %v261 = vunpack.c.h.b16 %v39
  %v262 = vunpack.c.l.b16 %v40
  %v263 = vunpack.c.h.b16 %v40
  %v264 = vunpack.c.l.b16 %v41
  %v265 = vunpack.c.h.b16 %v41
  %v266 = vunpack.c.l.b16 %v42
  %v267 = vunpack.c.h.b16 %v42
  %v268 = vunpack.c.l.b16 %v43
  %v269 = vunpack.c.h.b16 %v43
  %v270 = vunpack.c.l.b16 %v44
  %v271 = vunpack.c.h.b16 %v44
  %v272 = vunpack.c.l.b16 %v45
  %v273 = vunpack.c.h.b16 %v45
  %v274 = vunpack.c.l.b16 %v46
  %v275 = vunpack.c.h.b16 %v46
  %v276 = vunpack.c.l.b16 %v47
  %v277 = vunpack.c.h.b16 %v47
  %v278 = vunpack.c.l.b16 %v48
  %v279 = vunpack.c.h.b16 %v48
  %v280 = vunpack.c.l.b16 %v49
  %v281 = vunpack.c.h.b16 %v49
  %v282 = vunpack.c.l.b16 %v50
  %v283 = vunpack.c.h.b16 %v50
  %v284 = vunpack.c.l.b16 %v51
  %v285 = vunpack.c.h.b16 %v51
  %v286 = vunpack.c.l.b16 %v52
  %v287 = vunpack.c.h.b16 %v52
  %v288 = vunpack.c.l.b16 %v53
  %v289 = vunpack.c.h.b16 %v53
  %v290 = vunpack.c.l.b16 %v54
  %v291 = vunpack.c.h.b16 %v54
  %v292 = vunpack.c.l.b16 %v55
  %v293 = vunpack.c.h.b16 %v55
  %v294 = vunpack.c.l.b16 %v56
  %v295 = vunpack.c.h.b16 %v56
  %v296 = vunpack.c.l.b16 %v57
  %v297 = vunpack.c.h.b16 %v57
  %v298 = vunpack.c.l.b16 %v58
  %v299 = vunpack.c.h.b16 %v58
  %v300 = vunpack.c.l.b16 %v59
  %v301 = vunpack.c.h.b16 %v59
  %v302 = vunpack.c.l.b16 %v60
  %v303 = vunpack.c.h.b16 %v60
  %v304 = vunpack.c.l.b16 %v61
  %v305 = vunpack.c.h.b16 %v61
  %v306 = vpack.c.b16 %v216, %v210
  %v307 = vpack.c.b16 %v217, %v211
  %v308 = vpack.c.b16 %v218, %v212
  %v309 = vpack.c.b16 %v219, %v213
  %v310 = vpack.c.b16 %v220, %v214
  %v311 = vpack.c.b16 %v221, %v215
  %v312 = vpack.c.b16 %v228, %v222
  %v313 = vpack.c.b16 %v229, %v223
  %v314 = vpack.c.b16 %v230, %v224
  %v315 = vpack.c.b16 %v231, %v225
  %v316 = vpack.c.b16 %v232, %v226
  %v317 = vpack.c.b16 %v233, %v227
  %v318 = vpack.c.b16 %v240, %v234
  %v319 = vpack.c.b16 %v241, %v235
  %v320 = vpack.c.b16 %v242, %v236
  %v321 = vpack.c.b16 %v243, %v237
  %v322 = vpack.c.b16 %v244, %v238
  %v323 = vpack.c.b16 %v245, %v239
  %v324 = vpack.c.b16 %v252, %v246
  %v325 = vpack.c.b16 %v253, %v247
  %v326 = vpack.c.b16 %v254, %v248
  %v327 = vpack.c.b16 %v255, %v249
  %v328 = vpack.c.b16 %v256, %v250
  %v329 = vpack.c.b16 %v257, %v251
  %v330 = vpack.c.b16 %v264, %v258
  %v331 = vpack.c.b16 %v265, %v259
  %v332 = vpack.c.b16 %v266, %v260
  %v333 = vpack.c.b16 %v267, %v261
  %v334 = vpack.c.b16 %v268, %v262
  %v335 = vpack.c.b16 %v269, %v263
  %v336 = vpack.c.b16 %v276, %v270
  %v337 = vpack.c.b16 %v277, %v271
  %v338 = vpack.c.b16 %v278, %v272
  %v339 = vpack.c.b16 %v279, %v273
  %v340 = vpack.c.b16 %v280, %v274
  %v341 = vpack.c.b16 %v281, %v275
  %v342 = vpack.c.b16 %v288, %v282
  %v343 = vpack.c.b16 %v289, %v283
  %v344 = vpack.c.b16 %v290, %v284
  %v345 = vpack.c.b16 %v291, %v285
  %v346 = vpack.c.b16 %v292, %v286
  %v347 = vpack.c.b16 %v293, %v287
  %v348 = vpack.c.b16 %v300, %v294
  %v349 = vpack.c.b16 %v301, %v295
  %v350 = vpack.c.b16 %v302, %v296
  %v351 = vpack.c.b16 %v303, %v297
  %v352 = vpack.c.b16 %v304, %v298
  %v353 = vpack.c.b16 %v305, %v299
  %v498 = vunpack.c.l.b16 %v62
  %v499 = vunpack.c.l.b16 %v63
  %v500 = vunpack.c.l.b16 %v64
  %v501 = vunpack.c.l.b16 %v65
  %v502 = vunpack.c.l.b16 %v66
  %v503 = vunpack.c.l.b16 %v67
  %v504 = vunpack.c.l.b16 %v68
  %v505 = vunpack.c.l.b16 %v69
  %v506 = vunpack.c.l.b16 %v70
  %v507 = vunpack.c.l.b16 %v71
  %v508 = vunpack.c.l.b16 %v72
  %v509 = vunpack.c.l.b16 %v73
  %v510 = vunpack.c.l.b16 %v74
  %v511 = vunpack.c.l.b16 %v75
  %v512 = vunpack.c.l.b16 %v76
  %v513 = vunpack.c.l.b16 %v77
  %v514 = vunpack.c.l.b16 %v78
  %v515 = vunpack.c.l.b16 %v79
  %v516 = vunpack.c.l.b16 %v80
  %v517 = vunpack.c.l.b16 %v81
  %v518 = vunpack.c.l.b16 %v82
  %v519 = vunpack.c.l.b16 %v83
  %v520 = vunpack.c.l.b16 %v84
  %v521 = vunpack.c.l.b16 %v85
  %v522 = vunpack.c.l.b16 %v86
  %v523 = vunpack.c.l.b16 %v87
  %v524 = vunpack.c.l.b16 %v88
  %v525 = vunpack.c.l.b16 %v89
  %v526 = vunpack.c.l.b16 %v90
  %v527 = vunpack.c.l.b16 %v91
  %v528 = vunpack.c.l.b16 %v92
  %v529 = vunpack.c.l.b16 %v93
  %v530 = vunpack.c.l.b16 %v94
  %v531 = vunpack.c.l.b16 %v95
  %v532 = vunpack.c.l.b16 %v96
  %v533 = vunpack.c.l.b16 %v97
  %v534 = vunpack.c.l.b16 %v98
  %v535 = vunpack.c.l.b16 %v99
  %v536 = vunpack.c.l.b16 %v100
  %v537 = vunpack.c.l.b16 %v101
  %v538 = vunpack.c.l.b16 %v102
  %v539 = vunpack.c.l.b16 %v103
  %v540 = vunpack.c.l.b16 %v104
  %v541 = vunpack.c.l.b16 %v105
  %v542 = vunpack.c.l.b16 %v106
  %v543 = vunpack.c.l.b16 %v107
  %v544 = vunpack.c.l.b16 %v108
  %v545 = vunpack.c.l.b16 %v109
  %v546 = vunpack.c.l.b16 %v110
  %v547 = vunpack.c.l.b16 %v111
  %v548 = vunpack.c.l.b16 %v112
  %v549 = vunpack.c.l.b16 %v113
  %v550 = vunpack.c.l.b16 %v114
  %v551 = vunpack.c.l.b16 %v115
  %v552 = vunpack.c.l.b16 %v116
  %v553 = vunpack.c.l.b16 %v117
  %v554 = vunpack.c.l.b16 %v118
  %v555 = vunpack.c.l.b16 %v119
  %v556 = vunpack.c.l.b16 %v120
  %v557 = vunpack.c.l.b16 %v121
  %v558 = vunpack.c.l.b16 %v122
  %v559 = vunpack.c.l.b16 %v123
  %v560 = vunpack.c.l.b16 %v124
  %v561 = vunpack.c.l.b16 %v125
  %v562 = vunpack.c.l.b16 %v126
  %v563 = vunpack.c.l.b16 %v127
  %v564 = vunpack.c.l.b16 %v128
  %v565 = vunpack.c.l.b16 %v129
  %v566 = vunpack.c.l.b16 %v130
  %v567 = vunpack.c.l.b16 %v131
  %v568 = vunpack.c.l.b16 %v132
  %v569 = vunpack.c.l.b16 %v133
  %v570 = vunpack.c.l.b16 %v134
  %v571 = vunpack.c.l.b16 %v135
  %v572 = vunpack.c.l.b16 %v136
  %v573 = vunpack.c.l.b16 %v137
  %v574 = vunpack.c.l.b16 %v138
  %v575 = vunpack.c.l.b16 %v139
  %v576 = vunpack.c.l.b16 %v140
  %v577 = vunpack.c.l.b16 %v141
  %v578 = vunpack.c.l.b16 %v142
  %v579 = vunpack.c.l.b16 %v143
  %v580 = vunpack.c.l.b16 %v144
  %v581 = vunpack.c.l.b16 %v145
  %v582 = vunpack.c.l.b16 %v146
  %v583 = vunpack.c.l.b16 %v147
  %v584 = vunpack.c.l.b16 %v148
  %v585 = vunpack.c.l.b16 %v149
  %v586 = vunpack.c.l.b16 %v150
  %v587 = vunpack.c.l.b16 %v151
  %v588 = vunpack.c.l.b16 %v152
  %v589 = vunpack.c.l.b16 %v153
  %v590 = vunpack.c.l.b16 %v154
  %v591 = vunpack.c.l.b16 %v155
  %v592 = vunpack.c.l.b16 %v156
  %v593 = vunpack.c.l.b16 %v157
  %v594 = vpack.c.b16 %v499, %v498
  %v595 = vpack.c.b16 %v501, %v500
  %v596 = vpack.c.b16 %v503, %v502
  %v597 = vpack.c.b16 %v505, %v504
  %v598 = vpack.c.b16 %v507, %v506
  %v599 = vpack.c.b16 %v509, %v508
  %v600 = vpack.c.b16 %v511, %v510
  %v601 = vpack.c.b16 %v513, %v512
  %v602 = vpack.c.b16 %v515, %v514
  %v603 = vpack.c.b16 %v517, %v516
  %v604 = vpack.c.b16 %v519, %v518
  %v605 = vpack.c.b16 %v521, %v520
  %v606 = vpack.c.b16 %v523, %v522
  %v607 = vpack.c.b16 %v525, %v524
  %v608 = vpack.c.b16 %v527, %v526
  %v609 = vpack.c.b16 %v529, %v528
  %v610 = vpack.c.b16 %v531, %v530
  %v611 = vpack.c.b16 %v533, %v532
  %v612 = vpack.c.b16 %v535, %v534
  %v613 = vpack.c.b16 %v537, %v536
  %v614 = vpack.c.b16 %v539, %v538
  %v615 = vpack.c.b16 %v541, %v540
  %v616 = vpack.c.b16 %v543, %v542
  %v617 = vpack.c.b16 %v545, %v544
  %v618 = vpack.c.b16 %v547, %v546
  %v619 = vpack.c.b16 %v549, %v548
  %v620 = vpack.c.b16 %v551, %v550
  %v621 = vpack.c.b16 %v553, %v552
  %v622 = vpack.c.b16 %v555, %v554
  %v623 = vpack.c.b16 %v557, %v556
  %v624 = vpack.c.b16 %v559, %v558
  %v625 = vpack.c.b16 %v561, %v560
  %v626 = vpack.c.b16 %v563, %v562
  %v627 = vpack.c.b16 %v565, %v564
  %v628 = vpack.c.b16 %v567, %v566
  %v629 = vpack.c.b16 %v569, %v568
  %v630 = vpack.c.b16 %v571, %v570
  %v631 = vpack.c.b16 %v573, %v572
  %v632 = vpack.c.b16 %v575, %v574
  %v633 = vpack.c.b16 %v577, %v576
  %v634 = vpack.c.b16 %v579, %v578
  %v635 = vpack.c.b16 %v581, %v580
  %v636 = vpack.c.b16 %v583, %v582
  %v637 = vpack.c.b16 %v585, %v584
  %v638 = vpack.c.b16 %v587, %v586
  %v639 = vpack.c.b16 %v589, %v588
  %v640 = vpack.c.b16 %v591, %v590
  %v641 = vpack.c.b16 %v593, %v592
  %690 = vmatpush.bf16.msra.mxu0 %v601
  %691 = vmatpush.bf16.msra.mxu0 %v600
  %692 = vmatpush.bf16.msra.mxu0 %v599
  %693 = vmatpush.bf16.msra.mxu0 %v598
  %694 = vmatpush.bf16.msra.mxu0 %v597
  %695 = vmatpush.bf16.msra.mxu0 %v596
  %696 = vmatpush.bf16.msra.mxu0 %v595
  %697 = vmatpush.bf16.msra.mxu0 %v594
  %698 = vmatmul.bf16.gmra.mxu0 %v306
  %v699 = vpop.f32.mrf.mxu0
  %v700 = vadd.f32 %v160, %v699
  %v701 = vpop.f32.mrf.mxu0
  %v702 = vadd.f32 %v160, %v701
  %703 = vmatmul.bf16.gmra.mxu0 %v312
  %v704 = vpop.f32.mrf.mxu0
  %v705 = vadd.f32 %v160, %v704
  %v706 = vpop.f32.mrf.mxu0
  %v707 = vadd.f32 %v160, %v706
  %708 = vmatmul.bf16.gmra.mxu0 %v318
  %v709 = vpop.f32.mrf.mxu0
  %v710 = vadd.f32 %v160, %v709
  %v711 = vpop.f32.mrf.mxu0
  %v712 = vadd.f32 %v160, %v711
  %713 = vmatmul.bf16.gmra.mxu0 %v324
  %v714 = vpop.f32.mrf.mxu0
  %v715 = vadd.f32 %v160, %v714
  %v716 = vpop.f32.mrf.mxu0
  %v717 = vadd.f32 %v160, %v716
  %718 = vmatmul.bf16.gmra.mxu0 %v330
  %v719 = vpop.f32.mrf.mxu0
  %v720 = vadd.f32 %v160, %v719
  %v721 = vpop.f32.mrf.mxu0
  %v722 = vadd.f32 %v160, %v721
  %723 = vmatmul.bf16.gmra.mxu0 %v336
  %v724 = vpop.f32.mrf.mxu0
  %v725 = vadd.f32 %v160, %v724
  %v726 = vpop.f32.mrf.mxu0
  %v727 = vadd.f32 %v160, %v726
  %728 = vmatmul.bf16.gmra.mxu0 %v342
  %v729 = vpop.f32.mrf.mxu0
  %v730 = vadd.f32 %v160, %v729
  %v731 = vpop.f32.mrf.mxu0
  %v732 = vadd.f32 %v160, %v731
  %733 = vmatmul.bf16.gmra.mxu0 %v348
  %v734 = vpop.f32.mrf.mxu0
  %v735 = vadd.f32 %v160, %v734
  %v736 = vpop.f32.mrf.mxu0
  %v737 = vadd.f32 %v160, %v736
  %738 = vdwg.mxu0
  %739 = vmatpush.bf16.msra.mxu0 %v609
  %740 = vmatpush.bf16.msra.mxu0 %v608
  %741 = vmatpush.bf16.msra.mxu0 %v607
  %742 = vmatpush.bf16.msra.mxu0 %v606
  %743 = vmatpush.bf16.msra.mxu0 %v605
  %744 = vmatpush.bf16.msra.mxu0 %v604
  %745 = vmatpush.bf16.msra.mxu0 %v603
  %746 = vmatpush.bf16.msra.mxu0 %v602
  %747 = vmatmul.bf16.gmra.mxu0 %v307
  %v748 = vpop.f32.mrf.mxu0
  %v749 = vadd.f32 %v700, %v748
  %v750 = vpop.f32.mrf.mxu0
  %v751 = vadd.f32 %v702, %v750
  %752 = vmatmul.bf16.gmra.mxu0 %v313
  %v753 = vpop.f32.mrf.mxu0
  %v754 = vadd.f32 %v705, %v753
  %v755 = vpop.f32.mrf.mxu0
  %v756 = vadd.f32 %v707, %v755
  %757 = vmatmul.bf16.gmra.mxu0 %v319
  %v758 = vpop.f32.mrf.mxu0
  %v759 = vadd.f32 %v710, %v758
  %v760 = vpop.f32.mrf.mxu0
  %v761 = vadd.f32 %v712, %v760
  %762 = vmatmul.bf16.gmra.mxu0 %v325
  %v763 = vpop.f32.mrf.mxu0
  %v764 = vadd.f32 %v715, %v763
  %v765 = vpop.f32.mrf.mxu0
  %v766 = vadd.f32 %v717, %v765
  %767 = vmatmul.bf16.gmra.mxu0 %v331
  %v768 = vpop.f32.mrf.mxu0
  %v769 = vadd.f32 %v720, %v768
  %v770 = vpop.f32.mrf.mxu0
  %v771 = vadd.f32 %v722, %v770
  %772 = vmatmul.bf16.gmra.mxu0 %v337
  %v773 = vpop.f32.mrf.mxu0
  %v774 = vadd.f32 %v725, %v773
  %v775 = vpop.f32.mrf.mxu0
  %v776 = vadd.f32 %v727, %v775
  %777 = vmatmul.bf16.gmra.mxu0 %v343
  %v778 = vpop.f32.mrf.mxu0
  %v779 = vadd.f32 %v730, %v778
  %v780 = vpop.f32.mrf.mxu0
  %v781 = vadd.f32 %v732, %v780
  %782 = vmatmul.bf16.gmra.mxu0 %v349
  %v783 = vpop.f32.mrf.mxu0
  %v784 = vadd.f32 %v735, %v783
  %v785 = vpop.f32.mrf.mxu0
  %v786 = vadd.f32 %v737, %v785
  %787 = vdwg.mxu0
  %788 = vmatpush.bf16.msra.mxu0 %v617
  %789 = vmatpush.bf16.msra.mxu0 %v616
  %790 = vmatpush.bf16.msra.mxu0 %v615
  %791 = vmatpush.bf16.msra.mxu0 %v614
  %792 = vmatpush.bf16.msra.mxu0 %v613
  %793 = vmatpush.bf16.msra.mxu0 %v612
  %794 = vmatpush.bf16.msra.mxu0 %v611
  %795 = vmatpush.bf16.msra.mxu0 %v610
  %796 = vmatmul.bf16.gmra.mxu0 %v308
  %v797 = vpop.f32.mrf.mxu0
  %v798 = vadd.f32 %v749, %v797
  %v799 = vpop.f32.mrf.mxu0
  %v800 = vadd.f32 %v751, %v799
  %801 = vmatmul.bf16.gmra.mxu0 %v314
  %v802 = vpop.f32.mrf.mxu0
  %v803 = vadd.f32 %v754, %v802
  %v804 = vpop.f32.mrf.mxu0
  %v805 = vadd.f32 %v756, %v804
  %806 = vmatmul.bf16.gmra.mxu0 %v320
  %v807 = vpop.f32.mrf.mxu0
  %v808 = vadd.f32 %v759, %v807
  %v809 = vpop.f32.mrf.mxu0
  %v810 = vadd.f32 %v761, %v809
  %811 = vmatmul.bf16.gmra.mxu0 %v326
  %v812 = vpop.f32.mrf.mxu0
  %v813 = vadd.f32 %v764, %v812
  %v814 = vpop.f32.mrf.mxu0
  %v815 = vadd.f32 %v766, %v814
  %816 = vmatmul.bf16.gmra.mxu0 %v332
  %v817 = vpop.f32.mrf.mxu0
  %v818 = vadd.f32 %v769, %v817
  %v819 = vpop.f32.mrf.mxu0
  %v820 = vadd.f32 %v771, %v819
  %821 = vmatmul.bf16.gmra.mxu0 %v338
  %v822 = vpop.f32.mrf.mxu0
  %v823 = vadd.f32 %v774, %v822
  %v824 = vpop.f32.mrf.mxu0
  %v825 = vadd.f32 %v776, %v824
  %826 = vmatmul.bf16.gmra.mxu0 %v344
  %v827 = vpop.f32.mrf.mxu0
  %v828 = vadd.f32 %v779, %v827
  %v829 = vpop.f32.mrf.mxu0
  %v830 = vadd.f32 %v781, %v829
  %831 = vmatmul.bf16.gmra.mxu0 %v350
  %v832 = vpop.f32.mrf.mxu0
  %v833 = vadd.f32 %v784, %v832
  %v834 = vpop.f32.mrf.mxu0
  %v835 = vadd.f32 %v786, %v834
  %836 = vdwg.mxu0
  %837 = vmatpush.bf16.msra.mxu0 %v625
  %838 = vmatpush.bf16.msra.mxu0 %v624
  %839 = vmatpush.bf16.msra.mxu0 %v623
  %840 = vmatpush.bf16.msra.mxu0 %v622
  %841 = vmatpush.bf16.msra.mxu0 %v621
  %842 = vmatpush.bf16.msra.mxu0 %v620
  %843 = vmatpush.bf16.msra.mxu0 %v619
  %844 = vmatpush.bf16.msra.mxu0 %v618
  %845 = vmatmul.bf16.gmra.mxu0 %v309
  %v846 = vpop.f32.mrf.mxu0
  %v847 = vadd.f32 %v798, %v846
  %v848 = vpop.f32.mrf.mxu0
  %v849 = vadd.f32 %v800, %v848
  %850 = vmatmul.bf16.gmra.mxu0 %v315
  %v851 = vpop.f32.mrf.mxu0
  %v852 = vadd.f32 %v803, %v851
  %v853 = vpop.f32.mrf.mxu0
  %v854 = vadd.f32 %v805, %v853
  %855 = vmatmul.bf16.gmra.mxu0 %v321
  %v856 = vpop.f32.mrf.mxu0
  %v857 = vadd.f32 %v808, %v856
  %v858 = vpop.f32.mrf.mxu0
  %v859 = vadd.f32 %v810, %v858
  %860 = vmatmul.bf16.gmra.mxu0 %v327
  %v861 = vpop.f32.mrf.mxu0
  %v862 = vadd.f32 %v813, %v861
  %v863 = vpop.f32.mrf.mxu0
  %v864 = vadd.f32 %v815, %v863
  %865 = vmatmul.bf16.gmra.mxu0 %v333
  %v866 = vpop.f32.mrf.mxu0
  %v867 = vadd.f32 %v818, %v866
  %v868 = vpop.f32.mrf.mxu0
  %v869 = vadd.f32 %v820, %v868
  %870 = vmatmul.bf16.gmra.mxu0 %v339
  %v871 = vpop.f32.mrf.mxu0
  %v872 = vadd.f32 %v823, %v871
  %v873 = vpop.f32.mrf.mxu0
  %v874 = vadd.f32 %v825, %v873
  %875 = vmatmul.bf16.gmra.mxu0 %v345
  %v876 = vpop.f32.mrf.mxu0
  %v877 = vadd.f32 %v828, %v876
  %v878 = vpop.f32.mrf.mxu0
  %v879 = vadd.f32 %v830, %v878
  %880 = vmatmul.bf16.gmra.mxu0 %v351
  %v881 = vpop.f32.mrf.mxu0
  %v882 = vadd.f32 %v833, %v881
  %v883 = vpop.f32.mrf.mxu0
  %v884 = vadd.f32 %v835, %v883
  %885 = vdwg.mxu0
  %886 = vmatpush.bf16.msra.mxu0 %v633
  %887 = vmatpush.bf16.msra.mxu0 %v632
  %888 = vmatpush.bf16.msra.mxu0 %v631
  %889 = vmatpush.bf16.msra.mxu0 %v630
  %890 = vmatpush.bf16.msra.mxu0 %v629
  %891 = vmatpush.bf16.msra.mxu0 %v628
  %892 = vmatpush.bf16.msra.mxu0 %v627
  %893 = vmatpush.bf16.msra.mxu0 %v626
  %894 = vmatmul.bf16.gmra.mxu0 %v310
  %v895 = vpop.f32.mrf.mxu0
  %v896 = vadd.f32 %v847, %v895
  %v897 = vpop.f32.mrf.mxu0
  %v898 = vadd.f32 %v849, %v897
  %899 = vmatmul.bf16.gmra.mxu0 %v316
  %v900 = vpop.f32.mrf.mxu0
  %v901 = vadd.f32 %v852, %v900
  %v902 = vpop.f32.mrf.mxu0
  %v903 = vadd.f32 %v854, %v902
  %904 = vmatmul.bf16.gmra.mxu0 %v322
  %v905 = vpop.f32.mrf.mxu0
  %v906 = vadd.f32 %v857, %v905
  %v907 = vpop.f32.mrf.mxu0
  %v908 = vadd.f32 %v859, %v907
  %909 = vmatmul.bf16.gmra.mxu0 %v328
  %v910 = vpop.f32.mrf.mxu0
  %v911 = vadd.f32 %v862, %v910
  %v912 = vpop.f32.mrf.mxu0
  %v913 = vadd.f32 %v864, %v912
  %914 = vmatmul.bf16.gmra.mxu0 %v334
  %v915 = vpop.f32.mrf.mxu0
  %v916 = vadd.f32 %v867, %v915
  %v917 = vpop.f32.mrf.mxu0
  %v918 = vadd.f32 %v869, %v917
  %919 = vmatmul.bf16.gmra.mxu0 %v340
  %v920 = vpop.f32.mrf.mxu0
  %v921 = vadd.f32 %v872, %v920
  %v922 = vpop.f32.mrf.mxu0
  %v923 = vadd.f32 %v874, %v922
  %924 = vmatmul.bf16.gmra.mxu0 %v346
  %v925 = vpop.f32.mrf.mxu0
  %v926 = vadd.f32 %v877, %v925
  %v927 = vpop.f32.mrf.mxu0
  %v928 = vadd.f32 %v879, %v927
  %929 = vmatmul.bf16.gmra.mxu0 %v352
  %v930 = vpop.f32.mrf.mxu0
  %v931 = vadd.f32 %v882, %v930
  %v932 = vpop.f32.mrf.mxu0
  %v933 = vadd.f32 %v884, %v932
  %934 = vdwg.mxu0
  %935 = vmatpush.bf16.msra.mxu0 %v641
  %936 = vmatpush.bf16.msra.mxu0 %v640
  %937 = vmatpush.bf16.msra.mxu0 %v639
  %938 = vmatpush.bf16.msra.mxu0 %v638
  %939 = vmatpush.bf16.msra.mxu0 %v637
  %940 = vmatpush.bf16.msra.mxu0 %v636
  %941 = vmatpush.bf16.msra.mxu0 %v635
  %942 = vmatpush.bf16.msra.mxu0 %v634
  %943 = vmatmul.bf16.gmra.mxu0 %v311
  %v944 = vpop.f32.mrf.mxu0
  %v945 = vadd.f32 %v896, %v944
  %v946 = vpop.f32.mrf.mxu0
  %v947 = vadd.f32 %v898, %v946
  %948 = vmatmul.bf16.gmra.mxu0 %v317
  %v949 = vpop.f32.mrf.mxu0
  %v950 = vadd.f32 %v901, %v949
  %v951 = vpop.f32.mrf.mxu0
  %v952 = vadd.f32 %v903, %v951
  %953 = vmatmul.bf16.gmra.mxu0 %v323
  %v954 = vpop.f32.mrf.mxu0
  %v955 = vadd.f32 %v906, %v954
  %v956 = vpop.f32.mrf.mxu0
  %v957 = vadd.f32 %v908, %v956
  %958 = vmatmul.bf16.gmra.mxu0 %v329
  %v959 = vpop.f32.mrf.mxu0
  %v960 = vadd.f32 %v911, %v959
  %v961 = vpop.f32.mrf.mxu0
  %v962 = vadd.f32 %v913, %v961
  %963 = vmatmul.bf16.gmra.mxu0 %v335
  %v964 = vpop.f32.mrf.mxu0
  %v965 = vadd.f32 %v916, %v964
  %v966 = vpop.f32.mrf.mxu0
  %v967 = vadd.f32 %v918, %v966
  %968 = vmatmul.bf16.gmra.mxu0 %v341
  %v969 = vpop.f32.mrf.mxu0
  %v970 = vadd.f32 %v921, %v969
  %v971 = vpop.f32.mrf.mxu0
  %v972 = vadd.f32 %v923, %v971
  %973 = vmatmul.bf16.gmra.mxu0 %v347
  %v974 = vpop.f32.mrf.mxu0
  %v975 = vadd.f32 %v926, %v974
  %v976 = vpop.f32.mrf.mxu0
  %v977 = vadd.f32 %v928, %v976
  %978 = vmatmul.bf16.gmra.mxu0 %v353
  %v979 = vpop.f32.mrf.mxu0
  %v980 = vadd.f32 %v931, %v979
  %v981 = vpop.f32.mrf.mxu0
  %v982 = vadd.f32 %v933, %v981
  %983 = vdwg.mxu0
  %v984 = vpack.c.bf16 %v945, %v945
  %v985 = vpack.c.bf16 %v947, %v947
  %v986 = vpack.c.bf16 %v950, %v950
  %v987 = vpack.c.bf16 %v952, %v952
  %v988 = vpack.c.bf16 %v955, %v955
  %v989 = vpack.c.bf16 %v957, %v957
  %v990 = vpack.c.bf16 %v960, %v960
  %v991 = vpack.c.bf16 %v962, %v962
  %v992 = vpack.c.bf16 %v965, %v965
  %v993 = vpack.c.bf16 %v967, %v967
  %v994 = vpack.c.bf16 %v970, %v970
  %v995 = vpack.c.bf16 %v972, %v972
  %v996 = vpack.c.bf16 %v975, %v975
  %v997 = vpack.c.bf16 %v977, %v977
  %v998 = vpack.c.bf16 %v980, %v980
  %v999 = vpack.c.bf16 %v982, %v982
  %1000 = vst [vmem:[%s3] sm:$0xf] %v984
  %1001 = vst [vmem:[%s3 + $0x4] sm:$0xf] %v985
  %1002 = vst [vmem:[%s3 + $0x8] sm:$0xf] %v986
  %1003 = vst [vmem:[%s3 + $0xc] sm:$0xf] %v987
  %1004 = vst [vmem:[%s3 + $0x10] sm:$0xf] %v988
  %1005 = vst [vmem:[%s3 + $0x14] sm:$0xf] %v989
  %1006 = vst [vmem:[%s3 + $0x18] sm:$0xf] %v990
  %1007 = vst [vmem:[%s3 + $0x1c] sm:$0xf] %v991
  %1008 = vst [vmem:[%s3 + $0x20] sm:$0xf] %v992
  %1009 = vst [vmem:[%s3 + $0x24] sm:$0xf] %v993
  %1010 = vst [vmem:[%s3 + $0x28] sm:$0xf] %v994
  %1011 = vst [vmem:[%s3 + $0x2c] sm:$0xf] %v995
  %1012 = vst [vmem:[%s3 + $0x30] sm:$0xf] %v996
  %1013 = vst [vmem:[%s3 + $0x34] sm:$0xf] %v997
  %1014 = vst [vmem:[%s3 + $0x38] sm:$0xf] %v998
  %1015 = vst [vmem:[%s3 + $0x3c] sm:$0xf] %v999
  // Predicated region
  $region14: #{model_forward.7} parent=0 // pred_check
    _
  $region15: #{model_forward.7} parent=0 // pred_check_branch
    %1017 = sbr.rel (0) target = $region17
  $region16: #{model_forward.7} parent=0 // pred_region
    _
  $region17: #{model_forward.7} parent=0 // pred_fallthru
    _
  // Predicated region
  $region18: #{model_forward.7} parent=0 // pred_check
    _
  $region19: #{model_forward.7} parent=0 // pred_check_branch
    %1019 = sbr.rel (0) target = $region21
  $region20: #{model_forward.7} parent=0 // pred_region
    _
  $region21: #{model_forward.7} parent=0 // pred_fallthru
    _

// kernel: model_forward.13
$region0: #{model_forward.13}
  #allocation0 [shape = 'u32[]', space=smem, size = 0x4, offset = 0x4, fixed_abs, tag = 'smem constant byte address 0x4 - core index']
  #allocation1 [shape = 'u32[72,128]{1,0:T(1,128)}', space=vmem, size = 0x9000, scoped, tag = 'internal scratch']
  #allocation2 [shape = 'f32[10,10,128]{2,1,0:T(8,128)}', space=vmem, size = 0x14000, scoped, tag = 'scratch operand']
  %s0 = inlined_call_operand.vmem [shape: bf16[2,8,8,128], index: 0, kind: input, shape index: {}]
  %s1 = inlined_call_operand.vmem [shape: bf16[3,3,128,128], index: 1, kind: input, shape index: {}]
  %s2 = inlined_call_operand.vmem [shape: f32[1,128], index: 2, kind: input, shape index: {}]
  %s3 = inlined_call_operand.vmem [shape: bf16[128,128], index: 3, kind: input, shape index: {}]
  %s4 = inlined_call_operand.vmem [shape: f32[1,128], index: 4, kind: input, shape index: {}]
  %s5 = inlined_call_operand.vmem [shape: f32[2,8,8,128], index: 5, kind: output, shape index: {}]
  %s6 = sld [smem:[#allocation0]]
  $region53: #{model_forward.13} parent=0
    _
  %s8 = ssub.s32 1, %s6
  %s9 = scalar_select 0, %s8, %s6
  loop: start=0, step=1, limit=4
  $region2: #{model_forward.13} parent=0 // loop_pre_header
    _
  $region3: #{model_forward.13} parent=0 // loop_header
    %s11 = sphi 0, %s15
    %p12 = scmp.ge.s32.totalorder %s11, 4
    %s21 = sphi 0, %s23
    %s24 = sphi 0, %s21
    %s25 = sphi 0, %s24
    %s41 = sphi 0, %s25
    %s45 = sphi 0, %s45
    %s47 = sphi 0, %s45
    %s48 = sphi 0, %s47
    %s62 = sphi 0, %s48
    %s66 = sphi 0, %s66
    %s68 = sphi 0, %s66
    %s69 = sphi 0, %s68
    %s83 = sphi 0, %s69
    %s87 = sphi 0, %s87
    %s89 = sphi 0, %s87
    %s90 = sphi 0, %s89
    %s104 = sphi 0, %s90
    %s108 = sphi 0, %s108
    %s110 = sphi 0, %s108
    %s111 = sphi 0, %s110
    %s125 = sphi 0, %s111
    %s131 = sphi 0, %s133
    %s134 = sphi 0, %s131
    %s135 = sphi 0, %s134
    %s151 = sphi 0, %s135
  $region4: #{model_forward.13} parent=0 // loop_header_branch
    %14 = sbr.rel (%p12) target = $region8
  $region5: #{model_forward.13} parent=0 // loop_body
    %s16 = ssub.s32 %s11, 1
    %s17 = ssub.s32 %s11, 2
    %s18 = sadd.s32 %s11, 1
    %s19 = ssub.s32 %s11, %s18
    %p20 = scmp.eq.s32.totalorder %s19, 0
    %s22 = sadd.s32 %s21, 1
    %s23 = scalar_select %p20, %s21, %s22
    %p26 = pneg %p20
    %p27 = scmp.eq.s32.totalorder %s11, 1
    %p28 = por %p26, %p27
    %p29 = scmp.ne.s32.totalorder %s21, %s24
    %p30 = scmp.eq.s32.totalorder %s11, 0
    %p31 = por %p29, %p30
    %p32 = scmp.ne.s32.totalorder %s21, %s24
    %p33 = scmp.eq.s32.totalorder %s16, 1
    %p34 = por %p32, %p33
    %p35 = scmp.ne.s32.totalorder %s24, %s25
    %p36 = scmp.eq.s32.totalorder %s16, 0
    %p37 = por %p35, %p36
    %p38 = scmp.ne.s32.totalorder %s24, %s25
    %p39 = scmp.eq.s32.totalorder %s17, 1
    %p40 = por %p38, %p39
    %p42 = scmp.ne.s32.totalorder %s25, %s41
    %p43 = scmp.eq.s32.totalorder %s17, 0
    %p44 = por %p42, %p43
    %s46 = sadd.s32 %s45, 1
    %p49 = scmp.eq.s32.totalorder %s11, 1
    %p50 = scmp.ne.s32.totalorder %s45, %s47
    %p51 = scmp.eq.s32.totalorder %s11, 0
    %p52 = por %p50, %p51
    %p53 = scmp.ne.s32.totalorder %s45, %s47
    %p54 = scmp.eq.s32.totalorder %s16, 1
    %p55 = por %p53, %p54
    %p56 = scmp.ne.s32.totalorder %s47, %s48
    %p57 = scmp.eq.s32.totalorder %s16, 0
    %p58 = por %p56, %p57
    %p59 = scmp.ne.s32.totalorder %s47, %s48
    %p60 = scmp.eq.s32.totalorder %s17, 1
    %p61 = por %p59, %p60
    %p63 = scmp.ne.s32.totalorder %s48, %s62
    %p64 = scmp.eq.s32.totalorder %s17, 0
    %p65 = por %p63, %p64
    %s67 = sadd.s32 %s66, 1
    %p70 = scmp.eq.s32.totalorder %s11, 1
    %p71 = scmp.ne.s32.totalorder %s66, %s68
    %p72 = scmp.eq.s32.totalorder %s11, 0
    %p73 = por %p71, %p72
    %p74 = scmp.ne.s32.totalorder %s66, %s68
    %p75 = scmp.eq.s32.totalorder %s16, 1
    %p76 = por %p74, %p75
    %p77 = scmp.ne.s32.totalorder %s68, %s69
    %p78 = scmp.eq.s32.totalorder %s16, 0
    %p79 = por %p77, %p78
    %p80 = scmp.ne.s32.totalorder %s68, %s69
    %p81 = scmp.eq.s32.totalorder %s17, 1
    %p82 = por %p80, %p81
    %p84 = scmp.ne.s32.totalorder %s69, %s83
    %p85 = scmp.eq.s32.totalorder %s17, 0
    %p86 = por %p84, %p85
    %s88 = sadd.s32 %s87, 1
    %p91 = scmp.eq.s32.totalorder %s11, 1
    %p92 = scmp.ne.s32.totalorder %s87, %s89
    %p93 = scmp.eq.s32.totalorder %s11, 0
    %p94 = por %p92, %p93
    %p95 = scmp.ne.s32.totalorder %s87, %s89
    %p96 = scmp.eq.s32.totalorder %s16, 1
    %p97 = por %p95, %p96
    %p98 = scmp.ne.s32.totalorder %s89, %s90
    %p99 = scmp.eq.s32.totalorder %s16, 0
    %p100 = por %p98, %p99
    %p101 = scmp.ne.s32.totalorder %s89, %s90
    %p102 = scmp.eq.s32.totalorder %s17, 1
    %p103 = por %p101, %p102
    %p105 = scmp.ne.s32.totalorder %s90, %s104
    %p106 = scmp.eq.s32.totalorder %s17, 0
    %p107 = por %p105, %p106
    %s109 = sadd.s32 %s108, 1
    %p112 = scmp.eq.s32.totalorder %s11, 1
    %p113 = scmp.ne.s32.totalorder %s108, %s110
    %p114 = scmp.eq.s32.totalorder %s11, 0
    %p115 = por %p113, %p114
    %p116 = scmp.ne.s32.totalorder %s108, %s110
    %p117 = scmp.eq.s32.totalorder %s16, 1
    %p118 = por %p116, %p117
    %p119 = scmp.ne.s32.totalorder %s110, %s111
    %p120 = scmp.eq.s32.totalorder %s16, 0
    %p121 = por %p119, %p120
    %p122 = scmp.ne.s32.totalorder %s110, %s111
    %p123 = scmp.eq.s32.totalorder %s17, 1
    %p124 = por %p122, %p123
    %p126 = scmp.ne.s32.totalorder %s111, %s125
    %p127 = scmp.eq.s32.totalorder %s17, 0
    %p128 = por %p126, %p127
    %s129 = ssub.s32 %s11, %s18
    %p130 = scmp.eq.s32.totalorder %s129, 0
    %s132 = sadd.s32 %s131, 1
    %s133 = scalar_select %p130, %s131, %s132
    %p136 = pneg %p130
    %p137 = scmp.eq.s32.totalorder %s11, 1
    %p138 = por %p136, %p137
    %p139 = scmp.ne.s32.totalorder %s131, %s134
    %p140 = scmp.eq.s32.totalorder %s11, 0
    %p141 = por %p139, %p140
    %p142 = scmp.ne.s32.totalorder %s131, %s134
    %p143 = scmp.eq.s32.totalorder %s16, 1
    %p144 = por %p142, %p143
    %p145 = scmp.ne.s32.totalorder %s134, %s135
    %p146 = scmp.eq.s32.totalorder %s16, 0
    %p147 = por %p145, %p146
    %p148 = scmp.ne.s32.totalorder %s134, %s135
    %p149 = scmp.eq.s32.totalorder %s17, 1
    %p150 = por %p148, %p149
    %p152 = scmp.ne.s32.totalorder %s135, %s151
    %p153 = scmp.eq.s32.totalorder %s17, 0
    %p154 = por %p152, %p153
    %p155 = scmp.le.s32.totalorder 1, %s11
    %p156 = scmp.lt.s32.totalorder %s11, 3
    %p157 = pnand %p155, %p156
    %p158 = pneg %p157
    // Predicated region
    $region9: #{model_forward.13} parent=5 // pred_check
      _
    $region10: #{model_forward.13} parent=5 // pred_check_branch
      %160 = sbr.rel (%p157) target = $region12
    $region11: #{model_forward.13} parent=5 // pred_region
      %s161 = ssub.s32 %s11, 1
      // Predicated region
      $region13: #{model_forward.13} parent=11 // pred_check
        %p162 = pneg %p58
      $region14: #{model_forward.13} parent=11 // pred_check_branch
        %164 = sbr.rel (%p162) target = $region16
      $region15: #{model_forward.13} parent=11 // pred_region
        _
      $region16: #{model_forward.13} parent=11 // pred_fallthru
        _
      // Predicated region
      $region17: #{model_forward.13} parent=11 // pred_check
        %p165 = pneg %p79
      $region18: #{model_forward.13} parent=11 // pred_check_branch
        %167 = sbr.rel (%p165) target = $region20
      $region19: #{model_forward.13} parent=11 // pred_region
        _
      $region20: #{model_forward.13} parent=11 // pred_fallthru
        _
      // Predicated region
      $region21: #{model_forward.13} parent=11 // pred_check
        %p168 = pneg %p100
      $region22: #{model_forward.13} parent=11 // pred_check_branch
        %170 = sbr.rel (%p168) target = $region24
      $region23: #{model_forward.13} parent=11 // pred_region
        _
      $region24: #{model_forward.13} parent=11 // pred_fallthru
        _
      // Predicated region
      $region25: #{model_forward.13} parent=11 // pred_check
        %p171 = pneg %p121
      $region26: #{model_forward.13} parent=11 // pred_check_branch
        %173 = sbr.rel (%p171) target = $region28
      $region27: #{model_forward.13} parent=11 // pred_region
        _
      $region28: #{model_forward.13} parent=11 // pred_fallthru
        _
    $region12: #{model_forward.13} parent=5 // pred_fallthru
      _
    %p174 = scmp.lt.s32.totalorder %s11, 2
    // Predicated region
    $region29: #{model_forward.13} parent=5 // pred_check
      %p175 = pneg %p174
    $region30: #{model_forward.13} parent=5 // pred_check_branch
      %177 = sbr.rel (%p175) target = $region32
    $region31: #{model_forward.13} parent=5 // pred_region
      // Predicated region
      $region33: #{model_forward.13} parent=31 // pred_check
        %p178 = pneg %p31
      $region34: #{model_forward.13} parent=31 // pred_check_branch
        %180 = sbr.rel (%p178) target = $region36
      $region35: #{model_forward.13} parent=31 // pred_region
        %p181 = scmp.lt.s32.totalorder %s11, 1
        %s182 = scalar_select %p181, %s11, 1
        %s183 = smul.addr %s182, 8
        %s184 = smul.addr %s183, 4
        %s185 = scalar_lea.vmem %s0, %s184
      $region36: #{model_forward.13} parent=31 // pred_fallthru
        _
    $region32: #{model_forward.13} parent=5 // pred_fallthru
      _
    %p186 = scmp.le.s32.totalorder 1, %s11
    %p187 = scmp.lt.s32.totalorder %s11, 3
    %p188 = pnand %p186, %p187
    %p189 = pneg %p188
    // Predicated region
    $region37: #{model_forward.13} parent=5 // pred_check
      _
    $region38: #{model_forward.13} parent=5 // pred_check_branch
      %191 = sbr.rel (%p188) target = $region40
    $region39: #{model_forward.13} parent=5 // pred_region
      %s192 = ssub.s32 %s11, 1
      %p193 = scmp.lt.s32.totalorder %s16, 1
      %s194 = scalar_select %p193, %s16, 1
      %s195 = smul.addr %s194, 8
      %s196 = smul.addr %s195, 4
      %s197 = scalar_lea.vmem %s0, %s196
      %p198 = pneg %p37
      %p199 = pneg %p34
      %p200 = pneg %p58
      %p201 = pneg %p55
      %p202 = pneg %p79
      %p203 = pneg %p76
      %p204 = pneg %p100
      %p205 = pneg %p97
      %p206 = pneg %p121
      %p207 = pneg %p118
      %p208 = pneg %p147
      %p209 = pneg %p144
      %p210 = scmp.lt.s32.totalorder %s16, 1
      %s211 = scalar_select %p210, %s16, 1
      %s212 = smul.addr %s211, 8
      %s213 = smul.addr %s212, 8
      %s214 = scalar_lea.vmem %s5, %s213
      %p215 = scmp.lt.s32.totalorder %s16, 1
      %s216 = scalar_select %p215, %s16, 1
      %s217 = smul.addr %s216, 8
      %s218 = smul.addr %s217, 4
      %s219 = scalar_lea.vmem %s0, %s218
      %p220 = scmp.lt.s32.totalorder %s16, 1
      %s221 = scalar_select %p220, %s16, 1
      %s222 = smul.addr %s221, 8
      %s223 = smul.addr %s222, 8
      %s224 = scalar_lea.vmem %s5, %s223
      %225 = vst [vmem:[#allocation2] sm:$0xff] 0.0
      %226 = vst [vmem:[#allocation2 + $0x8] sm:$0x3] 0.0
      %227 = vst [vmem:[#allocation2 + $0x10] sm:$0xff] 0.0
      %228 = vst [vmem:[#allocation2 + $0x18] sm:$0x3] 0.0
      %229 = vst [vmem:[#allocation2 + $0x20] sm:$0xff] 0.0
      %230 = vst [vmem:[#allocation2 + $0x28] sm:$0x3] 0.0
      %231 = vst [vmem:[#allocation2 + $0x30] sm:$0xff] 0.0
      %232 = vst [vmem:[#allocation2 + $0x38] sm:$0x3] 0.0
      %233 = vst [vmem:[#allocation2 + $0x40] sm:$0xff] 0.0
      %234 = vst [vmem:[#allocation2 + $0x48] sm:$0x3] 0.0
      %235 = vst [vmem:[#allocation2 + $0x50] sm:$0xff] 0.0
      %236 = vst [vmem:[#allocation2 + $0x58] sm:$0x3] 0.0
      %237 = vst [vmem:[#allocation2 + $0x60] sm:$0xff] 0.0
      %238 = vst [vmem:[#allocation2 + $0x68] sm:$0x3] 0.0
      %239 = vst [vmem:[#allocation2 + $0x70] sm:$0xff] 0.0
      %240 = vst [vmem:[#allocation2 + $0x78] sm:$0x3] 0.0
      %241 = vst [vmem:[#allocation2 + $0x80] sm:$0xff] 0.0
      %242 = vst [vmem:[#allocation2 + $0x88] sm:$0x3] 0.0
      %243 = vst [vmem:[#allocation2 + $0x90] sm:$0xff] 0.0
      %244 = vst [vmem:[#allocation2 + $0x98] sm:$0x3] 0.0
      %v245 = vld [vmem:[%s219] sm:$0xf]
      %v246 = vld [vmem:[%s219 + $0x4] sm:$0xf]
      %v247 = vld [vmem:[%s219 + $0x8] sm:$0xf]
      %v248 = vld [vmem:[%s219 + $0xc] sm:$0xf]
      %v249 = vld [vmem:[%s219 + $0x10] sm:$0xf]
      %v250 = vld [vmem:[%s219 + $0x14] sm:$0xf]
      %v251 = vld [vmem:[%s219 + $0x18] sm:$0xf]
      %v252 = vld [vmem:[%s219 + $0x1c] sm:$0xf]
      %v253 = vunpack.c.l.bf16 %v245
      %v254 = vunpack.c.l.bf16 %v246
      %v255 = vunpack.c.l.bf16 %v247
      %v256 = vunpack.c.l.bf16 %v248
      %v257 = vunpack.c.l.bf16 %v249
      %v258 = vunpack.c.l.bf16 %v250
      %v259 = vunpack.c.l.bf16 %v251
      %v260 = vunpack.c.l.bf16 %v252
      %s261 = scalar_lea.vmem [#allocation2], 16
      %262 = vst [vmem:[%s261 + $0x1] sm:$0xff] %v253
      %263 = vst [vmem:[%s261 + $0x11] sm:$0xff] %v254
      %264 = vst [vmem:[%s261 + $0x21] sm:$0xff] %v255
      %265 = vst [vmem:[%s261 + $0x31] sm:$0xff] %v256
      %266 = vst [vmem:[%s261 + $0x41] sm:$0xff] %v257
      %267 = vst [vmem:[%s261 + $0x51] sm:$0xff] %v258
      %268 = vst [vmem:[%s261 + $0x61] sm:$0xff] %v259
      %269 = vst [vmem:[%s261 + $0x71] sm:$0xff] %v260
      %v270 = vld [vmem:[#allocation2] sm:$0xff]
      %v271 = vld [vmem:[#allocation2 + $0x10] sm:$0xff]
      %v272 = vld [vmem:[#allocation2 + $0x20] sm:$0xff]
      %v273 = vld [vmem:[#allocation2 + $0x30] sm:$0xff]
      %v274 = vld [vmem:[#allocation2 + $0x40] sm:$0xff]
      %v275 = vld [vmem:[#allocation2 + $0x50] sm:$0xff]
      %v276 = vld [vmem:[#allocation2 + $0x60] sm:$0xff]
      %v277 = vld [vmem:[#allocation2 + $0x70] sm:$0xff]
      %v278 = vpack.c.bf16 %v271, %v270
      %v279 = vpack.c.bf16 %v273, %v272
      %v280 = vpack.c.bf16 %v275, %v274
      %v281 = vpack.c.bf16 %v277, %v276
      %v282 = vld [vmem:[%s1] sm:$0xf]
      %v283 = vld [vmem:[%s1 + $0x4] sm:$0xf]
      %v284 = vld [vmem:[%s1 + $0x8] sm:$0xf]
      %v285 = vld [vmem:[%s1 + $0xc] sm:$0xf]
      %v286 = vld [vmem:[%s1 + $0x10] sm:$0xf]
      %v287 = vld [vmem:[%s1 + $0x14] sm:$0xf]
      %v288 = vld [vmem:[%s1 + $0x18] sm:$0xf]
      %v289 = vld [vmem:[%s1 + $0x1c] sm:$0xf]
      %v290 = vld [vmem:[%s1 + $0x20] sm:$0xf]
      %v291 = vld [vmem:[%s1 + $0x24] sm:$0xf]
      %v292 = vld [vmem:[%s1 + $0x28] sm:$0xf]
      %v293 = vld [vmem:[%s1 + $0x2c] sm:$0xf]
      %v294 = vld [vmem:[%s1 + $0x30] sm:$0xf]
      %v295 = vld [vmem:[%s1 + $0x34] sm:$0xf]
      %v296 = vld [vmem:[%s1 + $0x38] sm:$0xf]
      %v297 = vld [vmem:[%s1 + $0x3c] sm:$0xf]
      %v298 = vld [vmem:[#allocation2 + $0x1] sm:$0xff]
      %v299 = vld [vmem:[#allocation2 + $0x11] sm:$0xff]
      %v300 = vld [vmem:[#allocation2 + $0x21] sm:$0xff]
      %v301 = vld [vmem:[#allocation2 + $0x31] sm:$0xff]
      %v302 = vld [vmem:[#allocation2 + $0x41] sm:$0xff]
      %v303 = vld [vmem:[#allocation2 + $0x51] sm:$0xff]
      %v304 = vld [vmem:[#allocation2 + $0x61] sm:$0xff]
      %v305 = vld [vmem:[#allocation2 + $0x71] sm:$0xff]
      %v306 = vpack.c.bf16 %v299, %v298
      %v307 = vpack.c.bf16 %v301, %v300
      %v308 = vpack.c.bf16 %v303, %v302
      %v309 = vpack.c.bf16 %v305, %v304
      %s310 = scalar_lea.vmem %s1, 64
      %v311 = vld [vmem:[%s310] sm:$0xf]
      %v312 = vld [vmem:[%s310 + $0x4] sm:$0xf]
      %v313 = vld [vmem:[%s310 + $0x8] sm:$0xf]
      %v314 = vld [vmem:[%s310 + $0xc] sm:$0xf]
      %v315 = vld [vmem:[%s310 + $0x10] sm:$0xf]
      %v316 = vld [vmem:[%s310 + $0x14] sm:$0xf]
      %v317 = vld [vmem:[%s310 + $0x18] sm:$0xf]
      %v318 = vld [vmem:[%s310 + $0x1c] sm:$0xf]
      %v319 = vld [vmem:[%s310 + $0x20] sm:$0xf]
      %v320 = vld [vmem:[%s310 + $0x24] sm:$0xf]
      %v321 = vld [vmem:[%s310 + $0x28] sm:$0xf]
      %v322 = vld [vmem:[%s310 + $0x2c] sm:$0xf]
      %v323 = vld [vmem:[%s310 + $0x30] sm:$0xf]
      %v324 = vld [vmem:[%s310 + $0x34] sm:$0xf]
      %v325 = vld [vmem:[%s310 + $0x38] sm:$0xf]
      %v326 = vld [vmem:[%s310 + $0x3c] sm:$0xf]
      %v343 = vunpack.c.l.b16 %v311
      %v344 = vunpack.c.l.b16 %v312
      %v345 = vunpack.c.l.b16 %v313
      %v346 = vunpack.c.l.b16 %v314
      %v347 = vunpack.c.l.b16 %v315
      %v348 = vunpack.c.l.b16 %v316
      %v349 = vunpack.c.l.b16 %v317
      %v350 = vunpack.c.l.b16 %v318
      %v351 = vunpack.c.l.b16 %v319
      %v352 = vunpack.c.l.b16 %v320
      %v353 = vunpack.c.l.b16 %v321
      %v354 = vunpack.c.l.b16 %v322
      %v355 = vunpack.c.l.b16 %v323
      %v356 = vunpack.c.l.b16 %v324
      %v357 = vunpack.c.l.b16 %v325
      %v358 = vunpack.c.l.b16 %v326
      %v359 = vpack.c.b16 %v344, %v343
      %v360 = vpack.c.b16 %v346, %v345
      %v361 = vpack.c.b16 %v348, %v347
      %v362 = vpack.c.b16 %v350, %v349
      %v363 = vpack.c.b16 %v352, %v351
      %v364 = vpack.c.b16 %v354, %v353
      %v365 = vpack.c.b16 %v356, %v355
      %v366 = vpack.c.b16 %v358, %v357
      %375 = vmatpush.bf16.msra.mxu0 %v366
      %376 = vmatpush.bf16.msra.mxu0 %v365
      %377 = vmatpush.bf16.msra.mxu0 %v364
      %378 = vmatpush.bf16.msra.mxu0 %v363
      %379 = vmatpush.bf16.msra.mxu0 %v362
      %380 = vmatpush.bf16.msra.mxu0 %v361
      %381 = vmatpush.bf16.msra.mxu0 %v360
      %382 = vmatpush.bf16.msra.mxu0 %v359
      %383 = vmatmul.bf16.gmra.mxu0 %v306
      %v384 = vpop.f32.mrf.mxu0
      %v385 = vadd.f32 0.0, %v384
      %v386 = vpop.f32.mrf.mxu0
      %v387 = vadd.f32 0.0, %v386
      %388 = vmatmul.bf16.gmra.mxu0 %v307
      %v389 = vpop.f32.mrf.mxu0
      %v390 = vadd.f32 0.0, %v389
      %v391 = vpop.f32.mrf.mxu0
      %v392 = vadd.f32 0.0, %v391
      %393 = vmatmul.bf16.gmra.mxu0 %v308
      %v394 = vpop.f32.mrf.mxu0
      %v395 = vadd.f32 0.0, %v394
      %v396 = vpop.f32.mrf.mxu0
      %v397 = vadd.f32 0.0, %v396
      %398 = vmatmul.bf16.gmra.mxu0 %v309
      %v399 = vpop.f32.mrf.mxu0
      %v400 = vadd.f32 0.0, %v399
      %v401 = vpop.f32.mrf.mxu0
      %v402 = vadd.f32 0.0, %v401
      %403 = vdwg.mxu0
      %v420 = vunpack.c.l.b16 %v282
      %v421 = vunpack.c.l.b16 %v283
      %v422 = vunpack.c.l.b16 %v284
      %v423 = vunpack.c.l.b16 %v285
      %v424 = vunpack.c.l.b16 %v286
      %v425 = vunpack.c.l.b16 %v287
      %v426 = vunpack.c.l.b16 %v288
      %v427 = vunpack.c.l.b16 %v289
      %v428 = vunpack.c.l.b16 %v290
      %v429 = vunpack.c.l.b16 %v291
      %v430 = vunpack.c.l.b16 %v292
      %v431 = vunpack.c.l.b16 %v293
      %v432 = vunpack.c.l.b16 %v294
      %v433 = vunpack.c.l.b16 %v295
      %v434 = vunpack.c.l.b16 %v296
      %v435 = vunpack.c.l.b16 %v297
      %v436 = vpack.c.b16 %v421, %v420
      %v437 = vpack.c.b16 %v423, %v422
      %v438 = vpack.c.b16 %v425, %v424
      %v439 = vpack.c.b16 %v427, %v426
      %v440 = vpack.c.b16 %v429, %v428
      %v441 = vpack.c.b16 %v431, %v430
      %v442 = vpack.c.b16 %v433, %v432
      %v443 = vpack.c.b16 %v435, %v434
      %452 = vmatpush.bf16.msra.mxu0 %v443
      %453 = vmatpush.bf16.msra.mxu0 %v442
      %454 = vmatpush.bf16.msra.mxu0 %v441
      %455 = vmatpush.bf16.msra.mxu0 %v440
      %456 = vmatpush.bf16.msra.mxu0 %v439
      %457 = vmatpush.bf16.msra.mxu0 %v438
      %458 = vmatpush.bf16.msra.mxu0 %v437
      %459 = vmatpush.bf16.msra.mxu0 %v436
      %460 = vmatmul.bf16.gmra.mxu0 %v278
      %v461 = vpop.f32.mrf.mxu0
      %v462 = vadd.f32 %v385, %v461
      %v463 = vpop.f32.mrf.mxu0
      %v464 = vadd.f32 %v387, %v463
      %465 = vmatmul.bf16.gmra.mxu0 %v279
      %v466 = vpop.f32.mrf.mxu0
      %v467 = vadd.f32 %v390, %v466
      %v468 = vpop.f32.mrf.mxu0
      %v469 = vadd.f32 %v392, %v468
      %470 = vmatmul.bf16.gmra.mxu0 %v280
      %v471 = vpop.f32.mrf.mxu0
      %v472 = vadd.f32 %v395, %v471
      %v473 = vpop.f32.mrf.mxu0
      %v474 = vadd.f32 %v397, %v473
      %475 = vmatmul.bf16.gmra.mxu0 %v281
      %v476 = vpop.f32.mrf.mxu0
      %v477 = vadd.f32 %v400, %v476
      %v478 = vpop.f32.mrf.mxu0
      %v479 = vadd.f32 %v402, %v478
      %480 = vdwg.mxu0
      %v481 = vld [vmem:[#allocation2 + $0x2] sm:$0xff]
      %v482 = vld [vmem:[#allocation2 + $0x12] sm:$0xff]
      %v483 = vld [vmem:[#allocation2 + $0x22] sm:$0xff]
      %v484 = vld [vmem:[#allocation2 + $0x32] sm:$0xff]
      %v485 = vld [vmem:[#allocation2 + $0x42] sm:$0xff]
      %v486 = vld [vmem:[#allocation2 + $0x52] sm:$0xff]
      %v487 = vld [vmem:[#allocation2 + $0x62] sm:$0xff]
      %v488 = vld [vmem:[#allocation2 + $0x72] sm:$0xff]
      %v489 = vpack.c.bf16 %v482, %v481
      %v490 = vpack.c.bf16 %v484, %v483
      %v491 = vpack.c.bf16 %v486, %v485
      %v492 = vpack.c.bf16 %v488, %v487
      %s493 = scalar_lea.vmem %s1, 128
      %v494 = vld [vmem:[%s493] sm:$0xf]
      %v495 = vld [vmem:[%s493 + $0x4] sm:$0xf]
      %v496 = vld [vmem:[%s493 + $0x8] sm:$0xf]
      %v497 = vld [vmem:[%s493 + $0xc] sm:$0xf]
      %v498 = vld [vmem:[%s493 + $0x10] sm:$0xf]
      %v499 = vld [vmem:[%s493 + $0x14] sm:$0xf]
      %v500 = vld [vmem:[%s493 + $0x18] sm:$0xf]
      %v501 = vld [vmem:[%s493 + $0x1c] sm:$0xf]
      %v502 = vld [vmem:[%s493 + $0x20] sm:$0xf]
      %v503 = vld [vmem:[%s493 + $0x24] sm:$0xf]
      %v504 = vld [vmem:[%s493 + $0x28] sm:$0xf]
      %v505 = vld [vmem:[%s493 + $0x2c] sm:$0xf]
      %v506 = vld [vmem:[%s493 + $0x30] sm:$0xf]
      %v507 = vld [vmem:[%s493 + $0x34] sm:$0xf]
      %v508 = vld [vmem:[%s493 + $0x38] sm:$0xf]
      %v509 = vld [vmem:[%s493 + $0x3c] sm:$0xf]
      %v526 = vunpack.c.l.b16 %v494
      %v527 = vunpack.c.l.b16 %v495
      %v528 = vunpack.c.l.b16 %v496
      %v529 = vunpack.c.l.b16 %v497
      %v530 = vunpack.c.l.b16 %v498
      %v531 = vunpack.c.l.b16 %v499
      %v532 = vunpack.c.l.b16 %v500
      %v533 = vunpack.c.l.b16 %v501
      %v534 = vunpack.c.l.b16 %v502
      %v535 = vunpack.c.l.b16 %v503
      %v536 = vunpack.c.l.b16 %v504
      %v537 = vunpack.c.l.b16 %v505
      %v538 = vunpack.c.l.b16 %v506
      %v539 = vunpack.c.l.b16 %v507
      %v540 = vunpack.c.l.b16 %v508
      %v541 = vunpack.c.l.b16 %v509
      %v542 = vpack.c.b16 %v527, %v526
      %v543 = vpack.c.b16 %v529, %v528
      %v544 = vpack.c.b16 %v531, %v530
      %v545 = vpack.c.b16 %v533, %v532
      %v546 = vpack.c.b16 %v535, %v534
      %v547 = vpack.c.b16 %v537, %v536
      %v548 = vpack.c.b16 %v539, %v538
      %v549 = vpack.c.b16 %v541, %v540
      %558 = vmatpush.bf16.msra.mxu0 %v549
      %559 = vmatpush.bf16.msra.mxu0 %v548
      %560 = vmatpush.bf16.msra.mxu0 %v547
      %561 = vmatpush.bf16.msra.mxu0 %v546
      %562 = vmatpush.bf16.msra.mxu0 %v545
      %563 = vmatpush.bf16.msra.mxu0 %v544
      %564 = vmatpush.bf16.msra.mxu0 %v543
      %565 = vmatpush.bf16.msra.mxu0 %v542
      %566 = vmatmul.bf16.gmra.mxu0 %v489
      %v567 = vpop.f32.mrf.mxu0
      %v568 = vadd.f32 0.0, %v567
      %v569 = vpop.f32.mrf.mxu0
      %v570 = vadd.f32 0.0, %v569
      %571 = vmatmul.bf16.gmra.mxu0 %v490
      %v572 = vpop.f32.mrf.mxu0
      %v573 = vadd.f32 0.0, %v572
      %v574 = vpop.f32.mrf.mxu0
      %v575 = vadd.f32 0.0, %v574
      %576 = vmatmul.bf16.gmra.mxu0 %v491
      %v577 = vpop.f32.mrf.mxu0
      %v578 = vadd.f32 0.0, %v577
      %v579 = vpop.f32.mrf.mxu0
      %v580 = vadd.f32 0.0, %v579
      %581 = vmatmul.bf16.gmra.mxu0 %v492
      %v582 = vpop.f32.mrf.mxu0
      %v583 = vadd.f32 0.0, %v582
      %v584 = vpop.f32.mrf.mxu0
      %v585 = vadd.f32 0.0, %v584
      %586 = vdwg.mxu0
      %v587 = vadd.f32 %v462, %v568
      %v588 = vadd.f32 %v464, %v570
      %v589 = vadd.f32 %v467, %v573
      %v590 = vadd.f32 %v469, %v575
      %v591 = vadd.f32 %v472, %v578
      %v592 = vadd.f32 %v474, %v580
      %v593 = vadd.f32 %v477, %v583
      %v594 = vadd.f32 %v479, %v585
      %v595 = vld [vmem:[%s261] sm:$0xff]
      %v596 = vld [vmem:[%s261 + $0x10] sm:$0xff]
      %v597 = vld [vmem:[%s261 + $0x20] sm:$0xff]
      %v598 = vld [vmem:[%s261 + $0x30] sm:$0xff]
      %v599 = vld [vmem:[%s261 + $0x40] sm:$0xff]
      %v600 = vld [vmem:[%s261 + $0x50] sm:$0xff]
      %v601 = vld [vmem:[%s261 + $0x60] sm:$0xff]
      %v602 = vld [vmem:[%s261 + $0x70] sm:$0xff]
      %v603 = vpack.c.bf16 %v596, %v595
      %v604 = vpack.c.bf16 %v598, %v597
      %v605 = vpack.c.bf16 %v600, %v599
      %v606 = vpack.c.bf16 %v602, %v601
      %s607 = scalar_lea.vmem %s1, 192
      %v608 = vld [vmem:[%s607] sm:$0xf]
      %v609 = vld [vmem:[%s607 + $0x4] sm:$0xf]
      %v610 = vld [vmem:[%s607 + $0x8] sm:$0xf]
      %v611 = vld [vmem:[%s607 + $0xc] sm:$0xf]
      %v612 = vld [vmem:[%s607 + $0x10] sm:$0xf]
      %v613 = vld [vmem:[%s607 + $0x14] sm:$0xf]
      %v614 = vld [vmem:[%s607 + $0x18] sm:$0xf]
      %v615 = vld [vmem:[%s607 + $0x1c] sm:$0xf]
      %v616 = vld [vmem:[%s607 + $0x20] sm:$0xf]
      %v617 = vld [vmem:[%s607 + $0x24] sm:$0xf]
      %v618 = vld [vmem:[%s607 + $0x28] sm:$0xf]
      %v619 = vld [vmem:[%s607 + $0x2c] sm:$0xf]
      %v620 = vld [vmem:[%s607 + $0x30] sm:$0xf]
      %v621 = vld [vmem:[%s607 + $0x34] sm:$0xf]
      %v622 = vld [vmem:[%s607 + $0x38] sm:$0xf]
      %v623 = vld [vmem:[%s607 + $0x3c] sm:$0xf]
      %v640 = vunpack.c.l.b16 %v608
      %v641 = vunpack.c.l.b16 %v609
      %v642 = vunpack.c.l.b16 %v610
      %v643 = vunpack.c.l.b16 %v611
      %v644 = vunpack.c.l.b16 %v612
      %v645 = vunpack.c.l.b16 %v613
      %v646 = vunpack.c.l.b16 %v614
      %v647 = vunpack.c.l.b16 %v615
      %v648 = vunpack.c.l.b16 %v616
      %v649 = vunpack.c.l.b16 %v617
      %v650 = vunpack.c.l.b16 %v618
      %v651 = vunpack.c.l.b16 %v619
      %v652 = vunpack.c.l.b16 %v620
      %v653 = vunpack.c.l.b16 %v621
      %v654 = vunpack.c.l.b16 %v622
      %v655 = vunpack.c.l.b16 %v623
      %v656 = vpack.c.b16 %v641, %v640
      %v657 = vpack.c.b16 %v643, %v642
      %v658 = vpack.c.b16 %v645, %v644
      %v659 = vpack.c.b16 %v647, %v646
      %v660 = vpack.c.b16 %v649, %v648
      %v661 = vpack.c.b16 %v651, %v650
      %v662 = vpack.c.b16 %v653, %v652
      %v663 = vpack.c.b16 %v655, %v654
      %672 = vmatpush.bf16.msra.mxu0 %v663
      %673 = vmatpush.bf16.msra.mxu0 %v662
      %674 = vmatpush.bf16.msra.mxu0 %v661
      %675 = vmatpush.bf16.msra.mxu0 %v660
      %676 = vmatpush.bf16.msra.mxu0 %v659
      %677 = vmatpush.bf16.msra.mxu0 %v658
      %678 = vmatpush.bf16.msra.mxu0 %v657
      %679 = vmatpush.bf16.msra.mxu0 %v656
      %680 = vmatmul.bf16.gmra.mxu0 %v603
      %v681 = vpop.f32.mrf.mxu0
      %v682 = vadd.f32 0.0, %v681
      %v683 = vpop.f32.mrf.mxu0
      %v684 = vadd.f32 0.0, %v683
      %685 = vmatmul.bf16.gmra.mxu0 %v604
      %v686 = vpop.f32.mrf.mxu0
      %v687 = vadd.f32 0.0, %v686
      %v688 = vpop.f32.mrf.mxu0
      %v689 = vadd.f32 0.0, %v688
      %690 = vmatmul.bf16.gmra.mxu0 %v605
      %v691 = vpop.f32.mrf.mxu0
      %v692 = vadd.f32 0.0, %v691
      %v693 = vpop.f32.mrf.mxu0
      %v694 = vadd.f32 0.0, %v693
      %695 = vmatmul.bf16.gmra.mxu0 %v606
      %v696 = vpop.f32.mrf.mxu0
      %v697 = vadd.f32 0.0, %v696
      %v698 = vpop.f32.mrf.mxu0
      %v699 = vadd.f32 0.0, %v698
      %700 = vdwg.mxu0
      %v701 = vadd.f32 %v587, %v682
      %v702 = vadd.f32 %v588, %v684
      %v703 = vadd.f32 %v589, %v687
      %v704 = vadd.f32 %v590, %v689
      %v705 = vadd.f32 %v591, %v692
      %v706 = vadd.f32 %v592, %v694
      %v707 = vadd.f32 %v593, %v697
      %v708 = vadd.f32 %v594, %v699
      %v709 = vld [vmem:[%s261 + $0x1] sm:$0xff]
      %v710 = vld [vmem:[%s261 + $0x11] sm:$0xff]
      %v711 = vld [vmem:[%s261 + $0x21] sm:$0xff]
      %v712 = vld [vmem:[%s261 + $0x31] sm:$0xff]
      %v713 = vld [vmem:[%s261 + $0x41] sm:$0xff]
      %v714 = vld [vmem:[%s261 + $0x51] sm:$0xff]
      %v715 = vld [vmem:[%s261 + $0x61] sm:$0xff]
      %v716 = vld [vmem:[%s261 + $0x71] sm:$0xff]
      %v717 = vpack.c.bf16 %v710, %v709
      %v718 = vpack.c.bf16 %v712, %v711
      %v719 = vpack.c.bf16 %v714, %v713
      %v720 = vpack.c.bf16 %v716, %v715
      %s721 = scalar_lea.vmem %s1, 256
      %v722 = vld [vmem:[%s721] sm:$0xf]
      %v723 = vld [vmem:[%s721 + $0x4] sm:$0xf]
      %v724 = vld [vmem:[%s721 + $0x8] sm:$0xf]
      %v725 = vld [vmem:[%s721 + $0xc] sm:$0xf]
      %v726 = vld [vmem:[%s721 + $0x10] sm:$0xf]
      %v727 = vld [vmem:[%s721 + $0x14] sm:$0xf]
      %v728 = vld [vmem:[%s721 + $0x18] sm:$0xf]
      %v729 = vld [vmem:[%s721 + $0x1c] sm:$0xf]
      %v730 = vld [vmem:[%s721 + $0x20] sm:$0xf]
      %v731 = vld [vmem:[%s721 + $0x24] sm:$0xf]
      %v732 = vld [vmem:[%s721 + $0x28] sm:$0xf]
      %v733 = vld [vmem:[%s721 + $0x2c] sm:$0xf]
      %v734 = vld [vmem:[%s721 + $0x30] sm:$0xf]
      %v735 = vld [vmem:[%s721 + $0x34] sm:$0xf]
      %v736 = vld [vmem:[%s721 + $0x38] sm:$0xf]
      %v737 = vld [vmem:[%s721 + $0x3c] sm:$0xf]
      %v754 = vunpack.c.l.b16 %v722
      %v755 = vunpack.c.l.b16 %v723
      %v756 = vunpack.c.l.b16 %v724
      %v757 = vunpack.c.l.b16 %v725
      %v758 = vunpack.c.l.b16 %v726
      %v759 = vunpack.c.l.b16 %v727
      %v760 = vunpack.c.l.b16 %v728
      %v761 = vunpack.c.l.b16 %v729
      %v762 = vunpack.c.l.b16 %v730
      %v763 = vunpack.c.l.b16 %v731
      %v764 = vunpack.c.l.b16 %v732
      %v765 = vunpack.c.l.b16 %v733
      %v766 = vunpack.c.l.b16 %v734
      %v767 = vunpack.c.l.b16 %v735
      %v768 = vunpack.c.l.b16 %v736
      %v769 = vunpack.c.l.b16 %v737
      %v770 = vpack.c.b16 %v755, %v754
      %v771 = vpack.c.b16 %v757, %v756
      %v772 = vpack.c.b16 %v759, %v758
      %v773 = vpack.c.b16 %v761, %v760
      %v774 = vpack.c.b16 %v763, %v762
      %v775 = vpack.c.b16 %v765, %v764
      %v776 = vpack.c.b16 %v767, %v766
      %v777 = vpack.c.b16 %v769, %v768
      %786 = vmatpush.bf16.msra.mxu0 %v777
      %787 = vmatpush.bf16.msra.mxu0 %v776
      %788 = vmatpush.bf16.msra.mxu0 %v775
      %789 = vmatpush.bf16.msra.mxu0 %v774
      %790 = vmatpush.bf16.msra.mxu0 %v773
      %791 = vmatpush.bf16.msra.mxu0 %v772
      %792 = vmatpush.bf16.msra.mxu0 %v771
      %793 = vmatpush.bf16.msra.mxu0 %v770
      %794 = vmatmul.bf16.gmra.mxu0 %v717
      %v795 = vpop.f32.mrf.mxu0
      %v796 = vadd.f32 0.0, %v795
      %v797 = vpop.f32.mrf.mxu0
      %v798 = vadd.f32 0.0, %v797
      %799 = vmatmul.bf16.gmra.mxu0 %v718
      %v800 = vpop.f32.mrf.mxu0
      %v801 = vadd.f32 0.0, %v800
      %v802 = vpop.f32.mrf.mxu0
      %v803 = vadd.f32 0.0, %v802
      %804 = vmatmul.bf16.gmra.mxu0 %v719
      %v805 = vpop.f32.mrf.mxu0
      %v806 = vadd.f32 0.0, %v805
      %v807 = vpop.f32.mrf.mxu0
      %v808 = vadd.f32 0.0, %v807
      %809 = vmatmul.bf16.gmra.mxu0 %v720
      %v810 = vpop.f32.mrf.mxu0
      %v811 = vadd.f32 0.0, %v810
      %v812 = vpop.f32.mrf.mxu0
      %v813 = vadd.f32 0.0, %v812
      %814 = vdwg.mxu0
      %v815 = vadd.f32 %v701, %v796
      %v816 = vadd.f32 %v702, %v798
      %v817 = vadd.f32 %v703, %v801
      %v818 = vadd.f32 %v704, %v803
      %v819 = vadd.f32 %v705, %v806
      %v820 = vadd.f32 %v706, %v808
      %v821 = vadd.f32 %v707, %v811
      %v822 = vadd.f32 %v708, %v813
      %v823 = vld [vmem:[%s261 + $0x2] sm:$0xff]
      %v824 = vld [vmem:[%s261 + $0x12] sm:$0xff]
      %v825 = vld [vmem:[%s261 + $0x22] sm:$0xff]
      %v826 = vld [vmem:[%s261 + $0x32] sm:$0xff]
      %v827 = vld [vmem:[%s261 + $0x42] sm:$0xff]
      %v828 = vld [vmem:[%s261 + $0x52] sm:$0xff]
      %v829 = vld [vmem:[%s261 + $0x62] sm:$0xff]
      %v830 = vld [vmem:[%s261 + $0x72] sm:$0xff]
      %v831 = vpack.c.bf16 %v824, %v823
      %v832 = vpack.c.bf16 %v826, %v825
      %v833 = vpack.c.bf16 %v828, %v827
      %v834 = vpack.c.bf16 %v830, %v829
      %s835 = scalar_lea.vmem %s1, 320
      %v836 = vld [vmem:[%s835] sm:$0xf]
      %v837 = vld [vmem:[%s835 + $0x4] sm:$0xf]
      %v838 = vld [vmem:[%s835 + $0x8] sm:$0xf]
      %v839 = vld [vmem:[%s835 + $0xc] sm:$0xf]
      %v840 = vld [vmem:[%s835 + $0x10] sm:$0xf]
      %v841 = vld [vmem:[%s835 + $0x14] sm:$0xf]
      %v842 = vld [vmem:[%s835 + $0x18] sm:$0xf]
      %v843 = vld [vmem:[%s835 + $0x1c] sm:$0xf]
      %v844 = vld [vmem:[%s835 + $0x20] sm:$0xf]
      %v845 = vld [vmem:[%s835 + $0x24] sm:$0xf]
      %v846 = vld [vmem:[%s835 + $0x28] sm:$0xf]
      %v847 = vld [vmem:[%s835 + $0x2c] sm:$0xf]
      %v848 = vld [vmem:[%s835 + $0x30] sm:$0xf]
      %v849 = vld [vmem:[%s835 + $0x34] sm:$0xf]
      %v850 = vld [vmem:[%s835 + $0x38] sm:$0xf]
      %v851 = vld [vmem:[%s835 + $0x3c] sm:$0xf]
      %v868 = vunpack.c.l.b16 %v836
      %v869 = vunpack.c.l.b16 %v837
      %v870 = vunpack.c.l.b16 %v838
      %v871 = vunpack.c.l.b16 %v839
      %v872 = vunpack.c.l.b16 %v840
      %v873 = vunpack.c.l.b16 %v841
      %v874 = vunpack.c.l.b16 %v842
      %v875 = vunpack.c.l.b16 %v843
      %v876 = vunpack.c.l.b16 %v844
      %v877 = vunpack.c.l.b16 %v845
      %v878 = vunpack.c.l.b16 %v846
      %v879 = vunpack.c.l.b16 %v847
      %v880 = vunpack.c.l.b16 %v848
      %v881 = vunpack.c.l.b16 %v849
      %v882 = vunpack.c.l.b16 %v850
      %v883 = vunpack.c.l.b16 %v851
      %v884 = vpack.c.b16 %v869, %v868
      %v885 = vpack.c.b16 %v871, %v870
      %v886 = vpack.c.b16 %v873, %v872
      %v887 = vpack.c.b16 %v875, %v874
      %v888 = vpack.c.b16 %v877, %v876
      %v889 = vpack.c.b16 %v879, %v878
      %v890 = vpack.c.b16 %v881, %v880
      %v891 = vpack.c.b16 %v883, %v882
      %900 = vmatpush.bf16.msra.mxu0 %v891
      %901 = vmatpush.bf16.msra.mxu0 %v890
      %902 = vmatpush.bf16.msra.mxu0 %v889
      %903 = vmatpush.bf16.msra.mxu0 %v888
      %904 = vmatpush.bf16.msra.mxu0 %v887
      %905 = vmatpush.bf16.msra.mxu0 %v886
      %906 = vmatpush.bf16.msra.mxu0 %v885
      %907 = vmatpush.bf16.msra.mxu0 %v884
      %908 = vmatmul.bf16.gmra.mxu0 %v831
      %v909 = vpop.f32.mrf.mxu0
      %v910 = vadd.f32 0.0, %v909
      %v911 = vpop.f32.mrf.mxu0
      %v912 = vadd.f32 0.0, %v911
      %913 = vmatmul.bf16.gmra.mxu0 %v832
      %v914 = vpop.f32.mrf.mxu0
      %v915 = vadd.f32 0.0, %v914
      %v916 = vpop.f32.mrf.mxu0
      %v917 = vadd.f32 0.0, %v916
      %918 = vmatmul.bf16.gmra.mxu0 %v833
      %v919 = vpop.f32.mrf.mxu0
      %v920 = vadd.f32 0.0, %v919
      %v921 = vpop.f32.mrf.mxu0
      %v922 = vadd.f32 0.0, %v921
      %923 = vmatmul.bf16.gmra.mxu0 %v834
      %v924 = vpop.f32.mrf.mxu0
      %v925 = vadd.f32 0.0, %v924
      %v926 = vpop.f32.mrf.mxu0
      %v927 = vadd.f32 0.0, %v926
      %928 = vdwg.mxu0
      %v929 = vadd.f32 %v815, %v910
      %v930 = vadd.f32 %v816, %v912
      %v931 = vadd.f32 %v817, %v915
      %v932 = vadd.f32 %v818, %v917
      %v933 = vadd.f32 %v819, %v920
      %v934 = vadd.f32 %v820, %v922
      %v935 = vadd.f32 %v821, %v925
      %v936 = vadd.f32 %v822, %v927
      %s937 = scalar_lea.vmem [#allocation2], 32
      %v938 = vld [vmem:[%s937] sm:$0xff]
      %v939 = vld [vmem:[%s937 + $0x10] sm:$0xff]
      %v940 = vld [vmem:[%s937 + $0x20] sm:$0xff]
      %v941 = vld [vmem:[%s937 + $0x30] sm:$0xff]
      %v942 = vld [vmem:[%s937 + $0x40] sm:$0xff]
      %v943 = vld [vmem:[%s937 + $0x50] sm:$0xff]
      %v944 = vld [vmem:[%s937 + $0x60] sm:$0xff]
      %v945 = vld [vmem:[%s937 + $0x70] sm:$0xff]
      %v946 = vpack.c.bf16 %v939, %v938
      %v947 = vpack.c.bf16 %v941, %v940
      %v948 = vpack.c.bf16 %v943, %v942
      %v949 = vpack.c.bf16 %v945, %v944
      %s950 = scalar_lea.vmem %s1, 384
      %v951 = vld [vmem:[%s950] sm:$0xf]
      %v952 = vld [vmem:[%s950 + $0x4] sm:$0xf]
      %v953 = vld [vmem:[%s950 + $0x8] sm:$0xf]
      %v954 = vld [vmem:[%s950 + $0xc] sm:$0xf]
      %v955 = vld [vmem:[%s950 + $0x10] sm:$0xf]
      %v956 = vld [vmem:[%s950 + $0x14] sm:$0xf]
      %v957 = vld [vmem:[%s950 + $0x18] sm:$0xf]
      %v958 = vld [vmem:[%s950 + $0x1c] sm:$0xf]
      %v959 = vld [vmem:[%s950 + $0x20] sm:$0xf]
      %v960 = vld [vmem:[%s950 + $0x24] sm:$0xf]
      %v961 = vld [vmem:[%s950 + $0x28] sm:$0xf]
      %v962 = vld [vmem:[%s950 + $0x2c] sm:$0xf]
      %v963 = vld [vmem:[%s950 + $0x30] sm:$0xf]
      %v964 = vld [vmem:[%s950 + $0x34] sm:$0xf]
      %v965 = vld [vmem:[%s950 + $0x38] sm:$0xf]
      %v966 = vld [vmem:[%s950 + $0x3c] sm:$0xf]
      %v983 = vunpack.c.l.b16 %v951
      %v984 = vunpack.c.l.b16 %v952
      %v985 = vunpack.c.l.b16 %v953
      %v986 = vunpack.c.l.b16 %v954
      %v987 = vunpack.c.l.b16 %v955
      %v988 = vunpack.c.l.b16 %v956
      %v989 = vunpack.c.l.b16 %v957
      %v990 = vunpack.c.l.b16 %v958
      %v991 = vunpack.c.l.b16 %v959
      %v992 = vunpack.c.l.b16 %v960
      %v993 = vunpack.c.l.b16 %v961
      %v994 = vunpack.c.l.b16 %v962
      %v995 = vunpack.c.l.b16 %v963
      %v996 = vunpack.c.l.b16 %v964
      %v997 = vunpack.c.l.b16 %v965
      %v998 = vunpack.c.l.b16 %v966
      %v999 = vpack.c.b16 %v984, %v983
      %v1000 = vpack.c.b16 %v986, %v985
      %v1001 = vpack.c.b16 %v988, %v987
      %v1002 = vpack.c.b16 %v990, %v989
      %v1003 = vpack.c.b16 %v992, %v991
      %v1004 = vpack.c.b16 %v994, %v993
      %v1005 = vpack.c.b16 %v996, %v995
      %v1006 = vpack.c.b16 %v998, %v997
      %1015 = vmatpush.bf16.msra.mxu0 %v1006
      %1016 = vmatpush.bf16.msra.mxu0 %v1005
      %1017 = vmatpush.bf16.msra.mxu0 %v1004
      %1018 = vmatpush.bf16.msra.mxu0 %v1003
      %1019 = vmatpush.bf16.msra.mxu0 %v1002
      %1020 = vmatpush.bf16.msra.mxu0 %v1001
      %1021 = vmatpush.bf16.msra.mxu0 %v1000
      %1022 = vmatpush.bf16.msra.mxu0 %v999
      %1023 = vmatmul.bf16.gmra.mxu0 %v946
      %v1024 = vpop.f32.mrf.mxu0
      %v1025 = vadd.f32 0.0, %v1024
      %v1026 = vpop.f32.mrf.mxu0
      %v1027 = vadd.f32 0.0, %v1026
      %1028 = vmatmul.bf16.gmra.mxu0 %v947
      %v1029 = vpop.f32.mrf.mxu0
      %v1030 = vadd.f32 0.0, %v1029
      %v1031 = vpop.f32.mrf.mxu0
      %v1032 = vadd.f32 0.0, %v1031
      %1033 = vmatmul.bf16.gmra.mxu0 %v948
      %v1034 = vpop.f32.mrf.mxu0
      %v1035 = vadd.f32 0.0, %v1034
      %v1036 = vpop.f32.mrf.mxu0
      %v1037 = vadd.f32 0.0, %v1036
      %1038 = vmatmul.bf16.gmra.mxu0 %v949
      %v1039 = vpop.f32.mrf.mxu0
      %v1040 = vadd.f32 0.0, %v1039
      %v1041 = vpop.f32.mrf.mxu0
      %v1042 = vadd.f32 0.0, %v1041
      %1043 = vdwg.mxu0
      %v1044 = vadd.f32 %v929, %v1025
      %v1045 = vadd.f32 %v930, %v1027
      %v1046 = vadd.f32 %v931, %v1030
      %v1047 = vadd.f32 %v932, %v1032
      %v1048 = vadd.f32 %v933, %v1035
      %v1049 = vadd.f32 %v934, %v1037
      %v1050 = vadd.f32 %v935, %v1040
      %v1051 = vadd.f32 %v936, %v1042
      %v1052 = vld [vmem:[%s937 + $0x1] sm:$0xff]
      %v1053 = vld [vmem:[%s937 + $0x11] sm:$0xff]
      %v1054 = vld [vmem:[%s937 + $0x21] sm:$0xff]
      %v1055 = vld [vmem:[%s937 + $0x31] sm:$0xff]
      %v1056 = vld [vmem:[%s937 + $0x41] sm:$0xff]
      %v1057 = vld [vmem:[%s937 + $0x51] sm:$0xff]
      %v1058 = vld [vmem:[%s937 + $0x61] sm:$0xff]
      %v1059 = vld [vmem:[%s937 + $0x71] sm:$0xff]
      %v1060 = vpack.c.bf16 %v1053, %v1052
      %v1061 = vpack.c.bf16 %v1055, %v1054
      %v1062 = vpack.c.bf16 %v1057, %v1056
      %v1063 = vpack.c.bf16 %v1059, %v1058
      %s1064 = scalar_lea.vmem %s1, 448
      %v1065 = vld [vmem:[%s1064] sm:$0xf]
      %v1066 = vld [vmem:[%s1064 + $0x4] sm:$0xf]
      %v1067 = vld [vmem:[%s1064 + $0x8] sm:$0xf]
      %v1068 = vld [vmem:[%s1064 + $0xc] sm:$0xf]
      %v1069 = vld [vmem:[%s1064 + $0x10] sm:$0xf]
      %v1070 = vld [vmem:[%s1064 + $0x14] sm:$0xf]
      %v1071 = vld [vmem:[%s1064 + $0x18] sm:$0xf]
      %v1072 = vld [vmem:[%s1064 + $0x1c] sm:$0xf]
      %v1073 = vld [vmem:[%s1064 + $0x20] sm:$0xf]
      %v1074 = vld [vmem:[%s1064 + $0x24] sm:$0xf]
      %v1075 = vld [vmem:[%s1064 + $0x28] sm:$0xf]
      %v1076 = vld [vmem:[%s1064 + $0x2c] sm:$0xf]
      %v1077 = vld [vmem:[%s1064 + $0x30] sm:$0xf]
      %v1078 = vld [vmem:[%s1064 + $0x34] sm:$0xf]
      %v1079 = vld [vmem:[%s1064 + $0x38] sm:$0xf]
      %v1080 = vld [vmem:[%s1064 + $0x3c] sm:$0xf]
      %v1097 = vunpack.c.l.b16 %v1065
      %v1098 = vunpack.c.l.b16 %v1066
      %v1099 = vunpack.c.l.b16 %v1067
      %v1100 = vunpack.c.l.b16 %v1068
      %v1101 = vunpack.c.l.b16 %v1069
      %v1102 = vunpack.c.l.b16 %v1070
      %v1103 = vunpack.c.l.b16 %v1071
      %v1104 = vunpack.c.l.b16 %v1072
      %v1105 = vunpack.c.l.b16 %v1073
      %v1106 = vunpack.c.l.b16 %v1074
      %v1107 = vunpack.c.l.b16 %v1075
      %v1108 = vunpack.c.l.b16 %v1076
      %v1109 = vunpack.c.l.b16 %v1077
      %v1110 = vunpack.c.l.b16 %v1078
      %v1111 = vunpack.c.l.b16 %v1079
      %v1112 = vunpack.c.l.b16 %v1080
      %v1113 = vpack.c.b16 %v1098, %v1097
      %v1114 = vpack.c.b16 %v1100, %v1099
      %v1115 = vpack.c.b16 %v1102, %v1101
      %v1116 = vpack.c.b16 %v1104, %v1103
      %v1117 = vpack.c.b16 %v1106, %v1105
      %v1118 = vpack.c.b16 %v1108, %v1107
      %v1119 = vpack.c.b16 %v1110, %v1109
      %v1120 = vpack.c.b16 %v1112, %v1111
      %1129 = vmatpush.bf16.msra.mxu0 %v1120
      %1130 = vmatpush.bf16.msra.mxu0 %v1119
      %1131 = vmatpush.bf16.msra.mxu0 %v1118
      %1132 = vmatpush.bf16.msra.mxu0 %v1117
      %1133 = vmatpush.bf16.msra.mxu0 %v1116
      %1134 = vmatpush.bf16.msra.mxu0 %v1115
      %1135 = vmatpush.bf16.msra.mxu0 %v1114
      %1136 = vmatpush.bf16.msra.mxu0 %v1113
      %1137 = vmatmul.bf16.gmra.mxu0 %v1060
      %v1138 = vpop.f32.mrf.mxu0
      %v1139 = vadd.f32 0.0, %v1138
      %v1140 = vpop.f32.mrf.mxu0
      %v1141 = vadd.f32 0.0, %v1140
      %1142 = vmatmul.bf16.gmra.mxu0 %v1061
      %v1143 = vpop.f32.mrf.mxu0
      %v1144 = vadd.f32 0.0, %v1143
      %v1145 = vpop.f32.mrf.mxu0
      %v1146 = vadd.f32 0.0, %v1145
      %1147 = vmatmul.bf16.gmra.mxu0 %v1062
      %v1148 = vpop.f32.mrf.mxu0
      %v1149 = vadd.f32 0.0, %v1148
      %v1150 = vpop.f32.mrf.mxu0
      %v1151 = vadd.f32 0.0, %v1150
      %1152 = vmatmul.bf16.gmra.mxu0 %v1063
      %v1153 = vpop.f32.mrf.mxu0
      %v1154 = vadd.f32 0.0, %v1153
      %v1155 = vpop.f32.mrf.mxu0
      %v1156 = vadd.f32 0.0, %v1155
      %1157 = vdwg.mxu0
      %v1158 = vadd.f32 %v1044, %v1139
      %v1159 = vadd.f32 %v1045, %v1141
      %v1160 = vadd.f32 %v1046, %v1144
      %v1161 = vadd.f32 %v1047, %v1146
      %v1162 = vadd.f32 %v1048, %v1149
      %v1163 = vadd.f32 %v1049, %v1151
      %v1164 = vadd.f32 %v1050, %v1154
      %v1165 = vadd.f32 %v1051, %v1156
      %v1166 = vld [vmem:[%s937 + $0x2] sm:$0xff]
      %v1167 = vld [vmem:[%s937 + $0x12] sm:$0xff]
      %v1168 = vld [vmem:[%s937 + $0x22] sm:$0xff]
      %v1169 = vld [vmem:[%s937 + $0x32] sm:$0xff]
      %v1170 = vld [vmem:[%s937 + $0x42] sm:$0xff]
      %v1171 = vld [vmem:[%s937 + $0x52] sm:$0xff]
      %v1172 = vld [vmem:[%s937 + $0x62] sm:$0xff]
      %v1173 = vld [vmem:[%s937 + $0x72] sm:$0xff]
      %v1174 = vpack.c.bf16 %v1167, %v1166
      %v1175 = vpack.c.bf16 %v1169, %v1168
      %v1176 = vpack.c.bf16 %v1171, %v1170
      %v1177 = vpack.c.bf16 %v1173, %v1172
      %s1178 = scalar_lea.vmem %s1, 512
      %v1179 = vld [vmem:[%s1178] sm:$0xf]
      %v1180 = vld [vmem:[%s1178 + $0x4] sm:$0xf]
      %v1181 = vld [vmem:[%s1178 + $0x8] sm:$0xf]
      %v1182 = vld [vmem:[%s1178 + $0xc] sm:$0xf]
      %v1183 = vld [vmem:[%s1178 + $0x10] sm:$0xf]
      %v1184 = vld [vmem:[%s1178 + $0x14] sm:$0xf]
      %v1185 = vld [vmem:[%s1178 + $0x18] sm:$0xf]
      %v1186 = vld [vmem:[%s1178 + $0x1c] sm:$0xf]
      %v1187 = vld [vmem:[%s1178 + $0x20] sm:$0xf]
      %v1188 = vld [vmem:[%s1178 + $0x24] sm:$0xf]
      %v1189 = vld [vmem:[%s1178 + $0x28] sm:$0xf]
      %v1190 = vld [vmem:[%s1178 + $0x2c] sm:$0xf]
      %v1191 = vld [vmem:[%s1178 + $0x30] sm:$0xf]
      %v1192 = vld [vmem:[%s1178 + $0x34] sm:$0xf]
      %v1193 = vld [vmem:[%s1178 + $0x38] sm:$0xf]
      %v1194 = vld [vmem:[%s1178 + $0x3c] sm:$0xf]
      %v1211 = vunpack.c.l.b16 %v1179
      %v1212 = vunpack.c.l.b16 %v1180
      %v1213 = vunpack.c.l.b16 %v1181
      %v1214 = vunpack.c.l.b16 %v1182
      %v1215 = vunpack.c.l.b16 %v1183
      %v1216 = vunpack.c.l.b16 %v1184
      %v1217 = vunpack.c.l.b16 %v1185
      %v1218 = vunpack.c.l.b16 %v1186
      %v1219 = vunpack.c.l.b16 %v1187
      %v1220 = vunpack.c.l.b16 %v1188
      %v1221 = vunpack.c.l.b16 %v1189
      %v1222 = vunpack.c.l.b16 %v1190
      %v1223 = vunpack.c.l.b16 %v1191
      %v1224 = vunpack.c.l.b16 %v1192
      %v1225 = vunpack.c.l.b16 %v1193
      %v1226 = vunpack.c.l.b16 %v1194
      %v1227 = vpack.c.b16 %v1212, %v1211
      %v1228 = vpack.c.b16 %v1214, %v1213
      %v1229 = vpack.c.b16 %v1216, %v1215
      %v1230 = vpack.c.b16 %v1218, %v1217
      %v1231 = vpack.c.b16 %v1220, %v1219
      %v1232 = vpack.c.b16 %v1222, %v1221
      %v1233 = vpack.c.b16 %v1224, %v1223
      %v1234 = vpack.c.b16 %v1226, %v1225
      %1243 = vmatpush.bf16.msra.mxu0 %v1234
      %1244 = vmatpush.bf16.msra.mxu0 %v1233
      %1245 = vmatpush.bf16.msra.mxu0 %v1232
      %1246 = vmatpush.bf16.msra.mxu0 %v1231
      %1247 = vmatpush.bf16.msra.mxu0 %v1230
      %1248 = vmatpush.bf16.msra.mxu0 %v1229
      %1249 = vmatpush.bf16.msra.mxu0 %v1228
      %1250 = vmatpush.bf16.msra.mxu0 %v1227
      %1251 = vmatmul.bf16.gmra.mxu0 %v1174
      %v1252 = vpop.f32.mrf.mxu0
      %v1253 = vadd.f32 0.0, %v1252
      %v1254 = vpop.f32.mrf.mxu0
      %v1255 = vadd.f32 0.0, %v1254
      %1256 = vmatmul.bf16.gmra.mxu0 %v1175
      %v1257 = vpop.f32.mrf.mxu0
      %v1258 = vadd.f32 0.0, %v1257
      %v1259 = vpop.f32.mrf.mxu0
      %v1260 = vadd.f32 0.0, %v1259
      %1261 = vmatmul.bf16.gmra.mxu0 %v1176
      %v1262 = vpop.f32.mrf.mxu0
      %v1263 = vadd.f32 0.0, %v1262
      %v1264 = vpop.f32.mrf.mxu0
      %v1265 = vadd.f32 0.0, %v1264
      %1266 = vmatmul.bf16.gmra.mxu0 %v1177
      %v1267 = vpop.f32.mrf.mxu0
      %v1268 = vadd.f32 0.0, %v1267
      %v1269 = vpop.f32.mrf.mxu0
      %v1270 = vadd.f32 0.0, %v1269
      %1271 = vdwg.mxu0
      %v1272 = vadd.f32 %v1158, %v1253
      %v1273 = vadd.f32 %v1159, %v1255
      %v1274 = vadd.f32 %v1160, %v1258
      %v1275 = vadd.f32 %v1161, %v1260
      %v1276 = vadd.f32 %v1162, %v1263
      %v1277 = vadd.f32 %v1163, %v1265
      %v1278 = vadd.f32 %v1164, %v1268
      %v1279 = vadd.f32 %v1165, %v1270
      %v1280 = vld [vmem:[%s2] sm:$0x1]
      %v1282 = vperm.slane %v1280, 0
      %v1284 = vadd.f32 %v1272, %v1282
      %v1285 = vadd.f32 %v1273, %v1282
      %v1286 = vadd.f32 %v1274, %v1282
      %v1287 = vadd.f32 %v1275, %v1282
      %v1288 = vadd.f32 %v1276, %v1282
      %v1289 = vadd.f32 %v1277, %v1282
      %v1290 = vadd.f32 %v1278, %v1282
      %v1291 = vadd.f32 %v1279, %v1282
      %v1292 = vmax.f32 %v1284, 0.0
      %v1293 = vmax.f32 %v1285, 0.0
      %v1294 = vmax.f32 %v1286, 0.0
      %v1295 = vmax.f32 %v1287, 0.0
      %v1296 = vmax.f32 %v1288, 0.0
      %v1297 = vmax.f32 %v1289, 0.0
      %v1298 = vmax.f32 %v1290, 0.0
      %v1299 = vmax.f32 %v1291, 0.0
      %v1300 = vpack.c.bf16 %v1293, %v1292
      %v1301 = vpack.c.bf16 %v1295, %v1294
      %v1302 = vpack.c.bf16 %v1297, %v1296
      %v1303 = vpack.c.bf16 %v1299, %v1298
      %v1304 = vld [vmem:[%s3] sm:$0xf]
      %v1305 = vld [vmem:[%s3 + $0x4] sm:$0xf]
      %v1306 = vld [vmem:[%s3 + $0x8] sm:$0xf]
      %v1307 = vld [vmem:[%s3 + $0xc] sm:$0xf]
      %v1308 = vld [vmem:[%s3 + $0x10] sm:$0xf]
      %v1309 = vld [vmem:[%s3 + $0x14] sm:$0xf]
      %v1310 = vld [vmem:[%s3 + $0x18] sm:$0xf]
      %v1311 = vld [vmem:[%s3 + $0x1c] sm:$0xf]
      %v1312 = vld [vmem:[%s3 + $0x20] sm:$0xf]
      %v1313 = vld [vmem:[%s3 + $0x24] sm:$0xf]
      %v1314 = vld [vmem:[%s3 + $0x28] sm:$0xf]
      %v1315 = vld [vmem:[%s3 + $0x2c] sm:$0xf]
      %v1316 = vld [vmem:[%s3 + $0x30] sm:$0xf]
      %v1317 = vld [vmem:[%s3 + $0x34] sm:$0xf]
      %v1318 = vld [vmem:[%s3 + $0x38] sm:$0xf]
      %v1319 = vld [vmem:[%s3 + $0x3c] sm:$0xf]
      %v1320 = vld [vmem:[%s4] sm:$0x1]
      %v1322 = vperm.slane %v1320, 0
      %v1340 = vunpack.c.l.b16 %v1304
      %v1341 = vunpack.c.l.b16 %v1305
      %v1342 = vunpack.c.l.b16 %v1306
      %v1343 = vunpack.c.l.b16 %v1307
      %v1344 = vunpack.c.l.b16 %v1308
      %v1345 = vunpack.c.l.b16 %v1309
      %v1346 = vunpack.c.l.b16 %v1310
      %v1347 = vunpack.c.l.b16 %v1311
      %v1348 = vunpack.c.l.b16 %v1312
      %v1349 = vunpack.c.l.b16 %v1313
      %v1350 = vunpack.c.l.b16 %v1314
      %v1351 = vunpack.c.l.b16 %v1315
      %v1352 = vunpack.c.l.b16 %v1316
      %v1353 = vunpack.c.l.b16 %v1317
      %v1354 = vunpack.c.l.b16 %v1318
      %v1355 = vunpack.c.l.b16 %v1319
      %v1356 = vpack.c.b16 %v1341, %v1340
      %v1357 = vpack.c.b16 %v1343, %v1342
      %v1358 = vpack.c.b16 %v1345, %v1344
      %v1359 = vpack.c.b16 %v1347, %v1346
      %v1360 = vpack.c.b16 %v1349, %v1348
      %v1361 = vpack.c.b16 %v1351, %v1350
      %v1362 = vpack.c.b16 %v1353, %v1352
      %v1363 = vpack.c.b16 %v1355, %v1354
      %1372 = vmatpush.bf16.msra.mxu0 %v1363
      %1373 = vmatpush.bf16.msra.mxu0 %v1362
      %1374 = vmatpush.bf16.msra.mxu0 %v1361
      %1375 = vmatpush.bf16.msra.mxu0 %v1360
      %1376 = vmatpush.bf16.msra.mxu0 %v1359
      %1377 = vmatpush.bf16.msra.mxu0 %v1358
      %1378 = vmatpush.bf16.msra.mxu0 %v1357
      %1379 = vmatpush.bf16.msra.mxu0 %v1356
      %1380 = vmatmul.bf16.gmra.mxu0 %v1300
      %v1381 = vpop.f32.mrf.mxu0
      %v1382 = vadd.f32 %v1322, %v1381
      %v1383 = vpop.f32.mrf.mxu0
      %v1384 = vadd.f32 %v1322, %v1383
      %1385 = vmatmul.bf16.gmra.mxu0 %v1301
      %v1386 = vpop.f32.mrf.mxu0
      %v1387 = vadd.f32 %v1322, %v1386
      %v1388 = vpop.f32.mrf.mxu0
      %v1389 = vadd.f32 %v1322, %v1388
      %1390 = vmatmul.bf16.gmra.mxu0 %v1302
      %v1391 = vpop.f32.mrf.mxu0
      %v1392 = vadd.f32 %v1322, %v1391
      %v1393 = vpop.f32.mrf.mxu0
      %v1394 = vadd.f32 %v1322, %v1393
      %1395 = vmatmul.bf16.gmra.mxu0 %v1303
      %v1396 = vpop.f32.mrf.mxu0
      %v1397 = vadd.f32 %v1322, %v1396
      %v1398 = vpop.f32.mrf.mxu0
      %v1399 = vadd.f32 %v1322, %v1398
      %1400 = vdwg.mxu0
      %1401 = vst [vmem:[%s224] sm:$0xff] %v1382
      %1402 = vst [vmem:[%s224 + $0x8] sm:$0xff] %v1384
      %1403 = vst [vmem:[%s224 + $0x10] sm:$0xff] %v1387
      %1404 = vst [vmem:[%s224 + $0x18] sm:$0xff] %v1389
      %1405 = vst [vmem:[%s224 + $0x20] sm:$0xff] %v1392
      %1406 = vst [vmem:[%s224 + $0x28] sm:$0xff] %v1394
      %1407 = vst [vmem:[%s224 + $0x30] sm:$0xff] %v1397
      %1408 = vst [vmem:[%s224 + $0x38] sm:$0xff] %v1399
      %p1409 = scmp.lt.s32.totalorder %s16, 1
      %s1410 = scalar_select %p1409, %s16, 1
      %s1411 = smul.addr %s1410, 8
      %s1412 = smul.addr %s1411, 8
      %s1413 = scalar_lea.vmem %s5, %s1412
      // Predicated region
      $region41: #{model_forward.13} parent=39 // pred_check
        %p1414 = pneg %p144
      $region42: #{model_forward.13} parent=39 // pred_check_branch
        %1416 = sbr.rel (%p1414) target = $region44
      $region43: #{model_forward.13} parent=39 // pred_region
        _
      $region44: #{model_forward.13} parent=39 // pred_fallthru
        _
    $region40: #{model_forward.13} parent=5 // pred_fallthru
      _
    %p1417 = scmp.le.s32.totalorder 2, %s11
    // Predicated region
    $region45: #{model_forward.13} parent=5 // pred_check
      %p1418 = pneg %p1417
    $region46: #{model_forward.13} parent=5 // pred_check_branch
      %1420 = sbr.rel (%p1418) target = $region48
    $region47: #{model_forward.13} parent=5 // pred_region
      %s1421 = ssub.s32 %s11, 2
      // Predicated region
      $region49: #{model_forward.13} parent=47 // pred_check
        %p1422 = pneg %p150
      $region50: #{model_forward.13} parent=47 // pred_check_branch
        %1424 = sbr.rel (%p1422) target = $region52
      $region51: #{model_forward.13} parent=47 // pred_region
        %p1425 = scmp.lt.s32.totalorder %s17, 1
        %s1426 = scalar_select %p1425, %s17, 1
        %s1427 = smul.addr %s1426, 8
        %s1428 = smul.addr %s1427, 8
        %s1429 = scalar_lea.vmem %s5, %s1428
      $region52: #{model_forward.13} parent=47 // pred_fallthru
        _
    $region48: #{model_forward.13} parent=5 // pred_fallthru
      _
  $region6: #{model_forward.13} parent=0 // loop_footer
    %s15 = sadd.s32 1, %s11
  $region7: #{model_forward.13} parent=0 // loop_footer_branch
    %10 = sbr.rel target = $region3
  $region8: #{model_forward.13} parent=0 // loop_exit
    _

// kernel: model_forward.10
$region0: #{model_forward.10}
  #allocation0 [shape = 'u32[]', space=smem, size = 0x4, offset = 0x4, fixed_abs, tag = 'smem constant byte address 0x4 - core index']
  #allocation1 [shape = 'u32[72,128]{1,0:T(1,128)}', space=vmem, size = 0x9000, scoped, tag = 'internal scratch']
  #allocation2 [shape = 'f32[6,6,128]{2,1,0:T(8,128)}', space=vmem, size = 0x6000, scoped, tag = 'scratch operand']
  %s0 = inlined_call_operand.vmem [shape: bf16[2,4,4,128], index: 0, kind: input, shape index: {}]
  %s1 = inlined_call_operand.vmem [shape: bf16[3,3,128,128], index: 1, kind: input, shape index: {}]
  %s2 = inlined_call_operand.vmem [shape: f32[1,128], index: 2, kind: input, shape index: {}]
  %s3 = inlined_call_operand.vmem [shape: bf16[2,4,4,128], index: 3, kind: output, shape index: {}]
  %s4 = sld [smem:[#allocation0]]
  $region45: #{model_forward.10} parent=0
    _
  %s6 = ssub.s32 1, %s4
  %s7 = scalar_select 0, %s6, %s4
  loop: start=0, step=1, limit=4
  $region2: #{model_forward.10} parent=0 // loop_pre_header
    _
  $region3: #{model_forward.10} parent=0 // loop_header
    %s9 = sphi 0, %s13
    %p10 = scmp.ge.s32.totalorder %s9, 4
    %s19 = sphi 0, %s21
    %s22 = sphi 0, %s19
    %s23 = sphi 0, %s22
    %s39 = sphi 0, %s23
    %s43 = sphi 0, %s43
    %s45 = sphi 0, %s43
    %s46 = sphi 0, %s45
    %s60 = sphi 0, %s46
    %s64 = sphi 0, %s64
    %s66 = sphi 0, %s64
    %s67 = sphi 0, %s66
    %s81 = sphi 0, %s67
    %s87 = sphi 0, %s89
    %s90 = sphi 0, %s87
    %s91 = sphi 0, %s90
    %s107 = sphi 0, %s91
  $region4: #{model_forward.10} parent=0 // loop_header_branch
    %12 = sbr.rel (%p10) target = $region8
  $region5: #{model_forward.10} parent=0 // loop_body
    %s14 = ssub.s32 %s9, 1
    %s15 = ssub.s32 %s9, 2
    %s16 = sadd.s32 %s9, 1
    %s17 = ssub.s32 %s9, %s16
    %p18 = scmp.eq.s32.totalorder %s17, 0
    %s20 = sadd.s32 %s19, 1
    %s21 = scalar_select %p18, %s19, %s20
    %p24 = pneg %p18
    %p25 = scmp.eq.s32.totalorder %s9, 1
    %p26 = por %p24, %p25
    %p27 = scmp.ne.s32.totalorder %s19, %s22
    %p28 = scmp.eq.s32.totalorder %s9, 0
    %p29 = por %p27, %p28
    %p30 = scmp.ne.s32.totalorder %s19, %s22
    %p31 = scmp.eq.s32.totalorder %s14, 1
    %p32 = por %p30, %p31
    %p33 = scmp.ne.s32.totalorder %s22, %s23
    %p34 = scmp.eq.s32.totalorder %s14, 0
    %p35 = por %p33, %p34
    %p36 = scmp.ne.s32.totalorder %s22, %s23
    %p37 = scmp.eq.s32.totalorder %s15, 1
    %p38 = por %p36, %p37
    %p40 = scmp.ne.s32.totalorder %s23, %s39
    %p41 = scmp.eq.s32.totalorder %s15, 0
    %p42 = por %p40, %p41
    %s44 = sadd.s32 %s43, 1
    %p47 = scmp.eq.s32.totalorder %s9, 1
    %p48 = scmp.ne.s32.totalorder %s43, %s45
    %p49 = scmp.eq.s32.totalorder %s9, 0
    %p50 = por %p48, %p49
    %p51 = scmp.ne.s32.totalorder %s43, %s45
    %p52 = scmp.eq.s32.totalorder %s14, 1
    %p53 = por %p51, %p52
    %p54 = scmp.ne.s32.totalorder %s45, %s46
    %p55 = scmp.eq.s32.totalorder %s14, 0
    %p56 = por %p54, %p55
    %p57 = scmp.ne.s32.totalorder %s45, %s46
    %p58 = scmp.eq.s32.totalorder %s15, 1
    %p59 = por %p57, %p58
    %p61 = scmp.ne.s32.totalorder %s46, %s60
    %p62 = scmp.eq.s32.totalorder %s15, 0
    %p63 = por %p61, %p62
    %s65 = sadd.s32 %s64, 1
    %p68 = scmp.eq.s32.totalorder %s9, 1
    %p69 = scmp.ne.s32.totalorder %s64, %s66
    %p70 = scmp.eq.s32.totalorder %s9, 0
    %p71 = por %p69, %p70
    %p72 = scmp.ne.s32.totalorder %s64, %s66
    %p73 = scmp.eq.s32.totalorder %s14, 1
    %p74 = por %p72, %p73
    %p75 = scmp.ne.s32.totalorder %s66, %s67
    %p76 = scmp.eq.s32.totalorder %s14, 0
    %p77 = por %p75, %p76
    %p78 = scmp.ne.s32.totalorder %s66, %s67
    %p79 = scmp.eq.s32.totalorder %s15, 1
    %p80 = por %p78, %p79
    %p82 = scmp.ne.s32.totalorder %s67, %s81
    %p83 = scmp.eq.s32.totalorder %s15, 0
    %p84 = por %p82, %p83
    %s85 = ssub.s32 %s9, %s16
    %p86 = scmp.eq.s32.totalorder %s85, 0
    %s88 = sadd.s32 %s87, 1
    %s89 = scalar_select %p86, %s87, %s88
    %p92 = pneg %p86
    %p93 = scmp.eq.s32.totalorder %s9, 1
    %p94 = por %p92, %p93
    %p95 = scmp.ne.s32.totalorder %s87, %s90
    %p96 = scmp.eq.s32.totalorder %s9, 0
    %p97 = por %p95, %p96
    %p98 = scmp.ne.s32.totalorder %s87, %s90
    %p99 = scmp.eq.s32.totalorder %s14, 1
    %p100 = por %p98, %p99
    %p101 = scmp.ne.s32.totalorder %s90, %s91
    %p102 = scmp.eq.s32.totalorder %s14, 0
    %p103 = por %p101, %p102
    %p104 = scmp.ne.s32.totalorder %s90, %s91
    %p105 = scmp.eq.s32.totalorder %s15, 1
    %p106 = por %p104, %p105
    %p108 = scmp.ne.s32.totalorder %s91, %s107
    %p109 = scmp.eq.s32.totalorder %s15, 0
    %p110 = por %p108, %p109
    %p111 = scmp.le.s32.totalorder 1, %s9
    %p112 = scmp.lt.s32.totalorder %s9, 3
    %p113 = pnand %p111, %p112
    %p114 = pneg %p113
    // Predicated region
    $region9: #{model_forward.10} parent=5 // pred_check
      _
    $region10: #{model_forward.10} parent=5 // pred_check_branch
      %116 = sbr.rel (%p113) target = $region12
    $region11: #{model_forward.10} parent=5 // pred_region
      %s117 = ssub.s32 %s9, 1
      // Predicated region
      $region13: #{model_forward.10} parent=11 // pred_check
        %p118 = pneg %p56
      $region14: #{model_forward.10} parent=11 // pred_check_branch
        %120 = sbr.rel (%p118) target = $region16
      $region15: #{model_forward.10} parent=11 // pred_region
        _
      $region16: #{model_forward.10} parent=11 // pred_fallthru
        _
      // Predicated region
      $region17: #{model_forward.10} parent=11 // pred_check
        %p121 = pneg %p77
      $region18: #{model_forward.10} parent=11 // pred_check_branch
        %123 = sbr.rel (%p121) target = $region20
      $region19: #{model_forward.10} parent=11 // pred_region
        _
      $region20: #{model_forward.10} parent=11 // pred_fallthru
        _
    $region12: #{model_forward.10} parent=5 // pred_fallthru
      _
    %p124 = scmp.lt.s32.totalorder %s9, 2
    // Predicated region
    $region21: #{model_forward.10} parent=5 // pred_check
      %p125 = pneg %p124
    $region22: #{model_forward.10} parent=5 // pred_check_branch
      %127 = sbr.rel (%p125) target = $region24
    $region23: #{model_forward.10} parent=5 // pred_region
      // Predicated region
      $region25: #{model_forward.10} parent=23 // pred_check
        %p128 = pneg %p29
      $region26: #{model_forward.10} parent=23 // pred_check_branch
        %130 = sbr.rel (%p128) target = $region28
      $region27: #{model_forward.10} parent=23 // pred_region
        %p131 = scmp.lt.s32.totalorder %s9, 1
        %s132 = scalar_select %p131, %s9, 1
        %s133 = smul.addr %s132, 4
        %s134 = smul.addr %s133, 2
        %s135 = scalar_lea.vmem %s0, %s134
      $region28: #{model_forward.10} parent=23 // pred_fallthru
        _
    $region24: #{model_forward.10} parent=5 // pred_fallthru
      _
    %p136 = scmp.le.s32.totalorder 1, %s9
    %p137 = scmp.lt.s32.totalorder %s9, 3
    %p138 = pnand %p136, %p137
    %p139 = pneg %p138
    // Predicated region
    $region29: #{model_forward.10} parent=5 // pred_check
      _
    $region30: #{model_forward.10} parent=5 // pred_check_branch
      %141 = sbr.rel (%p138) target = $region32
    $region31: #{model_forward.10} parent=5 // pred_region
      %s142 = ssub.s32 %s9, 1
      %p143 = scmp.lt.s32.totalorder %s14, 1
      %s144 = scalar_select %p143, %s14, 1
      %s145 = smul.addr %s144, 4
      %s146 = smul.addr %s145, 2
      %s147 = scalar_lea.vmem %s0, %s146
      %p148 = pneg %p35
      %p149 = pneg %p32
      %p150 = pneg %p56
      %p151 = pneg %p53
      %p152 = pneg %p77
      %p153 = pneg %p74
      %p154 = pneg %p103
      %p155 = pneg %p100
      %p156 = scmp.lt.s32.totalorder %s14, 1
      %s157 = scalar_select %p156, %s14, 1
      %s158 = smul.addr %s157, 4
      %s159 = smul.addr %s158, 2
      %s160 = scalar_lea.vmem %s3, %s159
      %p161 = scmp.lt.s32.totalorder %s14, 1
      %s162 = scalar_select %p161, %s14, 1
      %s163 = smul.addr %s162, 4
      %s164 = smul.addr %s163, 2
      %s165 = scalar_lea.vmem %s0, %s164
      %p166 = scmp.lt.s32.totalorder %s14, 1
      %s167 = scalar_select %p166, %s14, 1
      %s168 = smul.addr %s167, 4
      %s169 = smul.addr %s168, 2
      %s170 = scalar_lea.vmem %s3, %s169
      %171 = vst [vmem:[#allocation2] sm:$0x3f] 0.0
      %172 = vst [vmem:[#allocation2 + $0x8] sm:$0x3f] 0.0
      %173 = vst [vmem:[#allocation2 + $0x10] sm:$0x3f] 0.0
      %174 = vst [vmem:[#allocation2 + $0x18] sm:$0x3f] 0.0
      %175 = vst [vmem:[#allocation2 + $0x20] sm:$0x3f] 0.0
      %176 = vst [vmem:[#allocation2 + $0x28] sm:$0x3f] 0.0
      %v177 = vld [vmem:[%s165] sm:$0x3]
      %v178 = vld [vmem:[%s165 + $0x2] sm:$0x3]
      %v179 = vld [vmem:[%s165 + $0x4] sm:$0x3]
      %v180 = vld [vmem:[%s165 + $0x6] sm:$0x3]
      %v181 = vunpack.c.l.bf16 %v177
      %v182 = vunpack.c.l.bf16 %v178
      %v183 = vunpack.c.l.bf16 %v179
      %v184 = vunpack.c.l.bf16 %v180
      %s185 = scalar_lea.vmem [#allocation2], 8
      %186 = vst [vmem:[%s185 + $0x1] sm:$0xf] %v181
      %187 = vst [vmem:[%s185 + $0x9] sm:$0xf] %v182
      %188 = vst [vmem:[%s185 + $0x11] sm:$0xf] %v183
      %189 = vst [vmem:[%s185 + $0x19] sm:$0xf] %v184
      %v190 = vld [vmem:[#allocation2] sm:$0xf]
      %v191 = vpack.c.bf16 %v190, %v190
      %v192 = vld [vmem:[%s1] sm:$0xf]
      %v193 = vld [vmem:[%s1 + $0x4] sm:$0xf]
      %v194 = vld [vmem:[%s1 + $0x8] sm:$0xf]
      %v195 = vld [vmem:[%s1 + $0xc] sm:$0xf]
      %v196 = vld [vmem:[%s1 + $0x10] sm:$0xf]
      %v197 = vld [vmem:[%s1 + $0x14] sm:$0xf]
      %v198 = vld [vmem:[%s1 + $0x18] sm:$0xf]
      %v199 = vld [vmem:[%s1 + $0x1c] sm:$0xf]
      %v200 = vld [vmem:[%s1 + $0x20] sm:$0xf]
      %v201 = vld [vmem:[%s1 + $0x24] sm:$0xf]
      %v202 = vld [vmem:[%s1 + $0x28] sm:$0xf]
      %v203 = vld [vmem:[%s1 + $0x2c] sm:$0xf]
      %v204 = vld [vmem:[%s1 + $0x30] sm:$0xf]
      %v205 = vld [vmem:[%s1 + $0x34] sm:$0xf]
      %v206 = vld [vmem:[%s1 + $0x38] sm:$0xf]
      %v207 = vld [vmem:[%s1 + $0x3c] sm:$0xf]
      %v208 = vld [vmem:[#allocation2 + $0x1] sm:$0xf]
      %v209 = vpack.c.bf16 %v208, %v208
      %s210 = scalar_lea.vmem %s1, 64
      %v211 = vld [vmem:[%s210] sm:$0xf]
      %v212 = vld [vmem:[%s210 + $0x4] sm:$0xf]
      %v213 = vld [vmem:[%s210 + $0x8] sm:$0xf]
      %v214 = vld [vmem:[%s210 + $0xc] sm:$0xf]
      %v215 = vld [vmem:[%s210 + $0x10] sm:$0xf]
      %v216 = vld [vmem:[%s210 + $0x14] sm:$0xf]
      %v217 = vld [vmem:[%s210 + $0x18] sm:$0xf]
      %v218 = vld [vmem:[%s210 + $0x1c] sm:$0xf]
      %v219 = vld [vmem:[%s210 + $0x20] sm:$0xf]
      %v220 = vld [vmem:[%s210 + $0x24] sm:$0xf]
      %v221 = vld [vmem:[%s210 + $0x28] sm:$0xf]
      %v222 = vld [vmem:[%s210 + $0x2c] sm:$0xf]
      %v223 = vld [vmem:[%s210 + $0x30] sm:$0xf]
      %v224 = vld [vmem:[%s210 + $0x34] sm:$0xf]
      %v225 = vld [vmem:[%s210 + $0x38] sm:$0xf]
      %v226 = vld [vmem:[%s210 + $0x3c] sm:$0xf]
      %v243 = vunpack.c.l.b16 %v211
      %v244 = vunpack.c.l.b16 %v212
      %v245 = vunpack.c.l.b16 %v213
      %v246 = vunpack.c.l.b16 %v214
      %v247 = vunpack.c.l.b16 %v215
      %v248 = vunpack.c.l.b16 %v216
      %v249 = vunpack.c.l.b16 %v217
      %v250 = vunpack.c.l.b16 %v218
      %v251 = vunpack.c.l.b16 %v219
      %v252 = vunpack.c.l.b16 %v220
      %v253 = vunpack.c.l.b16 %v221
      %v254 = vunpack.c.l.b16 %v222
      %v255 = vunpack.c.l.b16 %v223
      %v256 = vunpack.c.l.b16 %v224
      %v257 = vunpack.c.l.b16 %v225
      %v258 = vunpack.c.l.b16 %v226
      %v259 = vpack.c.b16 %v244, %v243
      %v260 = vpack.c.b16 %v246, %v245
      %v261 = vpack.c.b16 %v248, %v247
      %v262 = vpack.c.b16 %v250, %v249
      %v263 = vpack.c.b16 %v252, %v251
      %v264 = vpack.c.b16 %v254, %v253
      %v265 = vpack.c.b16 %v256, %v255
      %v266 = vpack.c.b16 %v258, %v257
      %275 = vmatpush.bf16.msra.mxu0 %v266
      %276 = vmatpush.bf16.msra.mxu0 %v265
      %277 = vmatpush.bf16.msra.mxu0 %v264
      %278 = vmatpush.bf16.msra.mxu0 %v263
      %279 = vmatpush.bf16.msra.mxu0 %v262
      %280 = vmatpush.bf16.msra.mxu0 %v261
      %281 = vmatpush.bf16.msra.mxu0 %v260
      %282 = vmatpush.bf16.msra.mxu0 %v259
      %283 = vmatmul.bf16.gmra.mxu0 %v209
      %v284 = vpop.f32.mrf.mxu0
      %v285 = vadd.f32 0.0, %v284
      %v286 = vpop.f32.mrf.mxu0
      %287 = vdwg.mxu0
      %v304 = vunpack.c.l.b16 %v192
      %v305 = vunpack.c.l.b16 %v193
      %v306 = vunpack.c.l.b16 %v194
      %v307 = vunpack.c.l.b16 %v195
      %v308 = vunpack.c.l.b16 %v196
      %v309 = vunpack.c.l.b16 %v197
      %v310 = vunpack.c.l.b16 %v198
      %v311 = vunpack.c.l.b16 %v199
      %v312 = vunpack.c.l.b16 %v200
      %v313 = vunpack.c.l.b16 %v201
      %v314 = vunpack.c.l.b16 %v202
      %v315 = vunpack.c.l.b16 %v203
      %v316 = vunpack.c.l.b16 %v204
      %v317 = vunpack.c.l.b16 %v205
      %v318 = vunpack.c.l.b16 %v206
      %v319 = vunpack.c.l.b16 %v207
      %v320 = vpack.c.b16 %v305, %v304
      %v321 = vpack.c.b16 %v307, %v306
      %v322 = vpack.c.b16 %v309, %v308
      %v323 = vpack.c.b16 %v311, %v310
      %v324 = vpack.c.b16 %v313, %v312
      %v325 = vpack.c.b16 %v315, %v314
      %v326 = vpack.c.b16 %v317, %v316
      %v327 = vpack.c.b16 %v319, %v318
      %336 = vmatpush.bf16.msra.mxu0 %v327
      %337 = vmatpush.bf16.msra.mxu0 %v326
      %338 = vmatpush.bf16.msra.mxu0 %v325
      %339 = vmatpush.bf16.msra.mxu0 %v324
      %340 = vmatpush.bf16.msra.mxu0 %v323
      %341 = vmatpush.bf16.msra.mxu0 %v322
      %342 = vmatpush.bf16.msra.mxu0 %v321
      %343 = vmatpush.bf16.msra.mxu0 %v320
      %344 = vmatmul.bf16.gmra.mxu0 %v191
      %v345 = vpop.f32.mrf.mxu0
      %v346 = vadd.f32 %v285, %v345
      %v347 = vpop.f32.mrf.mxu0
      %348 = vdwg.mxu0
      %v349 = vld [vmem:[#allocation2 + $0x2] sm:$0xf]
      %v350 = vpack.c.bf16 %v349, %v349
      %s351 = scalar_lea.vmem %s1, 128
      %v352 = vld [vmem:[%s351] sm:$0xf]
      %v353 = vld [vmem:[%s351 + $0x4] sm:$0xf]
      %v354 = vld [vmem:[%s351 + $0x8] sm:$0xf]
      %v355 = vld [vmem:[%s351 + $0xc] sm:$0xf]
      %v356 = vld [vmem:[%s351 + $0x10] sm:$0xf]
      %v357 = vld [vmem:[%s351 + $0x14] sm:$0xf]
      %v358 = vld [vmem:[%s351 + $0x18] sm:$0xf]
      %v359 = vld [vmem:[%s351 + $0x1c] sm:$0xf]
      %v360 = vld [vmem:[%s351 + $0x20] sm:$0xf]
      %v361 = vld [vmem:[%s351 + $0x24] sm:$0xf]
      %v362 = vld [vmem:[%s351 + $0x28] sm:$0xf]
      %v363 = vld [vmem:[%s351 + $0x2c] sm:$0xf]
      %v364 = vld [vmem:[%s351 + $0x30] sm:$0xf]
      %v365 = vld [vmem:[%s351 + $0x34] sm:$0xf]
      %v366 = vld [vmem:[%s351 + $0x38] sm:$0xf]
      %v367 = vld [vmem:[%s351 + $0x3c] sm:$0xf]
      %v384 = vunpack.c.l.b16 %v352
      %v385 = vunpack.c.l.b16 %v353
      %v386 = vunpack.c.l.b16 %v354
      %v387 = vunpack.c.l.b16 %v355
      %v388 = vunpack.c.l.b16 %v356
      %v389 = vunpack.c.l.b16 %v357
      %v390 = vunpack.c.l.b16 %v358
      %v391 = vunpack.c.l.b16 %v359
      %v392 = vunpack.c.l.b16 %v360
      %v393 = vunpack.c.l.b16 %v361
      %v394 = vunpack.c.l.b16 %v362
      %v395 = vunpack.c.l.b16 %v363
      %v396 = vunpack.c.l.b16 %v364
      %v397 = vunpack.c.l.b16 %v365
      %v398 = vunpack.c.l.b16 %v366
      %v399 = vunpack.c.l.b16 %v367
      %v400 = vpack.c.b16 %v385, %v384
      %v401 = vpack.c.b16 %v387, %v386
      %v402 = vpack.c.b16 %v389, %v388
      %v403 = vpack.c.b16 %v391, %v390
      %v404 = vpack.c.b16 %v393, %v392
      %v405 = vpack.c.b16 %v395, %v394
      %v406 = vpack.c.b16 %v397, %v396
      %v407 = vpack.c.b16 %v399, %v398
      %416 = vmatpush.bf16.msra.mxu0 %v407
      %417 = vmatpush.bf16.msra.mxu0 %v406
      %418 = vmatpush.bf16.msra.mxu0 %v405
      %419 = vmatpush.bf16.msra.mxu0 %v404
      %420 = vmatpush.bf16.msra.mxu0 %v403
      %421 = vmatpush.bf16.msra.mxu0 %v402
      %422 = vmatpush.bf16.msra.mxu0 %v401
      %423 = vmatpush.bf16.msra.mxu0 %v400
      %424 = vmatmul.bf16.gmra.mxu0 %v350
      %v425 = vpop.f32.mrf.mxu0
      %v426 = vadd.f32 0.0, %v425
      %v427 = vpop.f32.mrf.mxu0
      %428 = vdwg.mxu0
      %v429 = vadd.f32 %v346, %v426
      %v430 = vld [vmem:[%s185] sm:$0xf]
      %v431 = vpack.c.bf16 %v430, %v430
      %s432 = scalar_lea.vmem %s1, 192
      %v433 = vld [vmem:[%s432] sm:$0xf]
      %v434 = vld [vmem:[%s432 + $0x4] sm:$0xf]
      %v435 = vld [vmem:[%s432 + $0x8] sm:$0xf]
      %v436 = vld [vmem:[%s432 + $0xc] sm:$0xf]
      %v437 = vld [vmem:[%s432 + $0x10] sm:$0xf]
      %v438 = vld [vmem:[%s432 + $0x14] sm:$0xf]
      %v439 = vld [vmem:[%s432 + $0x18] sm:$0xf]
      %v440 = vld [vmem:[%s432 + $0x1c] sm:$0xf]
      %v441 = vld [vmem:[%s432 + $0x20] sm:$0xf]
      %v442 = vld [vmem:[%s432 + $0x24] sm:$0xf]
      %v443 = vld [vmem:[%s432 + $0x28] sm:$0xf]
      %v444 = vld [vmem:[%s432 + $0x2c] sm:$0xf]
      %v445 = vld [vmem:[%s432 + $0x30] sm:$0xf]
      %v446 = vld [vmem:[%s432 + $0x34] sm:$0xf]
      %v447 = vld [vmem:[%s432 + $0x38] sm:$0xf]
      %v448 = vld [vmem:[%s432 + $0x3c] sm:$0xf]
      %v465 = vunpack.c.l.b16 %v433
      %v466 = vunpack.c.l.b16 %v434
      %v467 = vunpack.c.l.b16 %v435
      %v468 = vunpack.c.l.b16 %v436
      %v469 = vunpack.c.l.b16 %v437
      %v470 = vunpack.c.l.b16 %v438
      %v471 = vunpack.c.l.b16 %v439
      %v472 = vunpack.c.l.b16 %v440
      %v473 = vunpack.c.l.b16 %v441
      %v474 = vunpack.c.l.b16 %v442
      %v475 = vunpack.c.l.b16 %v443
      %v476 = vunpack.c.l.b16 %v444
      %v477 = vunpack.c.l.b16 %v445
      %v478 = vunpack.c.l.b16 %v446
      %v479 = vunpack.c.l.b16 %v447
      %v480 = vunpack.c.l.b16 %v448
      %v481 = vpack.c.b16 %v466, %v465
      %v482 = vpack.c.b16 %v468, %v467
      %v483 = vpack.c.b16 %v470, %v469
      %v484 = vpack.c.b16 %v472, %v471
      %v485 = vpack.c.b16 %v474, %v473
      %v486 = vpack.c.b16 %v476, %v475
      %v487 = vpack.c.b16 %v478, %v477
      %v488 = vpack.c.b16 %v480, %v479
      %497 = vmatpush.bf16.msra.mxu0 %v488
      %498 = vmatpush.bf16.msra.mxu0 %v487
      %499 = vmatpush.bf16.msra.mxu0 %v486
      %500 = vmatpush.bf16.msra.mxu0 %v485
      %501 = vmatpush.bf16.msra.mxu0 %v484
      %502 = vmatpush.bf16.msra.mxu0 %v483
      %503 = vmatpush.bf16.msra.mxu0 %v482
      %504 = vmatpush.bf16.msra.mxu0 %v481
      %505 = vmatmul.bf16.gmra.mxu0 %v431
      %v506 = vpop.f32.mrf.mxu0
      %v507 = vadd.f32 0.0, %v506
      %v508 = vpop.f32.mrf.mxu0
      %509 = vdwg.mxu0
      %v510 = vadd.f32 %v429, %v507
      %v511 = vld [vmem:[%s185 + $0x1] sm:$0xf]
      %v512 = vpack.c.bf16 %v511, %v511
      %s513 = scalar_lea.vmem %s1, 256
      %v514 = vld [vmem:[%s513] sm:$0xf]
      %v515 = vld [vmem:[%s513 + $0x4] sm:$0xf]
      %v516 = vld [vmem:[%s513 + $0x8] sm:$0xf]
      %v517 = vld [vmem:[%s513 + $0xc] sm:$0xf]
      %v518 = vld [vmem:[%s513 + $0x10] sm:$0xf]
      %v519 = vld [vmem:[%s513 + $0x14] sm:$0xf]
      %v520 = vld [vmem:[%s513 + $0x18] sm:$0xf]
      %v521 = vld [vmem:[%s513 + $0x1c] sm:$0xf]
      %v522 = vld [vmem:[%s513 + $0x20] sm:$0xf]
      %v523 = vld [vmem:[%s513 + $0x24] sm:$0xf]
      %v524 = vld [vmem:[%s513 + $0x28] sm:$0xf]
      %v525 = vld [vmem:[%s513 + $0x2c] sm:$0xf]
      %v526 = vld [vmem:[%s513 + $0x30] sm:$0xf]
      %v527 = vld [vmem:[%s513 + $0x34] sm:$0xf]
      %v528 = vld [vmem:[%s513 + $0x38] sm:$0xf]
      %v529 = vld [vmem:[%s513 + $0x3c] sm:$0xf]
      %v546 = vunpack.c.l.b16 %v514
      %v547 = vunpack.c.l.b16 %v515
      %v548 = vunpack.c.l.b16 %v516
      %v549 = vunpack.c.l.b16 %v517
      %v550 = vunpack.c.l.b16 %v518
      %v551 = vunpack.c.l.b16 %v519
      %v552 = vunpack.c.l.b16 %v520
      %v553 = vunpack.c.l.b16 %v521
      %v554 = vunpack.c.l.b16 %v522
      %v555 = vunpack.c.l.b16 %v523
      %v556 = vunpack.c.l.b16 %v524
      %v557 = vunpack.c.l.b16 %v525
      %v558 = vunpack.c.l.b16 %v526
      %v559 = vunpack.c.l.b16 %v527
      %v560 = vunpack.c.l.b16 %v528
      %v561 = vunpack.c.l.b16 %v529
      %v562 = vpack.c.b16 %v547, %v546
      %v563 = vpack.c.b16 %v549, %v548
      %v564 = vpack.c.b16 %v551, %v550
      %v565 = vpack.c.b16 %v553, %v552
      %v566 = vpack.c.b16 %v555, %v554
      %v567 = vpack.c.b16 %v557, %v556
      %v568 = vpack.c.b16 %v559, %v558
      %v569 = vpack.c.b16 %v561, %v560
      %578 = vmatpush.bf16.msra.mxu0 %v569
      %579 = vmatpush.bf16.msra.mxu0 %v568
      %580 = vmatpush.bf16.msra.mxu0 %v567
      %581 = vmatpush.bf16.msra.mxu0 %v566
      %582 = vmatpush.bf16.msra.mxu0 %v565
      %583 = vmatpush.bf16.msra.mxu0 %v564
      %584 = vmatpush.bf16.msra.mxu0 %v563
      %585 = vmatpush.bf16.msra.mxu0 %v562
      %586 = vmatmul.bf16.gmra.mxu0 %v512
      %v587 = vpop.f32.mrf.mxu0
      %v588 = vadd.f32 0.0, %v587
      %v589 = vpop.f32.mrf.mxu0
      %590 = vdwg.mxu0
      %v591 = vadd.f32 %v510, %v588
      %v592 = vld [vmem:[%s185 + $0x2] sm:$0xf]
      %v593 = vpack.c.bf16 %v592, %v592
      %s594 = scalar_lea.vmem %s1, 320
      %v595 = vld [vmem:[%s594] sm:$0xf]
      %v596 = vld [vmem:[%s594 + $0x4] sm:$0xf]
      %v597 = vld [vmem:[%s594 + $0x8] sm:$0xf]
      %v598 = vld [vmem:[%s594 + $0xc] sm:$0xf]
      %v599 = vld [vmem:[%s594 + $0x10] sm:$0xf]
      %v600 = vld [vmem:[%s594 + $0x14] sm:$0xf]
      %v601 = vld [vmem:[%s594 + $0x18] sm:$0xf]
      %v602 = vld [vmem:[%s594 + $0x1c] sm:$0xf]
      %v603 = vld [vmem:[%s594 + $0x20] sm:$0xf]
      %v604 = vld [vmem:[%s594 + $0x24] sm:$0xf]
      %v605 = vld [vmem:[%s594 + $0x28] sm:$0xf]
      %v606 = vld [vmem:[%s594 + $0x2c] sm:$0xf]
      %v607 = vld [vmem:[%s594 + $0x30] sm:$0xf]
      %v608 = vld [vmem:[%s594 + $0x34] sm:$0xf]
      %v609 = vld [vmem:[%s594 + $0x38] sm:$0xf]
      %v610 = vld [vmem:[%s594 + $0x3c] sm:$0xf]
      %v627 = vunpack.c.l.b16 %v595
      %v628 = vunpack.c.l.b16 %v596
      %v629 = vunpack.c.l.b16 %v597
      %v630 = vunpack.c.l.b16 %v598
      %v631 = vunpack.c.l.b16 %v599
      %v632 = vunpack.c.l.b16 %v600
      %v633 = vunpack.c.l.b16 %v601
      %v634 = vunpack.c.l.b16 %v602
      %v635 = vunpack.c.l.b16 %v603
      %v636 = vunpack.c.l.b16 %v604
      %v637 = vunpack.c.l.b16 %v605
      %v638 = vunpack.c.l.b16 %v606
      %v639 = vunpack.c.l.b16 %v607
      %v640 = vunpack.c.l.b16 %v608
      %v641 = vunpack.c.l.b16 %v609
      %v642 = vunpack.c.l.b16 %v610
      %v643 = vpack.c.b16 %v628, %v627
      %v644 = vpack.c.b16 %v630, %v629
      %v645 = vpack.c.b16 %v632, %v631
      %v646 = vpack.c.b16 %v634, %v633
      %v647 = vpack.c.b16 %v636, %v635
      %v648 = vpack.c.b16 %v638, %v637
      %v649 = vpack.c.b16 %v640, %v639
      %v650 = vpack.c.b16 %v642, %v641
      %659 = vmatpush.bf16.msra.mxu0 %v650
      %660 = vmatpush.bf16.msra.mxu0 %v649
      %661 = vmatpush.bf16.msra.mxu0 %v648
      %662 = vmatpush.bf16.msra.mxu0 %v647
      %663 = vmatpush.bf16.msra.mxu0 %v646
      %664 = vmatpush.bf16.msra.mxu0 %v645
      %665 = vmatpush.bf16.msra.mxu0 %v644
      %666 = vmatpush.bf16.msra.mxu0 %v643
      %667 = vmatmul.bf16.gmra.mxu0 %v593
      %v668 = vpop.f32.mrf.mxu0
      %v669 = vadd.f32 0.0, %v668
      %v670 = vpop.f32.mrf.mxu0
      %671 = vdwg.mxu0
      %v672 = vadd.f32 %v591, %v669
      %s673 = scalar_lea.vmem [#allocation2], 16
      %v674 = vld [vmem:[%s673] sm:$0xf]
      %v675 = vpack.c.bf16 %v674, %v674
      %s676 = scalar_lea.vmem %s1, 384
      %v677 = vld [vmem:[%s676] sm:$0xf]
      %v678 = vld [vmem:[%s676 + $0x4] sm:$0xf]
      %v679 = vld [vmem:[%s676 + $0x8] sm:$0xf]
      %v680 = vld [vmem:[%s676 + $0xc] sm:$0xf]
      %v681 = vld [vmem:[%s676 + $0x10] sm:$0xf]
      %v682 = vld [vmem:[%s676 + $0x14] sm:$0xf]
      %v683 = vld [vmem:[%s676 + $0x18] sm:$0xf]
      %v684 = vld [vmem:[%s676 + $0x1c] sm:$0xf]
      %v685 = vld [vmem:[%s676 + $0x20] sm:$0xf]
      %v686 = vld [vmem:[%s676 + $0x24] sm:$0xf]
      %v687 = vld [vmem:[%s676 + $0x28] sm:$0xf]
      %v688 = vld [vmem:[%s676 + $0x2c] sm:$0xf]
      %v689 = vld [vmem:[%s676 + $0x30] sm:$0xf]
      %v690 = vld [vmem:[%s676 + $0x34] sm:$0xf]
      %v691 = vld [vmem:[%s676 + $0x38] sm:$0xf]
      %v692 = vld [vmem:[%s676 + $0x3c] sm:$0xf]
      %v709 = vunpack.c.l.b16 %v677
      %v710 = vunpack.c.l.b16 %v678
      %v711 = vunpack.c.l.b16 %v679
      %v712 = vunpack.c.l.b16 %v680
      %v713 = vunpack.c.l.b16 %v681
      %v714 = vunpack.c.l.b16 %v682
      %v715 = vunpack.c.l.b16 %v683
      %v716 = vunpack.c.l.b16 %v684
      %v717 = vunpack.c.l.b16 %v685
      %v718 = vunpack.c.l.b16 %v686
      %v719 = vunpack.c.l.b16 %v687
      %v720 = vunpack.c.l.b16 %v688
      %v721 = vunpack.c.l.b16 %v689
      %v722 = vunpack.c.l.b16 %v690
      %v723 = vunpack.c.l.b16 %v691
      %v724 = vunpack.c.l.b16 %v692
      %v725 = vpack.c.b16 %v710, %v709
      %v726 = vpack.c.b16 %v712, %v711
      %v727 = vpack.c.b16 %v714, %v713
      %v728 = vpack.c.b16 %v716, %v715
      %v729 = vpack.c.b16 %v718, %v717
      %v730 = vpack.c.b16 %v720, %v719
      %v731 = vpack.c.b16 %v722, %v721
      %v732 = vpack.c.b16 %v724, %v723
      %741 = vmatpush.bf16.msra.mxu0 %v732
      %742 = vmatpush.bf16.msra.mxu0 %v731
      %743 = vmatpush.bf16.msra.mxu0 %v730
      %744 = vmatpush.bf16.msra.mxu0 %v729
      %745 = vmatpush.bf16.msra.mxu0 %v728
      %746 = vmatpush.bf16.msra.mxu0 %v727
      %747 = vmatpush.bf16.msra.mxu0 %v726
      %748 = vmatpush.bf16.msra.mxu0 %v725
      %749 = vmatmul.bf16.gmra.mxu0 %v675
      %v750 = vpop.f32.mrf.mxu0
      %v751 = vadd.f32 0.0, %v750
      %v752 = vpop.f32.mrf.mxu0
      %753 = vdwg.mxu0
      %v754 = vadd.f32 %v672, %v751
      %v755 = vld [vmem:[%s673 + $0x1] sm:$0xf]
      %v756 = vpack.c.bf16 %v755, %v755
      %s757 = scalar_lea.vmem %s1, 448
      %v758 = vld [vmem:[%s757] sm:$0xf]
      %v759 = vld [vmem:[%s757 + $0x4] sm:$0xf]
      %v760 = vld [vmem:[%s757 + $0x8] sm:$0xf]
      %v761 = vld [vmem:[%s757 + $0xc] sm:$0xf]
      %v762 = vld [vmem:[%s757 + $0x10] sm:$0xf]
      %v763 = vld [vmem:[%s757 + $0x14] sm:$0xf]
      %v764 = vld [vmem:[%s757 + $0x18] sm:$0xf]
      %v765 = vld [vmem:[%s757 + $0x1c] sm:$0xf]
      %v766 = vld [vmem:[%s757 + $0x20] sm:$0xf]
      %v767 = vld [vmem:[%s757 + $0x24] sm:$0xf]
      %v768 = vld [vmem:[%s757 + $0x28] sm:$0xf]
      %v769 = vld [vmem:[%s757 + $0x2c] sm:$0xf]
      %v770 = vld [vmem:[%s757 + $0x30] sm:$0xf]
      %v771 = vld [vmem:[%s757 + $0x34] sm:$0xf]
      %v772 = vld [vmem:[%s757 + $0x38] sm:$0xf]
      %v773 = vld [vmem:[%s757 + $0x3c] sm:$0xf]
      %v790 = vunpack.c.l.b16 %v758
      %v791 = vunpack.c.l.b16 %v759
      %v792 = vunpack.c.l.b16 %v760
      %v793 = vunpack.c.l.b16 %v761
      %v794 = vunpack.c.l.b16 %v762
      %v795 = vunpack.c.l.b16 %v763
      %v796 = vunpack.c.l.b16 %v764
      %v797 = vunpack.c.l.b16 %v765
      %v798 = vunpack.c.l.b16 %v766
      %v799 = vunpack.c.l.b16 %v767
      %v800 = vunpack.c.l.b16 %v768
      %v801 = vunpack.c.l.b16 %v769
      %v802 = vunpack.c.l.b16 %v770
      %v803 = vunpack.c.l.b16 %v771
      %v804 = vunpack.c.l.b16 %v772
      %v805 = vunpack.c.l.b16 %v773
      %v806 = vpack.c.b16 %v791, %v790
      %v807 = vpack.c.b16 %v793, %v792
      %v808 = vpack.c.b16 %v795, %v794
      %v809 = vpack.c.b16 %v797, %v796
      %v810 = vpack.c.b16 %v799, %v798
      %v811 = vpack.c.b16 %v801, %v800
      %v812 = vpack.c.b16 %v803, %v802
      %v813 = vpack.c.b16 %v805, %v804
      %822 = vmatpush.bf16.msra.mxu0 %v813
      %823 = vmatpush.bf16.msra.mxu0 %v812
      %824 = vmatpush.bf16.msra.mxu0 %v811
      %825 = vmatpush.bf16.msra.mxu0 %v810
      %826 = vmatpush.bf16.msra.mxu0 %v809
      %827 = vmatpush.bf16.msra.mxu0 %v808
      %828 = vmatpush.bf16.msra.mxu0 %v807
      %829 = vmatpush.bf16.msra.mxu0 %v806
      %830 = vmatmul.bf16.gmra.mxu0 %v756
      %v831 = vpop.f32.mrf.mxu0
      %v832 = vadd.f32 0.0, %v831
      %v833 = vpop.f32.mrf.mxu0
      %834 = vdwg.mxu0
      %v835 = vadd.f32 %v754, %v832
      %v836 = vld [vmem:[%s673 + $0x2] sm:$0xf]
      %v837 = vpack.c.bf16 %v836, %v836
      %s838 = scalar_lea.vmem %s1, 512
      %v839 = vld [vmem:[%s838] sm:$0xf]
      %v840 = vld [vmem:[%s838 + $0x4] sm:$0xf]
      %v841 = vld [vmem:[%s838 + $0x8] sm:$0xf]
      %v842 = vld [vmem:[%s838 + $0xc] sm:$0xf]
      %v843 = vld [vmem:[%s838 + $0x10] sm:$0xf]
      %v844 = vld [vmem:[%s838 + $0x14] sm:$0xf]
      %v845 = vld [vmem:[%s838 + $0x18] sm:$0xf]
      %v846 = vld [vmem:[%s838 + $0x1c] sm:$0xf]
      %v847 = vld [vmem:[%s838 + $0x20] sm:$0xf]
      %v848 = vld [vmem:[%s838 + $0x24] sm:$0xf]
      %v849 = vld [vmem:[%s838 + $0x28] sm:$0xf]
      %v850 = vld [vmem:[%s838 + $0x2c] sm:$0xf]
      %v851 = vld [vmem:[%s838 + $0x30] sm:$0xf]
      %v852 = vld [vmem:[%s838 + $0x34] sm:$0xf]
      %v853 = vld [vmem:[%s838 + $0x38] sm:$0xf]
      %v854 = vld [vmem:[%s838 + $0x3c] sm:$0xf]
      %v871 = vunpack.c.l.b16 %v839
      %v872 = vunpack.c.l.b16 %v840
      %v873 = vunpack.c.l.b16 %v841
      %v874 = vunpack.c.l.b16 %v842
      %v875 = vunpack.c.l.b16 %v843
      %v876 = vunpack.c.l.b16 %v844
      %v877 = vunpack.c.l.b16 %v845
      %v878 = vunpack.c.l.b16 %v846
      %v879 = vunpack.c.l.b16 %v847
      %v880 = vunpack.c.l.b16 %v848
      %v881 = vunpack.c.l.b16 %v849
      %v882 = vunpack.c.l.b16 %v850
      %v883 = vunpack.c.l.b16 %v851
      %v884 = vunpack.c.l.b16 %v852
      %v885 = vunpack.c.l.b16 %v853
      %v886 = vunpack.c.l.b16 %v854
      %v887 = vpack.c.b16 %v872, %v871
      %v888 = vpack.c.b16 %v874, %v873
      %v889 = vpack.c.b16 %v876, %v875
      %v890 = vpack.c.b16 %v878, %v877
      %v891 = vpack.c.b16 %v880, %v879
      %v892 = vpack.c.b16 %v882, %v881
      %v893 = vpack.c.b16 %v884, %v883
      %v894 = vpack.c.b16 %v886, %v885
      %903 = vmatpush.bf16.msra.mxu0 %v894
      %904 = vmatpush.bf16.msra.mxu0 %v893
      %905 = vmatpush.bf16.msra.mxu0 %v892
      %906 = vmatpush.bf16.msra.mxu0 %v891
      %907 = vmatpush.bf16.msra.mxu0 %v890
      %908 = vmatpush.bf16.msra.mxu0 %v889
      %909 = vmatpush.bf16.msra.mxu0 %v888
      %910 = vmatpush.bf16.msra.mxu0 %v887
      %911 = vmatmul.bf16.gmra.mxu0 %v837
      %v912 = vpop.f32.mrf.mxu0
      %v913 = vadd.f32 0.0, %v912
      %v914 = vpop.f32.mrf.mxu0
      %915 = vdwg.mxu0
      %v916 = vadd.f32 %v835, %v913
      %v917 = vld [vmem:[%s2] sm:$0x1]
      %v919 = vperm.slane %v917, 0
      %v921 = vadd.f32 %v916, %v919
      %v922 = vmax.f32 %v921, 0.0
      %v923 = vpack.c.bf16 %v922, %v922
      %924 = vst [vmem:[%s170] sm:$0x3] %v923
      %v925 = vld [vmem:[%s185] sm:$0xf]
      %v926 = vpack.c.bf16 %v925, %v925
      %v927 = vld [vmem:[%s1] sm:$0xf]
      %v928 = vld [vmem:[%s1 + $0x4] sm:$0xf]
      %v929 = vld [vmem:[%s1 + $0x8] sm:$0xf]
      %v930 = vld [vmem:[%s1 + $0xc] sm:$0xf]
      %v931 = vld [vmem:[%s1 + $0x10] sm:$0xf]
      %v932 = vld [vmem:[%s1 + $0x14] sm:$0xf]
      %v933 = vld [vmem:[%s1 + $0x18] sm:$0xf]
      %v934 = vld [vmem:[%s1 + $0x1c] sm:$0xf]
      %v935 = vld [vmem:[%s1 + $0x20] sm:$0xf]
      %v936 = vld [vmem:[%s1 + $0x24] sm:$0xf]
      %v937 = vld [vmem:[%s1 + $0x28] sm:$0xf]
      %v938 = vld [vmem:[%s1 + $0x2c] sm:$0xf]
      %v939 = vld [vmem:[%s1 + $0x30] sm:$0xf]
      %v940 = vld [vmem:[%s1 + $0x34] sm:$0xf]
      %v941 = vld [vmem:[%s1 + $0x38] sm:$0xf]
      %v942 = vld [vmem:[%s1 + $0x3c] sm:$0xf]
      %v943 = vld [vmem:[%s185 + $0x1] sm:$0xf]
      %v944 = vpack.c.bf16 %v943, %v943
      %v945 = vld [vmem:[%s210] sm:$0xf]
      %v946 = vld [vmem:[%s210 + $0x4] sm:$0xf]
      %v947 = vld [vmem:[%s210 + $0x8] sm:$0xf]
      %v948 = vld [vmem:[%s210 + $0xc] sm:$0xf]
      %v949 = vld [vmem:[%s210 + $0x10] sm:$0xf]
      %v950 = vld [vmem:[%s210 + $0x14] sm:$0xf]
      %v951 = vld [vmem:[%s210 + $0x18] sm:$0xf]
      %v952 = vld [vmem:[%s210 + $0x1c] sm:$0xf]
      %v953 = vld [vmem:[%s210 + $0x20] sm:$0xf]
      %v954 = vld [vmem:[%s210 + $0x24] sm:$0xf]
      %v955 = vld [vmem:[%s210 + $0x28] sm:$0xf]
      %v956 = vld [vmem:[%s210 + $0x2c] sm:$0xf]
      %v957 = vld [vmem:[%s210 + $0x30] sm:$0xf]
      %v958 = vld [vmem:[%s210 + $0x34] sm:$0xf]
      %v959 = vld [vmem:[%s210 + $0x38] sm:$0xf]
      %v960 = vld [vmem:[%s210 + $0x3c] sm:$0xf]
      %v977 = vunpack.c.l.b16 %v945
      %v978 = vunpack.c.l.b16 %v946
      %v979 = vunpack.c.l.b16 %v947
      %v980 = vunpack.c.l.b16 %v948
      %v981 = vunpack.c.l.b16 %v949
      %v982 = vunpack.c.l.b16 %v950
      %v983 = vunpack.c.l.b16 %v951
      %v984 = vunpack.c.l.b16 %v952
      %v985 = vunpack.c.l.b16 %v953
      %v986 = vunpack.c.l.b16 %v954
      %v987 = vunpack.c.l.b16 %v955
      %v988 = vunpack.c.l.b16 %v956
      %v989 = vunpack.c.l.b16 %v957
      %v990 = vunpack.c.l.b16 %v958
      %v991 = vunpack.c.l.b16 %v959
      %v992 = vunpack.c.l.b16 %v960
      %v993 = vpack.c.b16 %v978, %v977
      %v994 = vpack.c.b16 %v980, %v979
      %v995 = vpack.c.b16 %v982, %v981
      %v996 = vpack.c.b16 %v984, %v983
      %v997 = vpack.c.b16 %v986, %v985
      %v998 = vpack.c.b16 %v988, %v987
      %v999 = vpack.c.b16 %v990, %v989
      %v1000 = vpack.c.b16 %v992, %v991
      %1009 = vmatpush.bf16.msra.mxu0 %v1000
      %1010 = vmatpush.bf16.msra.mxu0 %v999
      %1011 = vmatpush.bf16.msra.mxu0 %v998
      %1012 = vmatpush.bf16.msra.mxu0 %v997
      %1013 = vmatpush.bf16.msra.mxu0 %v996
      %1014 = vmatpush.bf16.msra.mxu0 %v995
      %1015 = vmatpush.bf16.msra.mxu0 %v994
      %1016 = vmatpush.bf16.msra.mxu0 %v993
      %1017 = vmatmul.bf16.gmra.mxu0 %v944
      %v1018 = vpop.f32.mrf.mxu0
      %v1019 = vadd.f32 0.0, %v1018
      %v1020 = vpop.f32.mrf.mxu0
      %1021 = vdwg.mxu0
      %v1038 = vunpack.c.l.b16 %v927
      %v1039 = vunpack.c.l.b16 %v928
      %v1040 = vunpack.c.l.b16 %v929
      %v1041 = vunpack.c.l.b16 %v930
      %v1042 = vunpack.c.l.b16 %v931
      %v1043 = vunpack.c.l.b16 %v932
      %v1044 = vunpack.c.l.b16 %v933
      %v1045 = vunpack.c.l.b16 %v934
      %v1046 = vunpack.c.l.b16 %v935
      %v1047 = vunpack.c.l.b16 %v936
      %v1048 = vunpack.c.l.b16 %v937
      %v1049 = vunpack.c.l.b16 %v938
      %v1050 = vunpack.c.l.b16 %v939
      %v1051 = vunpack.c.l.b16 %v940
      %v1052 = vunpack.c.l.b16 %v941
      %v1053 = vunpack.c.l.b16 %v942
      %v1054 = vpack.c.b16 %v1039, %v1038
      %v1055 = vpack.c.b16 %v1041, %v1040
      %v1056 = vpack.c.b16 %v1043, %v1042
      %v1057 = vpack.c.b16 %v1045, %v1044
      %v1058 = vpack.c.b16 %v1047, %v1046
      %v1059 = vpack.c.b16 %v1049, %v1048
      %v1060 = vpack.c.b16 %v1051, %v1050
      %v1061 = vpack.c.b16 %v1053, %v1052
      %1070 = vmatpush.bf16.msra.mxu0 %v1061
      %1071 = vmatpush.bf16.msra.mxu0 %v1060
      %1072 = vmatpush.bf16.msra.mxu0 %v1059
      %1073 = vmatpush.bf16.msra.mxu0 %v1058
      %1074 = vmatpush.bf16.msra.mxu0 %v1057
      %1075 = vmatpush.bf16.msra.mxu0 %v1056
      %1076 = vmatpush.bf16.msra.mxu0 %v1055
      %1077 = vmatpush.bf16.msra.mxu0 %v1054
      %1078 = vmatmul.bf16.gmra.mxu0 %v926
      %v1079 = vpop.f32.mrf.mxu0
      %v1080 = vadd.f32 %v1019, %v1079
      %v1081 = vpop.f32.mrf.mxu0
      %1082 = vdwg.mxu0
      %v1083 = vld [vmem:[%s185 + $0x2] sm:$0xf]
      %v1084 = vpack.c.bf16 %v1083, %v1083
      %v1085 = vld [vmem:[%s351] sm:$0xf]
      %v1086 = vld [vmem:[%s351 + $0x4] sm:$0xf]
      %v1087 = vld [vmem:[%s351 + $0x8] sm:$0xf]
      %v1088 = vld [vmem:[%s351 + $0xc] sm:$0xf]
      %v1089 = vld [vmem:[%s351 + $0x10] sm:$0xf]
      %v1090 = vld [vmem:[%s351 + $0x14] sm:$0xf]
      %v1091 = vld [vmem:[%s351 + $0x18] sm:$0xf]
      %v1092 = vld [vmem:[%s351 + $0x1c] sm:$0xf]
      %v1093 = vld [vmem:[%s351 + $0x20] sm:$0xf]
      %v1094 = vld [vmem:[%s351 + $0x24] sm:$0xf]
      %v1095 = vld [vmem:[%s351 + $0x28] sm:$0xf]
      %v1096 = vld [vmem:[%s351 + $0x2c] sm:$0xf]
      %v1097 = vld [vmem:[%s351 + $0x30] sm:$0xf]
      %v1098 = vld [vmem:[%s351 + $0x34] sm:$0xf]
      %v1099 = vld [vmem:[%s351 + $0x38] sm:$0xf]
      %v1100 = vld [vmem:[%s351 + $0x3c] sm:$0xf]
      %v1117 = vunpack.c.l.b16 %v1085
      %v1118 = vunpack.c.l.b16 %v1086
      %v1119 = vunpack.c.l.b16 %v1087
      %v1120 = vunpack.c.l.b16 %v1088
      %v1121 = vunpack.c.l.b16 %v1089
      %v1122 = vunpack.c.l.b16 %v1090
      %v1123 = vunpack.c.l.b16 %v1091
      %v1124 = vunpack.c.l.b16 %v1092
      %v1125 = vunpack.c.l.b16 %v1093
      %v1126 = vunpack.c.l.b16 %v1094
      %v1127 = vunpack.c.l.b16 %v1095
      %v1128 = vunpack.c.l.b16 %v1096
      %v1129 = vunpack.c.l.b16 %v1097
      %v1130 = vunpack.c.l.b16 %v1098
      %v1131 = vunpack.c.l.b16 %v1099
      %v1132 = vunpack.c.l.b16 %v1100
      %v1133 = vpack.c.b16 %v1118, %v1117
      %v1134 = vpack.c.b16 %v1120, %v1119
      %v1135 = vpack.c.b16 %v1122, %v1121
      %v1136 = vpack.c.b16 %v1124, %v1123
      %v1137 = vpack.c.b16 %v1126, %v1125
      %v1138 = vpack.c.b16 %v1128, %v1127
      %v1139 = vpack.c.b16 %v1130, %v1129
      %v1140 = vpack.c.b16 %v1132, %v1131
      %1149 = vmatpush.bf16.msra.mxu0 %v1140
      %1150 = vmatpush.bf16.msra.mxu0 %v1139
      %1151 = vmatpush.bf16.msra.mxu0 %v1138
      %1152 = vmatpush.bf16.msra.mxu0 %v1137
      %1153 = vmatpush.bf16.msra.mxu0 %v1136
      %1154 = vmatpush.bf16.msra.mxu0 %v1135
      %1155 = vmatpush.bf16.msra.mxu0 %v1134
      %1156 = vmatpush.bf16.msra.mxu0 %v1133
      %1157 = vmatmul.bf16.gmra.mxu0 %v1084
      %v1158 = vpop.f32.mrf.mxu0
      %v1159 = vadd.f32 0.0, %v1158
      %v1160 = vpop.f32.mrf.mxu0
      %1161 = vdwg.mxu0
      %v1162 = vadd.f32 %v1080, %v1159
      %v1163 = vld [vmem:[%s673] sm:$0xf]
      %v1164 = vpack.c.bf16 %v1163, %v1163
      %v1165 = vld [vmem:[%s432] sm:$0xf]
      %v1166 = vld [vmem:[%s432 + $0x4] sm:$0xf]
      %v1167 = vld [vmem:[%s432 + $0x8] sm:$0xf]
      %v1168 = vld [vmem:[%s432 + $0xc] sm:$0xf]
      %v1169 = vld [vmem:[%s432 + $0x10] sm:$0xf]
      %v1170 = vld [vmem:[%s432 + $0x14] sm:$0xf]
      %v1171 = vld [vmem:[%s432 + $0x18] sm:$0xf]
      %v1172 = vld [vmem:[%s432 + $0x1c] sm:$0xf]
      %v1173 = vld [vmem:[%s432 + $0x20] sm:$0xf]
      %v1174 = vld [vmem:[%s432 + $0x24] sm:$0xf]
      %v1175 = vld [vmem:[%s432 + $0x28] sm:$0xf]
      %v1176 = vld [vmem:[%s432 + $0x2c] sm:$0xf]
      %v1177 = vld [vmem:[%s432 + $0x30] sm:$0xf]
      %v1178 = vld [vmem:[%s432 + $0x34] sm:$0xf]
      %v1179 = vld [vmem:[%s432 + $0x38] sm:$0xf]
      %v1180 = vld [vmem:[%s432 + $0x3c] sm:$0xf]
      %v1197 = vunpack.c.l.b16 %v1165
      %v1198 = vunpack.c.l.b16 %v1166
      %v1199 = vunpack.c.l.b16 %v1167
      %v1200 = vunpack.c.l.b16 %v1168
      %v1201 = vunpack.c.l.b16 %v1169
      %v1202 = vunpack.c.l.b16 %v1170
      %v1203 = vunpack.c.l.b16 %v1171
      %v1204 = vunpack.c.l.b16 %v1172
      %v1205 = vunpack.c.l.b16 %v1173
      %v1206 = vunpack.c.l.b16 %v1174
      %v1207 = vunpack.c.l.b16 %v1175
      %v1208 = vunpack.c.l.b16 %v1176
      %v1209 = vunpack.c.l.b16 %v1177
      %v1210 = vunpack.c.l.b16 %v1178
      %v1211 = vunpack.c.l.b16 %v1179
      %v1212 = vunpack.c.l.b16 %v1180
      %v1213 = vpack.c.b16 %v1198, %v1197
      %v1214 = vpack.c.b16 %v1200, %v1199
      %v1215 = vpack.c.b16 %v1202, %v1201
      %v1216 = vpack.c.b16 %v1204, %v1203
      %v1217 = vpack.c.b16 %v1206, %v1205
      %v1218 = vpack.c.b16 %v1208, %v1207
      %v1219 = vpack.c.b16 %v1210, %v1209
      %v1220 = vpack.c.b16 %v1212, %v1211
      %1229 = vmatpush.bf16.msra.mxu0 %v1220
      %1230 = vmatpush.bf16.msra.mxu0 %v1219
      %1231 = vmatpush.bf16.msra.mxu0 %v1218
      %1232 = vmatpush.bf16.msra.mxu0 %v1217
      %1233 = vmatpush.bf16.msra.mxu0 %v1216
      %1234 = vmatpush.bf16.msra.mxu0 %v1215
      %1235 = vmatpush.bf16.msra.mxu0 %v1214
      %1236 = vmatpush.bf16.msra.mxu0 %v1213
      %1237 = vmatmul.bf16.gmra.mxu0 %v1164
      %v1238 = vpop.f32.mrf.mxu0
      %v1239 = vadd.f32 0.0, %v1238
      %v1240 = vpop.f32.mrf.mxu0
      %1241 = vdwg.mxu0
      %v1242 = vadd.f32 %v1162, %v1239
      %v1243 = vld [vmem:[%s673 + $0x1] sm:$0xf]
      %v1244 = vpack.c.bf16 %v1243, %v1243
      %v1245 = vld [vmem:[%s513] sm:$0xf]
      %v1246 = vld [vmem:[%s513 + $0x4] sm:$0xf]
      %v1247 = vld [vmem:[%s513 + $0x8] sm:$0xf]
      %v1248 = vld [vmem:[%s513 + $0xc] sm:$0xf]
      %v1249 = vld [vmem:[%s513 + $0x10] sm:$0xf]
      %v1250 = vld [vmem:[%s513 + $0x14] sm:$0xf]
      %v1251 = vld [vmem:[%s513 + $0x18] sm:$0xf]
      %v1252 = vld [vmem:[%s513 + $0x1c] sm:$0xf]
      %v1253 = vld [vmem:[%s513 + $0x20] sm:$0xf]
      %v1254 = vld [vmem:[%s513 + $0x24] sm:$0xf]
      %v1255 = vld [vmem:[%s513 + $0x28] sm:$0xf]
      %v1256 = vld [vmem:[%s513 + $0x2c] sm:$0xf]
      %v1257 = vld [vmem:[%s513 + $0x30] sm:$0xf]
      %v1258 = vld [vmem:[%s513 + $0x34] sm:$0xf]
      %v1259 = vld [vmem:[%s513 + $0x38] sm:$0xf]
      %v1260 = vld [vmem:[%s513 + $0x3c] sm:$0xf]
      %v1277 = vunpack.c.l.b16 %v1245
      %v1278 = vunpack.c.l.b16 %v1246
      %v1279 = vunpack.c.l.b16 %v1247
      %v1280 = vunpack.c.l.b16 %v1248
      %v1281 = vunpack.c.l.b16 %v1249
      %v1282 = vunpack.c.l.b16 %v1250
      %v1283 = vunpack.c.l.b16 %v1251
      %v1284 = vunpack.c.l.b16 %v1252
      %v1285 = vunpack.c.l.b16 %v1253
      %v1286 = vunpack.c.l.b16 %v1254
      %v1287 = vunpack.c.l.b16 %v1255
      %v1288 = vunpack.c.l.b16 %v1256
      %v1289 = vunpack.c.l.b16 %v1257
      %v1290 = vunpack.c.l.b16 %v1258
      %v1291 = vunpack.c.l.b16 %v1259
      %v1292 = vunpack.c.l.b16 %v1260
      %v1293 = vpack.c.b16 %v1278, %v1277
      %v1294 = vpack.c.b16 %v1280, %v1279
      %v1295 = vpack.c.b16 %v1282, %v1281
      %v1296 = vpack.c.b16 %v1284, %v1283
      %v1297 = vpack.c.b16 %v1286, %v1285
      %v1298 = vpack.c.b16 %v1288, %v1287
      %v1299 = vpack.c.b16 %v1290, %v1289
      %v1300 = vpack.c.b16 %v1292, %v1291
      %1309 = vmatpush.bf16.msra.mxu0 %v1300
      %1310 = vmatpush.bf16.msra.mxu0 %v1299
      %1311 = vmatpush.bf16.msra.mxu0 %v1298
      %1312 = vmatpush.bf16.msra.mxu0 %v1297
      %1313 = vmatpush.bf16.msra.mxu0 %v1296
      %1314 = vmatpush.bf16.msra.mxu0 %v1295
      %1315 = vmatpush.bf16.msra.mxu0 %v1294
      %1316 = vmatpush.bf16.msra.mxu0 %v1293
      %1317 = vmatmul.bf16.gmra.mxu0 %v1244
      %v1318 = vpop.f32.mrf.mxu0
      %v1319 = vadd.f32 0.0, %v1318
      %v1320 = vpop.f32.mrf.mxu0
      %1321 = vdwg.mxu0
      %v1322 = vadd.f32 %v1242, %v1319
      %v1323 = vld [vmem:[%s673 + $0x2] sm:$0xf]
      %v1324 = vpack.c.bf16 %v1323, %v1323
      %v1325 = vld [vmem:[%s594] sm:$0xf]
      %v1326 = vld [vmem:[%s594 + $0x4] sm:$0xf]
      %v1327 = vld [vmem:[%s594 + $0x8] sm:$0xf]
      %v1328 = vld [vmem:[%s594 + $0xc] sm:$0xf]
      %v1329 = vld [vmem:[%s594 + $0x10] sm:$0xf]
      %v1330 = vld [vmem:[%s594 + $0x14] sm:$0xf]
      %v1331 = vld [vmem:[%s594 + $0x18] sm:$0xf]
      %v1332 = vld [vmem:[%s594 + $0x1c] sm:$0xf]
      %v1333 = vld [vmem:[%s594 + $0x20] sm:$0xf]
      %v1334 = vld [vmem:[%s594 + $0x24] sm:$0xf]
      %v1335 = vld [vmem:[%s594 + $0x28] sm:$0xf]
      %v1336 = vld [vmem:[%s594 + $0x2c] sm:$0xf]
      %v1337 = vld [vmem:[%s594 + $0x30] sm:$0xf]
      %v1338 = vld [vmem:[%s594 + $0x34] sm:$0xf]
      %v1339 = vld [vmem:[%s594 + $0x38] sm:$0xf]
      %v1340 = vld [vmem:[%s594 + $0x3c] sm:$0xf]
      %v1357 = vunpack.c.l.b16 %v1325
      %v1358 = vunpack.c.l.b16 %v1326
      %v1359 = vunpack.c.l.b16 %v1327
      %v1360 = vunpack.c.l.b16 %v1328
      %v1361 = vunpack.c.l.b16 %v1329
      %v1362 = vunpack.c.l.b16 %v1330
      %v1363 = vunpack.c.l.b16 %v1331
      %v1364 = vunpack.c.l.b16 %v1332
      %v1365 = vunpack.c.l.b16 %v1333
      %v1366 = vunpack.c.l.b16 %v1334
      %v1367 = vunpack.c.l.b16 %v1335
      %v1368 = vunpack.c.l.b16 %v1336
      %v1369 = vunpack.c.l.b16 %v1337
      %v1370 = vunpack.c.l.b16 %v1338
      %v1371 = vunpack.c.l.b16 %v1339
      %v1372 = vunpack.c.l.b16 %v1340
      %v1373 = vpack.c.b16 %v1358, %v1357
      %v1374 = vpack.c.b16 %v1360, %v1359
      %v1375 = vpack.c.b16 %v1362, %v1361
      %v1376 = vpack.c.b16 %v1364, %v1363
      %v1377 = vpack.c.b16 %v1366, %v1365
      %v1378 = vpack.c.b16 %v1368, %v1367
      %v1379 = vpack.c.b16 %v1370, %v1369
      %v1380 = vpack.c.b16 %v1372, %v1371
      %1389 = vmatpush.bf16.msra.mxu0 %v1380
      %1390 = vmatpush.bf16.msra.mxu0 %v1379
      %1391 = vmatpush.bf16.msra.mxu0 %v1378
      %1392 = vmatpush.bf16.msra.mxu0 %v1377
      %1393 = vmatpush.bf16.msra.mxu0 %v1376
      %1394 = vmatpush.bf16.msra.mxu0 %v1375
      %1395 = vmatpush.bf16.msra.mxu0 %v1374
      %1396 = vmatpush.bf16.msra.mxu0 %v1373
      %1397 = vmatmul.bf16.gmra.mxu0 %v1324
      %v1398 = vpop.f32.mrf.mxu0
      %v1399 = vadd.f32 0.0, %v1398
      %v1400 = vpop.f32.mrf.mxu0
      %1401 = vdwg.mxu0
      %v1402 = vadd.f32 %v1322, %v1399
      %s1403 = scalar_lea.vmem [#allocation2], 24
      %v1404 = vld [vmem:[%s1403] sm:$0xf]
      %v1405 = vpack.c.bf16 %v1404, %v1404
      %v1406 = vld [vmem:[%s676] sm:$0xf]
      %v1407 = vld [vmem:[%s676 + $0x4] sm:$0xf]
      %v1408 = vld [vmem:[%s676 + $0x8] sm:$0xf]
      %v1409 = vld [vmem:[%s676 + $0xc] sm:$0xf]
      %v1410 = vld [vmem:[%s676 + $0x10] sm:$0xf]
      %v1411 = vld [vmem:[%s676 + $0x14] sm:$0xf]
      %v1412 = vld [vmem:[%s676 + $0x18] sm:$0xf]
      %v1413 = vld [vmem:[%s676 + $0x1c] sm:$0xf]
      %v1414 = vld [vmem:[%s676 + $0x20] sm:$0xf]
      %v1415 = vld [vmem:[%s676 + $0x24] sm:$0xf]
      %v1416 = vld [vmem:[%s676 + $0x28] sm:$0xf]
      %v1417 = vld [vmem:[%s676 + $0x2c] sm:$0xf]
      %v1418 = vld [vmem:[%s676 + $0x30] sm:$0xf]
      %v1419 = vld [vmem:[%s676 + $0x34] sm:$0xf]
      %v1420 = vld [vmem:[%s676 + $0x38] sm:$0xf]
      %v1421 = vld [vmem:[%s676 + $0x3c] sm:$0xf]
      %v1438 = vunpack.c.l.b16 %v1406
      %v1439 = vunpack.c.l.b16 %v1407
      %v1440 = vunpack.c.l.b16 %v1408
      %v1441 = vunpack.c.l.b16 %v1409
      %v1442 = vunpack.c.l.b16 %v1410
      %v1443 = vunpack.c.l.b16 %v1411
      %v1444 = vunpack.c.l.b16 %v1412
      %v1445 = vunpack.c.l.b16 %v1413
      %v1446 = vunpack.c.l.b16 %v1414
      %v1447 = vunpack.c.l.b16 %v1415
      %v1448 = vunpack.c.l.b16 %v1416
      %v1449 = vunpack.c.l.b16 %v1417
      %v1450 = vunpack.c.l.b16 %v1418
      %v1451 = vunpack.c.l.b16 %v1419
      %v1452 = vunpack.c.l.b16 %v1420
      %v1453 = vunpack.c.l.b16 %v1421
      %v1454 = vpack.c.b16 %v1439, %v1438
      %v1455 = vpack.c.b16 %v1441, %v1440
      %v1456 = vpack.c.b16 %v1443, %v1442
      %v1457 = vpack.c.b16 %v1445, %v1444
      %v1458 = vpack.c.b16 %v1447, %v1446
      %v1459 = vpack.c.b16 %v1449, %v1448
      %v1460 = vpack.c.b16 %v1451, %v1450
      %v1461 = vpack.c.b16 %v1453, %v1452
      %1470 = vmatpush.bf16.msra.mxu0 %v1461
      %1471 = vmatpush.bf16.msra.mxu0 %v1460
      %1472 = vmatpush.bf16.msra.mxu0 %v1459
      %1473 = vmatpush.bf16.msra.mxu0 %v1458
      %1474 = vmatpush.bf16.msra.mxu0 %v1457
      %1475 = vmatpush.bf16.msra.mxu0 %v1456
      %1476 = vmatpush.bf16.msra.mxu0 %v1455
      %1477 = vmatpush.bf16.msra.mxu0 %v1454
      %1478 = vmatmul.bf16.gmra.mxu0 %v1405
      %v1479 = vpop.f32.mrf.mxu0
      %v1480 = vadd.f32 0.0, %v1479
      %v1481 = vpop.f32.mrf.mxu0
      %1482 = vdwg.mxu0
      %v1483 = vadd.f32 %v1402, %v1480
      %v1484 = vld [vmem:[%s1403 + $0x1] sm:$0xf]
      %v1485 = vpack.c.bf16 %v1484, %v1484
      %v1486 = vld [vmem:[%s757] sm:$0xf]
      %v1487 = vld [vmem:[%s757 + $0x4] sm:$0xf]
      %v1488 = vld [vmem:[%s757 + $0x8] sm:$0xf]
      %v1489 = vld [vmem:[%s757 + $0xc] sm:$0xf]
      %v1490 = vld [vmem:[%s757 + $0x10] sm:$0xf]
      %v1491 = vld [vmem:[%s757 + $0x14] sm:$0xf]
      %v1492 = vld [vmem:[%s757 + $0x18] sm:$0xf]
      %v1493 = vld [vmem:[%s757 + $0x1c] sm:$0xf]
      %v1494 = vld [vmem:[%s757 + $0x20] sm:$0xf]
      %v1495 = vld [vmem:[%s757 + $0x24] sm:$0xf]
      %v1496 = vld [vmem:[%s757 + $0x28] sm:$0xf]
      %v1497 = vld [vmem:[%s757 + $0x2c] sm:$0xf]
      %v1498 = vld [vmem:[%s757 + $0x30] sm:$0xf]
      %v1499 = vld [vmem:[%s757 + $0x34] sm:$0xf]
      %v1500 = vld [vmem:[%s757 + $0x38] sm:$0xf]
      %v1501 = vld [vmem:[%s757 + $0x3c] sm:$0xf]
      %v1518 = vunpack.c.l.b16 %v1486
      %v1519 = vunpack.c.l.b16 %v1487
      %v1520 = vunpack.c.l.b16 %v1488
      %v1521 = vunpack.c.l.b16 %v1489
      %v1522 = vunpack.c.l.b16 %v1490
      %v1523 = vunpack.c.l.b16 %v1491
      %v1524 = vunpack.c.l.b16 %v1492
      %v1525 = vunpack.c.l.b16 %v1493
      %v1526 = vunpack.c.l.b16 %v1494
      %v1527 = vunpack.c.l.b16 %v1495
      %v1528 = vunpack.c.l.b16 %v1496
      %v1529 = vunpack.c.l.b16 %v1497
      %v1530 = vunpack.c.l.b16 %v1498
      %v1531 = vunpack.c.l.b16 %v1499
      %v1532 = vunpack.c.l.b16 %v1500
      %v1533 = vunpack.c.l.b16 %v1501
      %v1534 = vpack.c.b16 %v1519, %v1518
      %v1535 = vpack.c.b16 %v1521, %v1520
      %v1536 = vpack.c.b16 %v1523, %v1522
      %v1537 = vpack.c.b16 %v1525, %v1524
      %v1538 = vpack.c.b16 %v1527, %v1526
      %v1539 = vpack.c.b16 %v1529, %v1528
      %v1540 = vpack.c.b16 %v1531, %v1530
      %v1541 = vpack.c.b16 %v1533, %v1532
      %1550 = vmatpush.bf16.msra.mxu0 %v1541
      %1551 = vmatpush.bf16.msra.mxu0 %v1540
      %1552 = vmatpush.bf16.msra.mxu0 %v1539
      %1553 = vmatpush.bf16.msra.mxu0 %v1538
      %1554 = vmatpush.bf16.msra.mxu0 %v1537
      %1555 = vmatpush.bf16.msra.mxu0 %v1536
      %1556 = vmatpush.bf16.msra.mxu0 %v1535
      %1557 = vmatpush.bf16.msra.mxu0 %v1534
      %1558 = vmatmul.bf16.gmra.mxu0 %v1485
      %v1559 = vpop.f32.mrf.mxu0
      %v1560 = vadd.f32 0.0, %v1559
      %v1561 = vpop.f32.mrf.mxu0
      %1562 = vdwg.mxu0
      %v1563 = vadd.f32 %v1483, %v1560
      %v1564 = vld [vmem:[%s1403 + $0x2] sm:$0xf]
      %v1565 = vpack.c.bf16 %v1564, %v1564
      %v1566 = vld [vmem:[%s838] sm:$0xf]
      %v1567 = vld [vmem:[%s838 + $0x4] sm:$0xf]
      %v1568 = vld [vmem:[%s838 + $0x8] sm:$0xf]
      %v1569 = vld [vmem:[%s838 + $0xc] sm:$0xf]
      %v1570 = vld [vmem:[%s838 + $0x10] sm:$0xf]
      %v1571 = vld [vmem:[%s838 + $0x14] sm:$0xf]
      %v1572 = vld [vmem:[%s838 + $0x18] sm:$0xf]
      %v1573 = vld [vmem:[%s838 + $0x1c] sm:$0xf]
      %v1574 = vld [vmem:[%s838 + $0x20] sm:$0xf]
      %v1575 = vld [vmem:[%s838 + $0x24] sm:$0xf]
      %v1576 = vld [vmem:[%s838 + $0x28] sm:$0xf]
      %v1577 = vld [vmem:[%s838 + $0x2c] sm:$0xf]
      %v1578 = vld [vmem:[%s838 + $0x30] sm:$0xf]
      %v1579 = vld [vmem:[%s838 + $0x34] sm:$0xf]
      %v1580 = vld [vmem:[%s838 + $0x38] sm:$0xf]
      %v1581 = vld [vmem:[%s838 + $0x3c] sm:$0xf]
      %v1598 = vunpack.c.l.b16 %v1566
      %v1599 = vunpack.c.l.b16 %v1567
      %v1600 = vunpack.c.l.b16 %v1568
      %v1601 = vunpack.c.l.b16 %v1569
      %v1602 = vunpack.c.l.b16 %v1570
      %v1603 = vunpack.c.l.b16 %v1571
      %v1604 = vunpack.c.l.b16 %v1572
      %v1605 = vunpack.c.l.b16 %v1573
      %v1606 = vunpack.c.l.b16 %v1574
      %v1607 = vunpack.c.l.b16 %v1575
      %v1608 = vunpack.c.l.b16 %v1576
      %v1609 = vunpack.c.l.b16 %v1577
      %v1610 = vunpack.c.l.b16 %v1578
      %v1611 = vunpack.c.l.b16 %v1579
      %v1612 = vunpack.c.l.b16 %v1580
      %v1613 = vunpack.c.l.b16 %v1581
      %v1614 = vpack.c.b16 %v1599, %v1598
      %v1615 = vpack.c.b16 %v1601, %v1600
      %v1616 = vpack.c.b16 %v1603, %v1602
      %v1617 = vpack.c.b16 %v1605, %v1604
      %v1618 = vpack.c.b16 %v1607, %v1606
      %v1619 = vpack.c.b16 %v1609, %v1608
      %v1620 = vpack.c.b16 %v1611, %v1610
      %v1621 = vpack.c.b16 %v1613, %v1612
      %1630 = vmatpush.bf16.msra.mxu0 %v1621
      %1631 = vmatpush.bf16.msra.mxu0 %v1620
      %1632 = vmatpush.bf16.msra.mxu0 %v1619
      %1633 = vmatpush.bf16.msra.mxu0 %v1618
      %1634 = vmatpush.bf16.msra.mxu0 %v1617
      %1635 = vmatpush.bf16.msra.mxu0 %v1616
      %1636 = vmatpush.bf16.msra.mxu0 %v1615
      %1637 = vmatpush.bf16.msra.mxu0 %v1614
      %1638 = vmatmul.bf16.gmra.mxu0 %v1565
      %v1639 = vpop.f32.mrf.mxu0
      %v1640 = vadd.f32 0.0, %v1639
      %v1641 = vpop.f32.mrf.mxu0
      %1642 = vdwg.mxu0
      %v1643 = vadd.f32 %v1563, %v1640
      %v1644 = vld [vmem:[%s2] sm:$0x1]
      %v1646 = vperm.slane %v1644, 0
      %v1648 = vadd.f32 %v1643, %v1646
      %v1649 = vmax.f32 %v1648, 0.0
      %v1650 = vpack.c.bf16 %v1649, %v1649
      %s1651 = scalar_lea.vmem %s170, 2
      %1652 = vst [vmem:[%s1651] sm:$0x3] %v1650
      %v1653 = vld [vmem:[%s673] sm:$0xf]
      %v1654 = vpack.c.bf16 %v1653, %v1653
      %v1655 = vld [vmem:[%s1] sm:$0xf]
      %v1656 = vld [vmem:[%s1 + $0x4] sm:$0xf]
      %v1657 = vld [vmem:[%s1 + $0x8] sm:$0xf]
      %v1658 = vld [vmem:[%s1 + $0xc] sm:$0xf]
      %v1659 = vld [vmem:[%s1 + $0x10] sm:$0xf]
      %v1660 = vld [vmem:[%s1 + $0x14] sm:$0xf]
      %v1661 = vld [vmem:[%s1 + $0x18] sm:$0xf]
      %v1662 = vld [vmem:[%s1 + $0x1c] sm:$0xf]
      %v1663 = vld [vmem:[%s1 + $0x20] sm:$0xf]
      %v1664 = vld [vmem:[%s1 + $0x24] sm:$0xf]
      %v1665 = vld [vmem:[%s1 + $0x28] sm:$0xf]
      %v1666 = vld [vmem:[%s1 + $0x2c] sm:$0xf]
      %v1667 = vld [vmem:[%s1 + $0x30] sm:$0xf]
      %v1668 = vld [vmem:[%s1 + $0x34] sm:$0xf]
      %v1669 = vld [vmem:[%s1 + $0x38] sm:$0xf]
      %v1670 = vld [vmem:[%s1 + $0x3c] sm:$0xf]
      %v1671 = vld [vmem:[%s673 + $0x1] sm:$0xf]
      %v1672 = vpack.c.bf16 %v1671, %v1671
      %v1673 = vld [vmem:[%s210] sm:$0xf]
      %v1674 = vld [vmem:[%s210 + $0x4] sm:$0xf]
      %v1675 = vld [vmem:[%s210 + $0x8] sm:$0xf]
      %v1676 = vld [vmem:[%s210 + $0xc] sm:$0xf]
      %v1677 = vld [vmem:[%s210 + $0x10] sm:$0xf]
      %v1678 = vld [vmem:[%s210 + $0x14] sm:$0xf]
      %v1679 = vld [vmem:[%s210 + $0x18] sm:$0xf]
      %v1680 = vld [vmem:[%s210 + $0x1c] sm:$0xf]
      %v1681 = vld [vmem:[%s210 + $0x20] sm:$0xf]
      %v1682 = vld [vmem:[%s210 + $0x24] sm:$0xf]
      %v1683 = vld [vmem:[%s210 + $0x28] sm:$0xf]
      %v1684 = vld [vmem:[%s210 + $0x2c] sm:$0xf]
      %v1685 = vld [vmem:[%s210 + $0x30] sm:$0xf]
      %v1686 = vld [vmem:[%s210 + $0x34] sm:$0xf]
      %v1687 = vld [vmem:[%s210 + $0x38] sm:$0xf]
      %v1688 = vld [vmem:[%s210 + $0x3c] sm:$0xf]
      %v1705 = vunpack.c.l.b16 %v1673
      %v1706 = vunpack.c.l.b16 %v1674
      %v1707 = vunpack.c.l.b16 %v1675
      %v1708 = vunpack.c.l.b16 %v1676
      %v1709 = vunpack.c.l.b16 %v1677
      %v1710 = vunpack.c.l.b16 %v1678
      %v1711 = vunpack.c.l.b16 %v1679
      %v1712 = vunpack.c.l.b16 %v1680
      %v1713 = vunpack.c.l.b16 %v1681
      %v1714 = vunpack.c.l.b16 %v1682
      %v1715 = vunpack.c.l.b16 %v1683
      %v1716 = vunpack.c.l.b16 %v1684
      %v1717 = vunpack.c.l.b16 %v1685
      %v1718 = vunpack.c.l.b16 %v1686
      %v1719 = vunpack.c.l.b16 %v1687
      %v1720 = vunpack.c.l.b16 %v1688
      %v1721 = vpack.c.b16 %v1706, %v1705
      %v1722 = vpack.c.b16 %v1708, %v1707
      %v1723 = vpack.c.b16 %v1710, %v1709
      %v1724 = vpack.c.b16 %v1712, %v1711
      %v1725 = vpack.c.b16 %v1714, %v1713
      %v1726 = vpack.c.b16 %v1716, %v1715
      %v1727 = vpack.c.b16 %v1718, %v1717
      %v1728 = vpack.c.b16 %v1720, %v1719
      %1737 = vmatpush.bf16.msra.mxu0 %v1728
      %1738 = vmatpush.bf16.msra.mxu0 %v1727
      %1739 = vmatpush.bf16.msra.mxu0 %v1726
      %1740 = vmatpush.bf16.msra.mxu0 %v1725
      %1741 = vmatpush.bf16.msra.mxu0 %v1724
      %1742 = vmatpush.bf16.msra.mxu0 %v1723
      %1743 = vmatpush.bf16.msra.mxu0 %v1722
      %1744 = vmatpush.bf16.msra.mxu0 %v1721
      %1745 = vmatmul.bf16.gmra.mxu0 %v1672
      %v1746 = vpop.f32.mrf.mxu0
      %v1747 = vadd.f32 0.0, %v1746
      %v1748 = vpop.f32.mrf.mxu0
      %1749 = vdwg.mxu0
      %v1766 = vunpack.c.l.b16 %v1655
      %v1767 = vunpack.c.l.b16 %v1656
      %v1768 = vunpack.c.l.b16 %v1657
      %v1769 = vunpack.c.l.b16 %v1658
      %v1770 = vunpack.c.l.b16 %v1659
      %v1771 = vunpack.c.l.b16 %v1660
      %v1772 = vunpack.c.l.b16 %v1661
      %v1773 = vunpack.c.l.b16 %v1662
      %v1774 = vunpack.c.l.b16 %v1663
      %v1775 = vunpack.c.l.b16 %v1664
      %v1776 = vunpack.c.l.b16 %v1665
      %v1777 = vunpack.c.l.b16 %v1666
      %v1778 = vunpack.c.l.b16 %v1667
      %v1779 = vunpack.c.l.b16 %v1668
      %v1780 = vunpack.c.l.b16 %v1669
      %v1781 = vunpack.c.l.b16 %v1670
      %v1782 = vpack.c.b16 %v1767, %v1766
      %v1783 = vpack.c.b16 %v1769, %v1768
      %v1784 = vpack.c.b16 %v1771, %v1770
      %v1785 = vpack.c.b16 %v1773, %v1772
      %v1786 = vpack.c.b16 %v1775, %v1774
      %v1787 = vpack.c.b16 %v1777, %v1776
      %v1788 = vpack.c.b16 %v1779, %v1778
      %v1789 = vpack.c.b16 %v1781, %v1780
      %1798 = vmatpush.bf16.msra.mxu0 %v1789
      %1799 = vmatpush.bf16.msra.mxu0 %v1788
      %1800 = vmatpush.bf16.msra.mxu0 %v1787
      %1801 = vmatpush.bf16.msra.mxu0 %v1786
      %1802 = vmatpush.bf16.msra.mxu0 %v1785
      %1803 = vmatpush.bf16.msra.mxu0 %v1784
      %1804 = vmatpush.bf16.msra.mxu0 %v1783
      %1805 = vmatpush.bf16.msra.mxu0 %v1782
      %1806 = vmatmul.bf16.gmra.mxu0 %v1654
      %v1807 = vpop.f32.mrf.mxu0
      %v1808 = vadd.f32 %v1747, %v1807
      %v1809 = vpop.f32.mrf.mxu0
      %1810 = vdwg.mxu0
      %v1811 = vld [vmem:[%s673 + $0x2] sm:$0xf]
      %v1812 = vpack.c.bf16 %v1811, %v1811
      %v1813 = vld [vmem:[%s351] sm:$0xf]
      %v1814 = vld [vmem:[%s351 + $0x4] sm:$0xf]
      %v1815 = vld [vmem:[%s351 + $0x8] sm:$0xf]
      %v1816 = vld [vmem:[%s351 + $0xc] sm:$0xf]
      %v1817 = vld [vmem:[%s351 + $0x10] sm:$0xf]
      %v1818 = vld [vmem:[%s351 + $0x14] sm:$0xf]
      %v1819 = vld [vmem:[%s351 + $0x18] sm:$0xf]
      %v1820 = vld [vmem:[%s351 + $0x1c] sm:$0xf]
      %v1821 = vld [vmem:[%s351 + $0x20] sm:$0xf]
      %v1822 = vld [vmem:[%s351 + $0x24] sm:$0xf]
      %v1823 = vld [vmem:[%s351 + $0x28] sm:$0xf]
      %v1824 = vld [vmem:[%s351 + $0x2c] sm:$0xf]
      %v1825 = vld [vmem:[%s351 + $0x30] sm:$0xf]
      %v1826 = vld [vmem:[%s351 + $0x34] sm:$0xf]
      %v1827 = vld [vmem:[%s351 + $0x38] sm:$0xf]
      %v1828 = vld [vmem:[%s351 + $0x3c] sm:$0xf]
      %v1845 = vunpack.c.l.b16 %v1813
      %v1846 = vunpack.c.l.b16 %v1814
      %v1847 = vunpack.c.l.b16 %v1815
      %v1848 = vunpack.c.l.b16 %v1816
      %v1849 = vunpack.c.l.b16 %v1817
      %v1850 = vunpack.c.l.b16 %v1818
      %v1851 = vunpack.c.l.b16 %v1819
      %v1852 = vunpack.c.l.b16 %v1820
      %v1853 = vunpack.c.l.b16 %v1821
      %v1854 = vunpack.c.l.b16 %v1822
      %v1855 = vunpack.c.l.b16 %v1823
      %v1856 = vunpack.c.l.b16 %v1824
      %v1857 = vunpack.c.l.b16 %v1825
      %v1858 = vunpack.c.l.b16 %v1826
      %v1859 = vunpack.c.l.b16 %v1827
      %v1860 = vunpack.c.l.b16 %v1828
      %v1861 = vpack.c.b16 %v1846, %v1845
      %v1862 = vpack.c.b16 %v1848, %v1847
      %v1863 = vpack.c.b16 %v1850, %v1849
      %v1864 = vpack.c.b16 %v1852, %v1851
      %v1865 = vpack.c.b16 %v1854, %v1853
      %v1866 = vpack.c.b16 %v1856, %v1855
      %v1867 = vpack.c.b16 %v1858, %v1857
      %v1868 = vpack.c.b16 %v1860, %v1859
      %1877 = vmatpush.bf16.msra.mxu0 %v1868
      %1878 = vmatpush.bf16.msra.mxu0 %v1867
      %1879 = vmatpush.bf16.msra.mxu0 %v1866
      %1880 = vmatpush.bf16.msra.mxu0 %v1865
      %1881 = vmatpush.bf16.msra.mxu0 %v1864
      %1882 = vmatpush.bf16.msra.mxu0 %v1863
      %1883 = vmatpush.bf16.msra.mxu0 %v1862
      %1884 = vmatpush.bf16.msra.mxu0 %v1861
      %1885 = vmatmul.bf16.gmra.mxu0 %v1812
      %v1886 = vpop.f32.mrf.mxu0
      %v1887 = vadd.f32 0.0, %v1886
      %v1888 = vpop.f32.mrf.mxu0
      %1889 = vdwg.mxu0
      %v1890 = vadd.f32 %v1808, %v1887
      %v1891 = vld [vmem:[%s1403] sm:$0xf]
      %v1892 = vpack.c.bf16 %v1891, %v1891
      %v1893 = vld [vmem:[%s432] sm:$0xf]
      %v1894 = vld [vmem:[%s432 + $0x4] sm:$0xf]
      %v1895 = vld [vmem:[%s432 + $0x8] sm:$0xf]
      %v1896 = vld [vmem:[%s432 + $0xc] sm:$0xf]
      %v1897 = vld [vmem:[%s432 + $0x10] sm:$0xf]
      %v1898 = vld [vmem:[%s432 + $0x14] sm:$0xf]
      %v1899 = vld [vmem:[%s432 + $0x18] sm:$0xf]
      %v1900 = vld [vmem:[%s432 + $0x1c] sm:$0xf]
      %v1901 = vld [vmem:[%s432 + $0x20] sm:$0xf]
      %v1902 = vld [vmem:[%s432 + $0x24] sm:$0xf]
      %v1903 = vld [vmem:[%s432 + $0x28] sm:$0xf]
      %v1904 = vld [vmem:[%s432 + $0x2c] sm:$0xf]
      %v1905 = vld [vmem:[%s432 + $0x30] sm:$0xf]
      %v1906 = vld [vmem:[%s432 + $0x34] sm:$0xf]
      %v1907 = vld [vmem:[%s432 + $0x38] sm:$0xf]
      %v1908 = vld [vmem:[%s432 + $0x3c] sm:$0xf]
      %v1925 = vunpack.c.l.b16 %v1893
      %v1926 = vunpack.c.l.b16 %v1894
      %v1927 = vunpack.c.l.b16 %v1895
      %v1928 = vunpack.c.l.b16 %v1896
      %v1929 = vunpack.c.l.b16 %v1897
      %v1930 = vunpack.c.l.b16 %v1898
      %v1931 = vunpack.c.l.b16 %v1899
      %v1932 = vunpack.c.l.b16 %v1900
      %v1933 = vunpack.c.l.b16 %v1901
      %v1934 = vunpack.c.l.b16 %v1902
      %v1935 = vunpack.c.l.b16 %v1903
      %v1936 = vunpack.c.l.b16 %v1904
      %v1937 = vunpack.c.l.b16 %v1905
      %v1938 = vunpack.c.l.b16 %v1906
      %v1939 = vunpack.c.l.b16 %v1907
      %v1940 = vunpack.c.l.b16 %v1908
      %v1941 = vpack.c.b16 %v1926, %v1925
      %v1942 = vpack.c.b16 %v1928, %v1927
      %v1943 = vpack.c.b16 %v1930, %v1929
      %v1944 = vpack.c.b16 %v1932, %v1931
      %v1945 = vpack.c.b16 %v1934, %v1933
      %v1946 = vpack.c.b16 %v1936, %v1935
      %v1947 = vpack.c.b16 %v1938, %v1937
      %v1948 = vpack.c.b16 %v1940, %v1939
      %1957 = vmatpush.bf16.msra.mxu0 %v1948
      %1958 = vmatpush.bf16.msra.mxu0 %v1947
      %1959 = vmatpush.bf16.msra.mxu0 %v1946
      %1960 = vmatpush.bf16.msra.mxu0 %v1945
      %1961 = vmatpush.bf16.msra.mxu0 %v1944
      %1962 = vmatpush.bf16.msra.mxu0 %v1943
      %1963 = vmatpush.bf16.msra.mxu0 %v1942
      %1964 = vmatpush.bf16.msra.mxu0 %v1941
      %1965 = vmatmul.bf16.gmra.mxu0 %v1892
      %v1966 = vpop.f32.mrf.mxu0
      %v1967 = vadd.f32 0.0, %v1966
      %v1968 = vpop.f32.mrf.mxu0
      %1969 = vdwg.mxu0
      %v1970 = vadd.f32 %v1890, %v1967
      %v1971 = vld [vmem:[%s1403 + $0x1] sm:$0xf]
      %v1972 = vpack.c.bf16 %v1971, %v1971
      %v1973 = vld [vmem:[%s513] sm:$0xf]
      %v1974 = vld [vmem:[%s513 + $0x4] sm:$0xf]
      %v1975 = vld [vmem:[%s513 + $0x8] sm:$0xf]
      %v1976 = vld [vmem:[%s513 + $0xc] sm:$0xf]
      %v1977 = vld [vmem:[%s513 + $0x10] sm:$0xf]
      %v1978 = vld [vmem:[%s513 + $0x14] sm:$0xf]
      %v1979 = vld [vmem:[%s513 + $0x18] sm:$0xf]
      %v1980 = vld [vmem:[%s513 + $0x1c] sm:$0xf]
      %v1981 = vld [vmem:[%s513 + $0x20] sm:$0xf]
      %v1982 = vld [vmem:[%s513 + $0x24] sm:$0xf]
      %v1983 = vld [vmem:[%s513 + $0x28] sm:$0xf]
      %v1984 = vld [vmem:[%s513 + $0x2c] sm:$0xf]
      %v1985 = vld [vmem:[%s513 + $0x30] sm:$0xf]
      %v1986 = vld [vmem:[%s513 + $0x34] sm:$0xf]
      %v1987 = vld [vmem:[%s513 + $0x38] sm:$0xf]
      %v1988 = vld [vmem:[%s513 + $0x3c] sm:$0xf]
      %v2005 = vunpack.c.l.b16 %v1973
      %v2006 = vunpack.c.l.b16 %v1974
      %v2007 = vunpack.c.l.b16 %v1975
      %v2008 = vunpack.c.l.b16 %v1976
      %v2009 = vunpack.c.l.b16 %v1977
      %v2010 = vunpack.c.l.b16 %v1978
      %v2011 = vunpack.c.l.b16 %v1979
      %v2012 = vunpack.c.l.b16 %v1980
      %v2013 = vunpack.c.l.b16 %v1981
      %v2014 = vunpack.c.l.b16 %v1982
      %v2015 = vunpack.c.l.b16 %v1983
      %v2016 = vunpack.c.l.b16 %v1984
      %v2017 = vunpack.c.l.b16 %v1985
      %v2018 = vunpack.c.l.b16 %v1986
      %v2019 = vunpack.c.l.b16 %v1987
      %v2020 = vunpack.c.l.b16 %v1988
      %v2021 = vpack.c.b16 %v2006, %v2005
      %v2022 = vpack.c.b16 %v2008, %v2007
      %v2023 = vpack.c.b16 %v2010, %v2009
      %v2024 = vpack.c.b16 %v2012, %v2011
      %v2025 = vpack.c.b16 %v2014, %v2013
      %v2026 = vpack.c.b16 %v2016, %v2015
      %v2027 = vpack.c.b16 %v2018, %v2017
      %v2028 = vpack.c.b16 %v2020, %v2019
      %2037 = vmatpush.bf16.msra.mxu0 %v2028
      %2038 = vmatpush.bf16.msra.mxu0 %v2027
      %2039 = vmatpush.bf16.msra.mxu0 %v2026
      %2040 = vmatpush.bf16.msra.mxu0 %v2025
      %2041 = vmatpush.bf16.msra.mxu0 %v2024
      %2042 = vmatpush.bf16.msra.mxu0 %v2023
      %2043 = vmatpush.bf16.msra.mxu0 %v2022
      %2044 = vmatpush.bf16.msra.mxu0 %v2021
      %2045 = vmatmul.bf16.gmra.mxu0 %v1972
      %v2046 = vpop.f32.mrf.mxu0
      %v2047 = vadd.f32 0.0, %v2046
      %v2048 = vpop.f32.mrf.mxu0
      %2049 = vdwg.mxu0
      %v2050 = vadd.f32 %v1970, %v2047
      %v2051 = vld [vmem:[%s1403 + $0x2] sm:$0xf]
      %v2052 = vpack.c.bf16 %v2051, %v2051
      %v2053 = vld [vmem:[%s594] sm:$0xf]
      %v2054 = vld [vmem:[%s594 + $0x4] sm:$0xf]
      %v2055 = vld [vmem:[%s594 + $0x8] sm:$0xf]
      %v2056 = vld [vmem:[%s594 + $0xc] sm:$0xf]
      %v2057 = vld [vmem:[%s594 + $0x10] sm:$0xf]
      %v2058 = vld [vmem:[%s594 + $0x14] sm:$0xf]
      %v2059 = vld [vmem:[%s594 + $0x18] sm:$0xf]
      %v2060 = vld [vmem:[%s594 + $0x1c] sm:$0xf]
      %v2061 = vld [vmem:[%s594 + $0x20] sm:$0xf]
      %v2062 = vld [vmem:[%s594 + $0x24] sm:$0xf]
      %v2063 = vld [vmem:[%s594 + $0x28] sm:$0xf]
      %v2064 = vld [vmem:[%s594 + $0x2c] sm:$0xf]
      %v2065 = vld [vmem:[%s594 + $0x30] sm:$0xf]
      %v2066 = vld [vmem:[%s594 + $0x34] sm:$0xf]
      %v2067 = vld [vmem:[%s594 + $0x38] sm:$0xf]
      %v2068 = vld [vmem:[%s594 + $0x3c] sm:$0xf]
      %v2085 = vunpack.c.l.b16 %v2053
      %v2086 = vunpack.c.l.b16 %v2054
      %v2087 = vunpack.c.l.b16 %v2055
      %v2088 = vunpack.c.l.b16 %v2056
      %v2089 = vunpack.c.l.b16 %v2057
      %v2090 = vunpack.c.l.b16 %v2058
      %v2091 = vunpack.c.l.b16 %v2059
      %v2092 = vunpack.c.l.b16 %v2060
      %v2093 = vunpack.c.l.b16 %v2061
      %v2094 = vunpack.c.l.b16 %v2062
      %v2095 = vunpack.c.l.b16 %v2063
      %v2096 = vunpack.c.l.b16 %v2064
      %v2097 = vunpack.c.l.b16 %v2065
      %v2098 = vunpack.c.l.b16 %v2066
      %v2099 = vunpack.c.l.b16 %v2067
      %v2100 = vunpack.c.l.b16 %v2068
      %v2101 = vpack.c.b16 %v2086, %v2085
      %v2102 = vpack.c.b16 %v2088, %v2087
      %v2103 = vpack.c.b16 %v2090, %v2089
      %v2104 = vpack.c.b16 %v2092, %v2091
      %v2105 = vpack.c.b16 %v2094, %v2093
      %v2106 = vpack.c.b16 %v2096, %v2095
      %v2107 = vpack.c.b16 %v2098, %v2097
      %v2108 = vpack.c.b16 %v2100, %v2099
      %2117 = vmatpush.bf16.msra.mxu0 %v2108
      %2118 = vmatpush.bf16.msra.mxu0 %v2107
      %2119 = vmatpush.bf16.msra.mxu0 %v2106
      %2120 = vmatpush.bf16.msra.mxu0 %v2105
      %2121 = vmatpush.bf16.msra.mxu0 %v2104
      %2122 = vmatpush.bf16.msra.mxu0 %v2103
      %2123 = vmatpush.bf16.msra.mxu0 %v2102
      %2124 = vmatpush.bf16.msra.mxu0 %v2101
      %2125 = vmatmul.bf16.gmra.mxu0 %v2052
      %v2126 = vpop.f32.mrf.mxu0
      %v2127 = vadd.f32 0.0, %v2126
      %v2128 = vpop.f32.mrf.mxu0
      %2129 = vdwg.mxu0
      %v2130 = vadd.f32 %v2050, %v2127
      %s2131 = scalar_lea.vmem [#allocation2], 32
      %v2132 = vld [vmem:[%s2131] sm:$0xf]
      %v2133 = vpack.c.bf16 %v2132, %v2132
      %v2134 = vld [vmem:[%s676] sm:$0xf]
      %v2135 = vld [vmem:[%s676 + $0x4] sm:$0xf]
      %v2136 = vld [vmem:[%s676 + $0x8] sm:$0xf]
      %v2137 = vld [vmem:[%s676 + $0xc] sm:$0xf]
      %v2138 = vld [vmem:[%s676 + $0x10] sm:$0xf]
      %v2139 = vld [vmem:[%s676 + $0x14] sm:$0xf]
      %v2140 = vld [vmem:[%s676 + $0x18] sm:$0xf]
      %v2141 = vld [vmem:[%s676 + $0x1c] sm:$0xf]
      %v2142 = vld [vmem:[%s676 + $0x20] sm:$0xf]
      %v2143 = vld [vmem:[%s676 + $0x24] sm:$0xf]
      %v2144 = vld [vmem:[%s676 + $0x28] sm:$0xf]
      %v2145 = vld [vmem:[%s676 + $0x2c] sm:$0xf]
      %v2146 = vld [vmem:[%s676 + $0x30] sm:$0xf]
      %v2147 = vld [vmem:[%s676 + $0x34] sm:$0xf]
      %v2148 = vld [vmem:[%s676 + $0x38] sm:$0xf]
      %v2149 = vld [vmem:[%s676 + $0x3c] sm:$0xf]
      %v2166 = vunpack.c.l.b16 %v2134
      %v2167 = vunpack.c.l.b16 %v2135
      %v2168 = vunpack.c.l.b16 %v2136
      %v2169 = vunpack.c.l.b16 %v2137
      %v2170 = vunpack.c.l.b16 %v2138
      %v2171 = vunpack.c.l.b16 %v2139
      %v2172 = vunpack.c.l.b16 %v2140
      %v2173 = vunpack.c.l.b16 %v2141
      %v2174 = vunpack.c.l.b16 %v2142
      %v2175 = vunpack.c.l.b16 %v2143
      %v2176 = vunpack.c.l.b16 %v2144
      %v2177 = vunpack.c.l.b16 %v2145
      %v2178 = vunpack.c.l.b16 %v2146
      %v2179 = vunpack.c.l.b16 %v2147
      %v2180 = vunpack.c.l.b16 %v2148
      %v2181 = vunpack.c.l.b16 %v2149
      %v2182 = vpack.c.b16 %v2167, %v2166
      %v2183 = vpack.c.b16 %v2169, %v2168
      %v2184 = vpack.c.b16 %v2171, %v2170
      %v2185 = vpack.c.b16 %v2173, %v2172
      %v2186 = vpack.c.b16 %v2175, %v2174
      %v2187 = vpack.c.b16 %v2177, %v2176
      %v2188 = vpack.c.b16 %v2179, %v2178
      %v2189 = vpack.c.b16 %v2181, %v2180
      %2198 = vmatpush.bf16.msra.mxu0 %v2189
      %2199 = vmatpush.bf16.msra.mxu0 %v2188
      %2200 = vmatpush.bf16.msra.mxu0 %v2187
      %2201 = vmatpush.bf16.msra.mxu0 %v2186
      %2202 = vmatpush.bf16.msra.mxu0 %v2185
      %2203 = vmatpush.bf16.msra.mxu0 %v2184
      %2204 = vmatpush.bf16.msra.mxu0 %v2183
      %2205 = vmatpush.bf16.msra.mxu0 %v2182
      %2206 = vmatmul.bf16.gmra.mxu0 %v2133
      %v2207 = vpop.f32.mrf.mxu0
      %v2208 = vadd.f32 0.0, %v2207
      %v2209 = vpop.f32.mrf.mxu0
      %2210 = vdwg.mxu0
      %v2211 = vadd.f32 %v2130, %v2208
      %v2212 = vld [vmem:[%s2131 + $0x1] sm:$0xf]
      %v2213 = vpack.c.bf16 %v2212, %v2212
      %v2214 = vld [vmem:[%s757] sm:$0xf]
      %v2215 = vld [vmem:[%s757 + $0x4] sm:$0xf]
      %v2216 = vld [vmem:[%s757 + $0x8] sm:$0xf]
      %v2217 = vld [vmem:[%s757 + $0xc] sm:$0xf]
      %v2218 = vld [vmem:[%s757 + $0x10] sm:$0xf]
      %v2219 = vld [vmem:[%s757 + $0x14] sm:$0xf]
      %v2220 = vld [vmem:[%s757 + $0x18] sm:$0xf]
      %v2221 = vld [vmem:[%s757 + $0x1c] sm:$0xf]
      %v2222 = vld [vmem:[%s757 + $0x20] sm:$0xf]
      %v2223 = vld [vmem:[%s757 + $0x24] sm:$0xf]
      %v2224 = vld [vmem:[%s757 + $0x28] sm:$0xf]
      %v2225 = vld [vmem:[%s757 + $0x2c] sm:$0xf]
      %v2226 = vld [vmem:[%s757 + $0x30] sm:$0xf]
      %v2227 = vld [vmem:[%s757 + $0x34] sm:$0xf]
      %v2228 = vld [vmem:[%s757 + $0x38] sm:$0xf]
      %v2229 = vld [vmem:[%s757 + $0x3c] sm:$0xf]
      %v2246 = vunpack.c.l.b16 %v2214
      %v2247 = vunpack.c.l.b16 %v2215
      %v2248 = vunpack.c.l.b16 %v2216
      %v2249 = vunpack.c.l.b16 %v2217
      %v2250 = vunpack.c.l.b16 %v2218
      %v2251 = vunpack.c.l.b16 %v2219
      %v2252 = vunpack.c.l.b16 %v2220
      %v2253 = vunpack.c.l.b16 %v2221
      %v2254 = vunpack.c.l.b16 %v2222
      %v2255 = vunpack.c.l.b16 %v2223
      %v2256 = vunpack.c.l.b16 %v2224
      %v2257 = vunpack.c.l.b16 %v2225
      %v2258 = vunpack.c.l.b16 %v2226
      %v2259 = vunpack.c.l.b16 %v2227
      %v2260 = vunpack.c.l.b16 %v2228
      %v2261 = vunpack.c.l.b16 %v2229
      %v2262 = vpack.c.b16 %v2247, %v2246
      %v2263 = vpack.c.b16 %v2249, %v2248
      %v2264 = vpack.c.b16 %v2251, %v2250
      %v2265 = vpack.c.b16 %v2253, %v2252
      %v2266 = vpack.c.b16 %v2255, %v2254
      %v2267 = vpack.c.b16 %v2257, %v2256
      %v2268 = vpack.c.b16 %v2259, %v2258
      %v2269 = vpack.c.b16 %v2261, %v2260
      %2278 = vmatpush.bf16.msra.mxu0 %v2269
      %2279 = vmatpush.bf16.msra.mxu0 %v2268
      %2280 = vmatpush.bf16.msra.mxu0 %v2267
      %2281 = vmatpush.bf16.msra.mxu0 %v2266
      %2282 = vmatpush.bf16.msra.mxu0 %v2265
      %2283 = vmatpush.bf16.msra.mxu0 %v2264
      %2284 = vmatpush.bf16.msra.mxu0 %v2263
      %2285 = vmatpush.bf16.msra.mxu0 %v2262
      %2286 = vmatmul.bf16.gmra.mxu0 %v2213
      %v2287 = vpop.f32.mrf.mxu0
      %v2288 = vadd.f32 0.0, %v2287
      %v2289 = vpop.f32.mrf.mxu0
      %2290 = vdwg.mxu0
      %v2291 = vadd.f32 %v2211, %v2288
      %v2292 = vld [vmem:[%s2131 + $0x2] sm:$0xf]
      %v2293 = vpack.c.bf16 %v2292, %v2292
      %v2294 = vld [vmem:[%s838] sm:$0xf]
      %v2295 = vld [vmem:[%s838 + $0x4] sm:$0xf]
      %v2296 = vld [vmem:[%s838 + $0x8] sm:$0xf]
      %v2297 = vld [vmem:[%s838 + $0xc] sm:$0xf]
      %v2298 = vld [vmem:[%s838 + $0x10] sm:$0xf]
      %v2299 = vld [vmem:[%s838 + $0x14] sm:$0xf]
      %v2300 = vld [vmem:[%s838 + $0x18] sm:$0xf]
      %v2301 = vld [vmem:[%s838 + $0x1c] sm:$0xf]
      %v2302 = vld [vmem:[%s838 + $0x20] sm:$0xf]
      %v2303 = vld [vmem:[%s838 + $0x24] sm:$0xf]
      %v2304 = vld [vmem:[%s838 + $0x28] sm:$0xf]
      %v2305 = vld [vmem:[%s838 + $0x2c] sm:$0xf]
      %v2306 = vld [vmem:[%s838 + $0x30] sm:$0xf]
      %v2307 = vld [vmem:[%s838 + $0x34] sm:$0xf]
      %v2308 = vld [vmem:[%s838 + $0x38] sm:$0xf]
      %v2309 = vld [vmem:[%s838 + $0x3c] sm:$0xf]
      %v2326 = vunpack.c.l.b16 %v2294
      %v2327 = vunpack.c.l.b16 %v2295
      %v2328 = vunpack.c.l.b16 %v2296
      %v2329 = vunpack.c.l.b16 %v2297
      %v2330 = vunpack.c.l.b16 %v2298
      %v2331 = vunpack.c.l.b16 %v2299
      %v2332 = vunpack.c.l.b16 %v2300
      %v2333 = vunpack.c.l.b16 %v2301
      %v2334 = vunpack.c.l.b16 %v2302
      %v2335 = vunpack.c.l.b16 %v2303
      %v2336 = vunpack.c.l.b16 %v2304
      %v2337 = vunpack.c.l.b16 %v2305
      %v2338 = vunpack.c.l.b16 %v2306
      %v2339 = vunpack.c.l.b16 %v2307
      %v2340 = vunpack.c.l.b16 %v2308
      %v2341 = vunpack.c.l.b16 %v2309
      %v2342 = vpack.c.b16 %v2327, %v2326
      %v2343 = vpack.c.b16 %v2329, %v2328
      %v2344 = vpack.c.b16 %v2331, %v2330
      %v2345 = vpack.c.b16 %v2333, %v2332
      %v2346 = vpack.c.b16 %v2335, %v2334
      %v2347 = vpack.c.b16 %v2337, %v2336
      %v2348 = vpack.c.b16 %v2339, %v2338
      %v2349 = vpack.c.b16 %v2341, %v2340
      %2358 = vmatpush.bf16.msra.mxu0 %v2349
      %2359 = vmatpush.bf16.msra.mxu0 %v2348
      %2360 = vmatpush.bf16.msra.mxu0 %v2347
      %2361 = vmatpush.bf16.msra.mxu0 %v2346
      %2362 = vmatpush.bf16.msra.mxu0 %v2345
      %2363 = vmatpush.bf16.msra.mxu0 %v2344
      %2364 = vmatpush.bf16.msra.mxu0 %v2343
      %2365 = vmatpush.bf16.msra.mxu0 %v2342
      %2366 = vmatmul.bf16.gmra.mxu0 %v2293
      %v2367 = vpop.f32.mrf.mxu0
      %v2368 = vadd.f32 0.0, %v2367
      %v2369 = vpop.f32.mrf.mxu0
      %2370 = vdwg.mxu0
      %v2371 = vadd.f32 %v2291, %v2368
      %v2372 = vld [vmem:[%s2] sm:$0x1]
      %v2374 = vperm.slane %v2372, 0
      %v2376 = vadd.f32 %v2371, %v2374
      %v2377 = vmax.f32 %v2376, 0.0
      %v2378 = vpack.c.bf16 %v2377, %v2377
      %s2379 = scalar_lea.vmem %s170, 4
      %2380 = vst [vmem:[%s2379] sm:$0x3] %v2378
      %v2381 = vld [vmem:[%s1403] sm:$0xf]
      %v2382 = vpack.c.bf16 %v2381, %v2381
      %v2383 = vld [vmem:[%s1] sm:$0xf]
      %v2384 = vld [vmem:[%s1 + $0x4] sm:$0xf]
      %v2385 = vld [vmem:[%s1 + $0x8] sm:$0xf]
      %v2386 = vld [vmem:[%s1 + $0xc] sm:$0xf]
      %v2387 = vld [vmem:[%s1 + $0x10] sm:$0xf]
      %v2388 = vld [vmem:[%s1 + $0x14] sm:$0xf]
      %v2389 = vld [vmem:[%s1 + $0x18] sm:$0xf]
      %v2390 = vld [vmem:[%s1 + $0x1c] sm:$0xf]
      %v2391 = vld [vmem:[%s1 + $0x20] sm:$0xf]
      %v2392 = vld [vmem:[%s1 + $0x24] sm:$0xf]
      %v2393 = vld [vmem:[%s1 + $0x28] sm:$0xf]
      %v2394 = vld [vmem:[%s1 + $0x2c] sm:$0xf]
      %v2395 = vld [vmem:[%s1 + $0x30] sm:$0xf]
      %v2396 = vld [vmem:[%s1 + $0x34] sm:$0xf]
      %v2397 = vld [vmem:[%s1 + $0x38] sm:$0xf]
      %v2398 = vld [vmem:[%s1 + $0x3c] sm:$0xf]
      %v2399 = vld [vmem:[%s1403 + $0x1] sm:$0xf]
      %v2400 = vpack.c.bf16 %v2399, %v2399
      %v2401 = vld [vmem:[%s210] sm:$0xf]
      %v2402 = vld [vmem:[%s210 + $0x4] sm:$0xf]
      %v2403 = vld [vmem:[%s210 + $0x8] sm:$0xf]
      %v2404 = vld [vmem:[%s210 + $0xc] sm:$0xf]
      %v2405 = vld [vmem:[%s210 + $0x10] sm:$0xf]
      %v2406 = vld [vmem:[%s210 + $0x14] sm:$0xf]
      %v2407 = vld [vmem:[%s210 + $0x18] sm:$0xf]
      %v2408 = vld [vmem:[%s210 + $0x1c] sm:$0xf]
      %v2409 = vld [vmem:[%s210 + $0x20] sm:$0xf]
      %v2410 = vld [vmem:[%s210 + $0x24] sm:$0xf]
      %v2411 = vld [vmem:[%s210 + $0x28] sm:$0xf]
      %v2412 = vld [vmem:[%s210 + $0x2c] sm:$0xf]
      %v2413 = vld [vmem:[%s210 + $0x30] sm:$0xf]
      %v2414 = vld [vmem:[%s210 + $0x34] sm:$0xf]
      %v2415 = vld [vmem:[%s210 + $0x38] sm:$0xf]
      %v2416 = vld [vmem:[%s210 + $0x3c] sm:$0xf]
      %v2433 = vunpack.c.l.b16 %v2401
      %v2434 = vunpack.c.l.b16 %v2402
      %v2435 = vunpack.c.l.b16 %v2403
      %v2436 = vunpack.c.l.b16 %v2404
      %v2437 = vunpack.c.l.b16 %v2405
      %v2438 = vunpack.c.l.b16 %v2406
      %v2439 = vunpack.c.l.b16 %v2407
      %v2440 = vunpack.c.l.b16 %v2408
      %v2441 = vunpack.c.l.b16 %v2409
      %v2442 = vunpack.c.l.b16 %v2410
      %v2443 = vunpack.c.l.b16 %v2411
      %v2444 = vunpack.c.l.b16 %v2412
      %v2445 = vunpack.c.l.b16 %v2413
      %v2446 = vunpack.c.l.b16 %v2414
      %v2447 = vunpack.c.l.b16 %v2415
      %v2448 = vunpack.c.l.b16 %v2416
      %v2449 = vpack.c.b16 %v2434, %v2433
      %v2450 = vpack.c.b16 %v2436, %v2435
      %v2451 = vpack.c.b16 %v2438, %v2437
      %v2452 = vpack.c.b16 %v2440, %v2439
      %v2453 = vpack.c.b16 %v2442, %v2441
      %v2454 = vpack.c.b16 %v2444, %v2443
      %v2455 = vpack.c.b16 %v2446, %v2445
      %v2456 = vpack.c.b16 %v2448, %v2447
      %2465 = vmatpush.bf16.msra.mxu0 %v2456
      %2466 = vmatpush.bf16.msra.mxu0 %v2455
      %2467 = vmatpush.bf16.msra.mxu0 %v2454
      %2468 = vmatpush.bf16.msra.mxu0 %v2453
      %2469 = vmatpush.bf16.msra.mxu0 %v2452
      %2470 = vmatpush.bf16.msra.mxu0 %v2451
      %2471 = vmatpush.bf16.msra.mxu0 %v2450
      %2472 = vmatpush.bf16.msra.mxu0 %v2449
      %2473 = vmatmul.bf16.gmra.mxu0 %v2400
      %v2474 = vpop.f32.mrf.mxu0
      %v2475 = vadd.f32 0.0, %v2474
      %v2476 = vpop.f32.mrf.mxu0
      %2477 = vdwg.mxu0
      %v2494 = vunpack.c.l.b16 %v2383
      %v2495 = vunpack.c.l.b16 %v2384
      %v2496 = vunpack.c.l.b16 %v2385
      %v2497 = vunpack.c.l.b16 %v2386
      %v2498 = vunpack.c.l.b16 %v2387
      %v2499 = vunpack.c.l.b16 %v2388
      %v2500 = vunpack.c.l.b16 %v2389
      %v2501 = vunpack.c.l.b16 %v2390
      %v2502 = vunpack.c.l.b16 %v2391
      %v2503 = vunpack.c.l.b16 %v2392
      %v2504 = vunpack.c.l.b16 %v2393
      %v2505 = vunpack.c.l.b16 %v2394
      %v2506 = vunpack.c.l.b16 %v2395
      %v2507 = vunpack.c.l.b16 %v2396
      %v2508 = vunpack.c.l.b16 %v2397
      %v2509 = vunpack.c.l.b16 %v2398
      %v2510 = vpack.c.b16 %v2495, %v2494
      %v2511 = vpack.c.b16 %v2497, %v2496
      %v2512 = vpack.c.b16 %v2499, %v2498
      %v2513 = vpack.c.b16 %v2501, %v2500
      %v2514 = vpack.c.b16 %v2503, %v2502
      %v2515 = vpack.c.b16 %v2505, %v2504
      %v2516 = vpack.c.b16 %v2507, %v2506
      %v2517 = vpack.c.b16 %v2509, %v2508
      %2526 = vmatpush.bf16.msra.mxu0 %v2517
      %2527 = vmatpush.bf16.msra.mxu0 %v2516
      %2528 = vmatpush.bf16.msra.mxu0 %v2515
      %2529 = vmatpush.bf16.msra.mxu0 %v2514
      %2530 = vmatpush.bf16.msra.mxu0 %v2513
      %2531 = vmatpush.bf16.msra.mxu0 %v2512
      %2532 = vmatpush.bf16.msra.mxu0 %v2511
      %2533 = vmatpush.bf16.msra.mxu0 %v2510
      %2534 = vmatmul.bf16.gmra.mxu0 %v2382
      %v2535 = vpop.f32.mrf.mxu0
      %v2536 = vadd.f32 %v2475, %v2535
      %v2537 = vpop.f32.mrf.mxu0
      %2538 = vdwg.mxu0
      %v2539 = vld [vmem:[%s1403 + $0x2] sm:$0xf]
      %v2540 = vpack.c.bf16 %v2539, %v2539
      %v2541 = vld [vmem:[%s351] sm:$0xf]
      %v2542 = vld [vmem:[%s351 + $0x4] sm:$0xf]
      %v2543 = vld [vmem:[%s351 + $0x8] sm:$0xf]
      %v2544 = vld [vmem:[%s351 + $0xc] sm:$0xf]
      %v2545 = vld [vmem:[%s351 + $0x10] sm:$0xf]
      %v2546 = vld [vmem:[%s351 + $0x14] sm:$0xf]
      %v2547 = vld [vmem:[%s351 + $0x18] sm:$0xf]
      %v2548 = vld [vmem:[%s351 + $0x1c] sm:$0xf]
      %v2549 = vld [vmem:[%s351 + $0x20] sm:$0xf]
      %v2550 = vld [vmem:[%s351 + $0x24] sm:$0xf]
      %v2551 = vld [vmem:[%s351 + $0x28] sm:$0xf]
      %v2552 = vld [vmem:[%s351 + $0x2c] sm:$0xf]
      %v2553 = vld [vmem:[%s351 + $0x30] sm:$0xf]
      %v2554 = vld [vmem:[%s351 + $0x34] sm:$0xf]
      %v2555 = vld [vmem:[%s351 + $0x38] sm:$0xf]
      %v2556 = vld [vmem:[%s351 + $0x3c] sm:$0xf]
      %v2573 = vunpack.c.l.b16 %v2541
      %v2574 = vunpack.c.l.b16 %v2542
      %v2575 = vunpack.c.l.b16 %v2543
      %v2576 = vunpack.c.l.b16 %v2544
      %v2577 = vunpack.c.l.b16 %v2545
      %v2578 = vunpack.c.l.b16 %v2546
      %v2579 = vunpack.c.l.b16 %v2547
      %v2580 = vunpack.c.l.b16 %v2548
      %v2581 = vunpack.c.l.b16 %v2549
      %v2582 = vunpack.c.l.b16 %v2550
      %v2583 = vunpack.c.l.b16 %v2551
      %v2584 = vunpack.c.l.b16 %v2552
      %v2585 = vunpack.c.l.b16 %v2553
      %v2586 = vunpack.c.l.b16 %v2554
      %v2587 = vunpack.c.l.b16 %v2555
      %v2588 = vunpack.c.l.b16 %v2556
      %v2589 = vpack.c.b16 %v2574, %v2573
      %v2590 = vpack.c.b16 %v2576, %v2575
      %v2591 = vpack.c.b16 %v2578, %v2577
      %v2592 = vpack.c.b16 %v2580, %v2579
      %v2593 = vpack.c.b16 %v2582, %v2581
      %v2594 = vpack.c.b16 %v2584, %v2583
      %v2595 = vpack.c.b16 %v2586, %v2585
      %v2596 = vpack.c.b16 %v2588, %v2587
      %2605 = vmatpush.bf16.msra.mxu0 %v2596
      %2606 = vmatpush.bf16.msra.mxu0 %v2595
      %2607 = vmatpush.bf16.msra.mxu0 %v2594
      %2608 = vmatpush.bf16.msra.mxu0 %v2593
      %2609 = vmatpush.bf16.msra.mxu0 %v2592
      %2610 = vmatpush.bf16.msra.mxu0 %v2591
      %2611 = vmatpush.bf16.msra.mxu0 %v2590
      %2612 = vmatpush.bf16.msra.mxu0 %v2589
      %2613 = vmatmul.bf16.gmra.mxu0 %v2540
      %v2614 = vpop.f32.mrf.mxu0
      %v2615 = vadd.f32 0.0, %v2614
      %v2616 = vpop.f32.mrf.mxu0
      %2617 = vdwg.mxu0
      %v2618 = vadd.f32 %v2536, %v2615
      %v2619 = vld [vmem:[%s2131] sm:$0xf]
      %v2620 = vpack.c.bf16 %v2619, %v2619
      %v2621 = vld [vmem:[%s432] sm:$0xf]
      %v2622 = vld [vmem:[%s432 + $0x4] sm:$0xf]
      %v2623 = vld [vmem:[%s432 + $0x8] sm:$0xf]
      %v2624 = vld [vmem:[%s432 + $0xc] sm:$0xf]
      %v2625 = vld [vmem:[%s432 + $0x10] sm:$0xf]
      %v2626 = vld [vmem:[%s432 + $0x14] sm:$0xf]
      %v2627 = vld [vmem:[%s432 + $0x18] sm:$0xf]
      %v2628 = vld [vmem:[%s432 + $0x1c] sm:$0xf]
      %v2629 = vld [vmem:[%s432 + $0x20] sm:$0xf]
      %v2630 = vld [vmem:[%s432 + $0x24] sm:$0xf]
      %v2631 = vld [vmem:[%s432 + $0x28] sm:$0xf]
      %v2632 = vld [vmem:[%s432 + $0x2c] sm:$0xf]
      %v2633 = vld [vmem:[%s432 + $0x30] sm:$0xf]
      %v2634 = vld [vmem:[%s432 + $0x34] sm:$0xf]
      %v2635 = vld [vmem:[%s432 + $0x38] sm:$0xf]
      %v2636 = vld [vmem:[%s432 + $0x3c] sm:$0xf]
      %v2653 = vunpack.c.l.b16 %v2621
      %v2654 = vunpack.c.l.b16 %v2622
      %v2655 = vunpack.c.l.b16 %v2623
      %v2656 = vunpack.c.l.b16 %v2624
      %v2657 = vunpack.c.l.b16 %v2625
      %v2658 = vunpack.c.l.b16 %v2626
      %v2659 = vunpack.c.l.b16 %v2627
      %v2660 = vunpack.c.l.b16 %v2628
      %v2661 = vunpack.c.l.b16 %v2629
      %v2662 = vunpack.c.l.b16 %v2630
      %v2663 = vunpack.c.l.b16 %v2631
      %v2664 = vunpack.c.l.b16 %v2632
      %v2665 = vunpack.c.l.b16 %v2633
      %v2666 = vunpack.c.l.b16 %v2634
      %v2667 = vunpack.c.l.b16 %v2635
      %v2668 = vunpack.c.l.b16 %v2636
      %v2669 = vpack.c.b16 %v2654, %v2653
      %v2670 = vpack.c.b16 %v2656, %v2655
      %v2671 = vpack.c.b16 %v2658, %v2657
      %v2672 = vpack.c.b16 %v2660, %v2659
      %v2673 = vpack.c.b16 %v2662, %v2661
      %v2674 = vpack.c.b16 %v2664, %v2663
      %v2675 = vpack.c.b16 %v2666, %v2665
      %v2676 = vpack.c.b16 %v2668, %v2667
      %2685 = vmatpush.bf16.msra.mxu0 %v2676
      %2686 = vmatpush.bf16.msra.mxu0 %v2675
      %2687 = vmatpush.bf16.msra.mxu0 %v2674
      %2688 = vmatpush.bf16.msra.mxu0 %v2673
      %2689 = vmatpush.bf16.msra.mxu0 %v2672
      %2690 = vmatpush.bf16.msra.mxu0 %v2671
      %2691 = vmatpush.bf16.msra.mxu0 %v2670
      %2692 = vmatpush.bf16.msra.mxu0 %v2669
      %2693 = vmatmul.bf16.gmra.mxu0 %v2620
      %v2694 = vpop.f32.mrf.mxu0
      %v2695 = vadd.f32 0.0, %v2694
      %v2696 = vpop.f32.mrf.mxu0
      %2697 = vdwg.mxu0
      %v2698 = vadd.f32 %v2618, %v2695
      %v2699 = vld [vmem:[%s2131 + $0x1] sm:$0xf]
      %v2700 = vpack.c.bf16 %v2699, %v2699
      %v2701 = vld [vmem:[%s513] sm:$0xf]
      %v2702 = vld [vmem:[%s513 + $0x4] sm:$0xf]
      %v2703 = vld [vmem:[%s513 + $0x8] sm:$0xf]
      %v2704 = vld [vmem:[%s513 + $0xc] sm:$0xf]
      %v2705 = vld [vmem:[%s513 + $0x10] sm:$0xf]
      %v2706 = vld [vmem:[%s513 + $0x14] sm:$0xf]
      %v2707 = vld [vmem:[%s513 + $0x18] sm:$0xf]
      %v2708 = vld [vmem:[%s513 + $0x1c] sm:$0xf]
      %v2709 = vld [vmem:[%s513 + $0x20] sm:$0xf]
      %v2710 = vld [vmem:[%s513 + $0x24] sm:$0xf]
      %v2711 = vld [vmem:[%s513 + $0x28] sm:$0xf]
      %v2712 = vld [vmem:[%s513 + $0x2c] sm:$0xf]
      %v2713 = vld [vmem:[%s513 + $0x30] sm:$0xf]
      %v2714 = vld [vmem:[%s513 + $0x34] sm:$0xf]
      %v2715 = vld [vmem:[%s513 + $0x38] sm:$0xf]
      %v2716 = vld [vmem:[%s513 + $0x3c] sm:$0xf]
      %v2733 = vunpack.c.l.b16 %v2701
      %v2734 = vunpack.c.l.b16 %v2702
      %v2735 = vunpack.c.l.b16 %v2703
      %v2736 = vunpack.c.l.b16 %v2704
      %v2737 = vunpack.c.l.b16 %v2705
      %v2738 = vunpack.c.l.b16 %v2706
      %v2739 = vunpack.c.l.b16 %v2707
      %v2740 = vunpack.c.l.b16 %v2708
      %v2741 = vunpack.c.l.b16 %v2709
      %v2742 = vunpack.c.l.b16 %v2710
      %v2743 = vunpack.c.l.b16 %v2711
      %v2744 = vunpack.c.l.b16 %v2712
      %v2745 = vunpack.c.l.b16 %v2713
      %v2746 = vunpack.c.l.b16 %v2714
      %v2747 = vunpack.c.l.b16 %v2715
      %v2748 = vunpack.c.l.b16 %v2716
      %v2749 = vpack.c.b16 %v2734, %v2733
      %v2750 = vpack.c.b16 %v2736, %v2735
      %v2751 = vpack.c.b16 %v2738, %v2737
      %v2752 = vpack.c.b16 %v2740, %v2739
      %v2753 = vpack.c.b16 %v2742, %v2741
      %v2754 = vpack.c.b16 %v2744, %v2743
      %v2755 = vpack.c.b16 %v2746, %v2745
      %v2756 = vpack.c.b16 %v2748, %v2747
      %2765 = vmatpush.bf16.msra.mxu0 %v2756
      %2766 = vmatpush.bf16.msra.mxu0 %v2755
      %2767 = vmatpush.bf16.msra.mxu0 %v2754
      %2768 = vmatpush.bf16.msra.mxu0 %v2753
      %2769 = vmatpush.bf16.msra.mxu0 %v2752
      %2770 = vmatpush.bf16.msra.mxu0 %v2751
      %2771 = vmatpush.bf16.msra.mxu0 %v2750
      %2772 = vmatpush.bf16.msra.mxu0 %v2749
      %2773 = vmatmul.bf16.gmra.mxu0 %v2700
      %v2774 = vpop.f32.mrf.mxu0
      %v2775 = vadd.f32 0.0, %v2774
      %v2776 = vpop.f32.mrf.mxu0
      %2777 = vdwg.mxu0
      %v2778 = vadd.f32 %v2698, %v2775
      %v2779 = vld [vmem:[%s2131 + $0x2] sm:$0xf]
      %v2780 = vpack.c.bf16 %v2779, %v2779
      %v2781 = vld [vmem:[%s594] sm:$0xf]
      %v2782 = vld [vmem:[%s594 + $0x4] sm:$0xf]
      %v2783 = vld [vmem:[%s594 + $0x8] sm:$0xf]
      %v2784 = vld [vmem:[%s594 + $0xc] sm:$0xf]
      %v2785 = vld [vmem:[%s594 + $0x10] sm:$0xf]
      %v2786 = vld [vmem:[%s594 + $0x14] sm:$0xf]
      %v2787 = vld [vmem:[%s594 + $0x18] sm:$0xf]
      %v2788 = vld [vmem:[%s594 + $0x1c] sm:$0xf]
      %v2789 = vld [vmem:[%s594 + $0x20] sm:$0xf]
      %v2790 = vld [vmem:[%s594 + $0x24] sm:$0xf]
      %v2791 = vld [vmem:[%s594 + $0x28] sm:$0xf]
      %v2792 = vld [vmem:[%s594 + $0x2c] sm:$0xf]
      %v2793 = vld [vmem:[%s594 + $0x30] sm:$0xf]
      %v2794 = vld [vmem:[%s594 + $0x34] sm:$0xf]
      %v2795 = vld [vmem:[%s594 + $0x38] sm:$0xf]
      %v2796 = vld [vmem:[%s594 + $0x3c] sm:$0xf]
      %v2813 = vunpack.c.l.b16 %v2781
      %v2814 = vunpack.c.l.b16 %v2782
      %v2815 = vunpack.c.l.b16 %v2783
      %v2816 = vunpack.c.l.b16 %v2784
      %v2817 = vunpack.c.l.b16 %v2785
      %v2818 = vunpack.c.l.b16 %v2786
      %v2819 = vunpack.c.l.b16 %v2787
      %v2820 = vunpack.c.l.b16 %v2788
      %v2821 = vunpack.c.l.b16 %v2789
      %v2822 = vunpack.c.l.b16 %v2790
      %v2823 = vunpack.c.l.b16 %v2791
      %v2824 = vunpack.c.l.b16 %v2792
      %v2825 = vunpack.c.l.b16 %v2793
      %v2826 = vunpack.c.l.b16 %v2794
      %v2827 = vunpack.c.l.b16 %v2795
      %v2828 = vunpack.c.l.b16 %v2796
      %v2829 = vpack.c.b16 %v2814, %v2813
      %v2830 = vpack.c.b16 %v2816, %v2815
      %v2831 = vpack.c.b16 %v2818, %v2817
      %v2832 = vpack.c.b16 %v2820, %v2819
      %v2833 = vpack.c.b16 %v2822, %v2821
      %v2834 = vpack.c.b16 %v2824, %v2823
      %v2835 = vpack.c.b16 %v2826, %v2825
      %v2836 = vpack.c.b16 %v2828, %v2827
      %2845 = vmatpush.bf16.msra.mxu0 %v2836
      %2846 = vmatpush.bf16.msra.mxu0 %v2835
      %2847 = vmatpush.bf16.msra.mxu0 %v2834
      %2848 = vmatpush.bf16.msra.mxu0 %v2833
      %2849 = vmatpush.bf16.msra.mxu0 %v2832
      %2850 = vmatpush.bf16.msra.mxu0 %v2831
      %2851 = vmatpush.bf16.msra.mxu0 %v2830
      %2852 = vmatpush.bf16.msra.mxu0 %v2829
      %2853 = vmatmul.bf16.gmra.mxu0 %v2780
      %v2854 = vpop.f32.mrf.mxu0
      %v2855 = vadd.f32 0.0, %v2854
      %v2856 = vpop.f32.mrf.mxu0
      %2857 = vdwg.mxu0
      %v2858 = vadd.f32 %v2778, %v2855
      %s2859 = scalar_lea.vmem [#allocation2], 40
      %v2860 = vld [vmem:[%s2859] sm:$0xf]
      %v2861 = vpack.c.bf16 %v2860, %v2860
      %v2862 = vld [vmem:[%s676] sm:$0xf]
      %v2863 = vld [vmem:[%s676 + $0x4] sm:$0xf]
      %v2864 = vld [vmem:[%s676 + $0x8] sm:$0xf]
      %v2865 = vld [vmem:[%s676 + $0xc] sm:$0xf]
      %v2866 = vld [vmem:[%s676 + $0x10] sm:$0xf]
      %v2867 = vld [vmem:[%s676 + $0x14] sm:$0xf]
      %v2868 = vld [vmem:[%s676 + $0x18] sm:$0xf]
      %v2869 = vld [vmem:[%s676 + $0x1c] sm:$0xf]
      %v2870 = vld [vmem:[%s676 + $0x20] sm:$0xf]
      %v2871 = vld [vmem:[%s676 + $0x24] sm:$0xf]
      %v2872 = vld [vmem:[%s676 + $0x28] sm:$0xf]
      %v2873 = vld [vmem:[%s676 + $0x2c] sm:$0xf]
      %v2874 = vld [vmem:[%s676 + $0x30] sm:$0xf]
      %v2875 = vld [vmem:[%s676 + $0x34] sm:$0xf]
      %v2876 = vld [vmem:[%s676 + $0x38] sm:$0xf]
      %v2877 = vld [vmem:[%s676 + $0x3c] sm:$0xf]
      %v2894 = vunpack.c.l.b16 %v2862
      %v2895 = vunpack.c.l.b16 %v2863
      %v2896 = vunpack.c.l.b16 %v2864
      %v2897 = vunpack.c.l.b16 %v2865
      %v2898 = vunpack.c.l.b16 %v2866
      %v2899 = vunpack.c.l.b16 %v2867
      %v2900 = vunpack.c.l.b16 %v2868
      %v2901 = vunpack.c.l.b16 %v2869
      %v2902 = vunpack.c.l.b16 %v2870
      %v2903 = vunpack.c.l.b16 %v2871
      %v2904 = vunpack.c.l.b16 %v2872
      %v2905 = vunpack.c.l.b16 %v2873
      %v2906 = vunpack.c.l.b16 %v2874
      %v2907 = vunpack.c.l.b16 %v2875
      %v2908 = vunpack.c.l.b16 %v2876
      %v2909 = vunpack.c.l.b16 %v2877
      %v2910 = vpack.c.b16 %v2895, %v2894
      %v2911 = vpack.c.b16 %v2897, %v2896
      %v2912 = vpack.c.b16 %v2899, %v2898
      %v2913 = vpack.c.b16 %v2901, %v2900
      %v2914 = vpack.c.b16 %v2903, %v2902
      %v2915 = vpack.c.b16 %v2905, %v2904
      %v2916 = vpack.c.b16 %v2907, %v2906
      %v2917 = vpack.c.b16 %v2909, %v2908
      %2926 = vmatpush.bf16.msra.mxu0 %v2917
      %2927 = vmatpush.bf16.msra.mxu0 %v2916
      %2928 = vmatpush.bf16.msra.mxu0 %v2915
      %2929 = vmatpush.bf16.msra.mxu0 %v2914
      %2930 = vmatpush.bf16.msra.mxu0 %v2913
      %2931 = vmatpush.bf16.msra.mxu0 %v2912
      %2932 = vmatpush.bf16.msra.mxu0 %v2911
      %2933 = vmatpush.bf16.msra.mxu0 %v2910
      %2934 = vmatmul.bf16.gmra.mxu0 %v2861
      %v2935 = vpop.f32.mrf.mxu0
      %v2936 = vadd.f32 0.0, %v2935
      %v2937 = vpop.f32.mrf.mxu0
      %2938 = vdwg.mxu0
      %v2939 = vadd.f32 %v2858, %v2936
      %v2940 = vld [vmem:[%s2859 + $0x1] sm:$0xf]
      %v2941 = vpack.c.bf16 %v2940, %v2940
      %v2942 = vld [vmem:[%s757] sm:$0xf]
      %v2943 = vld [vmem:[%s757 + $0x4] sm:$0xf]
      %v2944 = vld [vmem:[%s757 + $0x8] sm:$0xf]
      %v2945 = vld [vmem:[%s757 + $0xc] sm:$0xf]
      %v2946 = vld [vmem:[%s757 + $0x10] sm:$0xf]
      %v2947 = vld [vmem:[%s757 + $0x14] sm:$0xf]
      %v2948 = vld [vmem:[%s757 + $0x18] sm:$0xf]
      %v2949 = vld [vmem:[%s757 + $0x1c] sm:$0xf]
      %v2950 = vld [vmem:[%s757 + $0x20] sm:$0xf]
      %v2951 = vld [vmem:[%s757 + $0x24] sm:$0xf]
      %v2952 = vld [vmem:[%s757 + $0x28] sm:$0xf]
      %v2953 = vld [vmem:[%s757 + $0x2c] sm:$0xf]
      %v2954 = vld [vmem:[%s757 + $0x30] sm:$0xf]
      %v2955 = vld [vmem:[%s757 + $0x34] sm:$0xf]
      %v2956 = vld [vmem:[%s757 + $0x38] sm:$0xf]
      %v2957 = vld [vmem:[%s757 + $0x3c] sm:$0xf]
      %v2974 = vunpack.c.l.b16 %v2942
      %v2975 = vunpack.c.l.b16 %v2943
      %v2976 = vunpack.c.l.b16 %v2944
      %v2977 = vunpack.c.l.b16 %v2945
      %v2978 = vunpack.c.l.b16 %v2946
      %v2979 = vunpack.c.l.b16 %v2947
      %v2980 = vunpack.c.l.b16 %v2948
      %v2981 = vunpack.c.l.b16 %v2949
      %v2982 = vunpack.c.l.b16 %v2950
      %v2983 = vunpack.c.l.b16 %v2951
      %v2984 = vunpack.c.l.b16 %v2952
      %v2985 = vunpack.c.l.b16 %v2953
      %v2986 = vunpack.c.l.b16 %v2954
      %v2987 = vunpack.c.l.b16 %v2955
      %v2988 = vunpack.c.l.b16 %v2956
      %v2989 = vunpack.c.l.b16 %v2957
      %v2990 = vpack.c.b16 %v2975, %v2974
      %v2991 = vpack.c.b16 %v2977, %v2976
      %v2992 = vpack.c.b16 %v2979, %v2978
      %v2993 = vpack.c.b16 %v2981, %v2980
      %v2994 = vpack.c.b16 %v2983, %v2982
      %v2995 = vpack.c.b16 %v2985, %v2984
      %v2996 = vpack.c.b16 %v2987, %v2986
      %v2997 = vpack.c.b16 %v2989, %v2988
      %3006 = vmatpush.bf16.msra.mxu0 %v2997
      %3007 = vmatpush.bf16.msra.mxu0 %v2996
      %3008 = vmatpush.bf16.msra.mxu0 %v2995
      %3009 = vmatpush.bf16.msra.mxu0 %v2994
      %3010 = vmatpush.bf16.msra.mxu0 %v2993
      %3011 = vmatpush.bf16.msra.mxu0 %v2992
      %3012 = vmatpush.bf16.msra.mxu0 %v2991
      %3013 = vmatpush.bf16.msra.mxu0 %v2990
      %3014 = vmatmul.bf16.gmra.mxu0 %v2941
      %v3015 = vpop.f32.mrf.mxu0
      %v3016 = vadd.f32 0.0, %v3015
      %v3017 = vpop.f32.mrf.mxu0
      %3018 = vdwg.mxu0
      %v3019 = vadd.f32 %v2939, %v3016
      %v3020 = vld [vmem:[%s2859 + $0x2] sm:$0xf]
      %v3021 = vpack.c.bf16 %v3020, %v3020
      %v3022 = vld [vmem:[%s838] sm:$0xf]
      %v3023 = vld [vmem:[%s838 + $0x4] sm:$0xf]
      %v3024 = vld [vmem:[%s838 + $0x8] sm:$0xf]
      %v3025 = vld [vmem:[%s838 + $0xc] sm:$0xf]
      %v3026 = vld [vmem:[%s838 + $0x10] sm:$0xf]
      %v3027 = vld [vmem:[%s838 + $0x14] sm:$0xf]
      %v3028 = vld [vmem:[%s838 + $0x18] sm:$0xf]
      %v3029 = vld [vmem:[%s838 + $0x1c] sm:$0xf]
      %v3030 = vld [vmem:[%s838 + $0x20] sm:$0xf]
      %v3031 = vld [vmem:[%s838 + $0x24] sm:$0xf]
      %v3032 = vld [vmem:[%s838 + $0x28] sm:$0xf]
      %v3033 = vld [vmem:[%s838 + $0x2c] sm:$0xf]
      %v3034 = vld [vmem:[%s838 + $0x30] sm:$0xf]
      %v3035 = vld [vmem:[%s838 + $0x34] sm:$0xf]
      %v3036 = vld [vmem:[%s838 + $0x38] sm:$0xf]
      %v3037 = vld [vmem:[%s838 + $0x3c] sm:$0xf]
      %v3054 = vunpack.c.l.b16 %v3022
      %v3055 = vunpack.c.l.b16 %v3023
      %v3056 = vunpack.c.l.b16 %v3024
      %v3057 = vunpack.c.l.b16 %v3025
      %v3058 = vunpack.c.l.b16 %v3026
      %v3059 = vunpack.c.l.b16 %v3027
      %v3060 = vunpack.c.l.b16 %v3028
      %v3061 = vunpack.c.l.b16 %v3029
      %v3062 = vunpack.c.l.b16 %v3030
      %v3063 = vunpack.c.l.b16 %v3031
      %v3064 = vunpack.c.l.b16 %v3032
      %v3065 = vunpack.c.l.b16 %v3033
      %v3066 = vunpack.c.l.b16 %v3034
      %v3067 = vunpack.c.l.b16 %v3035
      %v3068 = vunpack.c.l.b16 %v3036
      %v3069 = vunpack.c.l.b16 %v3037
      %v3070 = vpack.c.b16 %v3055, %v3054
      %v3071 = vpack.c.b16 %v3057, %v3056
      %v3072 = vpack.c.b16 %v3059, %v3058
      %v3073 = vpack.c.b16 %v3061, %v3060
      %v3074 = vpack.c.b16 %v3063, %v3062
      %v3075 = vpack.c.b16 %v3065, %v3064
      %v3076 = vpack.c.b16 %v3067, %v3066
      %v3077 = vpack.c.b16 %v3069, %v3068
      %3086 = vmatpush.bf16.msra.mxu0 %v3077
      %3087 = vmatpush.bf16.msra.mxu0 %v3076
      %3088 = vmatpush.bf16.msra.mxu0 %v3075
      %3089 = vmatpush.bf16.msra.mxu0 %v3074
      %3090 = vmatpush.bf16.msra.mxu0 %v3073
      %3091 = vmatpush.bf16.msra.mxu0 %v3072
      %3092 = vmatpush.bf16.msra.mxu0 %v3071
      %3093 = vmatpush.bf16.msra.mxu0 %v3070
      %3094 = vmatmul.bf16.gmra.mxu0 %v3021
      %v3095 = vpop.f32.mrf.mxu0
      %v3096 = vadd.f32 0.0, %v3095
      %v3097 = vpop.f32.mrf.mxu0
      %3098 = vdwg.mxu0
      %v3099 = vadd.f32 %v3019, %v3096
      %v3100 = vld [vmem:[%s2] sm:$0x1]
      %v3102 = vperm.slane %v3100, 0
      %v3104 = vadd.f32 %v3099, %v3102
      %v3105 = vmax.f32 %v3104, 0.0
      %v3106 = vpack.c.bf16 %v3105, %v3105
      %s3107 = scalar_lea.vmem %s170, 6
      %3108 = vst [vmem:[%s3107] sm:$0x3] %v3106
      %p3109 = scmp.lt.s32.totalorder %s14, 1
      %s3110 = scalar_select %p3109, %s14, 1
      %s3111 = smul.addr %s3110, 4
      %s3112 = smul.addr %s3111, 2
      %s3113 = scalar_lea.vmem %s3, %s3112
      // Predicated region
      $region33: #{model_forward.10} parent=31 // pred_check
        %p3114 = pneg %p100
      $region34: #{model_forward.10} parent=31 // pred_check_branch
        %3116 = sbr.rel (%p3114) target = $region36
      $region35: #{model_forward.10} parent=31 // pred_region
        _
      $region36: #{model_forward.10} parent=31 // pred_fallthru
        _
    $region32: #{model_forward.10} parent=5 // pred_fallthru
      _
    %p3117 = scmp.le.s32.totalorder 2, %s9
    // Predicated region
    $region37: #{model_forward.10} parent=5 // pred_check
      %p3118 = pneg %p3117
    $region38: #{model_forward.10} parent=5 // pred_check_branch
      %3120 = sbr.rel (%p3118) target = $region40
    $region39: #{model_forward.10} parent=5 // pred_region
      %s3121 = ssub.s32 %s9, 2
      // Predicated region
      $region41: #{model_forward.10} parent=39 // pred_check
        %p3122 = pneg %p106
      $region42: #{model_forward.10} parent=39 // pred_check_branch
        %3124 = sbr.rel (%p3122) target = $region44
      $region43: #{model_forward.10} parent=39 // pred_region
        %p3125 = scmp.lt.s32.totalorder %s15, 1
        %s3126 = scalar_select %p3125, %s15, 1
        %s3127 = smul.addr %s3126, 4
        %s3128 = smul.addr %s3127, 2
        %s3129 = scalar_lea.vmem %s3, %s3128
      $region44: #{model_forward.10} parent=39 // pred_fallthru
        _
    $region40: #{model_forward.10} parent=5 // pred_fallthru
      _
  $region6: #{model_forward.10} parent=0 // loop_footer
    %s13 = sadd.s32 1, %s9
  $region7: #{model_forward.10} parent=0 // loop_footer_branch
    %8 = sbr.rel target = $region3
  $region8: #{model_forward.10} parent=0 // loop_exit
    _

// kernel: model_forward.12
$region0: #{model_forward.12}
  #allocation0 [shape = 'u32[]', space=smem, size = 0x4, offset = 0x4, fixed_abs, tag = 'smem constant byte address 0x4 - core index']
  #allocation1 [shape = 'u32[72,128]{1,0:T(1,128)}', space=vmem, size = 0x9000, scoped, tag = 'internal scratch']
  #allocation2 [shape = 'f32[10,10,256]{2,1,0:T(8,128)}', space=vmem, size = 0x28000, scoped, tag = 'scratch operand']
  %s0 = inlined_call_operand.vmem [shape: bf16[2,8,8,256], index: 0, kind: input, shape index: {}]
  %s1 = inlined_call_operand.vmem [shape: bf16[3,3,256,128], index: 1, kind: input, shape index: {}]
  %s2 = inlined_call_operand.vmem [shape: f32[1,128], index: 2, kind: input, shape index: {}]
  %s3 = inlined_call_operand.vmem [shape: bf16[2,8,8,128], index: 3, kind: output, shape index: {}]
  %s4 = sld [smem:[#allocation0]]
  $region45: #{model_forward.12} parent=0
    _
  %s6 = ssub.s32 1, %s4
  %s7 = scalar_select 0, %s6, %s4
  loop: start=0, step=1, limit=4
  $region2: #{model_forward.12} parent=0 // loop_pre_header
    _
  $region3: #{model_forward.12} parent=0 // loop_header
    %s9 = sphi 0, %s13
    %p10 = scmp.ge.s32.totalorder %s9, 4
    %s19 = sphi 0, %s21
    %s22 = sphi 0, %s19
    %s23 = sphi 0, %s22
    %s39 = sphi 0, %s23
    %s43 = sphi 0, %s43
    %s45 = sphi 0, %s43
    %s46 = sphi 0, %s45
    %s60 = sphi 0, %s46
    %s64 = sphi 0, %s64
    %s66 = sphi 0, %s64
    %s67 = sphi 0, %s66
    %s81 = sphi 0, %s67
    %s87 = sphi 0, %s89
    %s90 = sphi 0, %s87
    %s91 = sphi 0, %s90
    %s107 = sphi 0, %s91
  $region4: #{model_forward.12} parent=0 // loop_header_branch
    %12 = sbr.rel (%p10) target = $region8
  $region5: #{model_forward.12} parent=0 // loop_body
    %s14 = ssub.s32 %s9, 1
    %s15 = ssub.s32 %s9, 2
    %s16 = sadd.s32 %s9, 1
    %s17 = ssub.s32 %s9, %s16
    %p18 = scmp.eq.s32.totalorder %s17, 0
    %s20 = sadd.s32 %s19, 1
    %s21 = scalar_select %p18, %s19, %s20
    %p24 = pneg %p18
    %p25 = scmp.eq.s32.totalorder %s9, 1
    %p26 = por %p24, %p25
    %p27 = scmp.ne.s32.totalorder %s19, %s22
    %p28 = scmp.eq.s32.totalorder %s9, 0
    %p29 = por %p27, %p28
    %p30 = scmp.ne.s32.totalorder %s19, %s22
    %p31 = scmp.eq.s32.totalorder %s14, 1
    %p32 = por %p30, %p31
    %p33 = scmp.ne.s32.totalorder %s22, %s23
    %p34 = scmp.eq.s32.totalorder %s14, 0
    %p35 = por %p33, %p34
    %p36 = scmp.ne.s32.totalorder %s22, %s23
    %p37 = scmp.eq.s32.totalorder %s15, 1
    %p38 = por %p36, %p37
    %p40 = scmp.ne.s32.totalorder %s23, %s39
    %p41 = scmp.eq.s32.totalorder %s15, 0
    %p42 = por %p40, %p41
    %s44 = sadd.s32 %s43, 1
    %p47 = scmp.eq.s32.totalorder %s9, 1
    %p48 = scmp.ne.s32.totalorder %s43, %s45
    %p49 = scmp.eq.s32.totalorder %s9, 0
    %p50 = por %p48, %p49
    %p51 = scmp.ne.s32.totalorder %s43, %s45
    %p52 = scmp.eq.s32.totalorder %s14, 1
    %p53 = por %p51, %p52
    %p54 = scmp.ne.s32.totalorder %s45, %s46
    %p55 = scmp.eq.s32.totalorder %s14, 0
    %p56 = por %p54, %p55
    %p57 = scmp.ne.s32.totalorder %s45, %s46
    %p58 = scmp.eq.s32.totalorder %s15, 1
    %p59 = por %p57, %p58
    %p61 = scmp.ne.s32.totalorder %s46, %s60
    %p62 = scmp.eq.s32.totalorder %s15, 0
    %p63 = por %p61, %p62
    %s65 = sadd.s32 %s64, 1
    %p68 = scmp.eq.s32.totalorder %s9, 1
    %p69 = scmp.ne.s32.totalorder %s64, %s66
    %p70 = scmp.eq.s32.totalorder %s9, 0
    %p71 = por %p69, %p70
    %p72 = scmp.ne.s32.totalorder %s64, %s66
    %p73 = scmp.eq.s32.totalorder %s14, 1
    %p74 = por %p72, %p73
    %p75 = scmp.ne.s32.totalorder %s66, %s67
    %p76 = scmp.eq.s32.totalorder %s14, 0
    %p77 = por %p75, %p76
    %p78 = scmp.ne.s32.totalorder %s66, %s67
    %p79 = scmp.eq.s32.totalorder %s15, 1
    %p80 = por %p78, %p79
    %p82 = scmp.ne.s32.totalorder %s67, %s81
    %p83 = scmp.eq.s32.totalorder %s15, 0
    %p84 = por %p82, %p83
    %s85 = ssub.s32 %s9, %s16
    %p86 = scmp.eq.s32.totalorder %s85, 0
    %s88 = sadd.s32 %s87, 1
    %s89 = scalar_select %p86, %s87, %s88
    %p92 = pneg %p86
    %p93 = scmp.eq.s32.totalorder %s9, 1
    %p94 = por %p92, %p93
    %p95 = scmp.ne.s32.totalorder %s87, %s90
    %p96 = scmp.eq.s32.totalorder %s9, 0
    %p97 = por %p95, %p96
    %p98 = scmp.ne.s32.totalorder %s87, %s90
    %p99 = scmp.eq.s32.totalorder %s14, 1
    %p100 = por %p98, %p99
    %p101 = scmp.ne.s32.totalorder %s90, %s91
    %p102 = scmp.eq.s32.totalorder %s14, 0
    %p103 = por %p101, %p102
    %p104 = scmp.ne.s32.totalorder %s90, %s91
    %p105 = scmp.eq.s32.totalorder %s15, 1
    %p106 = por %p104, %p105
    %p108 = scmp.ne.s32.totalorder %s91, %s107
    %p109 = scmp.eq.s32.totalorder %s15, 0
    %p110 = por %p108, %p109
    %p111 = scmp.le.s32.totalorder 1, %s9
    %p112 = scmp.lt.s32.totalorder %s9, 3
    %p113 = pnand %p111, %p112
    %p114 = pneg %p113
    // Predicated region
    $region9: #{model_forward.12} parent=5 // pred_check
      _
    $region10: #{model_forward.12} parent=5 // pred_check_branch
      %116 = sbr.rel (%p113) target = $region12
    $region11: #{model_forward.12} parent=5 // pred_region
      %s117 = ssub.s32 %s9, 1
      // Predicated region
      $region13: #{model_forward.12} parent=11 // pred_check
        %p118 = pneg %p56
      $region14: #{model_forward.12} parent=11 // pred_check_branch
        %120 = sbr.rel (%p118) target = $region16
      $region15: #{model_forward.12} parent=11 // pred_region
        _
      $region16: #{model_forward.12} parent=11 // pred_fallthru
        _
      // Predicated region
      $region17: #{model_forward.12} parent=11 // pred_check
        %p121 = pneg %p77
      $region18: #{model_forward.12} parent=11 // pred_check_branch
        %123 = sbr.rel (%p121) target = $region20
      $region19: #{model_forward.12} parent=11 // pred_region
        _
      $region20: #{model_forward.12} parent=11 // pred_fallthru
        _
    $region12: #{model_forward.12} parent=5 // pred_fallthru
      _
    %p124 = scmp.lt.s32.totalorder %s9, 2
    // Predicated region
    $region21: #{model_forward.12} parent=5 // pred_check
      %p125 = pneg %p124
    $region22: #{model_forward.12} parent=5 // pred_check_branch
      %127 = sbr.rel (%p125) target = $region24
    $region23: #{model_forward.12} parent=5 // pred_region
      // Predicated region
      $region25: #{model_forward.12} parent=23 // pred_check
        %p128 = pneg %p29
      $region26: #{model_forward.12} parent=23 // pred_check_branch
        %130 = sbr.rel (%p128) target = $region28
      $region27: #{model_forward.12} parent=23 // pred_region
        %p131 = scmp.lt.s32.totalorder %s9, 1
        %s132 = scalar_select %p131, %s9, 1
        %s133 = smul.addr %s132, 16
        %s134 = smul.addr %s133, 4
        %s135 = scalar_lea.vmem %s0, %s134
      $region28: #{model_forward.12} parent=23 // pred_fallthru
        _
    $region24: #{model_forward.12} parent=5 // pred_fallthru
      _
    %p136 = scmp.le.s32.totalorder 1, %s9
    %p137 = scmp.lt.s32.totalorder %s9, 3
    %p138 = pnand %p136, %p137
    %p139 = pneg %p138
    // Predicated region
    $region29: #{model_forward.12} parent=5 // pred_check
      _
    $region30: #{model_forward.12} parent=5 // pred_check_branch
      %141 = sbr.rel (%p138) target = $region32
    $region31: #{model_forward.12} parent=5 // pred_region
      %s142 = ssub.s32 %s9, 1
      %p143 = scmp.lt.s32.totalorder %s14, 1
      %s144 = scalar_select %p143, %s14, 1
      %s145 = smul.addr %s144, 16
      %s146 = smul.addr %s145, 4
      %s147 = scalar_lea.vmem %s0, %s146
      %p148 = pneg %p35
      %p149 = pneg %p32
      %p150 = pneg %p56
      %p151 = pneg %p53
      %p152 = pneg %p77
      %p153 = pneg %p74
      %p154 = pneg %p103
      %p155 = pneg %p100
      %p156 = scmp.lt.s32.totalorder %s14, 1
      %s157 = scalar_select %p156, %s14, 1
      %s158 = smul.addr %s157, 8
      %s159 = smul.addr %s158, 4
      %s160 = scalar_lea.vmem %s3, %s159
      %p161 = scmp.lt.s32.totalorder %s14, 1
      %s162 = scalar_select %p161, %s14, 1
      %s163 = smul.addr %s162, 16
      %s164 = smul.addr %s163, 4
      %s165 = scalar_lea.vmem %s0, %s164
      %p166 = scmp.lt.s32.totalorder %s14, 1
      %s167 = scalar_select %p166, %s14, 1
      %s168 = smul.addr %s167, 8
      %s169 = smul.addr %s168, 4
      %s170 = scalar_lea.vmem %s3, %s169
      %171 = vst [vmem:[#allocation2] sm:$0xff] 0.0
      %172 = vst [vmem:[#allocation2 + $0x8] sm:$0xff] 0.0
      %173 = vst [vmem:[#allocation2 + $0x10] sm:$0x3] 0.0
      %174 = vst [vmem:[#allocation2 + $0x18] sm:$0x3] 0.0
      %175 = vst [vmem:[#allocation2 + $0x20] sm:$0xff] 0.0
      %176 = vst [vmem:[#allocation2 + $0x28] sm:$0xff] 0.0
      %177 = vst [vmem:[#allocation2 + $0x30] sm:$0x3] 0.0
      %178 = vst [vmem:[#allocation2 + $0x38] sm:$0x3] 0.0
      %179 = vst [vmem:[#allocation2 + $0x40] sm:$0xff] 0.0
      %180 = vst [vmem:[#allocation2 + $0x48] sm:$0xff] 0.0
      %181 = vst [vmem:[#allocation2 + $0x50] sm:$0x3] 0.0
      %182 = vst [vmem:[#allocation2 + $0x58] sm:$0x3] 0.0
      %183 = vst [vmem:[#allocation2 + $0x60] sm:$0xff] 0.0
      %184 = vst [vmem:[#allocation2 + $0x68] sm:$0xff] 0.0
      %185 = vst [vmem:[#allocation2 + $0x70] sm:$0x3] 0.0
      %186 = vst [vmem:[#allocation2 + $0x78] sm:$0x3] 0.0
      %187 = vst [vmem:[#allocation2 + $0x80] sm:$0xff] 0.0
      %188 = vst [vmem:[#allocation2 + $0x88] sm:$0xff] 0.0
      %189 = vst [vmem:[#allocation2 + $0x90] sm:$0x3] 0.0
      %190 = vst [vmem:[#allocation2 + $0x98] sm:$0x3] 0.0
      %191 = vst [vmem:[#allocation2 + $0xa0] sm:$0xff] 0.0
      %192 = vst [vmem:[#allocation2 + $0xa8] sm:$0xff] 0.0
      %193 = vst [vmem:[#allocation2 + $0xb0] sm:$0x3] 0.0
      %194 = vst [vmem:[#allocation2 + $0xb8] sm:$0x3] 0.0
      %195 = vst [vmem:[#allocation2 + $0xc0] sm:$0xff] 0.0
      %196 = vst [vmem:[#allocation2 + $0xc8] sm:$0xff] 0.0
      %197 = vst [vmem:[#allocation2 + $0xd0] sm:$0x3] 0.0
      %198 = vst [vmem:[#allocation2 + $0xd8] sm:$0x3] 0.0
      %199 = vst [vmem:[#allocation2 + $0xe0] sm:$0xff] 0.0
      %200 = vst [vmem:[#allocation2 + $0xe8] sm:$0xff] 0.0
      %201 = vst [vmem:[#allocation2 + $0xf0] sm:$0x3] 0.0
      %202 = vst [vmem:[#allocation2 + $0xf8] sm:$0x3] 0.0
      %203 = vst [vmem:[#allocation2 + $0x100] sm:$0xff] 0.0
      %204 = vst [vmem:[#allocation2 + $0x108] sm:$0xff] 0.0
      %205 = vst [vmem:[#allocation2 + $0x110] sm:$0x3] 0.0
      %206 = vst [vmem:[#allocation2 + $0x118] sm:$0x3] 0.0
      %207 = vst [vmem:[#allocation2 + $0x120] sm:$0xff] 0.0
      %208 = vst [vmem:[#allocation2 + $0x128] sm:$0xff] 0.0
      %209 = vst [vmem:[#allocation2 + $0x130] sm:$0x3] 0.0
      %210 = vst [vmem:[#allocation2 + $0x138] sm:$0x3] 0.0
      %v211 = vld [vmem:[%s165] sm:$0xff]
      %v212 = vld [vmem:[%s165 + $0x8] sm:$0xff]
      %v213 = vld [vmem:[%s165 + $0x10] sm:$0xff]
      %v214 = vld [vmem:[%s165 + $0x18] sm:$0xff]
      %v215 = vld [vmem:[%s165 + $0x20] sm:$0xff]
      %v216 = vld [vmem:[%s165 + $0x28] sm:$0xff]
      %v217 = vld [vmem:[%s165 + $0x30] sm:$0xff]
      %v218 = vld [vmem:[%s165 + $0x38] sm:$0xff]
      %v219 = vunpack.c.l.bf16 %v211
      %v220 = vunpack.c.h.bf16 %v211
      %v221 = vunpack.c.l.bf16 %v212
      %v222 = vunpack.c.h.bf16 %v212
      %v223 = vunpack.c.l.bf16 %v213
      %v224 = vunpack.c.h.bf16 %v213
      %v225 = vunpack.c.l.bf16 %v214
      %v226 = vunpack.c.h.bf16 %v214
      %v227 = vunpack.c.l.bf16 %v215
      %v228 = vunpack.c.h.bf16 %v215
      %v229 = vunpack.c.l.bf16 %v216
      %v230 = vunpack.c.h.bf16 %v216
      %v231 = vunpack.c.l.bf16 %v217
      %v232 = vunpack.c.h.bf16 %v217
      %v233 = vunpack.c.l.bf16 %v218
      %v234 = vunpack.c.h.bf16 %v218
      %v251 = vrot.slane %v219, 7
      %v252 = vrot.slane %v220, 7
      %v253 = vrot.slane %v221, 7
      %v254 = vrot.slane %v222, 7
      %v255 = vrot.slane %v223, 7
      %v256 = vrot.slane %v224, 7
      %v257 = vrot.slane %v225, 7
      %v258 = vrot.slane %v226, 7
      %v259 = vrot.slane %v227, 7
      %v260 = vrot.slane %v228, 7
      %v261 = vrot.slane %v229, 7
      %v262 = vrot.slane %v230, 7
      %v263 = vrot.slane %v231, 7
      %v264 = vrot.slane %v232, 7
      %v265 = vrot.slane %v233, 7
      %v266 = vrot.slane %v234, 7
      %s283 = scalar_lea.vmem [#allocation2], 32
      %284 = vst [vmem:[%s283] sm:$0xfe] %v251
      %285 = vst [vmem:[%s283 + $0x8] sm:$0xfe] %v252
      %286 = vst [vmem:[%s283 + $0x10] sm:$0x1] %v251
      %287 = vst [vmem:[%s283 + $0x18] sm:$0x1] %v252
      %288 = vst [vmem:[%s283 + $0x20] sm:$0xfe] %v253
      %289 = vst [vmem:[%s283 + $0x28] sm:$0xfe] %v254
      %290 = vst [vmem:[%s283 + $0x30] sm:$0x1] %v253
      %291 = vst [vmem:[%s283 + $0x38] sm:$0x1] %v254
      %292 = vst [vmem:[%s283 + $0x40] sm:$0xfe] %v255
      %293 = vst [vmem:[%s283 + $0x48] sm:$0xfe] %v256
      %294 = vst [vmem:[%s283 + $0x50] sm:$0x1] %v255
      %295 = vst [vmem:[%s283 + $0x58] sm:$0x1] %v256
      %296 = vst [vmem:[%s283 + $0x60] sm:$0xfe] %v257
      %297 = vst [vmem:[%s283 + $0x68] sm:$0xfe] %v258
      %298 = vst [vmem:[%s283 + $0x70] sm:$0x1] %v257
      %299 = vst [vmem:[%s283 + $0x78] sm:$0x1] %v258
      %300 = vst [vmem:[%s283 + $0x80] sm:$0xfe] %v259
      %301 = vst [vmem:[%s283 + $0x88] sm:$0xfe] %v260
      %302 = vst [vmem:[%s283 + $0x90] sm:$0x1] %v259
      %303 = vst [vmem:[%s283 + $0x98] sm:$0x1] %v260
      %304 = vst [vmem:[%s283 + $0xa0] sm:$0xfe] %v261
      %305 = vst [vmem:[%s283 + $0xa8] sm:$0xfe] %v262
      %306 = vst [vmem:[%s283 + $0xb0] sm:$0x1] %v261
      %307 = vst [vmem:[%s283 + $0xb8] sm:$0x1] %v262
      %308 = vst [vmem:[%s283 + $0xc0] sm:$0xfe] %v263
      %309 = vst [vmem:[%s283 + $0xc8] sm:$0xfe] %v264
      %310 = vst [vmem:[%s283 + $0xd0] sm:$0x1] %v263
      %311 = vst [vmem:[%s283 + $0xd8] sm:$0x1] %v264
      %312 = vst [vmem:[%s283 + $0xe0] sm:$0xfe] %v265
      %313 = vst [vmem:[%s283 + $0xe8] sm:$0xfe] %v266
      %314 = vst [vmem:[%s283 + $0xf0] sm:$0x1] %v265
      %315 = vst [vmem:[%s283 + $0xf8] sm:$0x1] %v266
      %v316 = vld [vmem:[#allocation2] sm:$0xff]
      %v317 = vld [vmem:[#allocation2 + $0x8] sm:$0xff]
      %v318 = vld [vmem:[#allocation2 + $0x20] sm:$0xff]
      %v319 = vld [vmem:[#allocation2 + $0x28] sm:$0xff]
      %v320 = vld [vmem:[#allocation2 + $0x40] sm:$0xff]
      %v321 = vld [vmem:[#allocation2 + $0x48] sm:$0xff]
      %v322 = vld [vmem:[#allocation2 + $0x60] sm:$0xff]
      %v323 = vld [vmem:[#allocation2 + $0x68] sm:$0xff]
      %v324 = vld [vmem:[#allocation2 + $0x80] sm:$0xff]
      %v325 = vld [vmem:[#allocation2 + $0x88] sm:$0xff]
      %v326 = vld [vmem:[#allocation2 + $0xa0] sm:$0xff]
      %v327 = vld [vmem:[#allocation2 + $0xa8] sm:$0xff]
      %v328 = vld [vmem:[#allocation2 + $0xc0] sm:$0xff]
      %v329 = vld [vmem:[#allocation2 + $0xc8] sm:$0xff]
      %v330 = vld [vmem:[#allocation2 + $0xe0] sm:$0xff]
      %v331 = vld [vmem:[#allocation2 + $0xe8] sm:$0xff]
      %v332 = vpack.c.bf16 %v318, %v316
      %v333 = vpack.c.bf16 %v319, %v317
      %v334 = vpack.c.bf16 %v322, %v320
      %v335 = vpack.c.bf16 %v323, %v321
      %v336 = vpack.c.bf16 %v326, %v324
      %v337 = vpack.c.bf16 %v327, %v325
      %v338 = vpack.c.bf16 %v330, %v328
      %v339 = vpack.c.bf16 %v331, %v329
      %v340 = vld [vmem:[%s1] sm:$0xf]
      %v341 = vld [vmem:[%s1 + $0x4] sm:$0xf]
      %v342 = vld [vmem:[%s1 + $0x8] sm:$0xf]
      %v343 = vld [vmem:[%s1 + $0xc] sm:$0xf]
      %v344 = vld [vmem:[%s1 + $0x10] sm:$0xf]
      %v345 = vld [vmem:[%s1 + $0x14] sm:$0xf]
      %v346 = vld [vmem:[%s1 + $0x18] sm:$0xf]
      %v347 = vld [vmem:[%s1 + $0x1c] sm:$0xf]
      %v348 = vld [vmem:[%s1 + $0x20] sm:$0xf]
      %v349 = vld [vmem:[%s1 + $0x24] sm:$0xf]
      %v350 = vld [vmem:[%s1 + $0x28] sm:$0xf]
      %v351 = vld [vmem:[%s1 + $0x2c] sm:$0xf]
      %v352 = vld [vmem:[%s1 + $0x30] sm:$0xf]
      %v353 = vld [vmem:[%s1 + $0x34] sm:$0xf]
      %v354 = vld [vmem:[%s1 + $0x38] sm:$0xf]
      %v355 = vld [vmem:[%s1 + $0x3c] sm:$0xf]
      %v356 = vld [vmem:[%s1 + $0x40] sm:$0xf]
      %v357 = vld [vmem:[%s1 + $0x44] sm:$0xf]
      %v358 = vld [vmem:[%s1 + $0x48] sm:$0xf]
      %v359 = vld [vmem:[%s1 + $0x4c] sm:$0xf]
      %v360 = vld [vmem:[%s1 + $0x50] sm:$0xf]
      %v361 = vld [vmem:[%s1 + $0x54] sm:$0xf]
      %v362 = vld [vmem:[%s1 + $0x58] sm:$0xf]
      %v363 = vld [vmem:[%s1 + $0x5c] sm:$0xf]
      %v364 = vld [vmem:[%s1 + $0x60] sm:$0xf]
      %v365 = vld [vmem:[%s1 + $0x64] sm:$0xf]
      %v366 = vld [vmem:[%s1 + $0x68] sm:$0xf]
      %v367 = vld [vmem:[%s1 + $0x6c] sm:$0xf]
      %v368 = vld [vmem:[%s1 + $0x70] sm:$0xf]
      %v369 = vld [vmem:[%s1 + $0x74] sm:$0xf]
      %v370 = vld [vmem:[%s1 + $0x78] sm:$0xf]
      %v371 = vld [vmem:[%s1 + $0x7c] sm:$0xf]
      %v372 = vld [vmem:[#allocation2] sm:$0xfe]
      %v373 = vld [vmem:[#allocation2 + $0x8] sm:$0xfe]
      %v374 = vld [vmem:[#allocation2 + $0x10] sm:$0x1]
      %v375 = vld [vmem:[#allocation2 + $0x18] sm:$0x1]
      %v376 = vld [vmem:[#allocation2 + $0x20] sm:$0xfe]
      %v377 = vld [vmem:[#allocation2 + $0x28] sm:$0xfe]
      %v378 = vld [vmem:[#allocation2 + $0x30] sm:$0x1]
      %v379 = vld [vmem:[#allocation2 + $0x38] sm:$0x1]
      %v380 = vld [vmem:[#allocation2 + $0x40] sm:$0xfe]
      %v381 = vld [vmem:[#allocation2 + $0x48] sm:$0xfe]
      %v382 = vld [vmem:[#allocation2 + $0x50] sm:$0x1]
      %v383 = vld [vmem:[#allocation2 + $0x58] sm:$0x1]
      %v384 = vld [vmem:[#allocation2 + $0x60] sm:$0xfe]
      %v385 = vld [vmem:[#allocation2 + $0x68] sm:$0xfe]
      %v386 = vld [vmem:[#allocation2 + $0x70] sm:$0x1]
      %v387 = vld [vmem:[#allocation2 + $0x78] sm:$0x1]
      %v388 = vld [vmem:[#allocation2 + $0x80] sm:$0xfe]
      %v389 = vld [vmem:[#allocation2 + $0x88] sm:$0xfe]
      %v390 = vld [vmem:[#allocation2 + $0x90] sm:$0x1]
      %v391 = vld [vmem:[#allocation2 + $0x98] sm:$0x1]
      %v392 = vld [vmem:[#allocation2 + $0xa0] sm:$0xfe]
      %v393 = vld [vmem:[#allocation2 + $0xa8] sm:$0xfe]
      %v394 = vld [vmem:[#allocation2 + $0xb0] sm:$0x1]
      %v395 = vld [vmem:[#allocation2 + $0xb8] sm:$0x1]
      %v396 = vld [vmem:[#allocation2 + $0xc0] sm:$0xfe]
      %v397 = vld [vmem:[#allocation2 + $0xc8] sm:$0xfe]
      %v398 = vld [vmem:[#allocation2 + $0xd0] sm:$0x1]
      %v399 = vld [vmem:[#allocation2 + $0xd8] sm:$0x1]
      %v400 = vld [vmem:[#allocation2 + $0xe0] sm:$0xfe]
      %v401 = vld [vmem:[#allocation2 + $0xe8] sm:$0xfe]
      %v402 = vld [vmem:[#allocation2 + $0xf0] sm:$0x1]
      %v403 = vld [vmem:[#allocation2 + $0xf8] sm:$0x1]
      %vm436 = vcmask 1046528
      %v437 = vrot.slane %v372, 1
      %v438 = vrot.slane %v374, 1
      %v439 = vsel %vm436, %v437, %v438
      %v440 = vrot.slane %v373, 1
      %v441 = vrot.slane %v375, 1
      %v442 = vsel %vm436, %v440, %v441
      %v443 = vrot.slane %v376, 1
      %v444 = vrot.slane %v378, 1
      %v445 = vsel %vm436, %v443, %v444
      %v446 = vrot.slane %v377, 1
      %v447 = vrot.slane %v379, 1
      %v448 = vsel %vm436, %v446, %v447
      %v449 = vrot.slane %v380, 1
      %v450 = vrot.slane %v382, 1
      %v451 = vsel %vm436, %v449, %v450
      %v452 = vrot.slane %v381, 1
      %v453 = vrot.slane %v383, 1
      %v454 = vsel %vm436, %v452, %v453
      %v455 = vrot.slane %v384, 1
      %v456 = vrot.slane %v386, 1
      %v457 = vsel %vm436, %v455, %v456
      %v458 = vrot.slane %v385, 1
      %v459 = vrot.slane %v387, 1
      %v460 = vsel %vm436, %v458, %v459
      %v461 = vrot.slane %v388, 1
      %v462 = vrot.slane %v390, 1
      %v463 = vsel %vm436, %v461, %v462
      %v464 = vrot.slane %v389, 1
      %v465 = vrot.slane %v391, 1
      %v466 = vsel %vm436, %v464, %v465
      %v467 = vrot.slane %v392, 1
      %v468 = vrot.slane %v394, 1
      %v469 = vsel %vm436, %v467, %v468
      %v470 = vrot.slane %v393, 1
      %v471 = vrot.slane %v395, 1
      %v472 = vsel %vm436, %v470, %v471
      %v473 = vrot.slane %v396, 1
      %v474 = vrot.slane %v398, 1
      %v475 = vsel %vm436, %v473, %v474
      %v476 = vrot.slane %v397, 1
      %v477 = vrot.slane %v399, 1
      %v478 = vsel %vm436, %v476, %v477
      %v479 = vrot.slane %v400, 1
      %v480 = vrot.slane %v402, 1
      %v481 = vsel %vm436, %v479, %v480
      %v482 = vrot.slane %v401, 1
      %v483 = vrot.slane %v403, 1
      %v484 = vsel %vm436, %v482, %v483
      %v501 = vpack.c.bf16 %v445, %v439
      %v502 = vpack.c.bf16 %v448, %v442
      %v503 = vpack.c.bf16 %v457, %v451
      %v504 = vpack.c.bf16 %v460, %v454
      %v505 = vpack.c.bf16 %v469, %v463
      %v506 = vpack.c.bf16 %v472, %v466
      %v507 = vpack.c.bf16 %v481, %v475
      %v508 = vpack.c.bf16 %v484, %v478
      %s509 = scalar_lea.vmem %s1, 128
      %v510 = vld [vmem:[%s509] sm:$0xf]
      %v511 = vld [vmem:[%s509 + $0x4] sm:$0xf]
      %v512 = vld [vmem:[%s509 + $0x8] sm:$0xf]
      %v513 = vld [vmem:[%s509 + $0xc] sm:$0xf]
      %v514 = vld [vmem:[%s509 + $0x10] sm:$0xf]
      %v515 = vld [vmem:[%s509 + $0x14] sm:$0xf]
      %v516 = vld [vmem:[%s509 + $0x18] sm:$0xf]
      %v517 = vld [vmem:[%s509 + $0x1c] sm:$0xf]
      %v518 = vld [vmem:[%s509 + $0x20] sm:$0xf]
      %v519 = vld [vmem:[%s509 + $0x24] sm:$0xf]
      %v520 = vld [vmem:[%s509 + $0x28] sm:$0xf]
      %v521 = vld [vmem:[%s509 + $0x2c] sm:$0xf]
      %v522 = vld [vmem:[%s509 + $0x30] sm:$0xf]
      %v523 = vld [vmem:[%s509 + $0x34] sm:$0xf]
      %v524 = vld [vmem:[%s509 + $0x38] sm:$0xf]
      %v525 = vld [vmem:[%s509 + $0x3c] sm:$0xf]
      %v526 = vld [vmem:[%s509 + $0x40] sm:$0xf]
      %v527 = vld [vmem:[%s509 + $0x44] sm:$0xf]
      %v528 = vld [vmem:[%s509 + $0x48] sm:$0xf]
      %v529 = vld [vmem:[%s509 + $0x4c] sm:$0xf]
      %v530 = vld [vmem:[%s509 + $0x50] sm:$0xf]
      %v531 = vld [vmem:[%s509 + $0x54] sm:$0xf]
      %v532 = vld [vmem:[%s509 + $0x58] sm:$0xf]
      %v533 = vld [vmem:[%s509 + $0x5c] sm:$0xf]
      %v534 = vld [vmem:[%s509 + $0x60] sm:$0xf]
      %v535 = vld [vmem:[%s509 + $0x64] sm:$0xf]
      %v536 = vld [vmem:[%s509 + $0x68] sm:$0xf]
      %v537 = vld [vmem:[%s509 + $0x6c] sm:$0xf]
      %v538 = vld [vmem:[%s509 + $0x70] sm:$0xf]
      %v539 = vld [vmem:[%s509 + $0x74] sm:$0xf]
      %v540 = vld [vmem:[%s509 + $0x78] sm:$0xf]
      %v541 = vld [vmem:[%s509 + $0x7c] sm:$0xf]
      %v574 = vunpack.c.l.b16 %v510
      %v575 = vunpack.c.l.b16 %v511
      %v576 = vunpack.c.l.b16 %v512
      %v577 = vunpack.c.l.b16 %v513
      %v578 = vunpack.c.l.b16 %v514
      %v579 = vunpack.c.l.b16 %v515
      %v580 = vunpack.c.l.b16 %v516
      %v581 = vunpack.c.l.b16 %v517
      %v582 = vunpack.c.l.b16 %v518
      %v583 = vunpack.c.l.b16 %v519
      %v584 = vunpack.c.l.b16 %v520
      %v585 = vunpack.c.l.b16 %v521
      %v586 = vunpack.c.l.b16 %v522
      %v587 = vunpack.c.l.b16 %v523
      %v588 = vunpack.c.l.b16 %v524
      %v589 = vunpack.c.l.b16 %v525
      %v590 = vunpack.c.l.b16 %v526
      %v591 = vunpack.c.l.b16 %v527
      %v592 = vunpack.c.l.b16 %v528
      %v593 = vunpack.c.l.b16 %v529
      %v594 = vunpack.c.l.b16 %v530
      %v595 = vunpack.c.l.b16 %v531
      %v596 = vunpack.c.l.b16 %v532
      %v597 = vunpack.c.l.b16 %v533
      %v598 = vunpack.c.l.b16 %v534
      %v599 = vunpack.c.l.b16 %v535
      %v600 = vunpack.c.l.b16 %v536
      %v601 = vunpack.c.l.b16 %v537
      %v602 = vunpack.c.l.b16 %v538
      %v603 = vunpack.c.l.b16 %v539
      %v604 = vunpack.c.l.b16 %v540
      %v605 = vunpack.c.l.b16 %v541
      %v606 = vpack.c.b16 %v575, %v574
      %v607 = vpack.c.b16 %v577, %v576
      %v608 = vpack.c.b16 %v579, %v578
      %v609 = vpack.c.b16 %v581, %v580
      %v610 = vpack.c.b16 %v583, %v582
      %v611 = vpack.c.b16 %v585, %v584
      %v612 = vpack.c.b16 %v587, %v586
      %v613 = vpack.c.b16 %v589, %v588
      %v614 = vpack.c.b16 %v591, %v590
      %v615 = vpack.c.b16 %v593, %v592
      %v616 = vpack.c.b16 %v595, %v594
      %v617 = vpack.c.b16 %v597, %v596
      %v618 = vpack.c.b16 %v599, %v598
      %v619 = vpack.c.b16 %v601, %v600
      %v620 = vpack.c.b16 %v603, %v602
      %v621 = vpack.c.b16 %v605, %v604
      %638 = vmatpush.bf16.msra.mxu0 %v613
      %639 = vmatpush.bf16.msra.mxu0 %v612
      %640 = vmatpush.bf16.msra.mxu0 %v611
      %641 = vmatpush.bf16.msra.mxu0 %v610
      %642 = vmatpush.bf16.msra.mxu0 %v609
      %643 = vmatpush.bf16.msra.mxu0 %v608
      %644 = vmatpush.bf16.msra.mxu0 %v607
      %645 = vmatpush.bf16.msra.mxu0 %v606
      %646 = vmatmul.bf16.gmra.mxu0 %v501
      %v647 = vpop.f32.mrf.mxu0
      %v648 = vadd.f32 0.0, %v647
      %v649 = vpop.f32.mrf.mxu0
      %v650 = vadd.f32 0.0, %v649
      %651 = vmatmul.bf16.gmra.mxu0 %v503
      %v652 = vpop.f32.mrf.mxu0
      %v653 = vadd.f32 0.0, %v652
      %v654 = vpop.f32.mrf.mxu0
      %v655 = vadd.f32 0.0, %v654
      %656 = vmatmul.bf16.gmra.mxu0 %v505
      %v657 = vpop.f32.mrf.mxu0
      %v658 = vadd.f32 0.0, %v657
      %v659 = vpop.f32.mrf.mxu0
      %v660 = vadd.f32 0.0, %v659
      %661 = vmatmul.bf16.gmra.mxu0 %v507
      %v662 = vpop.f32.mrf.mxu0
      %v663 = vadd.f32 0.0, %v662
      %v664 = vpop.f32.mrf.mxu0
      %v665 = vadd.f32 0.0, %v664
      %666 = vdwg.mxu0
      %667 = vmatpush.bf16.msra.mxu0 %v621
      %668 = vmatpush.bf16.msra.mxu0 %v620
      %669 = vmatpush.bf16.msra.mxu0 %v619
      %670 = vmatpush.bf16.msra.mxu0 %v618
      %671 = vmatpush.bf16.msra.mxu0 %v617
      %672 = vmatpush.bf16.msra.mxu0 %v616
      %673 = vmatpush.bf16.msra.mxu0 %v615
      %674 = vmatpush.bf16.msra.mxu0 %v614
      %675 = vmatmul.bf16.gmra.mxu0 %v502
      %v676 = vpop.f32.mrf.mxu0
      %v677 = vadd.f32 %v648, %v676
      %v678 = vpop.f32.mrf.mxu0
      %v679 = vadd.f32 %v650, %v678
      %680 = vmatmul.bf16.gmra.mxu0 %v504
      %v681 = vpop.f32.mrf.mxu0
      %v682 = vadd.f32 %v653, %v681
      %v683 = vpop.f32.mrf.mxu0
      %v684 = vadd.f32 %v655, %v683
      %685 = vmatmul.bf16.gmra.mxu0 %v506
      %v686 = vpop.f32.mrf.mxu0
      %v687 = vadd.f32 %v658, %v686
      %v688 = vpop.f32.mrf.mxu0
      %v689 = vadd.f32 %v660, %v688
      %690 = vmatmul.bf16.gmra.mxu0 %v508
      %v691 = vpop.f32.mrf.mxu0
      %v692 = vadd.f32 %v663, %v691
      %v693 = vpop.f32.mrf.mxu0
      %v694 = vadd.f32 %v665, %v693
      %695 = vdwg.mxu0
      %v728 = vunpack.c.l.b16 %v340
      %v729 = vunpack.c.l.b16 %v341
      %v730 = vunpack.c.l.b16 %v342
      %v731 = vunpack.c.l.b16 %v343
      %v732 = vunpack.c.l.b16 %v344
      %v733 = vunpack.c.l.b16 %v345
      %v734 = vunpack.c.l.b16 %v346
      %v735 = vunpack.c.l.b16 %v347
      %v736 = vunpack.c.l.b16 %v348
      %v737 = vunpack.c.l.b16 %v349
      %v738 = vunpack.c.l.b16 %v350
      %v739 = vunpack.c.l.b16 %v351
      %v740 = vunpack.c.l.b16 %v352
      %v741 = vunpack.c.l.b16 %v353
      %v742 = vunpack.c.l.b16 %v354
      %v743 = vunpack.c.l.b16 %v355
      %v744 = vunpack.c.l.b16 %v356
      %v745 = vunpack.c.l.b16 %v357
      %v746 = vunpack.c.l.b16 %v358
      %v747 = vunpack.c.l.b16 %v359
      %v748 = vunpack.c.l.b16 %v360
      %v749 = vunpack.c.l.b16 %v361
      %v750 = vunpack.c.l.b16 %v362
      %v751 = vunpack.c.l.b16 %v363
      %v752 = vunpack.c.l.b16 %v364
      %v753 = vunpack.c.l.b16 %v365
      %v754 = vunpack.c.l.b16 %v366
      %v755 = vunpack.c.l.b16 %v367
      %v756 = vunpack.c.l.b16 %v368
      %v757 = vunpack.c.l.b16 %v369
      %v758 = vunpack.c.l.b16 %v370
      %v759 = vunpack.c.l.b16 %v371
      %v760 = vpack.c.b16 %v729, %v728
      %v761 = vpack.c.b16 %v731, %v730
      %v762 = vpack.c.b16 %v733, %v732
      %v763 = vpack.c.b16 %v735, %v734
      %v764 = vpack.c.b16 %v737, %v736
      %v765 = vpack.c.b16 %v739, %v738
      %v766 = vpack.c.b16 %v741, %v740
      %v767 = vpack.c.b16 %v743, %v742
      %v768 = vpack.c.b16 %v745, %v744
      %v769 = vpack.c.b16 %v747, %v746
      %v770 = vpack.c.b16 %v749, %v748
      %v771 = vpack.c.b16 %v751, %v750
      %v772 = vpack.c.b16 %v753, %v752
      %v773 = vpack.c.b16 %v755, %v754
      %v774 = vpack.c.b16 %v757, %v756
      %v775 = vpack.c.b16 %v759, %v758
      %792 = vmatpush.bf16.msra.mxu0 %v767
      %793 = vmatpush.bf16.msra.mxu0 %v766
      %794 = vmatpush.bf16.msra.mxu0 %v765
      %795 = vmatpush.bf16.msra.mxu0 %v764
      %796 = vmatpush.bf16.msra.mxu0 %v763
      %797 = vmatpush.bf16.msra.mxu0 %v762
      %798 = vmatpush.bf16.msra.mxu0 %v761
      %799 = vmatpush.bf16.msra.mxu0 %v760
      %800 = vmatmul.bf16.gmra.mxu0 %v332
      %v801 = vpop.f32.mrf.mxu0
      %v802 = vadd.f32 %v677, %v801
      %v803 = vpop.f32.mrf.mxu0
      %v804 = vadd.f32 %v679, %v803
      %805 = vmatmul.bf16.gmra.mxu0 %v334
      %v806 = vpop.f32.mrf.mxu0
      %v807 = vadd.f32 %v682, %v806
      %v808 = vpop.f32.mrf.mxu0
      %v809 = vadd.f32 %v684, %v808
      %810 = vmatmul.bf16.gmra.mxu0 %v336
      %v811 = vpop.f32.mrf.mxu0
      %v812 = vadd.f32 %v687, %v811
      %v813 = vpop.f32.mrf.mxu0
      %v814 = vadd.f32 %v689, %v813
      %815 = vmatmul.bf16.gmra.mxu0 %v338
      %v816 = vpop.f32.mrf.mxu0
      %v817 = vadd.f32 %v692, %v816
      %v818 = vpop.f32.mrf.mxu0
      %v819 = vadd.f32 %v694, %v818
      %820 = vdwg.mxu0
      %821 = vmatpush.bf16.msra.mxu0 %v775
      %822 = vmatpush.bf16.msra.mxu0 %v774
      %823 = vmatpush.bf16.msra.mxu0 %v773
      %824 = vmatpush.bf16.msra.mxu0 %v772
      %825 = vmatpush.bf16.msra.mxu0 %v771
      %826 = vmatpush.bf16.msra.mxu0 %v770
      %827 = vmatpush.bf16.msra.mxu0 %v769
      %828 = vmatpush.bf16.msra.mxu0 %v768
      %829 = vmatmul.bf16.gmra.mxu0 %v333
      %v830 = vpop.f32.mrf.mxu0
      %v831 = vadd.f32 %v802, %v830
      %v832 = vpop.f32.mrf.mxu0
      %v833 = vadd.f32 %v804, %v832
      %834 = vmatmul.bf16.gmra.mxu0 %v335
      %v835 = vpop.f32.mrf.mxu0
      %v836 = vadd.f32 %v807, %v835
      %v837 = vpop.f32.mrf.mxu0
      %v838 = vadd.f32 %v809, %v837
      %839 = vmatmul.bf16.gmra.mxu0 %v337
      %v840 = vpop.f32.mrf.mxu0
      %v841 = vadd.f32 %v812, %v840
      %v842 = vpop.f32.mrf.mxu0
      %v843 = vadd.f32 %v814, %v842
      %844 = vmatmul.bf16.gmra.mxu0 %v339
      %v845 = vpop.f32.mrf.mxu0
      %v846 = vadd.f32 %v817, %v845
      %v847 = vpop.f32.mrf.mxu0
      %v848 = vadd.f32 %v819, %v847
      %849 = vdwg.mxu0
      %v850 = vld [vmem:[#allocation2] sm:$0xfc]
      %v851 = vld [vmem:[#allocation2 + $0x8] sm:$0xfc]
      %v852 = vld [vmem:[#allocation2 + $0x10] sm:$0x3]
      %v853 = vld [vmem:[#allocation2 + $0x18] sm:$0x3]
      %v854 = vld [vmem:[#allocation2 + $0x20] sm:$0xfc]
      %v855 = vld [vmem:[#allocation2 + $0x28] sm:$0xfc]
      %v856 = vld [vmem:[#allocation2 + $0x30] sm:$0x3]
      %v857 = vld [vmem:[#allocation2 + $0x38] sm:$0x3]
      %v858 = vld [vmem:[#allocation2 + $0x40] sm:$0xfc]
      %v859 = vld [vmem:[#allocation2 + $0x48] sm:$0xfc]
      %v860 = vld [vmem:[#allocation2 + $0x50] sm:$0x3]
      %v861 = vld [vmem:[#allocation2 + $0x58] sm:$0x3]
      %v862 = vld [vmem:[#allocation2 + $0x60] sm:$0xfc]
      %v863 = vld [vmem:[#allocation2 + $0x68] sm:$0xfc]
      %v864 = vld [vmem:[#allocation2 + $0x70] sm:$0x3]
      %v865 = vld [vmem:[#allocation2 + $0x78] sm:$0x3]
      %v866 = vld [vmem:[#allocation2 + $0x80] sm:$0xfc]
      %v867 = vld [vmem:[#allocation2 + $0x88] sm:$0xfc]
      %v868 = vld [vmem:[#allocation2 + $0x90] sm:$0x3]
      %v869 = vld [vmem:[#allocation2 + $0x98] sm:$0x3]
      %v870 = vld [vmem:[#allocation2 + $0xa0] sm:$0xfc]
      %v871 = vld [vmem:[#allocation2 + $0xa8] sm:$0xfc]
      %v872 = vld [vmem:[#allocation2 + $0xb0] sm:$0x3]
      %v873 = vld [vmem:[#allocation2 + $0xb8] sm:$0x3]
      %v874 = vld [vmem:[#allocation2 + $0xc0] sm:$0xfc]
      %v875 = vld [vmem:[#allocation2 + $0xc8] sm:$0xfc]
      %v876 = vld [vmem:[#allocation2 + $0xd0] sm:$0x3]
      %v877 = vld [vmem:[#allocation2 + $0xd8] sm:$0x3]
      %v878 = vld [vmem:[#allocation2 + $0xe0] sm:$0xfc]
      %v879 = vld [vmem:[#allocation2 + $0xe8] sm:$0xfc]
      %v880 = vld [vmem:[#allocation2 + $0xf0] sm:$0x3]
      %v881 = vld [vmem:[#allocation2 + $0xf8] sm:$0x3]
      %vm914 = vcmask 1045504
      %v915 = vrot.slane %v850, 2
      %v916 = vrot.slane %v852, 2
      %v917 = vsel %vm914, %v915, %v916
      %v918 = vrot.slane %v851, 2
      %v919 = vrot.slane %v853, 2
      %v920 = vsel %vm914, %v918, %v919
      %v921 = vrot.slane %v854, 2
      %v922 = vrot.slane %v856, 2
      %v923 = vsel %vm914, %v921, %v922
      %v924 = vrot.slane %v855, 2
      %v925 = vrot.slane %v857, 2
      %v926 = vsel %vm914, %v924, %v925
      %v927 = vrot.slane %v858, 2
      %v928 = vrot.slane %v860, 2
      %v929 = vsel %vm914, %v927, %v928
      %v930 = vrot.slane %v859, 2
      %v931 = vrot.slane %v861, 2
      %v932 = vsel %vm914, %v930, %v931
      %v933 = vrot.slane %v862, 2
      %v934 = vrot.slane %v864, 2
      %v935 = vsel %vm914, %v933, %v934
      %v936 = vrot.slane %v863, 2
      %v937 = vrot.slane %v865, 2
      %v938 = vsel %vm914, %v936, %v937
      %v939 = vrot.slane %v866, 2
      %v940 = vrot.slane %v868, 2
      %v941 = vsel %vm914, %v939, %v940
      %v942 = vrot.slane %v867, 2
      %v943 = vrot.slane %v869, 2
      %v944 = vsel %vm914, %v942, %v943
      %v945 = vrot.slane %v870, 2
      %v946 = vrot.slane %v872, 2
      %v947 = vsel %vm914, %v945, %v946
      %v948 = vrot.slane %v871, 2
      %v949 = vrot.slane %v873, 2
      %v950 = vsel %vm914, %v948, %v949
      %v951 = vrot.slane %v874, 2
      %v952 = vrot.slane %v876, 2
      %v953 = vsel %vm914, %v951, %v952
      %v954 = vrot.slane %v875, 2
      %v955 = vrot.slane %v877, 2
      %v956 = vsel %vm914, %v954, %v955
      %v957 = vrot.slane %v878, 2
      %v958 = vrot.slane %v880, 2
      %v959 = vsel %vm914, %v957, %v958
      %v960 = vrot.slane %v879, 2
      %v961 = vrot.slane %v881, 2
      %v962 = vsel %vm914, %v960, %v961
      %v979 = vpack.c.bf16 %v923, %v917
      %v980 = vpack.c.bf16 %v926, %v920
      %v981 = vpack.c.bf16 %v935, %v929
      %v982 = vpack.c.bf16 %v938, %v932
      %v983 = vpack.c.bf16 %v947, %v941
      %v984 = vpack.c.bf16 %v950, %v944
      %v985 = vpack.c.bf16 %v959, %v953
      %v986 = vpack.c.bf16 %v962, %v956
      %s987 = scalar_lea.vmem %s1, 256
      %v988 = vld [vmem:[%s987] sm:$0xf]
      %v989 = vld [vmem:[%s987 + $0x4] sm:$0xf]
      %v990 = vld [vmem:[%s987 + $0x8] sm:$0xf]
      %v991 = vld [vmem:[%s987 + $0xc] sm:$0xf]
      %v992 = vld [vmem:[%s987 + $0x10] sm:$0xf]
      %v993 = vld [vmem:[%s987 + $0x14] sm:$0xf]
      %v994 = vld [vmem:[%s987 + $0x18] sm:$0xf]
      %v995 = vld [vmem:[%s987 + $0x1c] sm:$0xf]
      %v996 = vld [vmem:[%s987 + $0x20] sm:$0xf]
      %v997 = vld [vmem:[%s987 + $0x24] sm:$0xf]
      %v998 = vld [vmem:[%s987 + $0x28] sm:$0xf]
      %v999 = vld [vmem:[%s987 + $0x2c] sm:$0xf]
      %v1000 = vld [vmem:[%s987 + $0x30] sm:$0xf]
      %v1001 = vld [vmem:[%s987 + $0x34] sm:$0xf]
      %v1002 = vld [vmem:[%s987 + $0x38] sm:$0xf]
      %v1003 = vld [vmem:[%s987 + $0x3c] sm:$0xf]
      %v1004 = vld [vmem:[%s987 + $0x40] sm:$0xf]
      %v1005 = vld [vmem:[%s987 + $0x44] sm:$0xf]
      %v1006 = vld [vmem:[%s987 + $0x48] sm:$0xf]
      %v1007 = vld [vmem:[%s987 + $0x4c] sm:$0xf]
      %v1008 = vld [vmem:[%s987 + $0x50] sm:$0xf]
      %v1009 = vld [vmem:[%s987 + $0x54] sm:$0xf]
      %v1010 = vld [vmem:[%s987 + $0x58] sm:$0xf]
      %v1011 = vld [vmem:[%s987 + $0x5c] sm:$0xf]
      %v1012 = vld [vmem:[%s987 + $0x60] sm:$0xf]
      %v1013 = vld [vmem:[%s987 + $0x64] sm:$0xf]
      %v1014 = vld [vmem:[%s987 + $0x68] sm:$0xf]
      %v1015 = vld [vmem:[%s987 + $0x6c] sm:$0xf]
      %v1016 = vld [vmem:[%s987 + $0x70] sm:$0xf]
      %v1017 = vld [vmem:[%s987 + $0x74] sm:$0xf]
      %v1018 = vld [vmem:[%s987 + $0x78] sm:$0xf]
      %v1019 = vld [vmem:[%s987 + $0x7c] sm:$0xf]
      %v1052 = vunpack.c.l.b16 %v988
      %v1053 = vunpack.c.l.b16 %v989
      %v1054 = vunpack.c.l.b16 %v990
      %v1055 = vunpack.c.l.b16 %v991
      %v1056 = vunpack.c.l.b16 %v992
      %v1057 = vunpack.c.l.b16 %v993
      %v1058 = vunpack.c.l.b16 %v994
      %v1059 = vunpack.c.l.b16 %v995
      %v1060 = vunpack.c.l.b16 %v996
      %v1061 = vunpack.c.l.b16 %v997
      %v1062 = vunpack.c.l.b16 %v998
      %v1063 = vunpack.c.l.b16 %v999
      %v1064 = vunpack.c.l.b16 %v1000
      %v1065 = vunpack.c.l.b16 %v1001
      %v1066 = vunpack.c.l.b16 %v1002
      %v1067 = vunpack.c.l.b16 %v1003
      %v1068 = vunpack.c.l.b16 %v1004
      %v1069 = vunpack.c.l.b16 %v1005
      %v1070 = vunpack.c.l.b16 %v1006
      %v1071 = vunpack.c.l.b16 %v1007
      %v1072 = vunpack.c.l.b16 %v1008
      %v1073 = vunpack.c.l.b16 %v1009
      %v1074 = vunpack.c.l.b16 %v1010
      %v1075 = vunpack.c.l.b16 %v1011
      %v1076 = vunpack.c.l.b16 %v1012
      %v1077 = vunpack.c.l.b16 %v1013
      %v1078 = vunpack.c.l.b16 %v1014
      %v1079 = vunpack.c.l.b16 %v1015
      %v1080 = vunpack.c.l.b16 %v1016
      %v1081 = vunpack.c.l.b16 %v1017
      %v1082 = vunpack.c.l.b16 %v1018
      %v1083 = vunpack.c.l.b16 %v1019
      %v1084 = vpack.c.b16 %v1053, %v1052
      %v1085 = vpack.c.b16 %v1055, %v1054
      %v1086 = vpack.c.b16 %v1057, %v1056
      %v1087 = vpack.c.b16 %v1059, %v1058
      %v1088 = vpack.c.b16 %v1061, %v1060
      %v1089 = vpack.c.b16 %v1063, %v1062
      %v1090 = vpack.c.b16 %v1065, %v1064
      %v1091 = vpack.c.b16 %v1067, %v1066
      %v1092 = vpack.c.b16 %v1069, %v1068
      %v1093 = vpack.c.b16 %v1071, %v1070
      %v1094 = vpack.c.b16 %v1073, %v1072
      %v1095 = vpack.c.b16 %v1075, %v1074
      %v1096 = vpack.c.b16 %v1077, %v1076
      %v1097 = vpack.c.b16 %v1079, %v1078
      %v1098 = vpack.c.b16 %v1081, %v1080
      %v1099 = vpack.c.b16 %v1083, %v1082
      %1116 = vmatpush.bf16.msra.mxu0 %v1091
      %1117 = vmatpush.bf16.msra.mxu0 %v1090
      %1118 = vmatpush.bf16.msra.mxu0 %v1089
      %1119 = vmatpush.bf16.msra.mxu0 %v1088
      %1120 = vmatpush.bf16.msra.mxu0 %v1087
      %1121 = vmatpush.bf16.msra.mxu0 %v1086
      %1122 = vmatpush.bf16.msra.mxu0 %v1085
      %1123 = vmatpush.bf16.msra.mxu0 %v1084
      %1124 = vmatmul.bf16.gmra.mxu0 %v979
      %v1125 = vpop.f32.mrf.mxu0
      %v1126 = vadd.f32 0.0, %v1125
      %v1127 = vpop.f32.mrf.mxu0
      %v1128 = vadd.f32 0.0, %v1127
      %1129 = vmatmul.bf16.gmra.mxu0 %v981
      %v1130 = vpop.f32.mrf.mxu0
      %v1131 = vadd.f32 0.0, %v1130
      %v1132 = vpop.f32.mrf.mxu0
      %v1133 = vadd.f32 0.0, %v1132
      %1134 = vmatmul.bf16.gmra.mxu0 %v983
      %v1135 = vpop.f32.mrf.mxu0
      %v1136 = vadd.f32 0.0, %v1135
      %v1137 = vpop.f32.mrf.mxu0
      %v1138 = vadd.f32 0.0, %v1137
      %1139 = vmatmul.bf16.gmra.mxu0 %v985
      %v1140 = vpop.f32.mrf.mxu0
      %v1141 = vadd.f32 0.0, %v1140
      %v1142 = vpop.f32.mrf.mxu0
      %v1143 = vadd.f32 0.0, %v1142
      %1144 = vdwg.mxu0
      %1145 = vmatpush.bf16.msra.mxu0 %v1099
      %1146 = vmatpush.bf16.msra.mxu0 %v1098
      %1147 = vmatpush.bf16.msra.mxu0 %v1097
      %1148 = vmatpush.bf16.msra.mxu0 %v1096
      %1149 = vmatpush.bf16.msra.mxu0 %v1095
      %1150 = vmatpush.bf16.msra.mxu0 %v1094
      %1151 = vmatpush.bf16.msra.mxu0 %v1093
      %1152 = vmatpush.bf16.msra.mxu0 %v1092
      %1153 = vmatmul.bf16.gmra.mxu0 %v980
      %v1154 = vpop.f32.mrf.mxu0
      %v1155 = vadd.f32 %v1126, %v1154
      %v1156 = vpop.f32.mrf.mxu0
      %v1157 = vadd.f32 %v1128, %v1156
      %1158 = vmatmul.bf16.gmra.mxu0 %v982
      %v1159 = vpop.f32.mrf.mxu0
      %v1160 = vadd.f32 %v1131, %v1159
      %v1161 = vpop.f32.mrf.mxu0
      %v1162 = vadd.f32 %v1133, %v1161
      %1163 = vmatmul.bf16.gmra.mxu0 %v984
      %v1164 = vpop.f32.mrf.mxu0
      %v1165 = vadd.f32 %v1136, %v1164
      %v1166 = vpop.f32.mrf.mxu0
      %v1167 = vadd.f32 %v1138, %v1166
      %1168 = vmatmul.bf16.gmra.mxu0 %v986
      %v1169 = vpop.f32.mrf.mxu0
      %v1170 = vadd.f32 %v1141, %v1169
      %v1171 = vpop.f32.mrf.mxu0
      %v1172 = vadd.f32 %v1143, %v1171
      %1173 = vdwg.mxu0
      %v1174 = vadd.f32 %v831, %v1155
      %v1175 = vadd.f32 %v833, %v1157
      %v1176 = vadd.f32 %v836, %v1160
      %v1177 = vadd.f32 %v838, %v1162
      %v1178 = vadd.f32 %v841, %v1165
      %v1179 = vadd.f32 %v843, %v1167
      %v1180 = vadd.f32 %v846, %v1170
      %v1181 = vadd.f32 %v848, %v1172
      %v1182 = vld [vmem:[%s283] sm:$0xff]
      %v1183 = vld [vmem:[%s283 + $0x8] sm:$0xff]
      %v1184 = vld [vmem:[%s283 + $0x20] sm:$0xff]
      %v1185 = vld [vmem:[%s283 + $0x28] sm:$0xff]
      %v1186 = vld [vmem:[%s283 + $0x40] sm:$0xff]
      %v1187 = vld [vmem:[%s283 + $0x48] sm:$0xff]
      %v1188 = vld [vmem:[%s283 + $0x60] sm:$0xff]
      %v1189 = vld [vmem:[%s283 + $0x68] sm:$0xff]
      %v1190 = vld [vmem:[%s283 + $0x80] sm:$0xff]
      %v1191 = vld [vmem:[%s283 + $0x88] sm:$0xff]
      %v1192 = vld [vmem:[%s283 + $0xa0] sm:$0xff]
      %v1193 = vld [vmem:[%s283 + $0xa8] sm:$0xff]
      %v1194 = vld [vmem:[%s283 + $0xc0] sm:$0xff]
      %v1195 = vld [vmem:[%s283 + $0xc8] sm:$0xff]
      %v1196 = vld [vmem:[%s283 + $0xe0] sm:$0xff]
      %v1197 = vld [vmem:[%s283 + $0xe8] sm:$0xff]
      %v1198 = vpack.c.bf16 %v1184, %v1182
      %v1199 = vpack.c.bf16 %v1185, %v1183
      %v1200 = vpack.c.bf16 %v1188, %v1186
      %v1201 = vpack.c.bf16 %v1189, %v1187
      %v1202 = vpack.c.bf16 %v1192, %v1190
      %v1203 = vpack.c.bf16 %v1193, %v1191
      %v1204 = vpack.c.bf16 %v1196, %v1194
      %v1205 = vpack.c.bf16 %v1197, %v1195
      %s1206 = scalar_lea.vmem %s1, 384
      %v1207 = vld [vmem:[%s1206] sm:$0xf]
      %v1208 = vld [vmem:[%s1206 + $0x4] sm:$0xf]
      %v1209 = vld [vmem:[%s1206 + $0x8] sm:$0xf]
      %v1210 = vld [vmem:[%s1206 + $0xc] sm:$0xf]
      %v1211 = vld [vmem:[%s1206 + $0x10] sm:$0xf]
      %v1212 = vld [vmem:[%s1206 + $0x14] sm:$0xf]
      %v1213 = vld [vmem:[%s1206 + $0x18] sm:$0xf]
      %v1214 = vld [vmem:[%s1206 + $0x1c] sm:$0xf]
      %v1215 = vld [vmem:[%s1206 + $0x20] sm:$0xf]
      %v1216 = vld [vmem:[%s1206 + $0x24] sm:$0xf]
      %v1217 = vld [vmem:[%s1206 + $0x28] sm:$0xf]
      %v1218 = vld [vmem:[%s1206 + $0x2c] sm:$0xf]
      %v1219 = vld [vmem:[%s1206 + $0x30] sm:$0xf]
      %v1220 = vld [vmem:[%s1206 + $0x34] sm:$0xf]
      %v1221 = vld [vmem:[%s1206 + $0x38] sm:$0xf]
      %v1222 = vld [vmem:[%s1206 + $0x3c] sm:$0xf]
      %v1223 = vld [vmem:[%s1206 + $0x40] sm:$0xf]
      %v1224 = vld [vmem:[%s1206 + $0x44] sm:$0xf]
      %v1225 = vld [vmem:[%s1206 + $0x48] sm:$0xf]
      %v1226 = vld [vmem:[%s1206 + $0x4c] sm:$0xf]
      %v1227 = vld [vmem:[%s1206 + $0x50] sm:$0xf]
      %v1228 = vld [vmem:[%s1206 + $0x54] sm:$0xf]
      %v1229 = vld [vmem:[%s1206 + $0x58] sm:$0xf]
      %v1230 = vld [vmem:[%s1206 + $0x5c] sm:$0xf]
      %v1231 = vld [vmem:[%s1206 + $0x60] sm:$0xf]
      %v1232 = vld [vmem:[%s1206 + $0x64] sm:$0xf]
      %v1233 = vld [vmem:[%s1206 + $0x68] sm:$0xf]
      %v1234 = vld [vmem:[%s1206 + $0x6c] sm:$0xf]
      %v1235 = vld [vmem:[%s1206 + $0x70] sm:$0xf]
      %v1236 = vld [vmem:[%s1206 + $0x74] sm:$0xf]
      %v1237 = vld [vmem:[%s1206 + $0x78] sm:$0xf]
      %v1238 = vld [vmem:[%s1206 + $0x7c] sm:$0xf]
      %v1271 = vunpack.c.l.b16 %v1207
      %v1272 = vunpack.c.l.b16 %v1208
      %v1273 = vunpack.c.l.b16 %v1209
      %v1274 = vunpack.c.l.b16 %v1210
      %v1275 = vunpack.c.l.b16 %v1211
      %v1276 = vunpack.c.l.b16 %v1212
      %v1277 = vunpack.c.l.b16 %v1213
      %v1278 = vunpack.c.l.b16 %v1214
      %v1279 = vunpack.c.l.b16 %v1215
      %v1280 = vunpack.c.l.b16 %v1216
      %v1281 = vunpack.c.l.b16 %v1217
      %v1282 = vunpack.c.l.b16 %v1218
      %v1283 = vunpack.c.l.b16 %v1219
      %v1284 = vunpack.c.l.b16 %v1220
      %v1285 = vunpack.c.l.b16 %v1221
      %v1286 = vunpack.c.l.b16 %v1222
      %v1287 = vunpack.c.l.b16 %v1223
      %v1288 = vunpack.c.l.b16 %v1224
      %v1289 = vunpack.c.l.b16 %v1225
      %v1290 = vunpack.c.l.b16 %v1226
      %v1291 = vunpack.c.l.b16 %v1227
      %v1292 = vunpack.c.l.b16 %v1228
      %v1293 = vunpack.c.l.b16 %v1229
      %v1294 = vunpack.c.l.b16 %v1230
      %v1295 = vunpack.c.l.b16 %v1231
      %v1296 = vunpack.c.l.b16 %v1232
      %v1297 = vunpack.c.l.b16 %v1233
      %v1298 = vunpack.c.l.b16 %v1234
      %v1299 = vunpack.c.l.b16 %v1235
      %v1300 = vunpack.c.l.b16 %v1236
      %v1301 = vunpack.c.l.b16 %v1237
      %v1302 = vunpack.c.l.b16 %v1238
      %v1303 = vpack.c.b16 %v1272, %v1271
      %v1304 = vpack.c.b16 %v1274, %v1273
      %v1305 = vpack.c.b16 %v1276, %v1275
      %v1306 = vpack.c.b16 %v1278, %v1277
      %v1307 = vpack.c.b16 %v1280, %v1279
      %v1308 = vpack.c.b16 %v1282, %v1281
      %v1309 = vpack.c.b16 %v1284, %v1283
      %v1310 = vpack.c.b16 %v1286, %v1285
      %v1311 = vpack.c.b16 %v1288, %v1287
      %v1312 = vpack.c.b16 %v1290, %v1289
      %v1313 = vpack.c.b16 %v1292, %v1291
      %v1314 = vpack.c.b16 %v1294, %v1293
      %v1315 = vpack.c.b16 %v1296, %v1295
      %v1316 = vpack.c.b16 %v1298, %v1297
      %v1317 = vpack.c.b16 %v1300, %v1299
      %v1318 = vpack.c.b16 %v1302, %v1301
      %1335 = vmatpush.bf16.msra.mxu0 %v1310
      %1336 = vmatpush.bf16.msra.mxu0 %v1309
      %1337 = vmatpush.bf16.msra.mxu0 %v1308
      %1338 = vmatpush.bf16.msra.mxu0 %v1307
      %1339 = vmatpush.bf16.msra.mxu0 %v1306
      %1340 = vmatpush.bf16.msra.mxu0 %v1305
      %1341 = vmatpush.bf16.msra.mxu0 %v1304
      %1342 = vmatpush.bf16.msra.mxu0 %v1303
      %1343 = vmatmul.bf16.gmra.mxu0 %v1198
      %v1344 = vpop.f32.mrf.mxu0
      %v1345 = vadd.f32 0.0, %v1344
      %v1346 = vpop.f32.mrf.mxu0
      %v1347 = vadd.f32 0.0, %v1346
      %1348 = vmatmul.bf16.gmra.mxu0 %v1200
      %v1349 = vpop.f32.mrf.mxu0
      %v1350 = vadd.f32 0.0, %v1349
      %v1351 = vpop.f32.mrf.mxu0
      %v1352 = vadd.f32 0.0, %v1351
      %1353 = vmatmul.bf16.gmra.mxu0 %v1202
      %v1354 = vpop.f32.mrf.mxu0
      %v1355 = vadd.f32 0.0, %v1354
      %v1356 = vpop.f32.mrf.mxu0
      %v1357 = vadd.f32 0.0, %v1356
      %1358 = vmatmul.bf16.gmra.mxu0 %v1204
      %v1359 = vpop.f32.mrf.mxu0
      %v1360 = vadd.f32 0.0, %v1359
      %v1361 = vpop.f32.mrf.mxu0
      %v1362 = vadd.f32 0.0, %v1361
      %1363 = vdwg.mxu0
      %1364 = vmatpush.bf16.msra.mxu0 %v1318
      %1365 = vmatpush.bf16.msra.mxu0 %v1317
      %1366 = vmatpush.bf16.msra.mxu0 %v1316
      %1367 = vmatpush.bf16.msra.mxu0 %v1315
      %1368 = vmatpush.bf16.msra.mxu0 %v1314
      %1369 = vmatpush.bf16.msra.mxu0 %v1313
      %1370 = vmatpush.bf16.msra.mxu0 %v1312
      %1371 = vmatpush.bf16.msra.mxu0 %v1311
      %1372 = vmatmul.bf16.gmra.mxu0 %v1199
      %v1373 = vpop.f32.mrf.mxu0
      %v1374 = vadd.f32 %v1345, %v1373
      %v1375 = vpop.f32.mrf.mxu0
      %v1376 = vadd.f32 %v1347, %v1375
      %1377 = vmatmul.bf16.gmra.mxu0 %v1201
      %v1378 = vpop.f32.mrf.mxu0
      %v1379 = vadd.f32 %v1350, %v1378
      %v1380 = vpop.f32.mrf.mxu0
      %v1381 = vadd.f32 %v1352, %v1380
      %1382 = vmatmul.bf16.gmra.mxu0 %v1203
      %v1383 = vpop.f32.mrf.mxu0
      %v1384 = vadd.f32 %v1355, %v1383
      %v1385 = vpop.f32.mrf.mxu0
      %v1386 = vadd.f32 %v1357, %v1385
      %1387 = vmatmul.bf16.gmra.mxu0 %v1205
      %v1388 = vpop.f32.mrf.mxu0
      %v1389 = vadd.f32 %v1360, %v1388
      %v1390 = vpop.f32.mrf.mxu0
      %v1391 = vadd.f32 %v1362, %v1390
      %1392 = vdwg.mxu0
      %v1393 = vadd.f32 %v1174, %v1374
      %v1394 = vadd.f32 %v1175, %v1376
      %v1395 = vadd.f32 %v1176, %v1379
      %v1396 = vadd.f32 %v1177, %v1381
      %v1397 = vadd.f32 %v1178, %v1384
      %v1398 = vadd.f32 %v1179, %v1386
      %v1399 = vadd.f32 %v1180, %v1389
      %v1400 = vadd.f32 %v1181, %v1391
      %v1401 = vld [vmem:[%s283] sm:$0xfe]
      %v1402 = vld [vmem:[%s283 + $0x8] sm:$0xfe]
      %v1403 = vld [vmem:[%s283 + $0x10] sm:$0x1]
      %v1404 = vld [vmem:[%s283 + $0x18] sm:$0x1]
      %v1405 = vld [vmem:[%s283 + $0x20] sm:$0xfe]
      %v1406 = vld [vmem:[%s283 + $0x28] sm:$0xfe]
      %v1407 = vld [vmem:[%s283 + $0x30] sm:$0x1]
      %v1408 = vld [vmem:[%s283 + $0x38] sm:$0x1]
      %v1409 = vld [vmem:[%s283 + $0x40] sm:$0xfe]
      %v1410 = vld [vmem:[%s283 + $0x48] sm:$0xfe]
      %v1411 = vld [vmem:[%s283 + $0x50] sm:$0x1]
      %v1412 = vld [vmem:[%s283 + $0x58] sm:$0x1]
      %v1413 = vld [vmem:[%s283 + $0x60] sm:$0xfe]
      %v1414 = vld [vmem:[%s283 + $0x68] sm:$0xfe]
      %v1415 = vld [vmem:[%s283 + $0x70] sm:$0x1]
      %v1416 = vld [vmem:[%s283 + $0x78] sm:$0x1]
      %v1417 = vld [vmem:[%s283 + $0x80] sm:$0xfe]
      %v1418 = vld [vmem:[%s283 + $0x88] sm:$0xfe]
      %v1419 = vld [vmem:[%s283 + $0x90] sm:$0x1]
      %v1420 = vld [vmem:[%s283 + $0x98] sm:$0x1]
      %v1421 = vld [vmem:[%s283 + $0xa0] sm:$0xfe]
      %v1422 = vld [vmem:[%s283 + $0xa8] sm:$0xfe]
      %v1423 = vld [vmem:[%s283 + $0xb0] sm:$0x1]
      %v1424 = vld [vmem:[%s283 + $0xb8] sm:$0x1]
      %v1425 = vld [vmem:[%s283 + $0xc0] sm:$0xfe]
      %v1426 = vld [vmem:[%s283 + $0xc8] sm:$0xfe]
      %v1427 = vld [vmem:[%s283 + $0xd0] sm:$0x1]
      %v1428 = vld [vmem:[%s283 + $0xd8] sm:$0x1]
      %v1429 = vld [vmem:[%s283 + $0xe0] sm:$0xfe]
      %v1430 = vld [vmem:[%s283 + $0xe8] sm:$0xfe]
      %v1431 = vld [vmem:[%s283 + $0xf0] sm:$0x1]
      %v1432 = vld [vmem:[%s283 + $0xf8] sm:$0x1]
      %v1465 = vrot.slane %v1401, 1
      %v1466 = vrot.slane %v1403, 1
      %v1467 = vsel %vm436, %v1465, %v1466
      %v1468 = vrot.slane %v1402, 1
      %v1469 = vrot.slane %v1404, 1
      %v1470 = vsel %vm436, %v1468, %v1469
      %v1471 = vrot.slane %v1405, 1
      %v1472 = vrot.slane %v1407, 1
      %v1473 = vsel %vm436, %v1471, %v1472
      %v1474 = vrot.slane %v1406, 1
      %v1475 = vrot.slane %v1408, 1
      %v1476 = vsel %vm436, %v1474, %v1475
      %v1477 = vrot.slane %v1409, 1
      %v1478 = vrot.slane %v1411, 1
      %v1479 = vsel %vm436, %v1477, %v1478
      %v1480 = vrot.slane %v1410, 1
      %v1481 = vrot.slane %v1412, 1
      %v1482 = vsel %vm436, %v1480, %v1481
      %v1483 = vrot.slane %v1413, 1
      %v1484 = vrot.slane %v1415, 1
      %v1485 = vsel %vm436, %v1483, %v1484
      %v1486 = vrot.slane %v1414, 1
      %v1487 = vrot.slane %v1416, 1
      %v1488 = vsel %vm436, %v1486, %v1487
      %v1489 = vrot.slane %v1417, 1
      %v1490 = vrot.slane %v1419, 1
      %v1491 = vsel %vm436, %v1489, %v1490
      %v1492 = vrot.slane %v1418, 1
      %v1493 = vrot.slane %v1420, 1
      %v1494 = vsel %vm436, %v1492, %v1493
      %v1495 = vrot.slane %v1421, 1
      %v1496 = vrot.slane %v1423, 1
      %v1497 = vsel %vm436, %v1495, %v1496
      %v1498 = vrot.slane %v1422, 1
      %v1499 = vrot.slane %v1424, 1
      %v1500 = vsel %vm436, %v1498, %v1499
      %v1501 = vrot.slane %v1425, 1
      %v1502 = vrot.slane %v1427, 1
      %v1503 = vsel %vm436, %v1501, %v1502
      %v1504 = vrot.slane %v1426, 1
      %v1505 = vrot.slane %v1428, 1
      %v1506 = vsel %vm436, %v1504, %v1505
      %v1507 = vrot.slane %v1429, 1
      %v1508 = vrot.slane %v1431, 1
      %v1509 = vsel %vm436, %v1507, %v1508
      %v1510 = vrot.slane %v1430, 1
      %v1511 = vrot.slane %v1432, 1
      %v1512 = vsel %vm436, %v1510, %v1511
      %v1529 = vpack.c.bf16 %v1473, %v1467
      %v1530 = vpack.c.bf16 %v1476, %v1470
      %v1531 = vpack.c.bf16 %v1485, %v1479
      %v1532 = vpack.c.bf16 %v1488, %v1482
      %v1533 = vpack.c.bf16 %v1497, %v1491
      %v1534 = vpack.c.bf16 %v1500, %v1494
      %v1535 = vpack.c.bf16 %v1509, %v1503
      %v1536 = vpack.c.bf16 %v1512, %v1506
      %s1537 = scalar_lea.vmem %s1, 512
      %v1538 = vld [vmem:[%s1537] sm:$0xf]
      %v1539 = vld [vmem:[%s1537 + $0x4] sm:$0xf]
      %v1540 = vld [vmem:[%s1537 + $0x8] sm:$0xf]
      %v1541 = vld [vmem:[%s1537 + $0xc] sm:$0xf]
      %v1542 = vld [vmem:[%s1537 + $0x10] sm:$0xf]
      %v1543 = vld [vmem:[%s1537 + $0x14] sm:$0xf]
      %v1544 = vld [vmem:[%s1537 + $0x18] sm:$0xf]
      %v1545 = vld [vmem:[%s1537 + $0x1c] sm:$0xf]
      %v1546 = vld [vmem:[%s1537 + $0x20] sm:$0xf]
      %v1547 = vld [vmem:[%s1537 + $0x24] sm:$0xf]
      %v1548 = vld [vmem:[%s1537 + $0x28] sm:$0xf]
      %v1549 = vld [vmem:[%s1537 + $0x2c] sm:$0xf]
      %v1550 = vld [vmem:[%s1537 + $0x30] sm:$0xf]
      %v1551 = vld [vmem:[%s1537 + $0x34] sm:$0xf]
      %v1552 = vld [vmem:[%s1537 + $0x38] sm:$0xf]
      %v1553 = vld [vmem:[%s1537 + $0x3c] sm:$0xf]
      %v1554 = vld [vmem:[%s1537 + $0x40] sm:$0xf]
      %v1555 = vld [vmem:[%s1537 + $0x44] sm:$0xf]
      %v1556 = vld [vmem:[%s1537 + $0x48] sm:$0xf]
      %v1557 = vld [vmem:[%s1537 + $0x4c] sm:$0xf]
      %v1558 = vld [vmem:[%s1537 + $0x50] sm:$0xf]
      %v1559 = vld [vmem:[%s1537 + $0x54] sm:$0xf]
      %v1560 = vld [vmem:[%s1537 + $0x58] sm:$0xf]
      %v1561 = vld [vmem:[%s1537 + $0x5c] sm:$0xf]
      %v1562 = vld [vmem:[%s1537 + $0x60] sm:$0xf]
      %v1563 = vld [vmem:[%s1537 + $0x64] sm:$0xf]
      %v1564 = vld [vmem:[%s1537 + $0x68] sm:$0xf]
      %v1565 = vld [vmem:[%s1537 + $0x6c] sm:$0xf]
      %v1566 = vld [vmem:[%s1537 + $0x70] sm:$0xf]
      %v1567 = vld [vmem:[%s1537 + $0x74] sm:$0xf]
      %v1568 = vld [vmem:[%s1537 + $0x78] sm:$0xf]
      %v1569 = vld [vmem:[%s1537 + $0x7c] sm:$0xf]
      %v1602 = vunpack.c.l.b16 %v1538
      %v1603 = vunpack.c.l.b16 %v1539
      %v1604 = vunpack.c.l.b16 %v1540
      %v1605 = vunpack.c.l.b16 %v1541
      %v1606 = vunpack.c.l.b16 %v1542
      %v1607 = vunpack.c.l.b16 %v1543
      %v1608 = vunpack.c.l.b16 %v1544
      %v1609 = vunpack.c.l.b16 %v1545
      %v1610 = vunpack.c.l.b16 %v1546
      %v1611 = vunpack.c.l.b16 %v1547
      %v1612 = vunpack.c.l.b16 %v1548
      %v1613 = vunpack.c.l.b16 %v1549
      %v1614 = vunpack.c.l.b16 %v1550
      %v1615 = vunpack.c.l.b16 %v1551
      %v1616 = vunpack.c.l.b16 %v1552
      %v1617 = vunpack.c.l.b16 %v1553
      %v1618 = vunpack.c.l.b16 %v1554
      %v1619 = vunpack.c.l.b16 %v1555
      %v1620 = vunpack.c.l.b16 %v1556
      %v1621 = vunpack.c.l.b16 %v1557
      %v1622 = vunpack.c.l.b16 %v1558
      %v1623 = vunpack.c.l.b16 %v1559
      %v1624 = vunpack.c.l.b16 %v1560
      %v1625 = vunpack.c.l.b16 %v1561
      %v1626 = vunpack.c.l.b16 %v1562
      %v1627 = vunpack.c.l.b16 %v1563
      %v1628 = vunpack.c.l.b16 %v1564
      %v1629 = vunpack.c.l.b16 %v1565
      %v1630 = vunpack.c.l.b16 %v1566
      %v1631 = vunpack.c.l.b16 %v1567
      %v1632 = vunpack.c.l.b16 %v1568
      %v1633 = vunpack.c.l.b16 %v1569
      %v1634 = vpack.c.b16 %v1603, %v1602
      %v1635 = vpack.c.b16 %v1605, %v1604
      %v1636 = vpack.c.b16 %v1607, %v1606
      %v1637 = vpack.c.b16 %v1609, %v1608
      %v1638 = vpack.c.b16 %v1611, %v1610
      %v1639 = vpack.c.b16 %v1613, %v1612
      %v1640 = vpack.c.b16 %v1615, %v1614
      %v1641 = vpack.c.b16 %v1617, %v1616
      %v1642 = vpack.c.b16 %v1619, %v1618
      %v1643 = vpack.c.b16 %v1621, %v1620
      %v1644 = vpack.c.b16 %v1623, %v1622
      %v1645 = vpack.c.b16 %v1625, %v1624
      %v1646 = vpack.c.b16 %v1627, %v1626
      %v1647 = vpack.c.b16 %v1629, %v1628
      %v1648 = vpack.c.b16 %v1631, %v1630
      %v1649 = vpack.c.b16 %v1633, %v1632
      %1666 = vmatpush.bf16.msra.mxu0 %v1641
      %1667 = vmatpush.bf16.msra.mxu0 %v1640
      %1668 = vmatpush.bf16.msra.mxu0 %v1639
      %1669 = vmatpush.bf16.msra.mxu0 %v1638
      %1670 = vmatpush.bf16.msra.mxu0 %v1637
      %1671 = vmatpush.bf16.msra.mxu0 %v1636
      %1672 = vmatpush.bf16.msra.mxu0 %v1635
      %1673 = vmatpush.bf16.msra.mxu0 %v1634
      %1674 = vmatmul.bf16.gmra.mxu0 %v1529
      %v1675 = vpop.f32.mrf.mxu0
      %v1676 = vadd.f32 0.0, %v1675
      %v1677 = vpop.f32.mrf.mxu0
      %v1678 = vadd.f32 0.0, %v1677
      %1679 = vmatmul.bf16.gmra.mxu0 %v1531
      %v1680 = vpop.f32.mrf.mxu0
      %v1681 = vadd.f32 0.0, %v1680
      %v1682 = vpop.f32.mrf.mxu0
      %v1683 = vadd.f32 0.0, %v1682
      %1684 = vmatmul.bf16.gmra.mxu0 %v1533
      %v1685 = vpop.f32.mrf.mxu0
      %v1686 = vadd.f32 0.0, %v1685
      %v1687 = vpop.f32.mrf.mxu0
      %v1688 = vadd.f32 0.0, %v1687
      %1689 = vmatmul.bf16.gmra.mxu0 %v1535
      %v1690 = vpop.f32.mrf.mxu0
      %v1691 = vadd.f32 0.0, %v1690
      %v1692 = vpop.f32.mrf.mxu0
      %v1693 = vadd.f32 0.0, %v1692
      %1694 = vdwg.mxu0
      %1695 = vmatpush.bf16.msra.mxu0 %v1649
      %1696 = vmatpush.bf16.msra.mxu0 %v1648
      %1697 = vmatpush.bf16.msra.mxu0 %v1647
      %1698 = vmatpush.bf16.msra.mxu0 %v1646
      %1699 = vmatpush.bf16.msra.mxu0 %v1645
      %1700 = vmatpush.bf16.msra.mxu0 %v1644
      %1701 = vmatpush.bf16.msra.mxu0 %v1643
      %1702 = vmatpush.bf16.msra.mxu0 %v1642
      %1703 = vmatmul.bf16.gmra.mxu0 %v1530
      %v1704 = vpop.f32.mrf.mxu0
      %v1705 = vadd.f32 %v1676, %v1704
      %v1706 = vpop.f32.mrf.mxu0
      %v1707 = vadd.f32 %v1678, %v1706
      %1708 = vmatmul.bf16.gmra.mxu0 %v1532
      %v1709 = vpop.f32.mrf.mxu0
      %v1710 = vadd.f32 %v1681, %v1709
      %v1711 = vpop.f32.mrf.mxu0
      %v1712 = vadd.f32 %v1683, %v1711
      %1713 = vmatmul.bf16.gmra.mxu0 %v1534
      %v1714 = vpop.f32.mrf.mxu0
      %v1715 = vadd.f32 %v1686, %v1714
      %v1716 = vpop.f32.mrf.mxu0
      %v1717 = vadd.f32 %v1688, %v1716
      %1718 = vmatmul.bf16.gmra.mxu0 %v1536
      %v1719 = vpop.f32.mrf.mxu0
      %v1720 = vadd.f32 %v1691, %v1719
      %v1721 = vpop.f32.mrf.mxu0
      %v1722 = vadd.f32 %v1693, %v1721
      %1723 = vdwg.mxu0
      %v1724 = vadd.f32 %v1393, %v1705
      %v1725 = vadd.f32 %v1394, %v1707
      %v1726 = vadd.f32 %v1395, %v1710
      %v1727 = vadd.f32 %v1396, %v1712
      %v1728 = vadd.f32 %v1397, %v1715
      %v1729 = vadd.f32 %v1398, %v1717
      %v1730 = vadd.f32 %v1399, %v1720
      %v1731 = vadd.f32 %v1400, %v1722
      %v1732 = vld [vmem:[%s283] sm:$0xfc]
      %v1733 = vld [vmem:[%s283 + $0x8] sm:$0xfc]
      %v1734 = vld [vmem:[%s283 + $0x10] sm:$0x3]
      %v1735 = vld [vmem:[%s283 + $0x18] sm:$0x3]
      %v1736 = vld [vmem:[%s283 + $0x20] sm:$0xfc]
      %v1737 = vld [vmem:[%s283 + $0x28] sm:$0xfc]
      %v1738 = vld [vmem:[%s283 + $0x30] sm:$0x3]
      %v1739 = vld [vmem:[%s283 + $0x38] sm:$0x3]
      %v1740 = vld [vmem:[%s283 + $0x40] sm:$0xfc]
      %v1741 = vld [vmem:[%s283 + $0x48] sm:$0xfc]
      %v1742 = vld [vmem:[%s283 + $0x50] sm:$0x3]
      %v1743 = vld [vmem:[%s283 + $0x58] sm:$0x3]
      %v1744 = vld [vmem:[%s283 + $0x60] sm:$0xfc]
      %v1745 = vld [vmem:[%s283 + $0x68] sm:$0xfc]
      %v1746 = vld [vmem:[%s283 + $0x70] sm:$0x3]
      %v1747 = vld [vmem:[%s283 + $0x78] sm:$0x3]
      %v1748 = vld [vmem:[%s283 + $0x80] sm:$0xfc]
      %v1749 = vld [vmem:[%s283 + $0x88] sm:$0xfc]
      %v1750 = vld [vmem:[%s283 + $0x90] sm:$0x3]
      %v1751 = vld [vmem:[%s283 + $0x98] sm:$0x3]
      %v1752 = vld [vmem:[%s283 + $0xa0] sm:$0xfc]
      %v1753 = vld [vmem:[%s283 + $0xa8] sm:$0xfc]
      %v1754 = vld [vmem:[%s283 + $0xb0] sm:$0x3]
      %v1755 = vld [vmem:[%s283 + $0xb8] sm:$0x3]
      %v1756 = vld [vmem:[%s283 + $0xc0] sm:$0xfc]
      %v1757 = vld [vmem:[%s283 + $0xc8] sm:$0xfc]
      %v1758 = vld [vmem:[%s283 + $0xd0] sm:$0x3]
      %v1759 = vld [vmem:[%s283 + $0xd8] sm:$0x3]
      %v1760 = vld [vmem:[%s283 + $0xe0] sm:$0xfc]
      %v1761 = vld [vmem:[%s283 + $0xe8] sm:$0xfc]
      %v1762 = vld [vmem:[%s283 + $0xf0] sm:$0x3]
      %v1763 = vld [vmem:[%s283 + $0xf8] sm:$0x3]
      %v1796 = vrot.slane %v1732, 2
      %v1797 = vrot.slane %v1734, 2
      %v1798 = vsel %vm914, %v1796, %v1797
      %v1799 = vrot.slane %v1733, 2
      %v1800 = vrot.slane %v1735, 2
      %v1801 = vsel %vm914, %v1799, %v1800
      %v1802 = vrot.slane %v1736, 2
      %v1803 = vrot.slane %v1738, 2
      %v1804 = vsel %vm914, %v1802, %v1803
      %v1805 = vrot.slane %v1737, 2
      %v1806 = vrot.slane %v1739, 2
      %v1807 = vsel %vm914, %v1805, %v1806
      %v1808 = vrot.slane %v1740, 2
      %v1809 = vrot.slane %v1742, 2
      %v1810 = vsel %vm914, %v1808, %v1809
      %v1811 = vrot.slane %v1741, 2
      %v1812 = vrot.slane %v1743, 2
      %v1813 = vsel %vm914, %v1811, %v1812
      %v1814 = vrot.slane %v1744, 2
      %v1815 = vrot.slane %v1746, 2
      %v1816 = vsel %vm914, %v1814, %v1815
      %v1817 = vrot.slane %v1745, 2
      %v1818 = vrot.slane %v1747, 2
      %v1819 = vsel %vm914, %v1817, %v1818
      %v1820 = vrot.slane %v1748, 2
      %v1821 = vrot.slane %v1750, 2
      %v1822 = vsel %vm914, %v1820, %v1821
      %v1823 = vrot.slane %v1749, 2
      %v1824 = vrot.slane %v1751, 2
      %v1825 = vsel %vm914, %v1823, %v1824
      %v1826 = vrot.slane %v1752, 2
      %v1827 = vrot.slane %v1754, 2
      %v1828 = vsel %vm914, %v1826, %v1827
      %v1829 = vrot.slane %v1753, 2
      %v1830 = vrot.slane %v1755, 2
      %v1831 = vsel %vm914, %v1829, %v1830
      %v1832 = vrot.slane %v1756, 2
      %v1833 = vrot.slane %v1758, 2
      %v1834 = vsel %vm914, %v1832, %v1833
      %v1835 = vrot.slane %v1757, 2
      %v1836 = vrot.slane %v1759, 2
      %v1837 = vsel %vm914, %v1835, %v1836
      %v1838 = vrot.slane %v1760, 2
      %v1839 = vrot.slane %v1762, 2
      %v1840 = vsel %vm914, %v1838, %v1839
      %v1841 = vrot.slane %v1761, 2
      %v1842 = vrot.slane %v1763, 2
      %v1843 = vsel %vm914, %v1841, %v1842
      %v1860 = vpack.c.bf16 %v1804, %v1798
      %v1861 = vpack.c.bf16 %v1807, %v1801
      %v1862 = vpack.c.bf16 %v1816, %v1810
      %v1863 = vpack.c.bf16 %v1819, %v1813
      %v1864 = vpack.c.bf16 %v1828, %v1822
      %v1865 = vpack.c.bf16 %v1831, %v1825
      %v1866 = vpack.c.bf16 %v1840, %v1834
      %v1867 = vpack.c.bf16 %v1843, %v1837
      %s1868 = scalar_lea.vmem %s1, 640
      %v1869 = vld [vmem:[%s1868] sm:$0xf]
      %v1870 = vld [vmem:[%s1868 + $0x4] sm:$0xf]
      %v1871 = vld [vmem:[%s1868 + $0x8] sm:$0xf]
      %v1872 = vld [vmem:[%s1868 + $0xc] sm:$0xf]
      %v1873 = vld [vmem:[%s1868 + $0x10] sm:$0xf]
      %v1874 = vld [vmem:[%s1868 + $0x14] sm:$0xf]
      %v1875 = vld [vmem:[%s1868 + $0x18] sm:$0xf]
      %v1876 = vld [vmem:[%s1868 + $0x1c] sm:$0xf]
      %v1877 = vld [vmem:[%s1868 + $0x20] sm:$0xf]
      %v1878 = vld [vmem:[%s1868 + $0x24] sm:$0xf]
      %v1879 = vld [vmem:[%s1868 + $0x28] sm:$0xf]
      %v1880 = vld [vmem:[%s1868 + $0x2c] sm:$0xf]
      %v1881 = vld [vmem:[%s1868 + $0x30] sm:$0xf]
      %v1882 = vld [vmem:[%s1868 + $0x34] sm:$0xf]
      %v1883 = vld [vmem:[%s1868 + $0x38] sm:$0xf]
      %v1884 = vld [vmem:[%s1868 + $0x3c] sm:$0xf]
      %v1885 = vld [vmem:[%s1868 + $0x40] sm:$0xf]
      %v1886 = vld [vmem:[%s1868 + $0x44] sm:$0xf]
      %v1887 = vld [vmem:[%s1868 + $0x48] sm:$0xf]
      %v1888 = vld [vmem:[%s1868 + $0x4c] sm:$0xf]
      %v1889 = vld [vmem:[%s1868 + $0x50] sm:$0xf]
      %v1890 = vld [vmem:[%s1868 + $0x54] sm:$0xf]
      %v1891 = vld [vmem:[%s1868 + $0x58] sm:$0xf]
      %v1892 = vld [vmem:[%s1868 + $0x5c] sm:$0xf]
      %v1893 = vld [vmem:[%s1868 + $0x60] sm:$0xf]
      %v1894 = vld [vmem:[%s1868 + $0x64] sm:$0xf]
      %v1895 = vld [vmem:[%s1868 + $0x68] sm:$0xf]
      %v1896 = vld [vmem:[%s1868 + $0x6c] sm:$0xf]
      %v1897 = vld [vmem:[%s1868 + $0x70] sm:$0xf]
      %v1898 = vld [vmem:[%s1868 + $0x74] sm:$0xf]
      %v1899 = vld [vmem:[%s1868 + $0x78] sm:$0xf]
      %v1900 = vld [vmem:[%s1868 + $0x7c] sm:$0xf]
      %v1933 = vunpack.c.l.b16 %v1869
      %v1934 = vunpack.c.l.b16 %v1870
      %v1935 = vunpack.c.l.b16 %v1871
      %v1936 = vunpack.c.l.b16 %v1872
      %v1937 = vunpack.c.l.b16 %v1873
      %v1938 = vunpack.c.l.b16 %v1874
      %v1939 = vunpack.c.l.b16 %v1875
      %v1940 = vunpack.c.l.b16 %v1876
      %v1941 = vunpack.c.l.b16 %v1877
      %v1942 = vunpack.c.l.b16 %v1878
      %v1943 = vunpack.c.l.b16 %v1879
      %v1944 = vunpack.c.l.b16 %v1880
      %v1945 = vunpack.c.l.b16 %v1881
      %v1946 = vunpack.c.l.b16 %v1882
      %v1947 = vunpack.c.l.b16 %v1883
      %v1948 = vunpack.c.l.b16 %v1884
      %v1949 = vunpack.c.l.b16 %v1885
      %v1950 = vunpack.c.l.b16 %v1886
      %v1951 = vunpack.c.l.b16 %v1887
      %v1952 = vunpack.c.l.b16 %v1888
      %v1953 = vunpack.c.l.b16 %v1889
      %v1954 = vunpack.c.l.b16 %v1890
      %v1955 = vunpack.c.l.b16 %v1891
      %v1956 = vunpack.c.l.b16 %v1892
      %v1957 = vunpack.c.l.b16 %v1893
      %v1958 = vunpack.c.l.b16 %v1894
      %v1959 = vunpack.c.l.b16 %v1895
      %v1960 = vunpack.c.l.b16 %v1896
      %v1961 = vunpack.c.l.b16 %v1897
      %v1962 = vunpack.c.l.b16 %v1898
      %v1963 = vunpack.c.l.b16 %v1899
      %v1964 = vunpack.c.l.b16 %v1900
      %v1965 = vpack.c.b16 %v1934, %v1933
      %v1966 = vpack.c.b16 %v1936, %v1935
      %v1967 = vpack.c.b16 %v1938, %v1937
      %v1968 = vpack.c.b16 %v1940, %v1939
      %v1969 = vpack.c.b16 %v1942, %v1941
      %v1970 = vpack.c.b16 %v1944, %v1943
      %v1971 = vpack.c.b16 %v1946, %v1945
      %v1972 = vpack.c.b16 %v1948, %v1947
      %v1973 = vpack.c.b16 %v1950, %v1949
      %v1974 = vpack.c.b16 %v1952, %v1951
      %v1975 = vpack.c.b16 %v1954, %v1953
      %v1976 = vpack.c.b16 %v1956, %v1955
      %v1977 = vpack.c.b16 %v1958, %v1957
      %v1978 = vpack.c.b16 %v1960, %v1959
      %v1979 = vpack.c.b16 %v1962, %v1961
      %v1980 = vpack.c.b16 %v1964, %v1963
      %1997 = vmatpush.bf16.msra.mxu0 %v1972
      %1998 = vmatpush.bf16.msra.mxu0 %v1971
      %1999 = vmatpush.bf16.msra.mxu0 %v1970
      %2000 = vmatpush.bf16.msra.mxu0 %v1969
      %2001 = vmatpush.bf16.msra.mxu0 %v1968
      %2002 = vmatpush.bf16.msra.mxu0 %v1967
      %2003 = vmatpush.bf16.msra.mxu0 %v1966
      %2004 = vmatpush.bf16.msra.mxu0 %v1965
      %2005 = vmatmul.bf16.gmra.mxu0 %v1860
      %v2006 = vpop.f32.mrf.mxu0
      %v2007 = vadd.f32 0.0, %v2006
      %v2008 = vpop.f32.mrf.mxu0
      %v2009 = vadd.f32 0.0, %v2008
      %2010 = vmatmul.bf16.gmra.mxu0 %v1862
      %v2011 = vpop.f32.mrf.mxu0
      %v2012 = vadd.f32 0.0, %v2011
      %v2013 = vpop.f32.mrf.mxu0
      %v2014 = vadd.f32 0.0, %v2013
      %2015 = vmatmul.bf16.gmra.mxu0 %v1864
      %v2016 = vpop.f32.mrf.mxu0
      %v2017 = vadd.f32 0.0, %v2016
      %v2018 = vpop.f32.mrf.mxu0
      %v2019 = vadd.f32 0.0, %v2018
      %2020 = vmatmul.bf16.gmra.mxu0 %v1866
      %v2021 = vpop.f32.mrf.mxu0
      %v2022 = vadd.f32 0.0, %v2021
      %v2023 = vpop.f32.mrf.mxu0
      %v2024 = vadd.f32 0.0, %v2023
      %2025 = vdwg.mxu0
      %2026 = vmatpush.bf16.msra.mxu0 %v1980
      %2027 = vmatpush.bf16.msra.mxu0 %v1979
      %2028 = vmatpush.bf16.msra.mxu0 %v1978
      %2029 = vmatpush.bf16.msra.mxu0 %v1977
      %2030 = vmatpush.bf16.msra.mxu0 %v1976
      %2031 = vmatpush.bf16.msra.mxu0 %v1975
      %2032 = vmatpush.bf16.msra.mxu0 %v1974
      %2033 = vmatpush.bf16.msra.mxu0 %v1973
      %2034 = vmatmul.bf16.gmra.mxu0 %v1861
      %v2035 = vpop.f32.mrf.mxu0
      %v2036 = vadd.f32 %v2007, %v2035
      %v2037 = vpop.f32.mrf.mxu0
      %v2038 = vadd.f32 %v2009, %v2037
      %2039 = vmatmul.bf16.gmra.mxu0 %v1863
      %v2040 = vpop.f32.mrf.mxu0
      %v2041 = vadd.f32 %v2012, %v2040
      %v2042 = vpop.f32.mrf.mxu0
      %v2043 = vadd.f32 %v2014, %v2042
      %2044 = vmatmul.bf16.gmra.mxu0 %v1865
      %v2045 = vpop.f32.mrf.mxu0
      %v2046 = vadd.f32 %v2017, %v2045
      %v2047 = vpop.f32.mrf.mxu0
      %v2048 = vadd.f32 %v2019, %v2047
      %2049 = vmatmul.bf16.gmra.mxu0 %v1867
      %v2050 = vpop.f32.mrf.mxu0
      %v2051 = vadd.f32 %v2022, %v2050
      %v2052 = vpop.f32.mrf.mxu0
      %v2053 = vadd.f32 %v2024, %v2052
      %2054 = vdwg.mxu0
      %v2055 = vadd.f32 %v1724, %v2036
      %v2056 = vadd.f32 %v1725, %v2038
      %v2057 = vadd.f32 %v1726, %v2041
      %v2058 = vadd.f32 %v1727, %v2043
      %v2059 = vadd.f32 %v1728, %v2046
      %v2060 = vadd.f32 %v1729, %v2048
      %v2061 = vadd.f32 %v1730, %v2051
      %v2062 = vadd.f32 %v1731, %v2053
      %s2063 = scalar_lea.vmem [#allocation2], 64
      %v2064 = vld [vmem:[%s2063] sm:$0xff]
      %v2065 = vld [vmem:[%s2063 + $0x8] sm:$0xff]
      %v2066 = vld [vmem:[%s2063 + $0x20] sm:$0xff]
      %v2067 = vld [vmem:[%s2063 + $0x28] sm:$0xff]
      %v2068 = vld [vmem:[%s2063 + $0x40] sm:$0xff]
      %v2069 = vld [vmem:[%s2063 + $0x48] sm:$0xff]
      %v2070 = vld [vmem:[%s2063 + $0x60] sm:$0xff]
      %v2071 = vld [vmem:[%s2063 + $0x68] sm:$0xff]
      %v2072 = vld [vmem:[%s2063 + $0x80] sm:$0xff]
      %v2073 = vld [vmem:[%s2063 + $0x88] sm:$0xff]
      %v2074 = vld [vmem:[%s2063 + $0xa0] sm:$0xff]
      %v2075 = vld [vmem:[%s2063 + $0xa8] sm:$0xff]
      %v2076 = vld [vmem:[%s2063 + $0xc0] sm:$0xff]
      %v2077 = vld [vmem:[%s2063 + $0xc8] sm:$0xff]
      %v2078 = vld [vmem:[%s2063 + $0xe0] sm:$0xff]
      %v2079 = vld [vmem:[%s2063 + $0xe8] sm:$0xff]
      %v2080 = vpack.c.bf16 %v2066, %v2064
      %v2081 = vpack.c.bf16 %v2067, %v2065
      %v2082 = vpack.c.bf16 %v2070, %v2068
      %v2083 = vpack.c.bf16 %v2071, %v2069
      %v2084 = vpack.c.bf16 %v2074, %v2072
      %v2085 = vpack.c.bf16 %v2075, %v2073
      %v2086 = vpack.c.bf16 %v2078, %v2076
      %v2087 = vpack.c.bf16 %v2079, %v2077
      %s2088 = scalar_lea.vmem %s1, 768
      %v2089 = vld [vmem:[%s2088] sm:$0xf]
      %v2090 = vld [vmem:[%s2088 + $0x4] sm:$0xf]
      %v2091 = vld [vmem:[%s2088 + $0x8] sm:$0xf]
      %v2092 = vld [vmem:[%s2088 + $0xc] sm:$0xf]
      %v2093 = vld [vmem:[%s2088 + $0x10] sm:$0xf]
      %v2094 = vld [vmem:[%s2088 + $0x14] sm:$0xf]
      %v2095 = vld [vmem:[%s2088 + $0x18] sm:$0xf]
      %v2096 = vld [vmem:[%s2088 + $0x1c] sm:$0xf]
      %v2097 = vld [vmem:[%s2088 + $0x20] sm:$0xf]
      %v2098 = vld [vmem:[%s2088 + $0x24] sm:$0xf]
      %v2099 = vld [vmem:[%s2088 + $0x28] sm:$0xf]
      %v2100 = vld [vmem:[%s2088 + $0x2c] sm:$0xf]
      %v2101 = vld [vmem:[%s2088 + $0x30] sm:$0xf]
      %v2102 = vld [vmem:[%s2088 + $0x34] sm:$0xf]
      %v2103 = vld [vmem:[%s2088 + $0x38] sm:$0xf]
      %v2104 = vld [vmem:[%s2088 + $0x3c] sm:$0xf]
      %v2105 = vld [vmem:[%s2088 + $0x40] sm:$0xf]
      %v2106 = vld [vmem:[%s2088 + $0x44] sm:$0xf]
      %v2107 = vld [vmem:[%s2088 + $0x48] sm:$0xf]
      %v2108 = vld [vmem:[%s2088 + $0x4c] sm:$0xf]
      %v2109 = vld [vmem:[%s2088 + $0x50] sm:$0xf]
      %v2110 = vld [vmem:[%s2088 + $0x54] sm:$0xf]
      %v2111 = vld [vmem:[%s2088 + $0x58] sm:$0xf]
      %v2112 = vld [vmem:[%s2088 + $0x5c] sm:$0xf]
      %v2113 = vld [vmem:[%s2088 + $0x60] sm:$0xf]
      %v2114 = vld [vmem:[%s2088 + $0x64] sm:$0xf]
      %v2115 = vld [vmem:[%s2088 + $0x68] sm:$0xf]
      %v2116 = vld [vmem:[%s2088 + $0x6c] sm:$0xf]
      %v2117 = vld [vmem:[%s2088 + $0x70] sm:$0xf]
      %v2118 = vld [vmem:[%s2088 + $0x74] sm:$0xf]
      %v2119 = vld [vmem:[%s2088 + $0x78] sm:$0xf]
      %v2120 = vld [vmem:[%s2088 + $0x7c] sm:$0xf]
      %v2153 = vunpack.c.l.b16 %v2089
      %v2154 = vunpack.c.l.b16 %v2090
      %v2155 = vunpack.c.l.b16 %v2091
      %v2156 = vunpack.c.l.b16 %v2092
      %v2157 = vunpack.c.l.b16 %v2093
      %v2158 = vunpack.c.l.b16 %v2094
      %v2159 = vunpack.c.l.b16 %v2095
      %v2160 = vunpack.c.l.b16 %v2096
      %v2161 = vunpack.c.l.b16 %v2097
      %v2162 = vunpack.c.l.b16 %v2098
      %v2163 = vunpack.c.l.b16 %v2099
      %v2164 = vunpack.c.l.b16 %v2100
      %v2165 = vunpack.c.l.b16 %v2101
      %v2166 = vunpack.c.l.b16 %v2102
      %v2167 = vunpack.c.l.b16 %v2103
      %v2168 = vunpack.c.l.b16 %v2104
      %v2169 = vunpack.c.l.b16 %v2105
      %v2170 = vunpack.c.l.b16 %v2106
      %v2171 = vunpack.c.l.b16 %v2107
      %v2172 = vunpack.c.l.b16 %v2108
      %v2173 = vunpack.c.l.b16 %v2109
      %v2174 = vunpack.c.l.b16 %v2110
      %v2175 = vunpack.c.l.b16 %v2111
      %v2176 = vunpack.c.l.b16 %v2112
      %v2177 = vunpack.c.l.b16 %v2113
      %v2178 = vunpack.c.l.b16 %v2114
      %v2179 = vunpack.c.l.b16 %v2115
      %v2180 = vunpack.c.l.b16 %v2116
      %v2181 = vunpack.c.l.b16 %v2117
      %v2182 = vunpack.c.l.b16 %v2118
      %v2183 = vunpack.c.l.b16 %v2119
      %v2184 = vunpack.c.l.b16 %v2120
      %v2185 = vpack.c.b16 %v2154, %v2153
      %v2186 = vpack.c.b16 %v2156, %v2155
      %v2187 = vpack.c.b16 %v2158, %v2157
      %v2188 = vpack.c.b16 %v2160, %v2159
      %v2189 = vpack.c.b16 %v2162, %v2161
      %v2190 = vpack.c.b16 %v2164, %v2163
      %v2191 = vpack.c.b16 %v2166, %v2165
      %v2192 = vpack.c.b16 %v2168, %v2167
      %v2193 = vpack.c.b16 %v2170, %v2169
      %v2194 = vpack.c.b16 %v2172, %v2171
      %v2195 = vpack.c.b16 %v2174, %v2173
      %v2196 = vpack.c.b16 %v2176, %v2175
      %v2197 = vpack.c.b16 %v2178, %v2177
      %v2198 = vpack.c.b16 %v2180, %v2179
      %v2199 = vpack.c.b16 %v2182, %v2181
      %v2200 = vpack.c.b16 %v2184, %v2183
      %2217 = vmatpush.bf16.msra.mxu0 %v2192
      %2218 = vmatpush.bf16.msra.mxu0 %v2191
      %2219 = vmatpush.bf16.msra.mxu0 %v2190
      %2220 = vmatpush.bf16.msra.mxu0 %v2189
      %2221 = vmatpush.bf16.msra.mxu0 %v2188
      %2222 = vmatpush.bf16.msra.mxu0 %v2187
      %2223 = vmatpush.bf16.msra.mxu0 %v2186
      %2224 = vmatpush.bf16.msra.mxu0 %v2185
      %2225 = vmatmul.bf16.gmra.mxu0 %v2080
      %v2226 = vpop.f32.mrf.mxu0
      %v2227 = vadd.f32 0.0, %v2226
      %v2228 = vpop.f32.mrf.mxu0
      %v2229 = vadd.f32 0.0, %v2228
      %2230 = vmatmul.bf16.gmra.mxu0 %v2082
      %v2231 = vpop.f32.mrf.mxu0
      %v2232 = vadd.f32 0.0, %v2231
      %v2233 = vpop.f32.mrf.mxu0
      %v2234 = vadd.f32 0.0, %v2233
      %2235 = vmatmul.bf16.gmra.mxu0 %v2084
      %v2236 = vpop.f32.mrf.mxu0
      %v2237 = vadd.f32 0.0, %v2236
      %v2238 = vpop.f32.mrf.mxu0
      %v2239 = vadd.f32 0.0, %v2238
      %2240 = vmatmul.bf16.gmra.mxu0 %v2086
      %v2241 = vpop.f32.mrf.mxu0
      %v2242 = vadd.f32 0.0, %v2241
      %v2243 = vpop.f32.mrf.mxu0
      %v2244 = vadd.f32 0.0, %v2243
      %2245 = vdwg.mxu0
      %2246 = vmatpush.bf16.msra.mxu0 %v2200
      %2247 = vmatpush.bf16.msra.mxu0 %v2199
      %2248 = vmatpush.bf16.msra.mxu0 %v2198
      %2249 = vmatpush.bf16.msra.mxu0 %v2197
      %2250 = vmatpush.bf16.msra.mxu0 %v2196
      %2251 = vmatpush.bf16.msra.mxu0 %v2195
      %2252 = vmatpush.bf16.msra.mxu0 %v2194
      %2253 = vmatpush.bf16.msra.mxu0 %v2193
      %2254 = vmatmul.bf16.gmra.mxu0 %v2081
      %v2255 = vpop.f32.mrf.mxu0
      %v2256 = vadd.f32 %v2227, %v2255
      %v2257 = vpop.f32.mrf.mxu0
      %v2258 = vadd.f32 %v2229, %v2257
      %2259 = vmatmul.bf16.gmra.mxu0 %v2083
      %v2260 = vpop.f32.mrf.mxu0
      %v2261 = vadd.f32 %v2232, %v2260
      %v2262 = vpop.f32.mrf.mxu0
      %v2263 = vadd.f32 %v2234, %v2262
      %2264 = vmatmul.bf16.gmra.mxu0 %v2085
      %v2265 = vpop.f32.mrf.mxu0
      %v2266 = vadd.f32 %v2237, %v2265
      %v2267 = vpop.f32.mrf.mxu0
      %v2268 = vadd.f32 %v2239, %v2267
      %2269 = vmatmul.bf16.gmra.mxu0 %v2087
      %v2270 = vpop.f32.mrf.mxu0
      %v2271 = vadd.f32 %v2242, %v2270
      %v2272 = vpop.f32.mrf.mxu0
      %v2273 = vadd.f32 %v2244, %v2272
      %2274 = vdwg.mxu0
      %v2275 = vadd.f32 %v2055, %v2256
      %v2276 = vadd.f32 %v2056, %v2258
      %v2277 = vadd.f32 %v2057, %v2261
      %v2278 = vadd.f32 %v2058, %v2263
      %v2279 = vadd.f32 %v2059, %v2266
      %v2280 = vadd.f32 %v2060, %v2268
      %v2281 = vadd.f32 %v2061, %v2271
      %v2282 = vadd.f32 %v2062, %v2273
      %v2283 = vld [vmem:[%s2063] sm:$0xfe]
      %v2284 = vld [vmem:[%s2063 + $0x8] sm:$0xfe]
      %v2285 = vld [vmem:[%s2063 + $0x10] sm:$0x1]
      %v2286 = vld [vmem:[%s2063 + $0x18] sm:$0x1]
      %v2287 = vld [vmem:[%s2063 + $0x20] sm:$0xfe]
      %v2288 = vld [vmem:[%s2063 + $0x28] sm:$0xfe]
      %v2289 = vld [vmem:[%s2063 + $0x30] sm:$0x1]
      %v2290 = vld [vmem:[%s2063 + $0x38] sm:$0x1]
      %v2291 = vld [vmem:[%s2063 + $0x40] sm:$0xfe]
      %v2292 = vld [vmem:[%s2063 + $0x48] sm:$0xfe]
      %v2293 = vld [vmem:[%s2063 + $0x50] sm:$0x1]
      %v2294 = vld [vmem:[%s2063 + $0x58] sm:$0x1]
      %v2295 = vld [vmem:[%s2063 + $0x60] sm:$0xfe]
      %v2296 = vld [vmem:[%s2063 + $0x68] sm:$0xfe]
      %v2297 = vld [vmem:[%s2063 + $0x70] sm:$0x1]
      %v2298 = vld [vmem:[%s2063 + $0x78] sm:$0x1]
      %v2299 = vld [vmem:[%s2063 + $0x80] sm:$0xfe]
      %v2300 = vld [vmem:[%s2063 + $0x88] sm:$0xfe]
      %v2301 = vld [vmem:[%s2063 + $0x90] sm:$0x1]
      %v2302 = vld [vmem:[%s2063 + $0x98] sm:$0x1]
      %v2303 = vld [vmem:[%s2063 + $0xa0] sm:$0xfe]
      %v2304 = vld [vmem:[%s2063 + $0xa8] sm:$0xfe]
      %v2305 = vld [vmem:[%s2063 + $0xb0] sm:$0x1]
      %v2306 = vld [vmem:[%s2063 + $0xb8] sm:$0x1]
      %v2307 = vld [vmem:[%s2063 + $0xc0] sm:$0xfe]
      %v2308 = vld [vmem:[%s2063 + $0xc8] sm:$0xfe]
      %v2309 = vld [vmem:[%s2063 + $0xd0] sm:$0x1]
      %v2310 = vld [vmem:[%s2063 + $0xd8] sm:$0x1]
      %v2311 = vld [vmem:[%s2063 + $0xe0] sm:$0xfe]
      %v2312 = vld [vmem:[%s2063 + $0xe8] sm:$0xfe]
      %v2313 = vld [vmem:[%s2063 + $0xf0] sm:$0x1]
      %v2314 = vld [vmem:[%s2063 + $0xf8] sm:$0x1]
      %v2347 = vrot.slane %v2283, 1
      %v2348 = vrot.slane %v2285, 1
      %v2349 = vsel %vm436, %v2347, %v2348
      %v2350 = vrot.slane %v2284, 1
      %v2351 = vrot.slane %v2286, 1
      %v2352 = vsel %vm436, %v2350, %v2351
      %v2353 = vrot.slane %v2287, 1
      %v2354 = vrot.slane %v2289, 1
      %v2355 = vsel %vm436, %v2353, %v2354
      %v2356 = vrot.slane %v2288, 1
      %v2357 = vrot.slane %v2290, 1
      %v2358 = vsel %vm436, %v2356, %v2357
      %v2359 = vrot.slane %v2291, 1
      %v2360 = vrot.slane %v2293, 1
      %v2361 = vsel %vm436, %v2359, %v2360
      %v2362 = vrot.slane %v2292, 1
      %v2363 = vrot.slane %v2294, 1
      %v2364 = vsel %vm436, %v2362, %v2363
      %v2365 = vrot.slane %v2295, 1
      %v2366 = vrot.slane %v2297, 1
      %v2367 = vsel %vm436, %v2365, %v2366
      %v2368 = vrot.slane %v2296, 1
      %v2369 = vrot.slane %v2298, 1
      %v2370 = vsel %vm436, %v2368, %v2369
      %v2371 = vrot.slane %v2299, 1
      %v2372 = vrot.slane %v2301, 1
      %v2373 = vsel %vm436, %v2371, %v2372
      %v2374 = vrot.slane %v2300, 1
      %v2375 = vrot.slane %v2302, 1
      %v2376 = vsel %vm436, %v2374, %v2375
      %v2377 = vrot.slane %v2303, 1
      %v2378 = vrot.slane %v2305, 1
      %v2379 = vsel %vm436, %v2377, %v2378
      %v2380 = vrot.slane %v2304, 1
      %v2381 = vrot.slane %v2306, 1
      %v2382 = vsel %vm436, %v2380, %v2381
      %v2383 = vrot.slane %v2307, 1
      %v2384 = vrot.slane %v2309, 1
      %v2385 = vsel %vm436, %v2383, %v2384
      %v2386 = vrot.slane %v2308, 1
      %v2387 = vrot.slane %v2310, 1
      %v2388 = vsel %vm436, %v2386, %v2387
      %v2389 = vrot.slane %v2311, 1
      %v2390 = vrot.slane %v2313, 1
      %v2391 = vsel %vm436, %v2389, %v2390
      %v2392 = vrot.slane %v2312, 1
      %v2393 = vrot.slane %v2314, 1
      %v2394 = vsel %vm436, %v2392, %v2393
      %v2411 = vpack.c.bf16 %v2355, %v2349
      %v2412 = vpack.c.bf16 %v2358, %v2352
      %v2413 = vpack.c.bf16 %v2367, %v2361
      %v2414 = vpack.c.bf16 %v2370, %v2364
      %v2415 = vpack.c.bf16 %v2379, %v2373
      %v2416 = vpack.c.bf16 %v2382, %v2376
      %v2417 = vpack.c.bf16 %v2391, %v2385
      %v2418 = vpack.c.bf16 %v2394, %v2388
      %s2419 = scalar_lea.vmem %s1, 896
      %v2420 = vld [vmem:[%s2419] sm:$0xf]
      %v2421 = vld [vmem:[%s2419 + $0x4] sm:$0xf]
      %v2422 = vld [vmem:[%s2419 + $0x8] sm:$0xf]
      %v2423 = vld [vmem:[%s2419 + $0xc] sm:$0xf]
      %v2424 = vld [vmem:[%s2419 + $0x10] sm:$0xf]
      %v2425 = vld [vmem:[%s2419 + $0x14] sm:$0xf]
      %v2426 = vld [vmem:[%s2419 + $0x18] sm:$0xf]
      %v2427 = vld [vmem:[%s2419 + $0x1c] sm:$0xf]
      %v2428 = vld [vmem:[%s2419 + $0x20] sm:$0xf]
      %v2429 = vld [vmem:[%s2419 + $0x24] sm:$0xf]
      %v2430 = vld [vmem:[%s2419 + $0x28] sm:$0xf]
      %v2431 = vld [vmem:[%s2419 + $0x2c] sm:$0xf]
      %v2432 = vld [vmem:[%s2419 + $0x30] sm:$0xf]
      %v2433 = vld [vmem:[%s2419 + $0x34] sm:$0xf]
      %v2434 = vld [vmem:[%s2419 + $0x38] sm:$0xf]
      %v2435 = vld [vmem:[%s2419 + $0x3c] sm:$0xf]
      %v2436 = vld [vmem:[%s2419 + $0x40] sm:$0xf]
      %v2437 = vld [vmem:[%s2419 + $0x44] sm:$0xf]
      %v2438 = vld [vmem:[%s2419 + $0x48] sm:$0xf]
      %v2439 = vld [vmem:[%s2419 + $0x4c] sm:$0xf]
      %v2440 = vld [vmem:[%s2419 + $0x50] sm:$0xf]
      %v2441 = vld [vmem:[%s2419 + $0x54] sm:$0xf]
      %v2442 = vld [vmem:[%s2419 + $0x58] sm:$0xf]
      %v2443 = vld [vmem:[%s2419 + $0x5c] sm:$0xf]
      %v2444 = vld [vmem:[%s2419 + $0x60] sm:$0xf]
      %v2445 = vld [vmem:[%s2419 + $0x64] sm:$0xf]
      %v2446 = vld [vmem:[%s2419 + $0x68] sm:$0xf]
      %v2447 = vld [vmem:[%s2419 + $0x6c] sm:$0xf]
      %v2448 = vld [vmem:[%s2419 + $0x70] sm:$0xf]
      %v2449 = vld [vmem:[%s2419 + $0x74] sm:$0xf]
      %v2450 = vld [vmem:[%s2419 + $0x78] sm:$0xf]
      %v2451 = vld [vmem:[%s2419 + $0x7c] sm:$0xf]
      %v2484 = vunpack.c.l.b16 %v2420
      %v2485 = vunpack.c.l.b16 %v2421
      %v2486 = vunpack.c.l.b16 %v2422
      %v2487 = vunpack.c.l.b16 %v2423
      %v2488 = vunpack.c.l.b16 %v2424
      %v2489 = vunpack.c.l.b16 %v2425
      %v2490 = vunpack.c.l.b16 %v2426
      %v2491 = vunpack.c.l.b16 %v2427
      %v2492 = vunpack.c.l.b16 %v2428
      %v2493 = vunpack.c.l.b16 %v2429
      %v2494 = vunpack.c.l.b16 %v2430
      %v2495 = vunpack.c.l.b16 %v2431
      %v2496 = vunpack.c.l.b16 %v2432
      %v2497 = vunpack.c.l.b16 %v2433
      %v2498 = vunpack.c.l.b16 %v2434
      %v2499 = vunpack.c.l.b16 %v2435
      %v2500 = vunpack.c.l.b16 %v2436
      %v2501 = vunpack.c.l.b16 %v2437
      %v2502 = vunpack.c.l.b16 %v2438
      %v2503 = vunpack.c.l.b16 %v2439
      %v2504 = vunpack.c.l.b16 %v2440
      %v2505 = vunpack.c.l.b16 %v2441
      %v2506 = vunpack.c.l.b16 %v2442
      %v2507 = vunpack.c.l.b16 %v2443
      %v2508 = vunpack.c.l.b16 %v2444
      %v2509 = vunpack.c.l.b16 %v2445
      %v2510 = vunpack.c.l.b16 %v2446
      %v2511 = vunpack.c.l.b16 %v2447
      %v2512 = vunpack.c.l.b16 %v2448
      %v2513 = vunpack.c.l.b16 %v2449
      %v2514 = vunpack.c.l.b16 %v2450
      %v2515 = vunpack.c.l.b16 %v2451
      %v2516 = vpack.c.b16 %v2485, %v2484
      %v2517 = vpack.c.b16 %v2487, %v2486
      %v2518 = vpack.c.b16 %v2489, %v2488
      %v2519 = vpack.c.b16 %v2491, %v2490
      %v2520 = vpack.c.b16 %v2493, %v2492
      %v2521 = vpack.c.b16 %v2495, %v2494
      %v2522 = vpack.c.b16 %v2497, %v2496
      %v2523 = vpack.c.b16 %v2499, %v2498
      %v2524 = vpack.c.b16 %v2501, %v2500
      %v2525 = vpack.c.b16 %v2503, %v2502
      %v2526 = vpack.c.b16 %v2505, %v2504
      %v2527 = vpack.c.b16 %v2507, %v2506
      %v2528 = vpack.c.b16 %v2509, %v2508
      %v2529 = vpack.c.b16 %v2511, %v2510
      %v2530 = vpack.c.b16 %v2513, %v2512
      %v2531 = vpack.c.b16 %v2515, %v2514
      %2548 = vmatpush.bf16.msra.mxu0 %v2523
      %2549 = vmatpush.bf16.msra.mxu0 %v2522
      %2550 = vmatpush.bf16.msra.mxu0 %v2521
      %2551 = vmatpush.bf16.msra.mxu0 %v2520
      %2552 = vmatpush.bf16.msra.mxu0 %v2519
      %2553 = vmatpush.bf16.msra.mxu0 %v2518
      %2554 = vmatpush.bf16.msra.mxu0 %v2517
      %2555 = vmatpush.bf16.msra.mxu0 %v2516
      %2556 = vmatmul.bf16.gmra.mxu0 %v2411
      %v2557 = vpop.f32.mrf.mxu0
      %v2558 = vadd.f32 0.0, %v2557
      %v2559 = vpop.f32.mrf.mxu0
      %v2560 = vadd.f32 0.0, %v2559
      %2561 = vmatmul.bf16.gmra.mxu0 %v2413
      %v2562 = vpop.f32.mrf.mxu0
      %v2563 = vadd.f32 0.0, %v2562
      %v2564 = vpop.f32.mrf.mxu0
      %v2565 = vadd.f32 0.0, %v2564
      %2566 = vmatmul.bf16.gmra.mxu0 %v2415
      %v2567 = vpop.f32.mrf.mxu0
      %v2568 = vadd.f32 0.0, %v2567
      %v2569 = vpop.f32.mrf.mxu0
      %v2570 = vadd.f32 0.0, %v2569
      %2571 = vmatmul.bf16.gmra.mxu0 %v2417
      %v2572 = vpop.f32.mrf.mxu0
      %v2573 = vadd.f32 0.0, %v2572
      %v2574 = vpop.f32.mrf.mxu0
      %v2575 = vadd.f32 0.0, %v2574
      %2576 = vdwg.mxu0
      %2577 = vmatpush.bf16.msra.mxu0 %v2531
      %2578 = vmatpush.bf16.msra.mxu0 %v2530
      %2579 = vmatpush.bf16.msra.mxu0 %v2529
      %2580 = vmatpush.bf16.msra.mxu0 %v2528
      %2581 = vmatpush.bf16.msra.mxu0 %v2527
      %2582 = vmatpush.bf16.msra.mxu0 %v2526
      %2583 = vmatpush.bf16.msra.mxu0 %v2525
      %2584 = vmatpush.bf16.msra.mxu0 %v2524
      %2585 = vmatmul.bf16.gmra.mxu0 %v2412
      %v2586 = vpop.f32.mrf.mxu0
      %v2587 = vadd.f32 %v2558, %v2586
      %v2588 = vpop.f32.mrf.mxu0
      %v2589 = vadd.f32 %v2560, %v2588
      %2590 = vmatmul.bf16.gmra.mxu0 %v2414
      %v2591 = vpop.f32.mrf.mxu0
      %v2592 = vadd.f32 %v2563, %v2591
      %v2593 = vpop.f32.mrf.mxu0
      %v2594 = vadd.f32 %v2565, %v2593
      %2595 = vmatmul.bf16.gmra.mxu0 %v2416
      %v2596 = vpop.f32.mrf.mxu0
      %v2597 = vadd.f32 %v2568, %v2596
      %v2598 = vpop.f32.mrf.mxu0
      %v2599 = vadd.f32 %v2570, %v2598
      %2600 = vmatmul.bf16.gmra.mxu0 %v2418
      %v2601 = vpop.f32.mrf.mxu0
      %v2602 = vadd.f32 %v2573, %v2601
      %v2603 = vpop.f32.mrf.mxu0
      %v2604 = vadd.f32 %v2575, %v2603
      %2605 = vdwg.mxu0
      %v2606 = vadd.f32 %v2275, %v2587
      %v2607 = vadd.f32 %v2276, %v2589
      %v2608 = vadd.f32 %v2277, %v2592
      %v2609 = vadd.f32 %v2278, %v2594
      %v2610 = vadd.f32 %v2279, %v2597
      %v2611 = vadd.f32 %v2280, %v2599
      %v2612 = vadd.f32 %v2281, %v2602
      %v2613 = vadd.f32 %v2282, %v2604
      %v2614 = vld [vmem:[%s2063] sm:$0xfc]
      %v2615 = vld [vmem:[%s2063 + $0x8] sm:$0xfc]
      %v2616 = vld [vmem:[%s2063 + $0x10] sm:$0x3]
      %v2617 = vld [vmem:[%s2063 + $0x18] sm:$0x3]
      %v2618 = vld [vmem:[%s2063 + $0x20] sm:$0xfc]
      %v2619 = vld [vmem:[%s2063 + $0x28] sm:$0xfc]
      %v2620 = vld [vmem:[%s2063 + $0x30] sm:$0x3]
      %v2621 = vld [vmem:[%s2063 + $0x38] sm:$0x3]
      %v2622 = vld [vmem:[%s2063 + $0x40] sm:$0xfc]
      %v2623 = vld [vmem:[%s2063 + $0x48] sm:$0xfc]
      %v2624 = vld [vmem:[%s2063 + $0x50] sm:$0x3]
      %v2625 = vld [vmem:[%s2063 + $0x58] sm:$0x3]
      %v2626 = vld [vmem:[%s2063 + $0x60] sm:$0xfc]
      %v2627 = vld [vmem:[%s2063 + $0x68] sm:$0xfc]
      %v2628 = vld [vmem:[%s2063 + $0x70] sm:$0x3]
      %v2629 = vld [vmem:[%s2063 + $0x78] sm:$0x3]
      %v2630 = vld [vmem:[%s2063 + $0x80] sm:$0xfc]
      %v2631 = vld [vmem:[%s2063 + $0x88] sm:$0xfc]
      %v2632 = vld [vmem:[%s2063 + $0x90] sm:$0x3]
      %v2633 = vld [vmem:[%s2063 + $0x98] sm:$0x3]
      %v2634 = vld [vmem:[%s2063 + $0xa0] sm:$0xfc]
      %v2635 = vld [vmem:[%s2063 + $0xa8] sm:$0xfc]
      %v2636 = vld [vmem:[%s2063 + $0xb0] sm:$0x3]
      %v2637 = vld [vmem:[%s2063 + $0xb8] sm:$0x3]
      %v2638 = vld [vmem:[%s2063 + $0xc0] sm:$0xfc]
      %v2639 = vld [vmem:[%s2063 + $0xc8] sm:$0xfc]
      %v2640 = vld [vmem:[%s2063 + $0xd0] sm:$0x3]
      %v2641 = vld [vmem:[%s2063 + $0xd8] sm:$0x3]
      %v2642 = vld [vmem:[%s2063 + $0xe0] sm:$0xfc]
      %v2643 = vld [vmem:[%s2063 + $0xe8] sm:$0xfc]
      %v2644 = vld [vmem:[%s2063 + $0xf0] sm:$0x3]
      %v2645 = vld [vmem:[%s2063 + $0xf8] sm:$0x3]
      %v2678 = vrot.slane %v2614, 2
      %v2679 = vrot.slane %v2616, 2
      %v2680 = vsel %vm914, %v2678, %v2679
      %v2681 = vrot.slane %v2615, 2
      %v2682 = vrot.slane %v2617, 2
      %v2683 = vsel %vm914, %v2681, %v2682
      %v2684 = vrot.slane %v2618, 2
      %v2685 = vrot.slane %v2620, 2
      %v2686 = vsel %vm914, %v2684, %v2685
      %v2687 = vrot.slane %v2619, 2
      %v2688 = vrot.slane %v2621, 2
      %v2689 = vsel %vm914, %v2687, %v2688
      %v2690 = vrot.slane %v2622, 2
      %v2691 = vrot.slane %v2624, 2
      %v2692 = vsel %vm914, %v2690, %v2691
      %v2693 = vrot.slane %v2623, 2
      %v2694 = vrot.slane %v2625, 2
      %v2695 = vsel %vm914, %v2693, %v2694
      %v2696 = vrot.slane %v2626, 2
      %v2697 = vrot.slane %v2628, 2
      %v2698 = vsel %vm914, %v2696, %v2697
      %v2699 = vrot.slane %v2627, 2
      %v2700 = vrot.slane %v2629, 2
      %v2701 = vsel %vm914, %v2699, %v2700
      %v2702 = vrot.slane %v2630, 2
      %v2703 = vrot.slane %v2632, 2
      %v2704 = vsel %vm914, %v2702, %v2703
      %v2705 = vrot.slane %v2631, 2
      %v2706 = vrot.slane %v2633, 2
      %v2707 = vsel %vm914, %v2705, %v2706
      %v2708 = vrot.slane %v2634, 2
      %v2709 = vrot.slane %v2636, 2
      %v2710 = vsel %vm914, %v2708, %v2709
      %v2711 = vrot.slane %v2635, 2
      %v2712 = vrot.slane %v2637, 2
      %v2713 = vsel %vm914, %v2711, %v2712
      %v2714 = vrot.slane %v2638, 2
      %v2715 = vrot.slane %v2640, 2
      %v2716 = vsel %vm914, %v2714, %v2715
      %v2717 = vrot.slane %v2639, 2
      %v2718 = vrot.slane %v2641, 2
      %v2719 = vsel %vm914, %v2717, %v2718
      %v2720 = vrot.slane %v2642, 2
      %v2721 = vrot.slane %v2644, 2
      %v2722 = vsel %vm914, %v2720, %v2721
      %v2723 = vrot.slane %v2643, 2
      %v2724 = vrot.slane %v2645, 2
      %v2725 = vsel %vm914, %v2723, %v2724
      %v2742 = vpack.c.bf16 %v2686, %v2680
      %v2743 = vpack.c.bf16 %v2689, %v2683
      %v2744 = vpack.c.bf16 %v2698, %v2692
      %v2745 = vpack.c.bf16 %v2701, %v2695
      %v2746 = vpack.c.bf16 %v2710, %v2704
      %v2747 = vpack.c.bf16 %v2713, %v2707
      %v2748 = vpack.c.bf16 %v2722, %v2716
      %v2749 = vpack.c.bf16 %v2725, %v2719
      %s2750 = scalar_lea.vmem %s1, 1024
      %v2751 = vld [vmem:[%s2750] sm:$0xf]
      %v2752 = vld [vmem:[%s2750 + $0x4] sm:$0xf]
      %v2753 = vld [vmem:[%s2750 + $0x8] sm:$0xf]
      %v2754 = vld [vmem:[%s2750 + $0xc] sm:$0xf]
      %v2755 = vld [vmem:[%s2750 + $0x10] sm:$0xf]
      %v2756 = vld [vmem:[%s2750 + $0x14] sm:$0xf]
      %v2757 = vld [vmem:[%s2750 + $0x18] sm:$0xf]
      %v2758 = vld [vmem:[%s2750 + $0x1c] sm:$0xf]
      %v2759 = vld [vmem:[%s2750 + $0x20] sm:$0xf]
      %v2760 = vld [vmem:[%s2750 + $0x24] sm:$0xf]
      %v2761 = vld [vmem:[%s2750 + $0x28] sm:$0xf]
      %v2762 = vld [vmem:[%s2750 + $0x2c] sm:$0xf]
      %v2763 = vld [vmem:[%s2750 + $0x30] sm:$0xf]
      %v2764 = vld [vmem:[%s2750 + $0x34] sm:$0xf]
      %v2765 = vld [vmem:[%s2750 + $0x38] sm:$0xf]
      %v2766 = vld [vmem:[%s2750 + $0x3c] sm:$0xf]
      %v2767 = vld [vmem:[%s2750 + $0x40] sm:$0xf]
      %v2768 = vld [vmem:[%s2750 + $0x44] sm:$0xf]
      %v2769 = vld [vmem:[%s2750 + $0x48] sm:$0xf]
      %v2770 = vld [vmem:[%s2750 + $0x4c] sm:$0xf]
      %v2771 = vld [vmem:[%s2750 + $0x50] sm:$0xf]
      %v2772 = vld [vmem:[%s2750 + $0x54] sm:$0xf]
      %v2773 = vld [vmem:[%s2750 + $0x58] sm:$0xf]
      %v2774 = vld [vmem:[%s2750 + $0x5c] sm:$0xf]
      %v2775 = vld [vmem:[%s2750 + $0x60] sm:$0xf]
      %v2776 = vld [vmem:[%s2750 + $0x64] sm:$0xf]
      %v2777 = vld [vmem:[%s2750 + $0x68] sm:$0xf]
      %v2778 = vld [vmem:[%s2750 + $0x6c] sm:$0xf]
      %v2779 = vld [vmem:[%s2750 + $0x70] sm:$0xf]
      %v2780 = vld [vmem:[%s2750 + $0x74] sm:$0xf]
      %v2781 = vld [vmem:[%s2750 + $0x78] sm:$0xf]
      %v2782 = vld [vmem:[%s2750 + $0x7c] sm:$0xf]
      %v2815 = vunpack.c.l.b16 %v2751
      %v2816 = vunpack.c.l.b16 %v2752
      %v2817 = vunpack.c.l.b16 %v2753
      %v2818 = vunpack.c.l.b16 %v2754
      %v2819 = vunpack.c.l.b16 %v2755
      %v2820 = vunpack.c.l.b16 %v2756
      %v2821 = vunpack.c.l.b16 %v2757
      %v2822 = vunpack.c.l.b16 %v2758
      %v2823 = vunpack.c.l.b16 %v2759
      %v2824 = vunpack.c.l.b16 %v2760
      %v2825 = vunpack.c.l.b16 %v2761
      %v2826 = vunpack.c.l.b16 %v2762
      %v2827 = vunpack.c.l.b16 %v2763
      %v2828 = vunpack.c.l.b16 %v2764
      %v2829 = vunpack.c.l.b16 %v2765
      %v2830 = vunpack.c.l.b16 %v2766
      %v2831 = vunpack.c.l.b16 %v2767
      %v2832 = vunpack.c.l.b16 %v2768
      %v2833 = vunpack.c.l.b16 %v2769
      %v2834 = vunpack.c.l.b16 %v2770
      %v2835 = vunpack.c.l.b16 %v2771
      %v2836 = vunpack.c.l.b16 %v2772
      %v2837 = vunpack.c.l.b16 %v2773
      %v2838 = vunpack.c.l.b16 %v2774
      %v2839 = vunpack.c.l.b16 %v2775
      %v2840 = vunpack.c.l.b16 %v2776
      %v2841 = vunpack.c.l.b16 %v2777
      %v2842 = vunpack.c.l.b16 %v2778
      %v2843 = vunpack.c.l.b16 %v2779
      %v2844 = vunpack.c.l.b16 %v2780
      %v2845 = vunpack.c.l.b16 %v2781
      %v2846 = vunpack.c.l.b16 %v2782
      %v2847 = vpack.c.b16 %v2816, %v2815
      %v2848 = vpack.c.b16 %v2818, %v2817
      %v2849 = vpack.c.b16 %v2820, %v2819
      %v2850 = vpack.c.b16 %v2822, %v2821
      %v2851 = vpack.c.b16 %v2824, %v2823
      %v2852 = vpack.c.b16 %v2826, %v2825
      %v2853 = vpack.c.b16 %v2828, %v2827
      %v2854 = vpack.c.b16 %v2830, %v2829
      %v2855 = vpack.c.b16 %v2832, %v2831
      %v2856 = vpack.c.b16 %v2834, %v2833
      %v2857 = vpack.c.b16 %v2836, %v2835
      %v2858 = vpack.c.b16 %v2838, %v2837
      %v2859 = vpack.c.b16 %v2840, %v2839
      %v2860 = vpack.c.b16 %v2842, %v2841
      %v2861 = vpack.c.b16 %v2844, %v2843
      %v2862 = vpack.c.b16 %v2846, %v2845
      %2879 = vmatpush.bf16.msra.mxu0 %v2854
      %2880 = vmatpush.bf16.msra.mxu0 %v2853
      %2881 = vmatpush.bf16.msra.mxu0 %v2852
      %2882 = vmatpush.bf16.msra.mxu0 %v2851
      %2883 = vmatpush.bf16.msra.mxu0 %v2850
      %2884 = vmatpush.bf16.msra.mxu0 %v2849
      %2885 = vmatpush.bf16.msra.mxu0 %v2848
      %2886 = vmatpush.bf16.msra.mxu0 %v2847
      %2887 = vmatmul.bf16.gmra.mxu0 %v2742
      %v2888 = vpop.f32.mrf.mxu0
      %v2889 = vadd.f32 0.0, %v2888
      %v2890 = vpop.f32.mrf.mxu0
      %v2891 = vadd.f32 0.0, %v2890
      %2892 = vmatmul.bf16.gmra.mxu0 %v2744
      %v2893 = vpop.f32.mrf.mxu0
      %v2894 = vadd.f32 0.0, %v2893
      %v2895 = vpop.f32.mrf.mxu0
      %v2896 = vadd.f32 0.0, %v2895
      %2897 = vmatmul.bf16.gmra.mxu0 %v2746
      %v2898 = vpop.f32.mrf.mxu0
      %v2899 = vadd.f32 0.0, %v2898
      %v2900 = vpop.f32.mrf.mxu0
      %v2901 = vadd.f32 0.0, %v2900
      %2902 = vmatmul.bf16.gmra.mxu0 %v2748
      %v2903 = vpop.f32.mrf.mxu0
      %v2904 = vadd.f32 0.0, %v2903
      %v2905 = vpop.f32.mrf.mxu0
      %v2906 = vadd.f32 0.0, %v2905
      %2907 = vdwg.mxu0
      %2908 = vmatpush.bf16.msra.mxu0 %v2862
      %2909 = vmatpush.bf16.msra.mxu0 %v2861
      %2910 = vmatpush.bf16.msra.mxu0 %v2860
      %2911 = vmatpush.bf16.msra.mxu0 %v2859
      %2912 = vmatpush.bf16.msra.mxu0 %v2858
      %2913 = vmatpush.bf16.msra.mxu0 %v2857
      %2914 = vmatpush.bf16.msra.mxu0 %v2856
      %2915 = vmatpush.bf16.msra.mxu0 %v2855
      %2916 = vmatmul.bf16.gmra.mxu0 %v2743
      %v2917 = vpop.f32.mrf.mxu0
      %v2918 = vadd.f32 %v2889, %v2917
      %v2919 = vpop.f32.mrf.mxu0
      %v2920 = vadd.f32 %v2891, %v2919
      %2921 = vmatmul.bf16.gmra.mxu0 %v2745
      %v2922 = vpop.f32.mrf.mxu0
      %v2923 = vadd.f32 %v2894, %v2922
      %v2924 = vpop.f32.mrf.mxu0
      %v2925 = vadd.f32 %v2896, %v2924
      %2926 = vmatmul.bf16.gmra.mxu0 %v2747
      %v2927 = vpop.f32.mrf.mxu0
      %v2928 = vadd.f32 %v2899, %v2927
      %v2929 = vpop.f32.mrf.mxu0
      %v2930 = vadd.f32 %v2901, %v2929
      %2931 = vmatmul.bf16.gmra.mxu0 %v2749
      %v2932 = vpop.f32.mrf.mxu0
      %v2933 = vadd.f32 %v2904, %v2932
      %v2934 = vpop.f32.mrf.mxu0
      %v2935 = vadd.f32 %v2906, %v2934
      %2936 = vdwg.mxu0
      %v2937 = vadd.f32 %v2606, %v2918
      %v2938 = vadd.f32 %v2607, %v2920
      %v2939 = vadd.f32 %v2608, %v2923
      %v2940 = vadd.f32 %v2609, %v2925
      %v2941 = vadd.f32 %v2610, %v2928
      %v2942 = vadd.f32 %v2611, %v2930
      %v2943 = vadd.f32 %v2612, %v2933
      %v2944 = vadd.f32 %v2613, %v2935
      %v2945 = vld [vmem:[%s2] sm:$0x1]
      %v2947 = vperm.slane %v2945, 0
      %v2949 = vadd.f32 %v2937, %v2947
      %v2950 = vadd.f32 %v2938, %v2947
      %v2951 = vadd.f32 %v2939, %v2947
      %v2952 = vadd.f32 %v2940, %v2947
      %v2953 = vadd.f32 %v2941, %v2947
      %v2954 = vadd.f32 %v2942, %v2947
      %v2955 = vadd.f32 %v2943, %v2947
      %v2956 = vadd.f32 %v2944, %v2947
      %v2957 = vmax.f32 %v2949, 0.0
      %v2958 = vmax.f32 %v2950, 0.0
      %v2959 = vmax.f32 %v2951, 0.0
      %v2960 = vmax.f32 %v2952, 0.0
      %v2961 = vmax.f32 %v2953, 0.0
      %v2962 = vmax.f32 %v2954, 0.0
      %v2963 = vmax.f32 %v2955, 0.0
      %v2964 = vmax.f32 %v2956, 0.0
      %v2965 = vpack.c.bf16 %v2957, %v2957
      %v2966 = vpack.c.bf16 %v2958, %v2958
      %v2967 = vpack.c.bf16 %v2959, %v2959
      %v2968 = vpack.c.bf16 %v2960, %v2960
      %v2969 = vpack.c.bf16 %v2961, %v2961
      %v2970 = vpack.c.bf16 %v2962, %v2962
      %v2971 = vpack.c.bf16 %v2963, %v2963
      %v2972 = vpack.c.bf16 %v2964, %v2964
      %2973 = vst [vmem:[%s170] sm:$0xf] %v2965
      %2974 = vst [vmem:[%s170 + $0x4] sm:$0xf] %v2966
      %2975 = vst [vmem:[%s170 + $0x8] sm:$0xf] %v2967
      %2976 = vst [vmem:[%s170 + $0xc] sm:$0xf] %v2968
      %2977 = vst [vmem:[%s170 + $0x10] sm:$0xf] %v2969
      %2978 = vst [vmem:[%s170 + $0x14] sm:$0xf] %v2970
      %2979 = vst [vmem:[%s170 + $0x18] sm:$0xf] %v2971
      %2980 = vst [vmem:[%s170 + $0x1c] sm:$0xf] %v2972
      %p2981 = scmp.lt.s32.totalorder %s14, 1
      %s2982 = scalar_select %p2981, %s14, 1
      %s2983 = smul.addr %s2982, 8
      %s2984 = smul.addr %s2983, 4
      %s2985 = scalar_lea.vmem %s3, %s2984
      // Predicated region
      $region33: #{model_forward.12} parent=31 // pred_check
        %p2986 = pneg %p100
      $region34: #{model_forward.12} parent=31 // pred_check_branch
        %2988 = sbr.rel (%p2986) target = $region36
      $region35: #{model_forward.12} parent=31 // pred_region
        _
      $region36: #{model_forward.12} parent=31 // pred_fallthru
        _
    $region32: #{model_forward.12} parent=5 // pred_fallthru
      _
    %p2989 = scmp.le.s32.totalorder 2, %s9
    // Predicated region
    $region37: #{model_forward.12} parent=5 // pred_check
      %p2990 = pneg %p2989
    $region38: #{model_forward.12} parent=5 // pred_check_branch
      %2992 = sbr.rel (%p2990) target = $region40
    $region39: #{model_forward.12} parent=5 // pred_region
      %s2993 = ssub.s32 %s9, 2
      // Predicated region
      $region41: #{model_forward.12} parent=39 // pred_check
        %p2994 = pneg %p106
      $region42: #{model_forward.12} parent=39 // pred_check_branch
        %2996 = sbr.rel (%p2994) target = $region44
      $region43: #{model_forward.12} parent=39 // pred_region
        %p2997 = scmp.lt.s32.totalorder %s15, 1
        %s2998 = scalar_select %p2997, %s15, 1
        %s2999 = smul.addr %s2998, 8
        %s3000 = smul.addr %s2999, 4
        %s3001 = scalar_lea.vmem %s3, %s3000
      $region44: #{model_forward.12} parent=39 // pred_fallthru
        _
    $region40: #{model_forward.12} parent=5 // pred_fallthru
      _
  $region6: #{model_forward.12} parent=0 // loop_footer
    %s13 = sadd.s32 1, %s9
  $region7: #{model_forward.12} parent=0 // loop_footer_branch
    %8 = sbr.rel target = $region3
  $region8: #{model_forward.12} parent=0 // loop_exit
    _

</llo_original>
